<compile_context>
chip_gen: v7x
topology: tpu7x:2x2x1
jax: 0.10.0
libtpu: 0.0.40
codegen_flags: <defaults>
</compile_context>

<pallas_src>
import functools

import numpy as np

import jax
import jax.numpy as jnp
from jax.experimental import pallas as pl
from jax.experimental.pallas import tpu as pltpu


# ----------------------------------------------------------------------------
# Single fused Pallas kernel
# ----------------------------------------------------------------------------
def _encoder_fused_kernel(p0_ref, w0_ref, b0_ref,
                          s1_ref, w1_ref, b1_ref,
                          s2_ref, w2_ref, b2_ref,
                          s3_ref, w3_ref, b3_ref,
                          wfc_ref, bfc_ref, eps_ref,
                          mu_ref, logvar_ref, rp_ref):
    def leaky(v):                       # nn.LeakyReLU() default slope = 0.01
        return jnp.where(v >= 0.0, v, 0.01 * v)

    # --- conv layer 0: patches were built in the wrapper from the raw input ---
    x = leaky(jnp.dot(p0_ref[...], w0_ref[...],
                      preferred_element_type=jnp.float32) + b0_ref[...])

    # --- conv layers 1..3: gather-as-matmul per 4x4 tap, accumulate on MXU ----
    def conv_layer(x, s_ref, w_ref, b_ref):
        m_out = s_ref.shape[1]
        c_out = w_ref.shape[2]
        acc = jnp.zeros((m_out, c_out), jnp.float32) + b_ref[...]
        for p in range(16):             # 16 taps, unrolled at trace time
            g = jnp.dot(s_ref[p], x, preferred_element_type=jnp.float32)
            acc = acc + jnp.dot(g, w_ref[p], preferred_element_type=jnp.float32)
        return leaky(acc)

    x = conv_layer(x, s1_ref, w1_ref, b1_ref)   # (B*16, 32)
    x = conv_layer(x, s2_ref, w2_ref, b2_ref)   # (B*4,  64)
    x = conv_layer(x, s3_ref, w3_ref, b3_ref)   # (B,   128)  spatial == 1x1

    # --- merged FC heads (mean | logvar) + reparametrization epilogue --------
    head = jnp.dot(x, wfc_ref[...], preferred_element_type=jnp.float32) + bfc_ref[...]
    latent = mu_ref.shape[1]
    mu = head[:, 0:latent]
    logvar = head[:, latent:2 * latent]
    rp = mu + eps_ref[...] * jnp.exp(0.5 * logvar)

    mu_ref[...] = mu
    logvar_ref[...] = logvar
    rp_ref[...] = rp


# ----------------------------------------------------------------------------
# Host-side glue (runs once / outside the hot path)
# ----------------------------------------------------------------------------
def _im2col(x, kh=4, kw=4, stride=2, pad=1):
    """x: (B, C, H, W) -> (B*oh*ow, C*kh*kw); column order (ci, i, j).
    Only used for layer 0 on the tiny raw input."""
    B, C, H, W = x.shape
    xp = jnp.pad(x, ((0, 0), (0, 0), (pad, pad), (pad, pad)))
    oh = (H + 2 * pad - kh) // stride + 1
    ow = (W + 2 * pad - kw) // stride + 1
    cols = []
    for i in range(kh):
        for j in range(kw):
            cols.append(xp[:, :, i:i + stride * oh:stride, j:j + stride * ow:stride])
    patches = jnp.stack(cols, axis=2).reshape(B, C, kh, kw, oh, ow)
    patches = patches.transpose(0, 4, 5, 1, 2, 3).reshape(B * oh * ow, C * kh * kw)
    return patches


def _build_tap_selection(B, H, W, oh, ow, k=4, stride=2, pad=1):
    """(k*k, B*oh*ow, B*H*W) 0/1 row-gather matrices, one per conv tap.
    Row ordering of activations is (b, y, x); channels are the lane dim."""
    S = np.zeros((k * k, B * oh * ow, B * H * W), np.float32)
    for i in range(k):
        for j in range(k):
            p = i * k + j
            for b in range(B):
                for oy in range(oh):
                    for ox in range(ow):
                        iy = stride * oy + i - pad
                        ix = stride * ox + j - pad
                        if 0 <= iy < H and 0 <= ix < W:
                            S[p, (b * oh + oy) * ow + ox, (b * H + iy) * W + ix] = 1.0
    return jnp.asarray(S)


def build_encoder_constants(batch, in_hw=16, n_layers=4):
    """Gather matrices for conv layers 1..n_layers-1 (layer-0 im2col is done on
    the raw HBM input in the wrapper)."""
    consts = []
    H = in_hw // 2                      # spatial size of layer-0 output
    for _ in range(1, n_layers):
        oh = H // 2
        consts.append(_build_tap_selection(batch, H, H, oh, oh))
        H = oh
    return tuple(consts)


def init_encoder_params(key, in_channels=1, hidden_dims=(16, 32, 64, 128), latent_dim=2):
    """PyTorch-layout parameters (conv: (C_out, C_in, 4, 4); fc: (latent, fan_in))."""
    params = {}
    dims = [in_channels] + list(hidden_dims)
    keys = jax.random.split(key, 2 * len(hidden_dims) + 4)
    k_i = 0
    for li in range(len(hidden_dims)):
        scale = float(1.0 / np.sqrt(dims[li] * 16))
        params[f"conv{li}_w"] = scale * jax.random.normal(
            keys[k_i], (dims[li + 1], dims[li], 4, 4), jnp.float32); k_i += 1
        params[f"conv{li}_b"] = scale * jax.random.normal(
            keys[k_i], (dims[li + 1],), jnp.float32); k_i += 1
    fscale = float(1.0 / np.sqrt(hidden_dims[-1]))
    params["fc_mean_w"] = fscale * jax.random.normal(keys[k_i], (latent_dim, hidden_dims[-1]), jnp.float32); k_i += 1
    params["fc_mean_b"] = fscale * jax.random.normal(keys[k_i], (latent_dim,), jnp.float32); k_i += 1
    params["fc_logvar_w"] = fscale * jax.random.normal(keys[k_i], (latent_dim, hidden_dims[-1]), jnp.float32); k_i += 1
    params["fc_logvar_b"] = fscale * jax.random.normal(keys[k_i], (latent_dim,), jnp.float32); k_i += 1
    return params


def prepare_params(params, n_layers=4):
    """Pre-flatten weights once into the layouts the fused kernel consumes."""
    prep = {}
    w0 = params["conv0_w"]
    prep["w0"] = w0.reshape(w0.shape[0], -1).T               # (C_in*16, C0)
    prep["b0"] = params["conv0_b"].reshape(1, -1)
    for li in range(1, n_layers):
        w = params[f"conv{li}_w"]                            # (C_out, C_in, 4, 4)
        c_out, c_in = w.shape[0], w.shape[1]
        prep[f"w{li}"] = w.transpose(2, 3, 1, 0).reshape(16, c_in, c_out)
        prep[f"b{li}"] = params[f"conv{li}_b"].reshape(1, -1)
    prep["wfc"] = jnp.concatenate(                           # (fan_in, 2*latent)
        [params["fc_mean_w"].T, params["fc_logvar_w"].T], axis=1)
    prep["bfc"] = jnp.concatenate(
        [params["fc_mean_b"], params["fc_logvar_b"]]).reshape(1, -1)
    return prep


# ----------------------------------------------------------------------------
# Forward pass (one pallas_call)
# ----------------------------------------------------------------------------
def encoder_forward(prep, consts, x, eps, latent_dim=2, model_name="VAE"):
    """x: (B, C_in, H, W) NCHW f32; eps: (B, latent_dim) f32."""
    B = x.shape[0]
    patches0 = _im2col(x)                                    # (B*(H/2)^2, C_in*16)
    s1, s2, s3 = consts

    args = (patches0, prep["w0"], prep["b0"],
            s1, prep["w1"], prep["b1"],
            s2, prep["w2"], prep["b2"],
            s3, prep["w3"], prep["b3"],
            prep["wfc"], prep["bfc"], eps)

    # Advisory cost estimate for XLA scheduling around the fused custom call.
    flops = 2 * patches0.shape[0] * patches0.shape[1] * prep["w0"].shape[1]
    for s, w in ((s1, prep["w1"]), (s2, prep["w2"]), (s3, prep["w3"])):
        flops += 2 * 16 * (s.shape[1] * s.shape[2] * w.shape[1]
                           + s.shape[1] * w.shape[1] * w.shape[2])
    flops += 2 * B * prep["wfc"].shape[0] * prep["wfc"].shape[1]
    bytes_accessed = sum(int(a.size) * a.dtype.itemsize for a in args) \
        + 3 * B * latent_dim * 4

    vmem = pl.BlockSpec(memory_space=pltpu.MemorySpace.VMEM)
    out_sds = jax.ShapeDtypeStruct((B, latent_dim), jnp.float32)

    mu, logvar, rp = pl.pallas_call(
        _encoder_fused_kernel,
        out_shape=(out_sds, out_sds, out_sds),
        in_specs=[vmem] * len(args),
        out_specs=(vmem, vmem, vmem),
        cost_estimate=pl.CostEstimate(
            flops=int(flops),
            transcendentals=int(B * latent_dim),
            bytes_accessed=int(bytes_accessed)),
    )(*args)

    if model_name == "VAE":
        return mu, logvar, rp
    elif model_name == "AE":
        return mu
    raise ValueError(f"unknown model_name: {model_name}")


# ----------------------------------------------------------------------------
if __name__ == "__main__":
    B, C_IN, H, W = 2, 1, 16, 16
    HIDDEN = (16, 32, 64, 128)
    LATENT = 2

    key = jax.random.PRNGKey(0)
    k_params, k_x, k_eps = jax.random.split(key, 3)

    params = init_encoder_params(k_params, C_IN, HIDDEN, LATENT)
    prep = prepare_params(params, n_layers=len(HIDDEN))
    consts = build_encoder_constants(B, in_hw=H, n_layers=len(HIDDEN))

    x = jax.random.normal(k_x, (B, C_IN, H, W), jnp.float32)
    # TODO(synk): eps is an explicit input (torch.randn_like sampling left to the caller).
    eps = jax.random.normal(k_eps, (B, LATENT), jnp.float32)

    fwd = jax.jit(functools.partial(encoder_forward, latent_dim=LATENT, model_name="VAE"))
    mu, logvar, rp = fwd(prep, consts, x, eps)
    jax.block_until_ready((mu, logvar, rp))

    # Pure-JAX reference (lax.conv) to guard numerical correctness.
    @jax.jit
    def ref_forward(params, x, eps):
        h = x
        for li in range(len(HIDDEN)):
            h = jax.lax.conv_general_dilated(
                h, params[f"conv{li}_w"], window_strides=(2, 2),
                padding=((1, 1), (1, 1)),
                dimension_numbers=("NCHW", "OIHW", "NCHW"))
            h = h + params[f"conv{li}_b"][None, :, None, None]
            h = jnp.where(h >= 0, h, 0.01 * h)
        h = h.reshape(h.shape[0], -1)
        mu_r = h @ params["fc_mean_w"].T + params["fc_mean_b"]
        lv_r = h @ params["fc_logvar_w"].T + params["fc_logvar_b"]
        rp_r = mu_r + eps * jnp.exp(0.5 * lv_r)
        return mu_r, lv_r, rp_r

    mu_r, lv_r, rp_r = ref_forward(params, x, eps)

    assert mu.shape == (B, LATENT) and logvar.shape == (B, LATENT) and rp.shape == (B, LATENT)
    assert bool(jnp.all(jnp.isfinite(mu))) and bool(jnp.all(jnp.isfinite(logvar))) and bool(jnp.all(jnp.isfinite(rp)))
    assert bool(jnp.allclose(mu, mu_r, atol=1e-3, rtol=1e-3))
    assert bool(jnp.allclose(logvar, lv_r, atol=1e-3, rtol=1e-3))
    assert bool(jnp.allclose(rp, rp_r, atol=1e-3, rtol=1e-3))
    print("KERNEL_OK")
</pallas_src>

<mosaic_0001>
module attributes {stable_mosaic.version = 11 : i64} {
  func.func @_encoder_fused_kernel(%arg0: memref<128x16xf32, #tpu.memory_space<vmem>>, %arg1: memref<16x16xf32, #tpu.memory_space<vmem>>, %arg2: memref<1x16xf32, #tpu.memory_space<vmem>>, %arg3: memref<16x32x128xf32, #tpu.memory_space<vmem>>, %arg4: memref<16x16x32xf32, #tpu.memory_space<vmem>>, %arg5: memref<1x32xf32, #tpu.memory_space<vmem>>, %arg6: memref<16x8x32xf32, #tpu.memory_space<vmem>>, %arg7: memref<16x32x64xf32, #tpu.memory_space<vmem>>, %arg8: memref<1x64xf32, #tpu.memory_space<vmem>>, %arg9: memref<16x2x8xf32, #tpu.memory_space<vmem>>, %arg10: memref<16x64x128xf32, #tpu.memory_space<vmem>>, %arg11: memref<1x128xf32, #tpu.memory_space<vmem>>, %arg12: memref<128x4xf32, #tpu.memory_space<vmem>>, %arg13: memref<1x4xf32, #tpu.memory_space<vmem>>, %arg14: memref<2x2xf32, #tpu.memory_space<vmem>>, %arg15: memref<2x2xf32, #tpu.memory_space<vmem>>, %arg16: memref<2x2xf32, #tpu.memory_space<vmem>>, %arg17: memref<2x2xf32, #tpu.memory_space<vmem>>) attributes {dimension_semantics = [], scalar_prefetch = 0 : i64, scratch_operands = 0 : i64, tpu.core_type = #tpu.core_type<tc>} {
    %c0 = arith.constant 0 : index
    %c0_0 = arith.constant 0 : index
    %0 = vector.load %arg0[%c0, %c0_0] : memref<128x16xf32, #tpu.memory_space<vmem>>, vector<128x16xf32>
    %c0_1 = arith.constant 0 : index
    %c0_2 = arith.constant 0 : index
    %1 = vector.load %arg1[%c0_1, %c0_2] : memref<16x16xf32, #tpu.memory_space<vmem>>, vector<16x16xf32>
    %cst = arith.constant dense<0.000000e+00> : vector<128x16xf32>
    %2 = tpu.matmul %0, %1, %cst {dimension_numbers = #tpu.dot_dimension_numbers<[1], [0], [0], [1], [0, 0, 1, 1], [], []>} : vector<128x16xf32>, vector<16x16xf32>, vector<128x16xf32> -> vector<128x16xf32>
    %c0_3 = arith.constant 0 : index
    %c0_4 = arith.constant 0 : index
    %3 = vector.load %arg2[%c0_3, %c0_4] : memref<1x16xf32, #tpu.memory_space<vmem>>, vector<1x16xf32>
    %4 = vector.broadcast %3 : vector<1x16xf32> to vector<128x16xf32>
    %5 = arith.addf %2, %4 : vector<128x16xf32>
    %cst_5 = arith.constant 0.000000e+00 : f32
    %6 = vector.broadcast %cst_5 : f32 to vector<128x16xf32>
    %7 = arith.cmpf oge, %5, %6 : vector<128x16xf32>
    %cst_6 = arith.constant 0.00999999977 : f32
    %8 = vector.broadcast %cst_6 : f32 to vector<128x16xf32>
    %9 = arith.mulf %8, %5 : vector<128x16xf32>
    %10 = arith.select %7, %5, %9 : vector<128x16xi1>, vector<128x16xf32>
    %cst_7 = arith.constant 0.000000e+00 : f32
    %11 = vector.broadcast %cst_7 : f32 to vector<32x32xf32>
    %c0_8 = arith.constant 0 : index
    %c0_9 = arith.constant 0 : index
    %12 = vector.load %arg5[%c0_8, %c0_9] : memref<1x32xf32, #tpu.memory_space<vmem>>, vector<1x32xf32>
    %13 = vector.broadcast %12 : vector<1x32xf32> to vector<32x32xf32>
    %14 = arith.addf %11, %13 : vector<32x32xf32>
    %c0_10 = arith.constant 0 : index
    %c0_11 = arith.constant 0 : index
    %c0_12 = arith.constant 0 : index
    %15 = vector.load %arg3[%c0_10, %c0_11, %c0_12] : memref<16x32x128xf32, #tpu.memory_space<vmem>>, vector<1x32x128xf32>
    %16 = vector.shape_cast %15 : vector<1x32x128xf32> to vector<32x128xf32>
    %cst_13 = arith.constant dense<0.000000e+00> : vector<32x16xf32>
    %17 = tpu.matmul %16, %10, %cst_13 {dimension_numbers = #tpu.dot_dimension_numbers<[1], [0], [0], [1], [0, 0, 1, 1], [], []>} : vector<32x128xf32>, vector<128x16xf32>, vector<32x16xf32> -> vector<32x16xf32>
    %c0_14 = arith.constant 0 : index
    %c0_15 = arith.constant 0 : index
    %c0_16 = arith.constant 0 : index
    %18 = vector.load %arg4[%c0_14, %c0_15, %c0_16] : memref<16x16x32xf32, #tpu.memory_space<vmem>>, vector<1x16x32xf32>
    %19 = vector.shape_cast %18 : vector<1x16x32xf32> to vector<16x32xf32>
    %cst_17 = arith.constant dense<0.000000e+00> : vector<32x32xf32>
    %20 = tpu.matmul %17, %19, %cst_17 {dimension_numbers = #tpu.dot_dimension_numbers<[1], [0], [0], [1], [0, 0, 1, 1], [], []>} : vector<32x16xf32>, vector<16x32xf32>, vector<32x32xf32> -> vector<32x32xf32>
    %21 = arith.addf %14, %20 : vector<32x32xf32>
    %c1 = arith.constant 1 : index
    %c0_18 = arith.constant 0 : index
    %c0_19 = arith.constant 0 : index
    %22 = vector.load %arg3[%c1, %c0_18, %c0_19] : memref<16x32x128xf32, #tpu.memory_space<vmem>>, vector<1x32x128xf32>
    %23 = vector.shape_cast %22 : vector<1x32x128xf32> to vector<32x128xf32>
    %cst_20 = arith.constant dense<0.000000e+00> : vector<32x16xf32>
    %24 = tpu.matmul %23, %10, %cst_20 {dimension_numbers = #tpu.dot_dimension_numbers<[1], [0], [0], [1], [0, 0, 1, 1], [], []>} : vector<32x128xf32>, vector<128x16xf32>, vector<32x16xf32> -> vector<32x16xf32>
    %c1_21 = arith.constant 1 : index
    %c0_22 = arith.constant 0 : index
    %c0_23 = arith.constant 0 : index
    %25 = vector.load %arg4[%c1_21, %c0_22, %c0_23] : memref<16x16x32xf32, #tpu.memory_space<vmem>>, vector<1x16x32xf32>
    %26 = vector.shape_cast %25 : vector<1x16x32xf32> to vector<16x32xf32>
    %cst_24 = arith.constant dense<0.000000e+00> : vector<32x32xf32>
    %27 = tpu.matmul %24, %26, %cst_24 {dimension_numbers = #tpu.dot_dimension_numbers<[1], [0], [0], [1], [0, 0, 1, 1], [], []>} : vector<32x16xf32>, vector<16x32xf32>, vector<32x32xf32> -> vector<32x32xf32>
    %28 = arith.addf %21, %27 : vector<32x32xf32>
    %c2 = arith.constant 2 : index
    %c0_25 = arith.constant 0 : index
    %c0_26 = arith.constant 0 : index
    %29 = vector.load %arg3[%c2, %c0_25, %c0_26] : memref<16x32x128xf32, #tpu.memory_space<vmem>>, vector<1x32x128xf32>
    %30 = vector.shape_cast %29 : vector<1x32x128xf32> to vector<32x128xf32>
    %cst_27 = arith.constant dense<0.000000e+00> : vector<32x16xf32>
    %31 = tpu.matmul %30, %10, %cst_27 {dimension_numbers = #tpu.dot_dimension_numbers<[1], [0], [0], [1], [0, 0, 1, 1], [], []>} : vector<32x128xf32>, vector<128x16xf32>, vector<32x16xf32> -> vector<32x16xf32>
    %c2_28 = arith.constant 2 : index
    %c0_29 = arith.constant 0 : index
    %c0_30 = arith.constant 0 : index
    %32 = vector.load %arg4[%c2_28, %c0_29, %c0_30] : memref<16x16x32xf32, #tpu.memory_space<vmem>>, vector<1x16x32xf32>
    %33 = vector.shape_cast %32 : vector<1x16x32xf32> to vector<16x32xf32>
    %cst_31 = arith.constant dense<0.000000e+00> : vector<32x32xf32>
    %34 = tpu.matmul %31, %33, %cst_31 {dimension_numbers = #tpu.dot_dimension_numbers<[1], [0], [0], [1], [0, 0, 1, 1], [], []>} : vector<32x16xf32>, vector<16x32xf32>, vector<32x32xf32> -> vector<32x32xf32>
    %35 = arith.addf %28, %34 : vector<32x32xf32>
    %c3 = arith.constant 3 : index
    %c0_32 = arith.constant 0 : index
    %c0_33 = arith.constant 0 : index
    %36 = vector.load %arg3[%c3, %c0_32, %c0_33] : memref<16x32x128xf32, #tpu.memory_space<vmem>>, vector<1x32x128xf32>
    %37 = vector.shape_cast %36 : vector<1x32x128xf32> to vector<32x128xf32>
    %cst_34 = arith.constant dense<0.000000e+00> : vector<32x16xf32>
    %38 = tpu.matmul %37, %10, %cst_34 {dimension_numbers = #tpu.dot_dimension_numbers<[1], [0], [0], [1], [0, 0, 1, 1], [], []>} : vector<32x128xf32>, vector<128x16xf32>, vector<32x16xf32> -> vector<32x16xf32>
    %c3_35 = arith.constant 3 : index
    %c0_36 = arith.constant 0 : index
    %c0_37 = arith.constant 0 : index
    %39 = vector.load %arg4[%c3_35, %c0_36, %c0_37] : memref<16x16x32xf32, #tpu.memory_space<vmem>>, vector<1x16x32xf32>
    %40 = vector.shape_cast %39 : vector<1x16x32xf32> to vector<16x32xf32>
    %cst_38 = arith.constant dense<0.000000e+00> : vector<32x32xf32>
    %41 = tpu.matmul %38, %40, %cst_38 {dimension_numbers = #tpu.dot_dimension_numbers<[1], [0], [0], [1], [0, 0, 1, 1], [], []>} : vector<32x16xf32>, vector<16x32xf32>, vector<32x32xf32> -> vector<32x32xf32>
    %42 = arith.addf %35, %41 : vector<32x32xf32>
    %c4 = arith.constant 4 : index
    %c0_39 = arith.constant 0 : index
    %c0_40 = arith.constant 0 : index
    %43 = vector.load %arg3[%c4, %c0_39, %c0_40] : memref<16x32x128xf32, #tpu.memory_space<vmem>>, vector<1x32x128xf32>
    %44 = vector.shape_cast %43 : vector<1x32x128xf32> to vector<32x128xf32>
    %cst_41 = arith.constant dense<0.000000e+00> : vector<32x16xf32>
    %45 = tpu.matmul %44, %10, %cst_41 {dimension_numbers = #tpu.dot_dimension_numbers<[1], [0], [0], [1], [0, 0, 1, 1], [], []>} : vector<32x128xf32>, vector<128x16xf32>, vector<32x16xf32> -> vector<32x16xf32>
    %c4_42 = arith.constant 4 : index
    %c0_43 = arith.constant 0 : index
    %c0_44 = arith.constant 0 : index
    %46 = vector.load %arg4[%c4_42, %c0_43, %c0_44] : memref<16x16x32xf32, #tpu.memory_space<vmem>>, vector<1x16x32xf32>
    %47 = vector.shape_cast %46 : vector<1x16x32xf32> to vector<16x32xf32>
    %cst_45 = arith.constant dense<0.000000e+00> : vector<32x32xf32>
    %48 = tpu.matmul %45, %47, %cst_45 {dimension_numbers = #tpu.dot_dimension_numbers<[1], [0], [0], [1], [0, 0, 1, 1], [], []>} : vector<32x16xf32>, vector<16x32xf32>, vector<32x32xf32> -> vector<32x32xf32>
    %49 = arith.addf %42, %48 : vector<32x32xf32>
    %c5 = arith.constant 5 : index
    %c0_46 = arith.constant 0 : index
    %c0_47 = arith.constant 0 : index
    %50 = vector.load %arg3[%c5, %c0_46, %c0_47] : memref<16x32x128xf32, #tpu.memory_space<vmem>>, vector<1x32x128xf32>
    %51 = vector.shape_cast %50 : vector<1x32x128xf32> to vector<32x128xf32>
    %cst_48 = arith.constant dense<0.000000e+00> : vector<32x16xf32>
    %52 = tpu.matmul %51, %10, %cst_48 {dimension_numbers = #tpu.dot_dimension_numbers<[1], [0], [0], [1], [0, 0, 1, 1], [], []>} : vector<32x128xf32>, vector<128x16xf32>, vector<32x16xf32> -> vector<32x16xf32>
    %c5_49 = arith.constant 5 : index
    %c0_50 = arith.constant 0 : index
    %c0_51 = arith.constant 0 : index
    %53 = vector.load %arg4[%c5_49, %c0_50, %c0_51] : memref<16x16x32xf32, #tpu.memory_space<vmem>>, vector<1x16x32xf32>
    %54 = vector.shape_cast %53 : vector<1x16x32xf32> to vector<16x32xf32>
    %cst_52 = arith.constant dense<0.000000e+00> : vector<32x32xf32>
    %55 = tpu.matmul %52, %54, %cst_52 {dimension_numbers = #tpu.dot_dimension_numbers<[1], [0], [0], [1], [0, 0, 1, 1], [], []>} : vector<32x16xf32>, vector<16x32xf32>, vector<32x32xf32> -> vector<32x32xf32>
    %56 = arith.addf %49, %55 : vector<32x32xf32>
    %c6 = arith.constant 6 : index
    %c0_53 = arith.constant 0 : index
    %c0_54 = arith.constant 0 : index
    %57 = vector.load %arg3[%c6, %c0_53, %c0_54] : memref<16x32x128xf32, #tpu.memory_space<vmem>>, vector<1x32x128xf32>
    %58 = vector.shape_cast %57 : vector<1x32x128xf32> to vector<32x128xf32>
    %cst_55 = arith.constant dense<0.000000e+00> : vector<32x16xf32>
    %59 = tpu.matmul %58, %10, %cst_55 {dimension_numbers = #tpu.dot_dimension_numbers<[1], [0], [0], [1], [0, 0, 1, 1], [], []>} : vector<32x128xf32>, vector<128x16xf32>, vector<32x16xf32> -> vector<32x16xf32>
    %c6_56 = arith.constant 6 : index
    %c0_57 = arith.constant 0 : index
    %c0_58 = arith.constant 0 : index
    %60 = vector.load %arg4[%c6_56, %c0_57, %c0_58] : memref<16x16x32xf32, #tpu.memory_space<vmem>>, vector<1x16x32xf32>
    %61 = vector.shape_cast %60 : vector<1x16x32xf32> to vector<16x32xf32>
    %cst_59 = arith.constant dense<0.000000e+00> : vector<32x32xf32>
    %62 = tpu.matmul %59, %61, %cst_59 {dimension_numbers = #tpu.dot_dimension_numbers<[1], [0], [0], [1], [0, 0, 1, 1], [], []>} : vector<32x16xf32>, vector<16x32xf32>, vector<32x32xf32> -> vector<32x32xf32>
    %63 = arith.addf %56, %62 : vector<32x32xf32>
    %c7 = arith.constant 7 : index
    %c0_60 = arith.constant 0 : index
    %c0_61 = arith.constant 0 : index
    %64 = vector.load %arg3[%c7, %c0_60, %c0_61] : memref<16x32x128xf32, #tpu.memory_space<vmem>>, vector<1x32x128xf32>
    %65 = vector.shape_cast %64 : vector<1x32x128xf32> to vector<32x128xf32>
    %cst_62 = arith.constant dense<0.000000e+00> : vector<32x16xf32>
    %66 = tpu.matmul %65, %10, %cst_62 {dimension_numbers = #tpu.dot_dimension_numbers<[1], [0], [0], [1], [0, 0, 1, 1], [], []>} : vector<32x128xf32>, vector<128x16xf32>, vector<32x16xf32> -> vector<32x16xf32>
    %c7_63 = arith.constant 7 : index
    %c0_64 = arith.constant 0 : index
    %c0_65 = arith.constant 0 : index
    %67 = vector.load %arg4[%c7_63, %c0_64, %c0_65] : memref<16x16x32xf32, #tpu.memory_space<vmem>>, vector<1x16x32xf32>
    %68 = vector.shape_cast %67 : vector<1x16x32xf32> to vector<16x32xf32>
    %cst_66 = arith.constant dense<0.000000e+00> : vector<32x32xf32>
    %69 = tpu.matmul %66, %68, %cst_66 {dimension_numbers = #tpu.dot_dimension_numbers<[1], [0], [0], [1], [0, 0, 1, 1], [], []>} : vector<32x16xf32>, vector<16x32xf32>, vector<32x32xf32> -> vector<32x32xf32>
    %70 = arith.addf %63, %69 : vector<32x32xf32>
    %c8 = arith.constant 8 : index
    %c0_67 = arith.constant 0 : index
    %c0_68 = arith.constant 0 : index
    %71 = vector.load %arg3[%c8, %c0_67, %c0_68] : memref<16x32x128xf32, #tpu.memory_space<vmem>>, vector<1x32x128xf32>
    %72 = vector.shape_cast %71 : vector<1x32x128xf32> to vector<32x128xf32>
    %cst_69 = arith.constant dense<0.000000e+00> : vector<32x16xf32>
    %73 = tpu.matmul %72, %10, %cst_69 {dimension_numbers = #tpu.dot_dimension_numbers<[1], [0], [0], [1], [0, 0, 1, 1], [], []>} : vector<32x128xf32>, vector<128x16xf32>, vector<32x16xf32> -> vector<32x16xf32>
    %c8_70 = arith.constant 8 : index
    %c0_71 = arith.constant 0 : index
    %c0_72 = arith.constant 0 : index
    %74 = vector.load %arg4[%c8_70, %c0_71, %c0_72] : memref<16x16x32xf32, #tpu.memory_space<vmem>>, vector<1x16x32xf32>
    %75 = vector.shape_cast %74 : vector<1x16x32xf32> to vector<16x32xf32>
    %cst_73 = arith.constant dense<0.000000e+00> : vector<32x32xf32>
    %76 = tpu.matmul %73, %75, %cst_73 {dimension_numbers = #tpu.dot_dimension_numbers<[1], [0], [0], [1], [0, 0, 1, 1], [], []>} : vector<32x16xf32>, vector<16x32xf32>, vector<32x32xf32> -> vector<32x32xf32>
    %77 = arith.addf %70, %76 : vector<32x32xf32>
    %c9 = arith.constant 9 : index
    %c0_74 = arith.constant 0 : index
    %c0_75 = arith.constant 0 : index
    %78 = vector.load %arg3[%c9, %c0_74, %c0_75] : memref<16x32x128xf32, #tpu.memory_space<vmem>>, vector<1x32x128xf32>
    %79 = vector.shape_cast %78 : vector<1x32x128xf32> to vector<32x128xf32>
    %cst_76 = arith.constant dense<0.000000e+00> : vector<32x16xf32>
    %80 = tpu.matmul %79, %10, %cst_76 {dimension_numbers = #tpu.dot_dimension_numbers<[1], [0], [0], [1], [0, 0, 1, 1], [], []>} : vector<32x128xf32>, vector<128x16xf32>, vector<32x16xf32> -> vector<32x16xf32>
    %c9_77 = arith.constant 9 : index
    %c0_78 = arith.constant 0 : index
    %c0_79 = arith.constant 0 : index
    %81 = vector.load %arg4[%c9_77, %c0_78, %c0_79] : memref<16x16x32xf32, #tpu.memory_space<vmem>>, vector<1x16x32xf32>
    %82 = vector.shape_cast %81 : vector<1x16x32xf32> to vector<16x32xf32>
    %cst_80 = arith.constant dense<0.000000e+00> : vector<32x32xf32>
    %83 = tpu.matmul %80, %82, %cst_80 {dimension_numbers = #tpu.dot_dimension_numbers<[1], [0], [0], [1], [0, 0, 1, 1], [], []>} : vector<32x16xf32>, vector<16x32xf32>, vector<32x32xf32> -> vector<32x32xf32>
    %84 = arith.addf %77, %83 : vector<32x32xf32>
    %c10 = arith.constant 10 : index
    %c0_81 = arith.constant 0 : index
    %c0_82 = arith.constant 0 : index
    %85 = vector.load %arg3[%c10, %c0_81, %c0_82] : memref<16x32x128xf32, #tpu.memory_space<vmem>>, vector<1x32x128xf32>
    %86 = vector.shape_cast %85 : vector<1x32x128xf32> to vector<32x128xf32>
    %cst_83 = arith.constant dense<0.000000e+00> : vector<32x16xf32>
    %87 = tpu.matmul %86, %10, %cst_83 {dimension_numbers = #tpu.dot_dimension_numbers<[1], [0], [0], [1], [0, 0, 1, 1], [], []>} : vector<32x128xf32>, vector<128x16xf32>, vector<32x16xf32> -> vector<32x16xf32>
    %c10_84 = arith.constant 10 : index
    %c0_85 = arith.constant 0 : index
    %c0_86 = arith.constant 0 : index
    %88 = vector.load %arg4[%c10_84, %c0_85, %c0_86] : memref<16x16x32xf32, #tpu.memory_space<vmem>>, vector<1x16x32xf32>
    %89 = vector.shape_cast %88 : vector<1x16x32xf32> to vector<16x32xf32>
    %cst_87 = arith.constant dense<0.000000e+00> : vector<32x32xf32>
    %90 = tpu.matmul %87, %89, %cst_87 {dimension_numbers = #tpu.dot_dimension_numbers<[1], [0], [0], [1], [0, 0, 1, 1], [], []>} : vector<32x16xf32>, vector<16x32xf32>, vector<32x32xf32> -> vector<32x32xf32>
    %91 = arith.addf %84, %90 : vector<32x32xf32>
    %c11 = arith.constant 11 : index
    %c0_88 = arith.constant 0 : index
    %c0_89 = arith.constant 0 : index
    %92 = vector.load %arg3[%c11, %c0_88, %c0_89] : memref<16x32x128xf32, #tpu.memory_space<vmem>>, vector<1x32x128xf32>
    %93 = vector.shape_cast %92 : vector<1x32x128xf32> to vector<32x128xf32>
    %cst_90 = arith.constant dense<0.000000e+00> : vector<32x16xf32>
    %94 = tpu.matmul %93, %10, %cst_90 {dimension_numbers = #tpu.dot_dimension_numbers<[1], [0], [0], [1], [0, 0, 1, 1], [], []>} : vector<32x128xf32>, vector<128x16xf32>, vector<32x16xf32> -> vector<32x16xf32>
    %c11_91 = arith.constant 11 : index
    %c0_92 = arith.constant 0 : index
    %c0_93 = arith.constant 0 : index
    %95 = vector.load %arg4[%c11_91, %c0_92, %c0_93] : memref<16x16x32xf32, #tpu.memory_space<vmem>>, vector<1x16x32xf32>
    %96 = vector.shape_cast %95 : vector<1x16x32xf32> to vector<16x32xf32>
    %cst_94 = arith.constant dense<0.000000e+00> : vector<32x32xf32>
    %97 = tpu.matmul %94, %96, %cst_94 {dimension_numbers = #tpu.dot_dimension_numbers<[1], [0], [0], [1], [0, 0, 1, 1], [], []>} : vector<32x16xf32>, vector<16x32xf32>, vector<32x32xf32> -> vector<32x32xf32>
    %98 = arith.addf %91, %97 : vector<32x32xf32>
    %c12 = arith.constant 12 : index
    %c0_95 = arith.constant 0 : index
    %c0_96 = arith.constant 0 : index
    %99 = vector.load %arg3[%c12, %c0_95, %c0_96] : memref<16x32x128xf32, #tpu.memory_space<vmem>>, vector<1x32x128xf32>
    %100 = vector.shape_cast %99 : vector<1x32x128xf32> to vector<32x128xf32>
    %cst_97 = arith.constant dense<0.000000e+00> : vector<32x16xf32>
    %101 = tpu.matmul %100, %10, %cst_97 {dimension_numbers = #tpu.dot_dimension_numbers<[1], [0], [0], [1], [0, 0, 1, 1], [], []>} : vector<32x128xf32>, vector<128x16xf32>, vector<32x16xf32> -> vector<32x16xf32>
    %c12_98 = arith.constant 12 : index
    %c0_99 = arith.constant 0 : index
    %c0_100 = arith.constant 0 : index
    %102 = vector.load %arg4[%c12_98, %c0_99, %c0_100] : memref<16x16x32xf32, #tpu.memory_space<vmem>>, vector<1x16x32xf32>
    %103 = vector.shape_cast %102 : vector<1x16x32xf32> to vector<16x32xf32>
    %cst_101 = arith.constant dense<0.000000e+00> : vector<32x32xf32>
    %104 = tpu.matmul %101, %103, %cst_101 {dimension_numbers = #tpu.dot_dimension_numbers<[1], [0], [0], [1], [0, 0, 1, 1], [], []>} : vector<32x16xf32>, vector<16x32xf32>, vector<32x32xf32> -> vector<32x32xf32>
    %105 = arith.addf %98, %104 : vector<32x32xf32>
    %c13 = arith.constant 13 : index
    %c0_102 = arith.constant 0 : index
    %c0_103 = arith.constant 0 : index
    %106 = vector.load %arg3[%c13, %c0_102, %c0_103] : memref<16x32x128xf32, #tpu.memory_space<vmem>>, vector<1x32x128xf32>
    %107 = vector.shape_cast %106 : vector<1x32x128xf32> to vector<32x128xf32>
    %cst_104 = arith.constant dense<0.000000e+00> : vector<32x16xf32>
    %108 = tpu.matmul %107, %10, %cst_104 {dimension_numbers = #tpu.dot_dimension_numbers<[1], [0], [0], [1], [0, 0, 1, 1], [], []>} : vector<32x128xf32>, vector<128x16xf32>, vector<32x16xf32> -> vector<32x16xf32>
    %c13_105 = arith.constant 13 : index
    %c0_106 = arith.constant 0 : index
    %c0_107 = arith.constant 0 : index
    %109 = vector.load %arg4[%c13_105, %c0_106, %c0_107] : memref<16x16x32xf32, #tpu.memory_space<vmem>>, vector<1x16x32xf32>
    %110 = vector.shape_cast %109 : vector<1x16x32xf32> to vector<16x32xf32>
    %cst_108 = arith.constant dense<0.000000e+00> : vector<32x32xf32>
    %111 = tpu.matmul %108, %110, %cst_108 {dimension_numbers = #tpu.dot_dimension_numbers<[1], [0], [0], [1], [0, 0, 1, 1], [], []>} : vector<32x16xf32>, vector<16x32xf32>, vector<32x32xf32> -> vector<32x32xf32>
    %112 = arith.addf %105, %111 : vector<32x32xf32>
    %c14 = arith.constant 14 : index
    %c0_109 = arith.constant 0 : index
    %c0_110 = arith.constant 0 : index
    %113 = vector.load %arg3[%c14, %c0_109, %c0_110] : memref<16x32x128xf32, #tpu.memory_space<vmem>>, vector<1x32x128xf32>
    %114 = vector.shape_cast %113 : vector<1x32x128xf32> to vector<32x128xf32>
    %cst_111 = arith.constant dense<0.000000e+00> : vector<32x16xf32>
    %115 = tpu.matmul %114, %10, %cst_111 {dimension_numbers = #tpu.dot_dimension_numbers<[1], [0], [0], [1], [0, 0, 1, 1], [], []>} : vector<32x128xf32>, vector<128x16xf32>, vector<32x16xf32> -> vector<32x16xf32>
    %c14_112 = arith.constant 14 : index
    %c0_113 = arith.constant 0 : index
    %c0_114 = arith.constant 0 : index
    %116 = vector.load %arg4[%c14_112, %c0_113, %c0_114] : memref<16x16x32xf32, #tpu.memory_space<vmem>>, vector<1x16x32xf32>
    %117 = vector.shape_cast %116 : vector<1x16x32xf32> to vector<16x32xf32>
    %cst_115 = arith.constant dense<0.000000e+00> : vector<32x32xf32>
    %118 = tpu.matmul %115, %117, %cst_115 {dimension_numbers = #tpu.dot_dimension_numbers<[1], [0], [0], [1], [0, 0, 1, 1], [], []>} : vector<32x16xf32>, vector<16x32xf32>, vector<32x32xf32> -> vector<32x32xf32>
    %119 = arith.addf %112, %118 : vector<32x32xf32>
    %c15 = arith.constant 15 : index
    %c0_116 = arith.constant 0 : index
    %c0_117 = arith.constant 0 : index
    %120 = vector.load %arg3[%c15, %c0_116, %c0_117] : memref<16x32x128xf32, #tpu.memory_space<vmem>>, vector<1x32x128xf32>
    %121 = vector.shape_cast %120 : vector<1x32x128xf32> to vector<32x128xf32>
    %cst_118 = arith.constant dense<0.000000e+00> : vector<32x16xf32>
    %122 = tpu.matmul %121, %10, %cst_118 {dimension_numbers = #tpu.dot_dimension_numbers<[1], [0], [0], [1], [0, 0, 1, 1], [], []>} : vector<32x128xf32>, vector<128x16xf32>, vector<32x16xf32> -> vector<32x16xf32>
    %c15_119 = arith.constant 15 : index
    %c0_120 = arith.constant 0 : index
    %c0_121 = arith.constant 0 : index
    %123 = vector.load %arg4[%c15_119, %c0_120, %c0_121] : memref<16x16x32xf32, #tpu.memory_space<vmem>>, vector<1x16x32xf32>
    %124 = vector.shape_cast %123 : vector<1x16x32xf32> to vector<16x32xf32>
    %cst_122 = arith.constant dense<0.000000e+00> : vector<32x32xf32>
    %125 = tpu.matmul %122, %124, %cst_122 {dimension_numbers = #tpu.dot_dimension_numbers<[1], [0], [0], [1], [0, 0, 1, 1], [], []>} : vector<32x16xf32>, vector<16x32xf32>, vector<32x32xf32> -> vector<32x32xf32>
    %126 = arith.addf %119, %125 : vector<32x32xf32>
    %cst_123 = arith.constant 0.000000e+00 : f32
    %127 = vector.broadcast %cst_123 : f32 to vector<32x32xf32>
    %128 = arith.cmpf oge, %126, %127 : vector<32x32xf32>
    %cst_124 = arith.constant 0.00999999977 : f32
    %129 = vector.broadcast %cst_124 : f32 to vector<32x32xf32>
    %130 = arith.mulf %129, %126 : vector<32x32xf32>
    %131 = arith.select %128, %126, %130 : vector<32x32xi1>, vector<32x32xf32>
    %cst_125 = arith.constant 0.000000e+00 : f32
    %132 = vector.broadcast %cst_125 : f32 to vector<8x64xf32>
    %c0_126 = arith.constant 0 : index
    %c0_127 = arith.constant 0 : index
    %133 = vector.load %arg8[%c0_126, %c0_127] : memref<1x64xf32, #tpu.memory_space<vmem>>, vector<1x64xf32>
    %134 = vector.broadcast %133 : vector<1x64xf32> to vector<8x64xf32>
    %135 = arith.addf %132, %134 : vector<8x64xf32>
    %c0_128 = arith.constant 0 : index
    %c0_129 = arith.constant 0 : index
    %c0_130 = arith.constant 0 : index
    %136 = vector.load %arg6[%c0_128, %c0_129, %c0_130] : memref<16x8x32xf32, #tpu.memory_space<vmem>>, vector<1x8x32xf32>
    %137 = vector.shape_cast %136 : vector<1x8x32xf32> to vector<8x32xf32>
    %cst_131 = arith.constant dense<0.000000e+00> : vector<8x32xf32>
    %138 = tpu.matmul %137, %131, %cst_131 {dimension_numbers = #tpu.dot_dimension_numbers<[1], [0], [0], [1], [0, 0, 1, 1], [], []>} : vector<8x32xf32>, vector<32x32xf32>, vector<8x32xf32> -> vector<8x32xf32>
    %c0_132 = arith.constant 0 : index
    %c0_133 = arith.constant 0 : index
    %c0_134 = arith.constant 0 : index
    %139 = vector.load %arg7[%c0_132, %c0_133, %c0_134] : memref<16x32x64xf32, #tpu.memory_space<vmem>>, vector<1x32x64xf32>
    %140 = vector.shape_cast %139 : vector<1x32x64xf32> to vector<32x64xf32>
    %cst_135 = arith.constant dense<0.000000e+00> : vector<8x64xf32>
    %141 = tpu.matmul %138, %140, %cst_135 {dimension_numbers = #tpu.dot_dimension_numbers<[1], [0], [0], [1], [0, 0, 1, 1], [], []>} : vector<8x32xf32>, vector<32x64xf32>, vector<8x64xf32> -> vector<8x64xf32>
    %142 = arith.addf %135, %141 : vector<8x64xf32>
    %c1_136 = arith.constant 1 : index
    %c0_137 = arith.constant 0 : index
    %c0_138 = arith.constant 0 : index
    %143 = vector.load %arg6[%c1_136, %c0_137, %c0_138] : memref<16x8x32xf32, #tpu.memory_space<vmem>>, vector<1x8x32xf32>
    %144 = vector.shape_cast %143 : vector<1x8x32xf32> to vector<8x32xf32>
    %cst_139 = arith.constant dense<0.000000e+00> : vector<8x32xf32>
    %145 = tpu.matmul %144, %131, %cst_139 {dimension_numbers = #tpu.dot_dimension_numbers<[1], [0], [0], [1], [0, 0, 1, 1], [], []>} : vector<8x32xf32>, vector<32x32xf32>, vector<8x32xf32> -> vector<8x32xf32>
    %c1_140 = arith.constant 1 : index
    %c0_141 = arith.constant 0 : index
    %c0_142 = arith.constant 0 : index
    %146 = vector.load %arg7[%c1_140, %c0_141, %c0_142] : memref<16x32x64xf32, #tpu.memory_space<vmem>>, vector<1x32x64xf32>
    %147 = vector.shape_cast %146 : vector<1x32x64xf32> to vector<32x64xf32>
    %cst_143 = arith.constant dense<0.000000e+00> : vector<8x64xf32>
    %148 = tpu.matmul %145, %147, %cst_143 {dimension_numbers = #tpu.dot_dimension_numbers<[1], [0], [0], [1], [0, 0, 1, 1], [], []>} : vector<8x32xf32>, vector<32x64xf32>, vector<8x64xf32> -> vector<8x64xf32>
    %149 = arith.addf %142, %148 : vector<8x64xf32>
    %c2_144 = arith.constant 2 : index
    %c0_145 = arith.constant 0 : index
    %c0_146 = arith.constant 0 : index
    %150 = vector.load %arg6[%c2_144, %c0_145, %c0_146] : memref<16x8x32xf32, #tpu.memory_space<vmem>>, vector<1x8x32xf32>
    %151 = vector.shape_cast %150 : vector<1x8x32xf32> to vector<8x32xf32>
    %cst_147 = arith.constant dense<0.000000e+00> : vector<8x32xf32>
    %152 = tpu.matmul %151, %131, %cst_147 {dimension_numbers = #tpu.dot_dimension_numbers<[1], [0], [0], [1], [0, 0, 1, 1], [], []>} : vector<8x32xf32>, vector<32x32xf32>, vector<8x32xf32> -> vector<8x32xf32>
    %c2_148 = arith.constant 2 : index
    %c0_149 = arith.constant 0 : index
    %c0_150 = arith.constant 0 : index
    %153 = vector.load %arg7[%c2_148, %c0_149, %c0_150] : memref<16x32x64xf32, #tpu.memory_space<vmem>>, vector<1x32x64xf32>
    %154 = vector.shape_cast %153 : vector<1x32x64xf32> to vector<32x64xf32>
    %cst_151 = arith.constant dense<0.000000e+00> : vector<8x64xf32>
    %155 = tpu.matmul %152, %154, %cst_151 {dimension_numbers = #tpu.dot_dimension_numbers<[1], [0], [0], [1], [0, 0, 1, 1], [], []>} : vector<8x32xf32>, vector<32x64xf32>, vector<8x64xf32> -> vector<8x64xf32>
    %156 = arith.addf %149, %155 : vector<8x64xf32>
    %c3_152 = arith.constant 3 : index
    %c0_153 = arith.constant 0 : index
    %c0_154 = arith.constant 0 : index
    %157 = vector.load %arg6[%c3_152, %c0_153, %c0_154] : memref<16x8x32xf32, #tpu.memory_space<vmem>>, vector<1x8x32xf32>
    %158 = vector.shape_cast %157 : vector<1x8x32xf32> to vector<8x32xf32>
    %cst_155 = arith.constant dense<0.000000e+00> : vector<8x32xf32>
    %159 = tpu.matmul %158, %131, %cst_155 {dimension_numbers = #tpu.dot_dimension_numbers<[1], [0], [0], [1], [0, 0, 1, 1], [], []>} : vector<8x32xf32>, vector<32x32xf32>, vector<8x32xf32> -> vector<8x32xf32>
    %c3_156 = arith.constant 3 : index
    %c0_157 = arith.constant 0 : index
    %c0_158 = arith.constant 0 : index
    %160 = vector.load %arg7[%c3_156, %c0_157, %c0_158] : memref<16x32x64xf32, #tpu.memory_space<vmem>>, vector<1x32x64xf32>
    %161 = vector.shape_cast %160 : vector<1x32x64xf32> to vector<32x64xf32>
    %cst_159 = arith.constant dense<0.000000e+00> : vector<8x64xf32>
    %162 = tpu.matmul %159, %161, %cst_159 {dimension_numbers = #tpu.dot_dimension_numbers<[1], [0], [0], [1], [0, 0, 1, 1], [], []>} : vector<8x32xf32>, vector<32x64xf32>, vector<8x64xf32> -> vector<8x64xf32>
    %163 = arith.addf %156, %162 : vector<8x64xf32>
    %c4_160 = arith.constant 4 : index
    %c0_161 = arith.constant 0 : index
    %c0_162 = arith.constant 0 : index
    %164 = vector.load %arg6[%c4_160, %c0_161, %c0_162] : memref<16x8x32xf32, #tpu.memory_space<vmem>>, vector<1x8x32xf32>
    %165 = vector.shape_cast %164 : vector<1x8x32xf32> to vector<8x32xf32>
    %cst_163 = arith.constant dense<0.000000e+00> : vector<8x32xf32>
    %166 = tpu.matmul %165, %131, %cst_163 {dimension_numbers = #tpu.dot_dimension_numbers<[1], [0], [0], [1], [0, 0, 1, 1], [], []>} : vector<8x32xf32>, vector<32x32xf32>, vector<8x32xf32> -> vector<8x32xf32>
    %c4_164 = arith.constant 4 : index
    %c0_165 = arith.constant 0 : index
    %c0_166 = arith.constant 0 : index
    %167 = vector.load %arg7[%c4_164, %c0_165, %c0_166] : memref<16x32x64xf32, #tpu.memory_space<vmem>>, vector<1x32x64xf32>
    %168 = vector.shape_cast %167 : vector<1x32x64xf32> to vector<32x64xf32>
    %cst_167 = arith.constant dense<0.000000e+00> : vector<8x64xf32>
    %169 = tpu.matmul %166, %168, %cst_167 {dimension_numbers = #tpu.dot_dimension_numbers<[1], [0], [0], [1], [0, 0, 1, 1], [], []>} : vector<8x32xf32>, vector<32x64xf32>, vector<8x64xf32> -> vector<8x64xf32>
    %170 = arith.addf %163, %169 : vector<8x64xf32>
    %c5_168 = arith.constant 5 : index
    %c0_169 = arith.constant 0 : index
    %c0_170 = arith.constant 0 : index
    %171 = vector.load %arg6[%c5_168, %c0_169, %c0_170] : memref<16x8x32xf32, #tpu.memory_space<vmem>>, vector<1x8x32xf32>
    %172 = vector.shape_cast %171 : vector<1x8x32xf32> to vector<8x32xf32>
    %cst_171 = arith.constant dense<0.000000e+00> : vector<8x32xf32>
    %173 = tpu.matmul %172, %131, %cst_171 {dimension_numbers = #tpu.dot_dimension_numbers<[1], [0], [0], [1], [0, 0, 1, 1], [], []>} : vector<8x32xf32>, vector<32x32xf32>, vector<8x32xf32> -> vector<8x32xf32>
    %c5_172 = arith.constant 5 : index
    %c0_173 = arith.constant 0 : index
    %c0_174 = arith.constant 0 : index
    %174 = vector.load %arg7[%c5_172, %c0_173, %c0_174] : memref<16x32x64xf32, #tpu.memory_space<vmem>>, vector<1x32x64xf32>
    %175 = vector.shape_cast %174 : vector<1x32x64xf32> to vector<32x64xf32>
    %cst_175 = arith.constant dense<0.000000e+00> : vector<8x64xf32>
    %176 = tpu.matmul %173, %175, %cst_175 {dimension_numbers = #tpu.dot_dimension_numbers<[1], [0], [0], [1], [0, 0, 1, 1], [], []>} : vector<8x32xf32>, vector<32x64xf32>, vector<8x64xf32> -> vector<8x64xf32>
    %177 = arith.addf %170, %176 : vector<8x64xf32>
    %c6_176 = arith.constant 6 : index
    %c0_177 = arith.constant 0 : index
    %c0_178 = arith.constant 0 : index
    %178 = vector.load %arg6[%c6_176, %c0_177, %c0_178] : memref<16x8x32xf32, #tpu.memory_space<vmem>>, vector<1x8x32xf32>
    %179 = vector.shape_cast %178 : vector<1x8x32xf32> to vector<8x32xf32>
    %cst_179 = arith.constant dense<0.000000e+00> : vector<8x32xf32>
    %180 = tpu.matmul %179, %131, %cst_179 {dimension_numbers = #tpu.dot_dimension_numbers<[1], [0], [0], [1], [0, 0, 1, 1], [], []>} : vector<8x32xf32>, vector<32x32xf32>, vector<8x32xf32> -> vector<8x32xf32>
    %c6_180 = arith.constant 6 : index
    %c0_181 = arith.constant 0 : index
    %c0_182 = arith.constant 0 : index
    %181 = vector.load %arg7[%c6_180, %c0_181, %c0_182] : memref<16x32x64xf32, #tpu.memory_space<vmem>>, vector<1x32x64xf32>
    %182 = vector.shape_cast %181 : vector<1x32x64xf32> to vector<32x64xf32>
    %cst_183 = arith.constant dense<0.000000e+00> : vector<8x64xf32>
    %183 = tpu.matmul %180, %182, %cst_183 {dimension_numbers = #tpu.dot_dimension_numbers<[1], [0], [0], [1], [0, 0, 1, 1], [], []>} : vector<8x32xf32>, vector<32x64xf32>, vector<8x64xf32> -> vector<8x64xf32>
    %184 = arith.addf %177, %183 : vector<8x64xf32>
    %c7_184 = arith.constant 7 : index
    %c0_185 = arith.constant 0 : index
    %c0_186 = arith.constant 0 : index
    %185 = vector.load %arg6[%c7_184, %c0_185, %c0_186] : memref<16x8x32xf32, #tpu.memory_space<vmem>>, vector<1x8x32xf32>
    %186 = vector.shape_cast %185 : vector<1x8x32xf32> to vector<8x32xf32>
    %cst_187 = arith.constant dense<0.000000e+00> : vector<8x32xf32>
    %187 = tpu.matmul %186, %131, %cst_187 {dimension_numbers = #tpu.dot_dimension_numbers<[1], [0], [0], [1], [0, 0, 1, 1], [], []>} : vector<8x32xf32>, vector<32x32xf32>, vector<8x32xf32> -> vector<8x32xf32>
    %c7_188 = arith.constant 7 : index
    %c0_189 = arith.constant 0 : index
    %c0_190 = arith.constant 0 : index
    %188 = vector.load %arg7[%c7_188, %c0_189, %c0_190] : memref<16x32x64xf32, #tpu.memory_space<vmem>>, vector<1x32x64xf32>
    %189 = vector.shape_cast %188 : vector<1x32x64xf32> to vector<32x64xf32>
    %cst_191 = arith.constant dense<0.000000e+00> : vector<8x64xf32>
    %190 = tpu.matmul %187, %189, %cst_191 {dimension_numbers = #tpu.dot_dimension_numbers<[1], [0], [0], [1], [0, 0, 1, 1], [], []>} : vector<8x32xf32>, vector<32x64xf32>, vector<8x64xf32> -> vector<8x64xf32>
    %191 = arith.addf %184, %190 : vector<8x64xf32>
    %c8_192 = arith.constant 8 : index
    %c0_193 = arith.constant 0 : index
    %c0_194 = arith.constant 0 : index
    %192 = vector.load %arg6[%c8_192, %c0_193, %c0_194] : memref<16x8x32xf32, #tpu.memory_space<vmem>>, vector<1x8x32xf32>
    %193 = vector.shape_cast %192 : vector<1x8x32xf32> to vector<8x32xf32>
    %cst_195 = arith.constant dense<0.000000e+00> : vector<8x32xf32>
    %194 = tpu.matmul %193, %131, %cst_195 {dimension_numbers = #tpu.dot_dimension_numbers<[1], [0], [0], [1], [0, 0, 1, 1], [], []>} : vector<8x32xf32>, vector<32x32xf32>, vector<8x32xf32> -> vector<8x32xf32>
    %c8_196 = arith.constant 8 : index
    %c0_197 = arith.constant 0 : index
    %c0_198 = arith.constant 0 : index
    %195 = vector.load %arg7[%c8_196, %c0_197, %c0_198] : memref<16x32x64xf32, #tpu.memory_space<vmem>>, vector<1x32x64xf32>
    %196 = vector.shape_cast %195 : vector<1x32x64xf32> to vector<32x64xf32>
    %cst_199 = arith.constant dense<0.000000e+00> : vector<8x64xf32>
    %197 = tpu.matmul %194, %196, %cst_199 {dimension_numbers = #tpu.dot_dimension_numbers<[1], [0], [0], [1], [0, 0, 1, 1], [], []>} : vector<8x32xf32>, vector<32x64xf32>, vector<8x64xf32> -> vector<8x64xf32>
    %198 = arith.addf %191, %197 : vector<8x64xf32>
    %c9_200 = arith.constant 9 : index
    %c0_201 = arith.constant 0 : index
    %c0_202 = arith.constant 0 : index
    %199 = vector.load %arg6[%c9_200, %c0_201, %c0_202] : memref<16x8x32xf32, #tpu.memory_space<vmem>>, vector<1x8x32xf32>
    %200 = vector.shape_cast %199 : vector<1x8x32xf32> to vector<8x32xf32>
    %cst_203 = arith.constant dense<0.000000e+00> : vector<8x32xf32>
    %201 = tpu.matmul %200, %131, %cst_203 {dimension_numbers = #tpu.dot_dimension_numbers<[1], [0], [0], [1], [0, 0, 1, 1], [], []>} : vector<8x32xf32>, vector<32x32xf32>, vector<8x32xf32> -> vector<8x32xf32>
    %c9_204 = arith.constant 9 : index
    %c0_205 = arith.constant 0 : index
    %c0_206 = arith.constant 0 : index
    %202 = vector.load %arg7[%c9_204, %c0_205, %c0_206] : memref<16x32x64xf32, #tpu.memory_space<vmem>>, vector<1x32x64xf32>
    %203 = vector.shape_cast %202 : vector<1x32x64xf32> to vector<32x64xf32>
    %cst_207 = arith.constant dense<0.000000e+00> : vector<8x64xf32>
    %204 = tpu.matmul %201, %203, %cst_207 {dimension_numbers = #tpu.dot_dimension_numbers<[1], [0], [0], [1], [0, 0, 1, 1], [], []>} : vector<8x32xf32>, vector<32x64xf32>, vector<8x64xf32> -> vector<8x64xf32>
    %205 = arith.addf %198, %204 : vector<8x64xf32>
    %c10_208 = arith.constant 10 : index
    %c0_209 = arith.constant 0 : index
    %c0_210 = arith.constant 0 : index
    %206 = vector.load %arg6[%c10_208, %c0_209, %c0_210] : memref<16x8x32xf32, #tpu.memory_space<vmem>>, vector<1x8x32xf32>
    %207 = vector.shape_cast %206 : vector<1x8x32xf32> to vector<8x32xf32>
    %cst_211 = arith.constant dense<0.000000e+00> : vector<8x32xf32>
    %208 = tpu.matmul %207, %131, %cst_211 {dimension_numbers = #tpu.dot_dimension_numbers<[1], [0], [0], [1], [0, 0, 1, 1], [], []>} : vector<8x32xf32>, vector<32x32xf32>, vector<8x32xf32> -> vector<8x32xf32>
    %c10_212 = arith.constant 10 : index
    %c0_213 = arith.constant 0 : index
    %c0_214 = arith.constant 0 : index
    %209 = vector.load %arg7[%c10_212, %c0_213, %c0_214] : memref<16x32x64xf32, #tpu.memory_space<vmem>>, vector<1x32x64xf32>
    %210 = vector.shape_cast %209 : vector<1x32x64xf32> to vector<32x64xf32>
    %cst_215 = arith.constant dense<0.000000e+00> : vector<8x64xf32>
    %211 = tpu.matmul %208, %210, %cst_215 {dimension_numbers = #tpu.dot_dimension_numbers<[1], [0], [0], [1], [0, 0, 1, 1], [], []>} : vector<8x32xf32>, vector<32x64xf32>, vector<8x64xf32> -> vector<8x64xf32>
    %212 = arith.addf %205, %211 : vector<8x64xf32>
    %c11_216 = arith.constant 11 : index
    %c0_217 = arith.constant 0 : index
    %c0_218 = arith.constant 0 : index
    %213 = vector.load %arg6[%c11_216, %c0_217, %c0_218] : memref<16x8x32xf32, #tpu.memory_space<vmem>>, vector<1x8x32xf32>
    %214 = vector.shape_cast %213 : vector<1x8x32xf32> to vector<8x32xf32>
    %cst_219 = arith.constant dense<0.000000e+00> : vector<8x32xf32>
    %215 = tpu.matmul %214, %131, %cst_219 {dimension_numbers = #tpu.dot_dimension_numbers<[1], [0], [0], [1], [0, 0, 1, 1], [], []>} : vector<8x32xf32>, vector<32x32xf32>, vector<8x32xf32> -> vector<8x32xf32>
    %c11_220 = arith.constant 11 : index
    %c0_221 = arith.constant 0 : index
    %c0_222 = arith.constant 0 : index
    %216 = vector.load %arg7[%c11_220, %c0_221, %c0_222] : memref<16x32x64xf32, #tpu.memory_space<vmem>>, vector<1x32x64xf32>
    %217 = vector.shape_cast %216 : vector<1x32x64xf32> to vector<32x64xf32>
    %cst_223 = arith.constant dense<0.000000e+00> : vector<8x64xf32>
    %218 = tpu.matmul %215, %217, %cst_223 {dimension_numbers = #tpu.dot_dimension_numbers<[1], [0], [0], [1], [0, 0, 1, 1], [], []>} : vector<8x32xf32>, vector<32x64xf32>, vector<8x64xf32> -> vector<8x64xf32>
    %219 = arith.addf %212, %218 : vector<8x64xf32>
    %c12_224 = arith.constant 12 : index
    %c0_225 = arith.constant 0 : index
    %c0_226 = arith.constant 0 : index
    %220 = vector.load %arg6[%c12_224, %c0_225, %c0_226] : memref<16x8x32xf32, #tpu.memory_space<vmem>>, vector<1x8x32xf32>
    %221 = vector.shape_cast %220 : vector<1x8x32xf32> to vector<8x32xf32>
    %cst_227 = arith.constant dense<0.000000e+00> : vector<8x32xf32>
    %222 = tpu.matmul %221, %131, %cst_227 {dimension_numbers = #tpu.dot_dimension_numbers<[1], [0], [0], [1], [0, 0, 1, 1], [], []>} : vector<8x32xf32>, vector<32x32xf32>, vector<8x32xf32> -> vector<8x32xf32>
    %c12_228 = arith.constant 12 : index
    %c0_229 = arith.constant 0 : index
    %c0_230 = arith.constant 0 : index
    %223 = vector.load %arg7[%c12_228, %c0_229, %c0_230] : memref<16x32x64xf32, #tpu.memory_space<vmem>>, vector<1x32x64xf32>
    %224 = vector.shape_cast %223 : vector<1x32x64xf32> to vector<32x64xf32>
    %cst_231 = arith.constant dense<0.000000e+00> : vector<8x64xf32>
    %225 = tpu.matmul %222, %224, %cst_231 {dimension_numbers = #tpu.dot_dimension_numbers<[1], [0], [0], [1], [0, 0, 1, 1], [], []>} : vector<8x32xf32>, vector<32x64xf32>, vector<8x64xf32> -> vector<8x64xf32>
    %226 = arith.addf %219, %225 : vector<8x64xf32>
    %c13_232 = arith.constant 13 : index
    %c0_233 = arith.constant 0 : index
    %c0_234 = arith.constant 0 : index
    %227 = vector.load %arg6[%c13_232, %c0_233, %c0_234] : memref<16x8x32xf32, #tpu.memory_space<vmem>>, vector<1x8x32xf32>
    %228 = vector.shape_cast %227 : vector<1x8x32xf32> to vector<8x32xf32>
    %cst_235 = arith.constant dense<0.000000e+00> : vector<8x32xf32>
    %229 = tpu.matmul %228, %131, %cst_235 {dimension_numbers = #tpu.dot_dimension_numbers<[1], [0], [0], [1], [0, 0, 1, 1], [], []>} : vector<8x32xf32>, vector<32x32xf32>, vector<8x32xf32> -> vector<8x32xf32>
    %c13_236 = arith.constant 13 : index
    %c0_237 = arith.constant 0 : index
    %c0_238 = arith.constant 0 : index
    %230 = vector.load %arg7[%c13_236, %c0_237, %c0_238] : memref<16x32x64xf32, #tpu.memory_space<vmem>>, vector<1x32x64xf32>
    %231 = vector.shape_cast %230 : vector<1x32x64xf32> to vector<32x64xf32>
    %cst_239 = arith.constant dense<0.000000e+00> : vector<8x64xf32>
    %232 = tpu.matmul %229, %231, %cst_239 {dimension_numbers = #tpu.dot_dimension_numbers<[1], [0], [0], [1], [0, 0, 1, 1], [], []>} : vector<8x32xf32>, vector<32x64xf32>, vector<8x64xf32> -> vector<8x64xf32>
    %233 = arith.addf %226, %232 : vector<8x64xf32>
    %c14_240 = arith.constant 14 : index
    %c0_241 = arith.constant 0 : index
    %c0_242 = arith.constant 0 : index
    %234 = vector.load %arg6[%c14_240, %c0_241, %c0_242] : memref<16x8x32xf32, #tpu.memory_space<vmem>>, vector<1x8x32xf32>
    %235 = vector.shape_cast %234 : vector<1x8x32xf32> to vector<8x32xf32>
    %cst_243 = arith.constant dense<0.000000e+00> : vector<8x32xf32>
    %236 = tpu.matmul %235, %131, %cst_243 {dimension_numbers = #tpu.dot_dimension_numbers<[1], [0], [0], [1], [0, 0, 1, 1], [], []>} : vector<8x32xf32>, vector<32x32xf32>, vector<8x32xf32> -> vector<8x32xf32>
    %c14_244 = arith.constant 14 : index
    %c0_245 = arith.constant 0 : index
    %c0_246 = arith.constant 0 : index
    %237 = vector.load %arg7[%c14_244, %c0_245, %c0_246] : memref<16x32x64xf32, #tpu.memory_space<vmem>>, vector<1x32x64xf32>
    %238 = vector.shape_cast %237 : vector<1x32x64xf32> to vector<32x64xf32>
    %cst_247 = arith.constant dense<0.000000e+00> : vector<8x64xf32>
    %239 = tpu.matmul %236, %238, %cst_247 {dimension_numbers = #tpu.dot_dimension_numbers<[1], [0], [0], [1], [0, 0, 1, 1], [], []>} : vector<8x32xf32>, vector<32x64xf32>, vector<8x64xf32> -> vector<8x64xf32>
    %240 = arith.addf %233, %239 : vector<8x64xf32>
    %c15_248 = arith.constant 15 : index
    %c0_249 = arith.constant 0 : index
    %c0_250 = arith.constant 0 : index
    %241 = vector.load %arg6[%c15_248, %c0_249, %c0_250] : memref<16x8x32xf32, #tpu.memory_space<vmem>>, vector<1x8x32xf32>
    %242 = vector.shape_cast %241 : vector<1x8x32xf32> to vector<8x32xf32>
    %cst_251 = arith.constant dense<0.000000e+00> : vector<8x32xf32>
    %243 = tpu.matmul %242, %131, %cst_251 {dimension_numbers = #tpu.dot_dimension_numbers<[1], [0], [0], [1], [0, 0, 1, 1], [], []>} : vector<8x32xf32>, vector<32x32xf32>, vector<8x32xf32> -> vector<8x32xf32>
    %c15_252 = arith.constant 15 : index
    %c0_253 = arith.constant 0 : index
    %c0_254 = arith.constant 0 : index
    %244 = vector.load %arg7[%c15_252, %c0_253, %c0_254] : memref<16x32x64xf32, #tpu.memory_space<vmem>>, vector<1x32x64xf32>
    %245 = vector.shape_cast %244 : vector<1x32x64xf32> to vector<32x64xf32>
    %cst_255 = arith.constant dense<0.000000e+00> : vector<8x64xf32>
    %246 = tpu.matmul %243, %245, %cst_255 {dimension_numbers = #tpu.dot_dimension_numbers<[1], [0], [0], [1], [0, 0, 1, 1], [], []>} : vector<8x32xf32>, vector<32x64xf32>, vector<8x64xf32> -> vector<8x64xf32>
    %247 = arith.addf %240, %246 : vector<8x64xf32>
    %cst_256 = arith.constant 0.000000e+00 : f32
    %248 = vector.broadcast %cst_256 : f32 to vector<8x64xf32>
    %249 = arith.cmpf oge, %247, %248 : vector<8x64xf32>
    %cst_257 = arith.constant 0.00999999977 : f32
    %250 = vector.broadcast %cst_257 : f32 to vector<8x64xf32>
    %251 = arith.mulf %250, %247 : vector<8x64xf32>
    %252 = arith.select %249, %247, %251 : vector<8x64xi1>, vector<8x64xf32>
    %cst_258 = arith.constant 0.000000e+00 : f32
    %253 = vector.broadcast %cst_258 : f32 to vector<2x128xf32>
    %c0_259 = arith.constant 0 : index
    %c0_260 = arith.constant 0 : index
    %254 = vector.load %arg11[%c0_259, %c0_260] : memref<1x128xf32, #tpu.memory_space<vmem>>, vector<1x128xf32>
    %255 = vector.broadcast %254 : vector<1x128xf32> to vector<2x128xf32>
    %256 = arith.addf %253, %255 : vector<2x128xf32>
    %c0_261 = arith.constant 0 : index
    %c0_262 = arith.constant 0 : index
    %c0_263 = arith.constant 0 : index
    %257 = vector.load %arg9[%c0_261, %c0_262, %c0_263] : memref<16x2x8xf32, #tpu.memory_space<vmem>>, vector<1x2x8xf32>
    %258 = vector.shape_cast %257 : vector<1x2x8xf32> to vector<2x8xf32>
    %cst_264 = arith.constant dense<0.000000e+00> : vector<2x64xf32>
    %259 = tpu.matmul %258, %252, %cst_264 {dimension_numbers = #tpu.dot_dimension_numbers<[1], [0], [0], [1], [0, 0, 1, 1], [], []>} : vector<2x8xf32>, vector<8x64xf32>, vector<2x64xf32> -> vector<2x64xf32>
    %c0_265 = arith.constant 0 : index
    %c0_266 = arith.constant 0 : index
    %c0_267 = arith.constant 0 : index
    %260 = vector.load %arg10[%c0_265, %c0_266, %c0_267] : memref<16x64x128xf32, #tpu.memory_space<vmem>>, vector<1x64x128xf32>
    %261 = vector.shape_cast %260 : vector<1x64x128xf32> to vector<64x128xf32>
    %cst_268 = arith.constant dense<0.000000e+00> : vector<2x128xf32>
    %262 = tpu.matmul %259, %261, %cst_268 {dimension_numbers = #tpu.dot_dimension_numbers<[1], [0], [0], [1], [0, 0, 1, 1], [], []>} : vector<2x64xf32>, vector<64x128xf32>, vector<2x128xf32> -> vector<2x128xf32>
    %263 = arith.addf %256, %262 : vector<2x128xf32>
    %c1_269 = arith.constant 1 : index
    %c0_270 = arith.constant 0 : index
    %c0_271 = arith.constant 0 : index
    %264 = vector.load %arg9[%c1_269, %c0_270, %c0_271] : memref<16x2x8xf32, #tpu.memory_space<vmem>>, vector<1x2x8xf32>
    %265 = vector.shape_cast %264 : vector<1x2x8xf32> to vector<2x8xf32>
    %cst_272 = arith.constant dense<0.000000e+00> : vector<2x64xf32>
    %266 = tpu.matmul %265, %252, %cst_272 {dimension_numbers = #tpu.dot_dimension_numbers<[1], [0], [0], [1], [0, 0, 1, 1], [], []>} : vector<2x8xf32>, vector<8x64xf32>, vector<2x64xf32> -> vector<2x64xf32>
    %c1_273 = arith.constant 1 : index
    %c0_274 = arith.constant 0 : index
    %c0_275 = arith.constant 0 : index
    %267 = vector.load %arg10[%c1_273, %c0_274, %c0_275] : memref<16x64x128xf32, #tpu.memory_space<vmem>>, vector<1x64x128xf32>
    %268 = vector.shape_cast %267 : vector<1x64x128xf32> to vector<64x128xf32>
    %cst_276 = arith.constant dense<0.000000e+00> : vector<2x128xf32>
    %269 = tpu.matmul %266, %268, %cst_276 {dimension_numbers = #tpu.dot_dimension_numbers<[1], [0], [0], [1], [0, 0, 1, 1], [], []>} : vector<2x64xf32>, vector<64x128xf32>, vector<2x128xf32> -> vector<2x128xf32>
    %270 = arith.addf %263, %269 : vector<2x128xf32>
    %c2_277 = arith.constant 2 : index
    %c0_278 = arith.constant 0 : index
    %c0_279 = arith.constant 0 : index
    %271 = vector.load %arg9[%c2_277, %c0_278, %c0_279] : memref<16x2x8xf32, #tpu.memory_space<vmem>>, vector<1x2x8xf32>
    %272 = vector.shape_cast %271 : vector<1x2x8xf32> to vector<2x8xf32>
    %cst_280 = arith.constant dense<0.000000e+00> : vector<2x64xf32>
    %273 = tpu.matmul %272, %252, %cst_280 {dimension_numbers = #tpu.dot_dimension_numbers<[1], [0], [0], [1], [0, 0, 1, 1], [], []>} : vector<2x8xf32>, vector<8x64xf32>, vector<2x64xf32> -> vector<2x64xf32>
    %c2_281 = arith.constant 2 : index
    %c0_282 = arith.constant 0 : index
    %c0_283 = arith.constant 0 : index
    %274 = vector.load %arg10[%c2_281, %c0_282, %c0_283] : memref<16x64x128xf32, #tpu.memory_space<vmem>>, vector<1x64x128xf32>
    %275 = vector.shape_cast %274 : vector<1x64x128xf32> to vector<64x128xf32>
    %cst_284 = arith.constant dense<0.000000e+00> : vector<2x128xf32>
    %276 = tpu.matmul %273, %275, %cst_284 {dimension_numbers = #tpu.dot_dimension_numbers<[1], [0], [0], [1], [0, 0, 1, 1], [], []>} : vector<2x64xf32>, vector<64x128xf32>, vector<2x128xf32> -> vector<2x128xf32>
    %277 = arith.addf %270, %276 : vector<2x128xf32>
    %c3_285 = arith.constant 3 : index
    %c0_286 = arith.constant 0 : index
    %c0_287 = arith.constant 0 : index
    %278 = vector.load %arg9[%c3_285, %c0_286, %c0_287] : memref<16x2x8xf32, #tpu.memory_space<vmem>>, vector<1x2x8xf32>
    %279 = vector.shape_cast %278 : vector<1x2x8xf32> to vector<2x8xf32>
    %cst_288 = arith.constant dense<0.000000e+00> : vector<2x64xf32>
    %280 = tpu.matmul %279, %252, %cst_288 {dimension_numbers = #tpu.dot_dimension_numbers<[1], [0], [0], [1], [0, 0, 1, 1], [], []>} : vector<2x8xf32>, vector<8x64xf32>, vector<2x64xf32> -> vector<2x64xf32>
    %c3_289 = arith.constant 3 : index
    %c0_290 = arith.constant 0 : index
    %c0_291 = arith.constant 0 : index
    %281 = vector.load %arg10[%c3_289, %c0_290, %c0_291] : memref<16x64x128xf32, #tpu.memory_space<vmem>>, vector<1x64x128xf32>
    %282 = vector.shape_cast %281 : vector<1x64x128xf32> to vector<64x128xf32>
    %cst_292 = arith.constant dense<0.000000e+00> : vector<2x128xf32>
    %283 = tpu.matmul %280, %282, %cst_292 {dimension_numbers = #tpu.dot_dimension_numbers<[1], [0], [0], [1], [0, 0, 1, 1], [], []>} : vector<2x64xf32>, vector<64x128xf32>, vector<2x128xf32> -> vector<2x128xf32>
    %284 = arith.addf %277, %283 : vector<2x128xf32>
    %c4_293 = arith.constant 4 : index
    %c0_294 = arith.constant 0 : index
    %c0_295 = arith.constant 0 : index
    %285 = vector.load %arg9[%c4_293, %c0_294, %c0_295] : memref<16x2x8xf32, #tpu.memory_space<vmem>>, vector<1x2x8xf32>
    %286 = vector.shape_cast %285 : vector<1x2x8xf32> to vector<2x8xf32>
    %cst_296 = arith.constant dense<0.000000e+00> : vector<2x64xf32>
    %287 = tpu.matmul %286, %252, %cst_296 {dimension_numbers = #tpu.dot_dimension_numbers<[1], [0], [0], [1], [0, 0, 1, 1], [], []>} : vector<2x8xf32>, vector<8x64xf32>, vector<2x64xf32> -> vector<2x64xf32>
    %c4_297 = arith.constant 4 : index
    %c0_298 = arith.constant 0 : index
    %c0_299 = arith.constant 0 : index
    %288 = vector.load %arg10[%c4_297, %c0_298, %c0_299] : memref<16x64x128xf32, #tpu.memory_space<vmem>>, vector<1x64x128xf32>
    %289 = vector.shape_cast %288 : vector<1x64x128xf32> to vector<64x128xf32>
    %cst_300 = arith.constant dense<0.000000e+00> : vector<2x128xf32>
    %290 = tpu.matmul %287, %289, %cst_300 {dimension_numbers = #tpu.dot_dimension_numbers<[1], [0], [0], [1], [0, 0, 1, 1], [], []>} : vector<2x64xf32>, vector<64x128xf32>, vector<2x128xf32> -> vector<2x128xf32>
    %291 = arith.addf %284, %290 : vector<2x128xf32>
    %c5_301 = arith.constant 5 : index
    %c0_302 = arith.constant 0 : index
    %c0_303 = arith.constant 0 : index
    %292 = vector.load %arg9[%c5_301, %c0_302, %c0_303] : memref<16x2x8xf32, #tpu.memory_space<vmem>>, vector<1x2x8xf32>
    %293 = vector.shape_cast %292 : vector<1x2x8xf32> to vector<2x8xf32>
    %cst_304 = arith.constant dense<0.000000e+00> : vector<2x64xf32>
    %294 = tpu.matmul %293, %252, %cst_304 {dimension_numbers = #tpu.dot_dimension_numbers<[1], [0], [0], [1], [0, 0, 1, 1], [], []>} : vector<2x8xf32>, vector<8x64xf32>, vector<2x64xf32> -> vector<2x64xf32>
    %c5_305 = arith.constant 5 : index
    %c0_306 = arith.constant 0 : index
    %c0_307 = arith.constant 0 : index
    %295 = vector.load %arg10[%c5_305, %c0_306, %c0_307] : memref<16x64x128xf32, #tpu.memory_space<vmem>>, vector<1x64x128xf32>
    %296 = vector.shape_cast %295 : vector<1x64x128xf32> to vector<64x128xf32>
    %cst_308 = arith.constant dense<0.000000e+00> : vector<2x128xf32>
    %297 = tpu.matmul %294, %296, %cst_308 {dimension_numbers = #tpu.dot_dimension_numbers<[1], [0], [0], [1], [0, 0, 1, 1], [], []>} : vector<2x64xf32>, vector<64x128xf32>, vector<2x128xf32> -> vector<2x128xf32>
    %298 = arith.addf %291, %297 : vector<2x128xf32>
    %c6_309 = arith.constant 6 : index
    %c0_310 = arith.constant 0 : index
    %c0_311 = arith.constant 0 : index
    %299 = vector.load %arg9[%c6_309, %c0_310, %c0_311] : memref<16x2x8xf32, #tpu.memory_space<vmem>>, vector<1x2x8xf32>
    %300 = vector.shape_cast %299 : vector<1x2x8xf32> to vector<2x8xf32>
    %cst_312 = arith.constant dense<0.000000e+00> : vector<2x64xf32>
    %301 = tpu.matmul %300, %252, %cst_312 {dimension_numbers = #tpu.dot_dimension_numbers<[1], [0], [0], [1], [0, 0, 1, 1], [], []>} : vector<2x8xf32>, vector<8x64xf32>, vector<2x64xf32> -> vector<2x64xf32>
    %c6_313 = arith.constant 6 : index
    %c0_314 = arith.constant 0 : index
    %c0_315 = arith.constant 0 : index
    %302 = vector.load %arg10[%c6_313, %c0_314, %c0_315] : memref<16x64x128xf32, #tpu.memory_space<vmem>>, vector<1x64x128xf32>
    %303 = vector.shape_cast %302 : vector<1x64x128xf32> to vector<64x128xf32>
    %cst_316 = arith.constant dense<0.000000e+00> : vector<2x128xf32>
    %304 = tpu.matmul %301, %303, %cst_316 {dimension_numbers = #tpu.dot_dimension_numbers<[1], [0], [0], [1], [0, 0, 1, 1], [], []>} : vector<2x64xf32>, vector<64x128xf32>, vector<2x128xf32> -> vector<2x128xf32>
    %305 = arith.addf %298, %304 : vector<2x128xf32>
    %c7_317 = arith.constant 7 : index
    %c0_318 = arith.constant 0 : index
    %c0_319 = arith.constant 0 : index
    %306 = vector.load %arg9[%c7_317, %c0_318, %c0_319] : memref<16x2x8xf32, #tpu.memory_space<vmem>>, vector<1x2x8xf32>
    %307 = vector.shape_cast %306 : vector<1x2x8xf32> to vector<2x8xf32>
    %cst_320 = arith.constant dense<0.000000e+00> : vector<2x64xf32>
    %308 = tpu.matmul %307, %252, %cst_320 {dimension_numbers = #tpu.dot_dimension_numbers<[1], [0], [0], [1], [0, 0, 1, 1], [], []>} : vector<2x8xf32>, vector<8x64xf32>, vector<2x64xf32> -> vector<2x64xf32>
    %c7_321 = arith.constant 7 : index
    %c0_322 = arith.constant 0 : index
    %c0_323 = arith.constant 0 : index
    %309 = vector.load %arg10[%c7_321, %c0_322, %c0_323] : memref<16x64x128xf32, #tpu.memory_space<vmem>>, vector<1x64x128xf32>
    %310 = vector.shape_cast %309 : vector<1x64x128xf32> to vector<64x128xf32>
    %cst_324 = arith.constant dense<0.000000e+00> : vector<2x128xf32>
    %311 = tpu.matmul %308, %310, %cst_324 {dimension_numbers = #tpu.dot_dimension_numbers<[1], [0], [0], [1], [0, 0, 1, 1], [], []>} : vector<2x64xf32>, vector<64x128xf32>, vector<2x128xf32> -> vector<2x128xf32>
    %312 = arith.addf %305, %311 : vector<2x128xf32>
    %c8_325 = arith.constant 8 : index
    %c0_326 = arith.constant 0 : index
    %c0_327 = arith.constant 0 : index
    %313 = vector.load %arg9[%c8_325, %c0_326, %c0_327] : memref<16x2x8xf32, #tpu.memory_space<vmem>>, vector<1x2x8xf32>
    %314 = vector.shape_cast %313 : vector<1x2x8xf32> to vector<2x8xf32>
    %cst_328 = arith.constant dense<0.000000e+00> : vector<2x64xf32>
    %315 = tpu.matmul %314, %252, %cst_328 {dimension_numbers = #tpu.dot_dimension_numbers<[1], [0], [0], [1], [0, 0, 1, 1], [], []>} : vector<2x8xf32>, vector<8x64xf32>, vector<2x64xf32> -> vector<2x64xf32>
    %c8_329 = arith.constant 8 : index
    %c0_330 = arith.constant 0 : index
    %c0_331 = arith.constant 0 : index
    %316 = vector.load %arg10[%c8_329, %c0_330, %c0_331] : memref<16x64x128xf32, #tpu.memory_space<vmem>>, vector<1x64x128xf32>
    %317 = vector.shape_cast %316 : vector<1x64x128xf32> to vector<64x128xf32>
    %cst_332 = arith.constant dense<0.000000e+00> : vector<2x128xf32>
    %318 = tpu.matmul %315, %317, %cst_332 {dimension_numbers = #tpu.dot_dimension_numbers<[1], [0], [0], [1], [0, 0, 1, 1], [], []>} : vector<2x64xf32>, vector<64x128xf32>, vector<2x128xf32> -> vector<2x128xf32>
    %319 = arith.addf %312, %318 : vector<2x128xf32>
    %c9_333 = arith.constant 9 : index
    %c0_334 = arith.constant 0 : index
    %c0_335 = arith.constant 0 : index
    %320 = vector.load %arg9[%c9_333, %c0_334, %c0_335] : memref<16x2x8xf32, #tpu.memory_space<vmem>>, vector<1x2x8xf32>
    %321 = vector.shape_cast %320 : vector<1x2x8xf32> to vector<2x8xf32>
    %cst_336 = arith.constant dense<0.000000e+00> : vector<2x64xf32>
    %322 = tpu.matmul %321, %252, %cst_336 {dimension_numbers = #tpu.dot_dimension_numbers<[1], [0], [0], [1], [0, 0, 1, 1], [], []>} : vector<2x8xf32>, vector<8x64xf32>, vector<2x64xf32> -> vector<2x64xf32>
    %c9_337 = arith.constant 9 : index
    %c0_338 = arith.constant 0 : index
    %c0_339 = arith.constant 0 : index
    %323 = vector.load %arg10[%c9_337, %c0_338, %c0_339] : memref<16x64x128xf32, #tpu.memory_space<vmem>>, vector<1x64x128xf32>
    %324 = vector.shape_cast %323 : vector<1x64x128xf32> to vector<64x128xf32>
    %cst_340 = arith.constant dense<0.000000e+00> : vector<2x128xf32>
    %325 = tpu.matmul %322, %324, %cst_340 {dimension_numbers = #tpu.dot_dimension_numbers<[1], [0], [0], [1], [0, 0, 1, 1], [], []>} : vector<2x64xf32>, vector<64x128xf32>, vector<2x128xf32> -> vector<2x128xf32>
    %326 = arith.addf %319, %325 : vector<2x128xf32>
    %c10_341 = arith.constant 10 : index
    %c0_342 = arith.constant 0 : index
    %c0_343 = arith.constant 0 : index
    %327 = vector.load %arg9[%c10_341, %c0_342, %c0_343] : memref<16x2x8xf32, #tpu.memory_space<vmem>>, vector<1x2x8xf32>
    %328 = vector.shape_cast %327 : vector<1x2x8xf32> to vector<2x8xf32>
    %cst_344 = arith.constant dense<0.000000e+00> : vector<2x64xf32>
    %329 = tpu.matmul %328, %252, %cst_344 {dimension_numbers = #tpu.dot_dimension_numbers<[1], [0], [0], [1], [0, 0, 1, 1], [], []>} : vector<2x8xf32>, vector<8x64xf32>, vector<2x64xf32> -> vector<2x64xf32>
    %c10_345 = arith.constant 10 : index
    %c0_346 = arith.constant 0 : index
    %c0_347 = arith.constant 0 : index
    %330 = vector.load %arg10[%c10_345, %c0_346, %c0_347] : memref<16x64x128xf32, #tpu.memory_space<vmem>>, vector<1x64x128xf32>
    %331 = vector.shape_cast %330 : vector<1x64x128xf32> to vector<64x128xf32>
    %cst_348 = arith.constant dense<0.000000e+00> : vector<2x128xf32>
    %332 = tpu.matmul %329, %331, %cst_348 {dimension_numbers = #tpu.dot_dimension_numbers<[1], [0], [0], [1], [0, 0, 1, 1], [], []>} : vector<2x64xf32>, vector<64x128xf32>, vector<2x128xf32> -> vector<2x128xf32>
    %333 = arith.addf %326, %332 : vector<2x128xf32>
    %c11_349 = arith.constant 11 : index
    %c0_350 = arith.constant 0 : index
    %c0_351 = arith.constant 0 : index
    %334 = vector.load %arg9[%c11_349, %c0_350, %c0_351] : memref<16x2x8xf32, #tpu.memory_space<vmem>>, vector<1x2x8xf32>
    %335 = vector.shape_cast %334 : vector<1x2x8xf32> to vector<2x8xf32>
    %cst_352 = arith.constant dense<0.000000e+00> : vector<2x64xf32>
    %336 = tpu.matmul %335, %252, %cst_352 {dimension_numbers = #tpu.dot_dimension_numbers<[1], [0], [0], [1], [0, 0, 1, 1], [], []>} : vector<2x8xf32>, vector<8x64xf32>, vector<2x64xf32> -> vector<2x64xf32>
    %c11_353 = arith.constant 11 : index
    %c0_354 = arith.constant 0 : index
    %c0_355 = arith.constant 0 : index
    %337 = vector.load %arg10[%c11_353, %c0_354, %c0_355] : memref<16x64x128xf32, #tpu.memory_space<vmem>>, vector<1x64x128xf32>
    %338 = vector.shape_cast %337 : vector<1x64x128xf32> to vector<64x128xf32>
    %cst_356 = arith.constant dense<0.000000e+00> : vector<2x128xf32>
    %339 = tpu.matmul %336, %338, %cst_356 {dimension_numbers = #tpu.dot_dimension_numbers<[1], [0], [0], [1], [0, 0, 1, 1], [], []>} : vector<2x64xf32>, vector<64x128xf32>, vector<2x128xf32> -> vector<2x128xf32>
    %340 = arith.addf %333, %339 : vector<2x128xf32>
    %c12_357 = arith.constant 12 : index
    %c0_358 = arith.constant 0 : index
    %c0_359 = arith.constant 0 : index
    %341 = vector.load %arg9[%c12_357, %c0_358, %c0_359] : memref<16x2x8xf32, #tpu.memory_space<vmem>>, vector<1x2x8xf32>
    %342 = vector.shape_cast %341 : vector<1x2x8xf32> to vector<2x8xf32>
    %cst_360 = arith.constant dense<0.000000e+00> : vector<2x64xf32>
    %343 = tpu.matmul %342, %252, %cst_360 {dimension_numbers = #tpu.dot_dimension_numbers<[1], [0], [0], [1], [0, 0, 1, 1], [], []>} : vector<2x8xf32>, vector<8x64xf32>, vector<2x64xf32> -> vector<2x64xf32>
    %c12_361 = arith.constant 12 : index
    %c0_362 = arith.constant 0 : index
    %c0_363 = arith.constant 0 : index
    %344 = vector.load %arg10[%c12_361, %c0_362, %c0_363] : memref<16x64x128xf32, #tpu.memory_space<vmem>>, vector<1x64x128xf32>
    %345 = vector.shape_cast %344 : vector<1x64x128xf32> to vector<64x128xf32>
    %cst_364 = arith.constant dense<0.000000e+00> : vector<2x128xf32>
    %346 = tpu.matmul %343, %345, %cst_364 {dimension_numbers = #tpu.dot_dimension_numbers<[1], [0], [0], [1], [0, 0, 1, 1], [], []>} : vector<2x64xf32>, vector<64x128xf32>, vector<2x128xf32> -> vector<2x128xf32>
    %347 = arith.addf %340, %346 : vector<2x128xf32>
    %c13_365 = arith.constant 13 : index
    %c0_366 = arith.constant 0 : index
    %c0_367 = arith.constant 0 : index
    %348 = vector.load %arg9[%c13_365, %c0_366, %c0_367] : memref<16x2x8xf32, #tpu.memory_space<vmem>>, vector<1x2x8xf32>
    %349 = vector.shape_cast %348 : vector<1x2x8xf32> to vector<2x8xf32>
    %cst_368 = arith.constant dense<0.000000e+00> : vector<2x64xf32>
    %350 = tpu.matmul %349, %252, %cst_368 {dimension_numbers = #tpu.dot_dimension_numbers<[1], [0], [0], [1], [0, 0, 1, 1], [], []>} : vector<2x8xf32>, vector<8x64xf32>, vector<2x64xf32> -> vector<2x64xf32>
    %c13_369 = arith.constant 13 : index
    %c0_370 = arith.constant 0 : index
    %c0_371 = arith.constant 0 : index
    %351 = vector.load %arg10[%c13_369, %c0_370, %c0_371] : memref<16x64x128xf32, #tpu.memory_space<vmem>>, vector<1x64x128xf32>
    %352 = vector.shape_cast %351 : vector<1x64x128xf32> to vector<64x128xf32>
    %cst_372 = arith.constant dense<0.000000e+00> : vector<2x128xf32>
    %353 = tpu.matmul %350, %352, %cst_372 {dimension_numbers = #tpu.dot_dimension_numbers<[1], [0], [0], [1], [0, 0, 1, 1], [], []>} : vector<2x64xf32>, vector<64x128xf32>, vector<2x128xf32> -> vector<2x128xf32>
    %354 = arith.addf %347, %353 : vector<2x128xf32>
    %c14_373 = arith.constant 14 : index
    %c0_374 = arith.constant 0 : index
    %c0_375 = arith.constant 0 : index
    %355 = vector.load %arg9[%c14_373, %c0_374, %c0_375] : memref<16x2x8xf32, #tpu.memory_space<vmem>>, vector<1x2x8xf32>
    %356 = vector.shape_cast %355 : vector<1x2x8xf32> to vector<2x8xf32>
    %cst_376 = arith.constant dense<0.000000e+00> : vector<2x64xf32>
    %357 = tpu.matmul %356, %252, %cst_376 {dimension_numbers = #tpu.dot_dimension_numbers<[1], [0], [0], [1], [0, 0, 1, 1], [], []>} : vector<2x8xf32>, vector<8x64xf32>, vector<2x64xf32> -> vector<2x64xf32>
    %c14_377 = arith.constant 14 : index
    %c0_378 = arith.constant 0 : index
    %c0_379 = arith.constant 0 : index
    %358 = vector.load %arg10[%c14_377, %c0_378, %c0_379] : memref<16x64x128xf32, #tpu.memory_space<vmem>>, vector<1x64x128xf32>
    %359 = vector.shape_cast %358 : vector<1x64x128xf32> to vector<64x128xf32>
    %cst_380 = arith.constant dense<0.000000e+00> : vector<2x128xf32>
    %360 = tpu.matmul %357, %359, %cst_380 {dimension_numbers = #tpu.dot_dimension_numbers<[1], [0], [0], [1], [0, 0, 1, 1], [], []>} : vector<2x64xf32>, vector<64x128xf32>, vector<2x128xf32> -> vector<2x128xf32>
    %361 = arith.addf %354, %360 : vector<2x128xf32>
    %c15_381 = arith.constant 15 : index
    %c0_382 = arith.constant 0 : index
    %c0_383 = arith.constant 0 : index
    %362 = vector.load %arg9[%c15_381, %c0_382, %c0_383] : memref<16x2x8xf32, #tpu.memory_space<vmem>>, vector<1x2x8xf32>
    %363 = vector.shape_cast %362 : vector<1x2x8xf32> to vector<2x8xf32>
    %cst_384 = arith.constant dense<0.000000e+00> : vector<2x64xf32>
    %364 = tpu.matmul %363, %252, %cst_384 {dimension_numbers = #tpu.dot_dimension_numbers<[1], [0], [0], [1], [0, 0, 1, 1], [], []>} : vector<2x8xf32>, vector<8x64xf32>, vector<2x64xf32> -> vector<2x64xf32>
    %c15_385 = arith.constant 15 : index
    %c0_386 = arith.constant 0 : index
    %c0_387 = arith.constant 0 : index
    %365 = vector.load %arg10[%c15_385, %c0_386, %c0_387] : memref<16x64x128xf32, #tpu.memory_space<vmem>>, vector<1x64x128xf32>
    %366 = vector.shape_cast %365 : vector<1x64x128xf32> to vector<64x128xf32>
    %cst_388 = arith.constant dense<0.000000e+00> : vector<2x128xf32>
    %367 = tpu.matmul %364, %366, %cst_388 {dimension_numbers = #tpu.dot_dimension_numbers<[1], [0], [0], [1], [0, 0, 1, 1], [], []>} : vector<2x64xf32>, vector<64x128xf32>, vector<2x128xf32> -> vector<2x128xf32>
    %368 = arith.addf %361, %367 : vector<2x128xf32>
    %cst_389 = arith.constant 0.000000e+00 : f32
    %369 = vector.broadcast %cst_389 : f32 to vector<2x128xf32>
    %370 = arith.cmpf oge, %368, %369 : vector<2x128xf32>
    %cst_390 = arith.constant 0.00999999977 : f32
    %371 = vector.broadcast %cst_390 : f32 to vector<2x128xf32>
    %372 = arith.mulf %371, %368 : vector<2x128xf32>
    %373 = arith.select %370, %368, %372 : vector<2x128xi1>, vector<2x128xf32>
    %c0_391 = arith.constant 0 : index
    %c0_392 = arith.constant 0 : index
    %374 = vector.load %arg12[%c0_391, %c0_392] : memref<128x4xf32, #tpu.memory_space<vmem>>, vector<128x4xf32>
    %cst_393 = arith.constant dense<0.000000e+00> : vector<2x4xf32>
    %375 = tpu.matmul %373, %374, %cst_393 {dimension_numbers = #tpu.dot_dimension_numbers<[1], [0], [0], [1], [0, 0, 1, 1], [], []>} : vector<2x128xf32>, vector<128x4xf32>, vector<2x4xf32> -> vector<2x4xf32>
    %c0_394 = arith.constant 0 : index
    %c0_395 = arith.constant 0 : index
    %376 = vector.load %arg13[%c0_394, %c0_395] : memref<1x4xf32, #tpu.memory_space<vmem>>, vector<1x4xf32>
    %377 = vector.broadcast %376 : vector<1x4xf32> to vector<2x4xf32>
    %378 = arith.addf %375, %377 : vector<2x4xf32>
    %379 = vector.extract_strided_slice %378 {offsets = [0, 0], sizes = [2, 2], strides = [1, 1]} : vector<2x4xf32> to vector<2x2xf32>
    %380 = vector.extract_strided_slice %378 {offsets = [0, 2], sizes = [2, 2], strides = [1, 1]} : vector<2x4xf32> to vector<2x2xf32>
    %c0_396 = arith.constant 0 : index
    %c0_397 = arith.constant 0 : index
    %381 = vector.load %arg14[%c0_396, %c0_397] : memref<2x2xf32, #tpu.memory_space<vmem>>, vector<2x2xf32>
    %cst_398 = arith.constant 5.000000e-01 : f32
    %382 = vector.broadcast %cst_398 : f32 to vector<2x2xf32>
    %383 = arith.mulf %382, %380 : vector<2x2xf32>
    %384 = math.exp %383 : vector<2x2xf32>
    %385 = arith.mulf %381, %384 : vector<2x2xf32>
    %386 = arith.addf %379, %385 : vector<2x2xf32>
    %c0_399 = arith.constant 0 : index
    %c0_400 = arith.constant 0 : index
    %387 = vector.load %arg15[%c0_399, %c0_400] : memref<2x2xf32, #tpu.memory_space<vmem>>, vector<2x2xf32>
    tpu.vector_store %arg15[%c0_399, %c0_400], %379 {strides = array<i32>} : memref<2x2xf32, #tpu.memory_space<vmem>>, vector<2x2xf32>,
    %c0_401 = arith.constant 0 : index
    %c0_402 = arith.constant 0 : index
    %388 = vector.load %arg16[%c0_401, %c0_402] : memref<2x2xf32, #tpu.memory_space<vmem>>, vector<2x2xf32>
    tpu.vector_store %arg16[%c0_401, %c0_402], %380 {strides = array<i32>} : memref<2x2xf32, #tpu.memory_space<vmem>>, vector<2x2xf32>,
    %c0_403 = arith.constant 0 : index
    %c0_404 = arith.constant 0 : index
    %389 = vector.load %arg17[%c0_403, %c0_404] : memref<2x2xf32, #tpu.memory_space<vmem>>, vector<2x2xf32>
    tpu.vector_store %arg17[%c0_403, %c0_404], %386 {strides = array<i32>} : memref<2x2xf32, #tpu.memory_space<vmem>>, vector<2x2xf32>,
    return
  }
}

</mosaic_0001>

<llo_original>
// kernel: encoder_forward.1
$region0: #{encoder_forward.1}
  #allocation0 [shape = 'u32[]', space=smem, size = 0x4, offset = 0x4, fixed_abs, tag = 'smem constant byte address 0x4 - core index']
  #allocation1 [shape = 'u32[144,128]{1,0:T(1,128)}', space=vmem, size = 0x12000, scoped, tag = 'internal scratch']
  %s0 = inlined_call_operand.vmem [shape: f32[128,16], index: 0, kind: input, shape index: {}]
  %s1 = inlined_call_operand.vmem [shape: f32[16,16], index: 1, kind: input, shape index: {}]
  %s2 = inlined_call_operand.vmem [shape: f32[1,16], index: 2, kind: input, shape index: {}]
  %s3 = inlined_call_operand.vmem [shape: f32[16,32,128], index: 3, kind: input, shape index: {}]
  %s4 = inlined_call_operand.hbm [shape: f32[16,16,32], index: 4, kind: input, shape index: {}]
  %s5 = inlined_call_operand.vmem [shape: f32[1,32], index: 5, kind: input, shape index: {}]
  %s6 = inlined_call_operand.vmem [shape: f32[16,8,32], index: 6, kind: input, shape index: {}]
  %s7 = inlined_call_operand.hbm [shape: f32[16,32,64], index: 7, kind: input, shape index: {}]
  %s8 = inlined_call_operand.vmem [shape: f32[1,64], index: 8, kind: input, shape index: {}]
  %s9 = inlined_call_operand.vmem [shape: f32[16,2,8], index: 9, kind: input, shape index: {}]
  %s10 = inlined_call_operand.vmem [shape: f32[16,64,128], index: 10, kind: input, shape index: {}]
  %s11 = inlined_call_operand.vmem [shape: f32[1,128], index: 11, kind: input, shape index: {}]
  %s12 = inlined_call_operand.vmem [shape: f32[128,4], index: 12, kind: input, shape index: {}]
  %s13 = inlined_call_operand.vmem [shape: f32[1,4], index: 13, kind: input, shape index: {}]
  %s14 = inlined_call_operand.vmem [shape: f32[2,2], index: 14, kind: input, shape index: {}]
  %s15 = inlined_call_operand.hbm [shape: f32[2,2], index: 15, kind: output, shape index: {0}]
  %s16 = inlined_call_operand.hbm [shape: f32[2,2], index: 16, kind: output, shape index: {1}]
  %s17 = inlined_call_operand.hbm [shape: f32[2,2], index: 17, kind: output, shape index: {2}]
  %18 = xla_tuple %s15, %s16, %s17
  %s19 = sld [smem:[#allocation0]]
  $region94: #{encoder_forward.1} parent=0
    _
  %s21 = ssub.s32 1, %s19
  %s22 = scalar_select 0, %s21, %s19
  $region1: #{encoder_forward.1} parent=0
    #allocation2 [shape = 'u8[131072]{0}', space=vmem, size = 0x20000, scoped, tag = 'input window, operand 4, single buffered']
    #allocation3 [shape = 's32[1]{0}', space=sflag, size = 0x4, scoped, tag = 'scoped memory for encoder_forward.1']
    #allocation4 [shape = 's32[1]{0}', space=sflag, size = 0x4, scoped, tag = 'scoped memory for encoder_forward.1']
    #allocation5 [shape = 'u8[262144]{0}', space=vmem, size = 0x40000, scoped, tag = 'input window, operand 7, single buffered']
    #allocation6 [shape = 's32[1]{0}', space=sflag, size = 0x4, scoped, tag = 'scoped memory for encoder_forward.1']
    #allocation7 [shape = 'u8[1024]{0}', space=vmem, size = 0x400, scoped, tag = 'output window, operand 0, single buffered']
    #allocation8 [shape = 'u8[1024]{0}', space=vmem, size = 0x400, scoped, tag = 'output window, operand 1, single buffered']
    #allocation9 [shape = 's32[1]{0}', space=sflag, size = 0x4, scoped, tag = 'scoped memory for encoder_forward.1']
    #allocation10 [shape = 'u8[1024]{0}', space=vmem, size = 0x400, scoped, tag = 'output window, operand 2, single buffered']
    %23 = vsyncpa [#allocation3], 0
    %24 = vsyncpa [#allocation6], 0
    %25 = vsyncpa [#allocation4], 0
    %26 = vsyncpa [#allocation9], 0
    // Predicated region
    $region2: #{encoder_forward.1} parent=1 // pred_check
      _
    $region3: #{encoder_forward.1} parent=1 // pred_check_branch
      %28 = sbr.rel (0) target = $region5
    $region4: #{encoder_forward.1} parent=1 // pred_region
      _
    $region5: #{encoder_forward.1} parent=1 // pred_fallthru
      _
    // Predicated region
    $region6: #{encoder_forward.1} parent=1 // pred_check
      _
    $region7: #{encoder_forward.1} parent=1 // pred_check_branch
      %30 = sbr.rel (0) target = $region9
    $region8: #{encoder_forward.1} parent=1 // pred_region
      _
    $region9: #{encoder_forward.1} parent=1 // pred_fallthru
      _
    // Predicated region
    $region10: #{encoder_forward.1} parent=1 // pred_check
      _
    $region11: #{encoder_forward.1} parent=1 // pred_check_branch
      %32 = sbr.rel (0) target = $region13
    $region12: #{encoder_forward.1} parent=1 // pred_region
      _
    $region13: #{encoder_forward.1} parent=1 // pred_fallthru
      _
    // Predicated region
    $region14: #{encoder_forward.1} parent=1 // pred_check
      _
    $region15: #{encoder_forward.1} parent=1 // pred_check_branch
      %34 = sbr.rel (0) target = $region17
    $region16: #{encoder_forward.1} parent=1 // pred_region
      _
    $region17: #{encoder_forward.1} parent=1 // pred_fallthru
      _
    // Predicated region
    $region18: #{encoder_forward.1} parent=1 // pred_check
      _
    $region19: #{encoder_forward.1} parent=1 // pred_check_branch
      %36 = sbr.rel (0) target = $region21
    $region20: #{encoder_forward.1} parent=1 // pred_region
      %s38 = ssub.s32 4096, 4096
      %39 = vsyncadd [#allocation3], %s38
      %s40 = sshll.u32 [#allocation2], 4
      %s41 = int_to_ptr.vmem [resolvable:$true] %s40
      %46 = dma.hbm_to_vmem [thread:$0]  %s4, 4096, %s41, [#allocation3], 128, 128, 8
    $region21: #{encoder_forward.1} parent=1 // pred_fallthru
      _
    // Predicated region
    $region22: #{encoder_forward.1} parent=1 // pred_check
      _
    $region23: #{encoder_forward.1} parent=1 // pred_check_branch
      %48 = sbr.rel (0) target = $region25
    $region24: #{encoder_forward.1} parent=1 // pred_region
      _
    $region25: #{encoder_forward.1} parent=1 // pred_fallthru
      _
    // Predicated region
    $region26: #{encoder_forward.1} parent=1 // pred_check
      _
    $region27: #{encoder_forward.1} parent=1 // pred_check_branch
      %50 = sbr.rel (0) target = $region29
    $region28: #{encoder_forward.1} parent=1 // pred_region
      _
    $region29: #{encoder_forward.1} parent=1 // pred_fallthru
      _
    // Predicated region
    $region30: #{encoder_forward.1} parent=1 // pred_check
      _
    $region31: #{encoder_forward.1} parent=1 // pred_check_branch
      %52 = sbr.rel (0) target = $region33
    $region32: #{encoder_forward.1} parent=1 // pred_region
      %s54 = ssub.s32 8192, 8192
      %55 = vsyncadd [#allocation6], %s54
      %s56 = sshll.u32 [#allocation5], 4
      %s57 = int_to_ptr.vmem [resolvable:$true] %s56
      %62 = dma.hbm_to_vmem [thread:$0]  %s7, 8192, %s57, [#allocation6], 128, 128, 8
    $region33: #{encoder_forward.1} parent=1 // pred_fallthru
      _
    // Predicated region
    $region34: #{encoder_forward.1} parent=1 // pred_check
      _
    $region35: #{encoder_forward.1} parent=1 // pred_check_branch
      %64 = sbr.rel (0) target = $region37
    $region36: #{encoder_forward.1} parent=1 // pred_region
      _
    $region37: #{encoder_forward.1} parent=1 // pred_fallthru
      _
    // Predicated region
    $region38: #{encoder_forward.1} parent=1 // pred_check
      _
    $region39: #{encoder_forward.1} parent=1 // pred_check_branch
      %66 = sbr.rel (0) target = $region41
    $region40: #{encoder_forward.1} parent=1 // pred_region
      _
    $region41: #{encoder_forward.1} parent=1 // pred_fallthru
      _
    // Predicated region
    $region42: #{encoder_forward.1} parent=1 // pred_check
      _
    $region43: #{encoder_forward.1} parent=1 // pred_check_branch
      %68 = sbr.rel (0) target = $region45
    $region44: #{encoder_forward.1} parent=1 // pred_region
      _
    $region45: #{encoder_forward.1} parent=1 // pred_fallthru
      _
    // Predicated region
    $region46: #{encoder_forward.1} parent=1 // pred_check
      _
    $region47: #{encoder_forward.1} parent=1 // pred_check_branch
      %70 = sbr.rel (0) target = $region49
    $region48: #{encoder_forward.1} parent=1 // pred_region
      _
    $region49: #{encoder_forward.1} parent=1 // pred_fallthru
      _
    // Predicated region
    $region50: #{encoder_forward.1} parent=1 // pred_check
      _
    $region51: #{encoder_forward.1} parent=1 // pred_check_branch
      %72 = sbr.rel (0) target = $region53
    $region52: #{encoder_forward.1} parent=1 // pred_region
      _
    $region53: #{encoder_forward.1} parent=1 // pred_fallthru
      _
    // Predicated region
    $region54: #{encoder_forward.1} parent=1 // pred_check
      _
    $region55: #{encoder_forward.1} parent=1 // pred_check_branch
      %74 = sbr.rel (0) target = $region57
    $region56: #{encoder_forward.1} parent=1 // pred_region
      _
    $region57: #{encoder_forward.1} parent=1 // pred_fallthru
      _
    // Predicated region
    $region58: #{encoder_forward.1} parent=1 // pred_check
      _
    $region59: #{encoder_forward.1} parent=1 // pred_check_branch
      %76 = sbr.rel (0) target = $region61
    $region60: #{encoder_forward.1} parent=1 // pred_region
      _
    $region61: #{encoder_forward.1} parent=1 // pred_fallthru
      _
    // Predicated region
    $region62: #{encoder_forward.1} parent=1 // pred_check
      _
    $region63: #{encoder_forward.1} parent=1 // pred_check_branch
      %78 = sbr.rel (0) target = $region65
    $region64: #{encoder_forward.1} parent=1 // pred_region
      %79 = dma.done [#allocation3], 4096
    $region65: #{encoder_forward.1} parent=1 // pred_fallthru
      _
    // Predicated region
    $region66: #{encoder_forward.1} parent=1 // pred_check
      _
    $region67: #{encoder_forward.1} parent=1 // pred_check_branch
      %81 = sbr.rel (0) target = $region69
    $region68: #{encoder_forward.1} parent=1 // pred_region
      %82 = dma.done [#allocation6], 8192
    $region69: #{encoder_forward.1} parent=1 // pred_fallthru
      _
    %v83 = vld [vmem:[%s0] sm:$0xff]
    %v84 = vld [vmem:[%s0 + $0x8] sm:$0xff]
    %v85 = vld [vmem:[%s0 + $0x10] sm:$0xff]
    %v86 = vld [vmem:[%s0 + $0x18] sm:$0xff]
    %v87 = vld [vmem:[%s0 + $0x20] sm:$0xff]
    %v88 = vld [vmem:[%s0 + $0x28] sm:$0xff]
    %v89 = vld [vmem:[%s0 + $0x30] sm:$0xff]
    %v90 = vld [vmem:[%s0 + $0x38] sm:$0xff]
    %v91 = vld [vmem:[%s0 + $0x40] sm:$0xff]
    %v92 = vld [vmem:[%s0 + $0x48] sm:$0xff]
    %v93 = vld [vmem:[%s0 + $0x50] sm:$0xff]
    %v94 = vld [vmem:[%s0 + $0x58] sm:$0xff]
    %v95 = vld [vmem:[%s0 + $0x60] sm:$0xff]
    %v96 = vld [vmem:[%s0 + $0x68] sm:$0xff]
    %v97 = vld [vmem:[%s0 + $0x70] sm:$0xff]
    %v98 = vld [vmem:[%s0 + $0x78] sm:$0xff]
    %v99 = vld [vmem:[%s1] sm:$0xff]
    %v100 = vld [vmem:[%s1 + $0x8] sm:$0xff]
    %v101 = vld [vmem:[%s2] sm:$0x1]
    %v103 = vlaneseq
    %v104 = vshrl.u32 %v103, 7
    %v105 = vsub.s32 0, %v104
    %v106 = vrot.slane %v101, %v105
    %vm108 = vcmask 130048
    %v110 = vsel %vm108, %v83, 0
    %v113 = vsel %vm108, %v84, 0
    %v116 = vsel %vm108, %v85, 0
    %v119 = vsel %vm108, %v86, 0
    %v122 = vsel %vm108, %v87, 0
    %v125 = vsel %vm108, %v88, 0
    %v128 = vsel %vm108, %v89, 0
    %v131 = vsel %vm108, %v90, 0
    %v134 = vsel %vm108, %v91, 0
    %v137 = vsel %vm108, %v92, 0
    %v140 = vsel %vm108, %v93, 0
    %v143 = vsel %vm108, %v94, 0
    %v146 = vsel %vm108, %v95, 0
    %v149 = vsel %vm108, %v96, 0
    %v152 = vsel %vm108, %v97, 0
    %v155 = vsel %vm108, %v98, 0
    %157 = vmatprep.subr.mxu0 0.0
    %158 = vmatpush1.msra.mxu0 %v99
    %159 = vmatprep.subr.mxu0 0.0
    %160 = vmatpush1.msra.mxu0 %v100
    %161 = vmatprep.subr.mxu0 0.0
    %162 = vmatpush1.msra.mxu0 0.0
    %163 = vmatprep.subr.mxu0 0.0
    %164 = vmatpush1.msra.mxu0 0.0
    %165 = vmatprep.subr.mxu0 0.0
    %166 = vmatpush1.msra.mxu0 0.0
    %167 = vmatprep.subr.mxu0 0.0
    %168 = vmatpush1.msra.mxu0 0.0
    %169 = vmatprep.subr.mxu0 0.0
    %170 = vmatpush1.msra.mxu0 0.0
    %171 = vmatprep.subr.mxu0 0.0
    %172 = vmatpush1.msra.mxu0 0.0
    %173 = vmatprep.subr.mxu0 0.0
    %174 = vmatpush1.msra.mxu0 0.0
    %175 = vmatprep.subr.mxu0 0.0
    %176 = vmatpush1.msra.mxu0 0.0
    %177 = vmatprep.subr.mxu0 0.0
    %178 = vmatpush1.msra.mxu0 0.0
    %179 = vmatprep.subr.mxu0 0.0
    %180 = vmatpush1.msra.mxu0 0.0
    %181 = vmatprep.subr.mxu0 0.0
    %182 = vmatpush1.msra.mxu0 0.0
    %183 = vmatprep.subr.mxu0 0.0
    %184 = vmatpush1.msra.mxu0 0.0
    %185 = vmatprep.subr.mxu0 0.0
    %186 = vmatpush1.msra.mxu0 0.0
    %187 = vmatprep.subr.mxu0 0.0
    %188 = vmatpush1.msra.mxu0 0.0
    %189 = vmatprep.subr.mxu0 0.0
    %190 = vmatpush1.msra.mxu0 0.0
    %191 = vmatprep.subr.mxu0 0.0
    %192 = vmatpush1.msra.mxu0 0.0
    %193 = vmatprep.subr.mxu0 0.0
    %194 = vmatpush1.msra.mxu0 0.0
    %195 = vmatprep.subr.mxu0 0.0
    %196 = vmatpush1.msra.mxu0 0.0
    %197 = vmatprep.subr.mxu0 0.0
    %198 = vmatpush1.msra.mxu0 0.0
    %199 = vmatprep.subr.mxu0 0.0
    %200 = vmatpush1.msra.mxu0 0.0
    %201 = vmatprep.subr.mxu0 0.0
    %202 = vmatpush1.msra.mxu0 0.0
    %203 = vmatprep.subr.mxu0 0.0
    %204 = vmatpush1.msra.mxu0 0.0
    %205 = vmatprep.subr.mxu0 0.0
    %206 = vmatpush1.msra.mxu0 0.0
    %207 = vmatprep.subr.mxu0 0.0
    %208 = vmatpush1.msra.mxu0 0.0
    %209 = vmatprep.subr.mxu0 0.0
    %210 = vmatpush1.msra.mxu0 0.0
    %211 = vmatprep.subr.mxu0 0.0
    %212 = vmatpush1.msra.mxu0 0.0
    %213 = vmatprep.subr.mxu0 0.0
    %214 = vmatpush1.msra.mxu0 0.0
    %215 = vmatprep.subr.mxu0 0.0
    %216 = vmatpush1.msra.mxu0 0.0
    %217 = vmatprep.subr.mxu0 0.0
    %218 = vmatpush1.msra.mxu0 0.0
    %219 = vmatprep.subr.mxu0 0.0
    %220 = vmatpush1.msra.mxu0 0.0
    %221 = vmatprep.mubr.f32.mxu0 0.0
    %222 = vmatmul.mubr.f32.gmra.mrb[0].mxu0 %v110
    %v223 = vpop.f32.mrb[0].mxu0
    %v224 = vadd.f32 %v106, %v223
    %v225 = vpop.f32.mrb[0].mxu0
    %226 = vmatprep.mubr.f32.mxu0 0.0
    %227 = vmatmul.mubr.f32.gmra.mrb[0].mxu0 %v113
    %v228 = vpop.f32.mrb[0].mxu0
    %v229 = vadd.f32 %v106, %v228
    %v230 = vpop.f32.mrb[0].mxu0
    %231 = vmatprep.mubr.f32.mxu0 0.0
    %232 = vmatmul.mubr.f32.gmra.mrb[0].mxu0 %v116
    %v233 = vpop.f32.mrb[0].mxu0
    %v234 = vadd.f32 %v106, %v233
    %v235 = vpop.f32.mrb[0].mxu0
    %236 = vmatprep.mubr.f32.mxu0 0.0
    %237 = vmatmul.mubr.f32.gmra.mrb[0].mxu0 %v119
    %v238 = vpop.f32.mrb[0].mxu0
    %v239 = vadd.f32 %v106, %v238
    %v240 = vpop.f32.mrb[0].mxu0
    %241 = vmatprep.mubr.f32.mxu0 0.0
    %242 = vmatmul.mubr.f32.gmra.mrb[0].mxu0 %v122
    %v243 = vpop.f32.mrb[0].mxu0
    %v244 = vadd.f32 %v106, %v243
    %v245 = vpop.f32.mrb[0].mxu0
    %246 = vmatprep.mubr.f32.mxu0 0.0
    %247 = vmatmul.mubr.f32.gmra.mrb[0].mxu0 %v125
    %v248 = vpop.f32.mrb[0].mxu0
    %v249 = vadd.f32 %v106, %v248
    %v250 = vpop.f32.mrb[0].mxu0
    %251 = vmatprep.mubr.f32.mxu0 0.0
    %252 = vmatmul.mubr.f32.gmra.mrb[0].mxu0 %v128
    %v253 = vpop.f32.mrb[0].mxu0
    %v254 = vadd.f32 %v106, %v253
    %v255 = vpop.f32.mrb[0].mxu0
    %256 = vmatprep.mubr.f32.mxu0 0.0
    %257 = vmatmul.mubr.f32.gmra.mrb[0].mxu0 %v131
    %v258 = vpop.f32.mrb[0].mxu0
    %v259 = vadd.f32 %v106, %v258
    %v260 = vpop.f32.mrb[0].mxu0
    %261 = vmatprep.mubr.f32.mxu0 0.0
    %262 = vmatmul.mubr.f32.gmra.mrb[0].mxu0 %v134
    %v263 = vpop.f32.mrb[0].mxu0
    %v264 = vadd.f32 %v106, %v263
    %v265 = vpop.f32.mrb[0].mxu0
    %266 = vmatprep.mubr.f32.mxu0 0.0
    %267 = vmatmul.mubr.f32.gmra.mrb[0].mxu0 %v137
    %v268 = vpop.f32.mrb[0].mxu0
    %v269 = vadd.f32 %v106, %v268
    %v270 = vpop.f32.mrb[0].mxu0
    %271 = vmatprep.mubr.f32.mxu0 0.0
    %272 = vmatmul.mubr.f32.gmra.mrb[0].mxu0 %v140
    %v273 = vpop.f32.mrb[0].mxu0
    %v274 = vadd.f32 %v106, %v273
    %v275 = vpop.f32.mrb[0].mxu0
    %276 = vmatprep.mubr.f32.mxu0 0.0
    %277 = vmatmul.mubr.f32.gmra.mrb[0].mxu0 %v143
    %v278 = vpop.f32.mrb[0].mxu0
    %v279 = vadd.f32 %v106, %v278
    %v280 = vpop.f32.mrb[0].mxu0
    %281 = vmatprep.mubr.f32.mxu0 0.0
    %282 = vmatmul.mubr.f32.gmra.mrb[0].mxu0 %v146
    %v283 = vpop.f32.mrb[0].mxu0
    %v284 = vadd.f32 %v106, %v283
    %v285 = vpop.f32.mrb[0].mxu0
    %286 = vmatprep.mubr.f32.mxu0 0.0
    %287 = vmatmul.mubr.f32.gmra.mrb[0].mxu0 %v149
    %v288 = vpop.f32.mrb[0].mxu0
    %v289 = vadd.f32 %v106, %v288
    %v290 = vpop.f32.mrb[0].mxu0
    %291 = vmatprep.mubr.f32.mxu0 0.0
    %292 = vmatmul.mubr.f32.gmra.mrb[0].mxu0 %v152
    %v293 = vpop.f32.mrb[0].mxu0
    %v294 = vadd.f32 %v106, %v293
    %v295 = vpop.f32.mrb[0].mxu0
    %296 = vmatprep.mubr.f32.mxu0 0.0
    %297 = vmatmul.mubr.f32.gmra.mrb[0].mxu0 %v155
    %v298 = vpop.f32.mrb[0].mxu0
    %v299 = vadd.f32 %v106, %v298
    %v300 = vpop.f32.mrb[0].mxu0
    %301 = vdwg.mxu0
    %vm302 = vcmp.ge.f32.partialorder %v224, 0.0
    %vm303 = vcmp.ge.f32.partialorder %v229, 0.0
    %vm304 = vcmp.ge.f32.partialorder %v234, 0.0
    %vm305 = vcmp.ge.f32.partialorder %v239, 0.0
    %vm306 = vcmp.ge.f32.partialorder %v244, 0.0
    %vm307 = vcmp.ge.f32.partialorder %v249, 0.0
    %vm308 = vcmp.ge.f32.partialorder %v254, 0.0
    %vm309 = vcmp.ge.f32.partialorder %v259, 0.0
    %vm310 = vcmp.ge.f32.partialorder %v264, 0.0
    %vm311 = vcmp.ge.f32.partialorder %v269, 0.0
    %vm312 = vcmp.ge.f32.partialorder %v274, 0.0
    %vm313 = vcmp.ge.f32.partialorder %v279, 0.0
    %vm314 = vcmp.ge.f32.partialorder %v284, 0.0
    %vm315 = vcmp.ge.f32.partialorder %v289, 0.0
    %vm316 = vcmp.ge.f32.partialorder %v294, 0.0
    %vm317 = vcmp.ge.f32.partialorder %v299, 0.0
    %v318 = vmul.f32 %v224, 0.01
    %v319 = vmul.f32 %v229, 0.01
    %v320 = vmul.f32 %v234, 0.01
    %v321 = vmul.f32 %v239, 0.01
    %v322 = vmul.f32 %v244, 0.01
    %v323 = vmul.f32 %v249, 0.01
    %v324 = vmul.f32 %v254, 0.01
    %v325 = vmul.f32 %v259, 0.01
    %v326 = vmul.f32 %v264, 0.01
    %v327 = vmul.f32 %v269, 0.01
    %v328 = vmul.f32 %v274, 0.01
    %v329 = vmul.f32 %v279, 0.01
    %v330 = vmul.f32 %v284, 0.01
    %v331 = vmul.f32 %v289, 0.01
    %v332 = vmul.f32 %v294, 0.01
    %v333 = vmul.f32 %v299, 0.01
    %v334 = vsel %vm302, %v224, %v318
    %v335 = vsel %vm303, %v229, %v319
    %v336 = vsel %vm304, %v234, %v320
    %v337 = vsel %vm305, %v239, %v321
    %v338 = vsel %vm306, %v244, %v322
    %v339 = vsel %vm307, %v249, %v323
    %v340 = vsel %vm308, %v254, %v324
    %v341 = vsel %vm309, %v259, %v325
    %v342 = vsel %vm310, %v264, %v326
    %v343 = vsel %vm311, %v269, %v327
    %v344 = vsel %vm312, %v274, %v328
    %v345 = vsel %vm313, %v279, %v329
    %v346 = vsel %vm314, %v284, %v330
    %v347 = vsel %vm315, %v289, %v331
    %v348 = vsel %vm316, %v294, %v332
    %v349 = vsel %vm317, %v299, %v333
    %v350 = vld [vmem:[%s5] sm:$0x1]
    %v352 = vlaneseq
    %v353 = vshrl.u32 %v352, 7
    %v354 = vsub.s32 0, %v353
    %v355 = vrot.slane %v350, %v354
    %v357 = vadd.f32 %v355, 0.0
    %v358 = vld [vmem:[%s3] sm:$0xff]
    %v359 = vld [vmem:[%s3 + $0x8] sm:$0xff]
    %v360 = vld [vmem:[%s3 + $0x10] sm:$0xff]
    %v361 = vld [vmem:[%s3 + $0x18] sm:$0xff]
    %362 = vmatprep.subr.mxu0 0.0
    %363 = vmatpush1.msra.mxu0 %v334
    %364 = vmatprep.subr.mxu0 0.0
    %365 = vmatpush1.msra.mxu0 %v335
    %366 = vmatprep.subr.mxu0 0.0
    %367 = vmatpush1.msra.mxu0 %v336
    %368 = vmatprep.subr.mxu0 0.0
    %369 = vmatpush1.msra.mxu0 %v337
    %370 = vmatprep.subr.mxu0 0.0
    %371 = vmatpush1.msra.mxu0 %v338
    %372 = vmatprep.subr.mxu0 0.0
    %373 = vmatpush1.msra.mxu0 %v339
    %374 = vmatprep.subr.mxu0 0.0
    %375 = vmatpush1.msra.mxu0 %v340
    %376 = vmatprep.subr.mxu0 0.0
    %377 = vmatpush1.msra.mxu0 %v341
    %378 = vmatprep.subr.mxu0 0.0
    %379 = vmatpush1.msra.mxu0 %v342
    %380 = vmatprep.subr.mxu0 0.0
    %381 = vmatpush1.msra.mxu0 %v343
    %382 = vmatprep.subr.mxu0 0.0
    %383 = vmatpush1.msra.mxu0 %v344
    %384 = vmatprep.subr.mxu0 0.0
    %385 = vmatpush1.msra.mxu0 %v345
    %386 = vmatprep.subr.mxu0 0.0
    %387 = vmatpush1.msra.mxu0 %v346
    %388 = vmatprep.subr.mxu0 0.0
    %389 = vmatpush1.msra.mxu0 %v347
    %390 = vmatprep.subr.mxu0 0.0
    %391 = vmatpush1.msra.mxu0 %v348
    %392 = vmatprep.subr.mxu0 0.0
    %393 = vmatpush1.msra.mxu0 %v349
    %394 = vmatprep.subr.mxu0 0.0
    %395 = vmatpush1.msra.mxu0 0.0
    %396 = vmatprep.subr.mxu0 0.0
    %397 = vmatpush1.msra.mxu0 0.0
    %398 = vmatprep.subr.mxu0 0.0
    %399 = vmatpush1.msra.mxu0 0.0
    %400 = vmatprep.subr.mxu0 0.0
    %401 = vmatpush1.msra.mxu0 0.0
    %402 = vmatprep.subr.mxu0 0.0
    %403 = vmatpush1.msra.mxu0 0.0
    %404 = vmatprep.subr.mxu0 0.0
    %405 = vmatpush1.msra.mxu0 0.0
    %406 = vmatprep.subr.mxu0 0.0
    %407 = vmatpush1.msra.mxu0 0.0
    %408 = vmatprep.subr.mxu0 0.0
    %409 = vmatpush1.msra.mxu0 0.0
    %410 = vmatprep.subr.mxu0 0.0
    %411 = vmatpush1.msra.mxu0 0.0
    %412 = vmatprep.subr.mxu0 0.0
    %413 = vmatpush1.msra.mxu0 0.0
    %414 = vmatprep.subr.mxu0 0.0
    %415 = vmatpush1.msra.mxu0 0.0
    %416 = vmatprep.subr.mxu0 0.0
    %417 = vmatpush1.msra.mxu0 0.0
    %418 = vmatprep.subr.mxu0 0.0
    %419 = vmatpush1.msra.mxu0 0.0
    %420 = vmatprep.subr.mxu0 0.0
    %421 = vmatpush1.msra.mxu0 0.0
    %422 = vmatprep.subr.mxu0 0.0
    %423 = vmatpush1.msra.mxu0 0.0
    %424 = vmatprep.subr.mxu0 0.0
    %425 = vmatpush1.msra.mxu0 0.0
    %426 = vmatprep.mubr.f32.mxu0 0.0
    %427 = vmatmul.mubr.f32.gmra.mrb[0].mxu0 %v358
    %v428 = vpop.f32.mrb[0].mxu0
    %v429 = vadd.f32 0.0, %v428
    %v430 = vpop.f32.mrb[0].mxu0
    %431 = vmatprep.mubr.f32.mxu0 0.0
    %432 = vmatmul.mubr.f32.gmra.mrb[0].mxu0 %v359
    %v433 = vpop.f32.mrb[0].mxu0
    %v434 = vadd.f32 0.0, %v433
    %v435 = vpop.f32.mrb[0].mxu0
    %436 = vmatprep.mubr.f32.mxu0 0.0
    %437 = vmatmul.mubr.f32.gmra.mrb[0].mxu0 %v360
    %v438 = vpop.f32.mrb[0].mxu0
    %v439 = vadd.f32 0.0, %v438
    %v440 = vpop.f32.mrb[0].mxu0
    %441 = vmatprep.mubr.f32.mxu0 0.0
    %442 = vmatmul.mubr.f32.gmra.mrb[0].mxu0 %v361
    %v443 = vpop.f32.mrb[0].mxu0
    %v444 = vadd.f32 0.0, %v443
    %v445 = vpop.f32.mrb[0].mxu0
    %446 = vdwg.mxu0
    %v447 = vld [vmem:[#allocation2] sm:$0xff]
    %v448 = vld [vmem:[#allocation2 + $0x8] sm:$0xff]
    %v450 = vsel %vm108, %v429, 0
    %v453 = vsel %vm108, %v434, 0
    %v456 = vsel %vm108, %v439, 0
    %v459 = vsel %vm108, %v444, 0
    %461 = vmatprep.subr.mxu0 0.0
    %462 = vmatpush1.msra.mxu0 %v447
    %463 = vmatprep.subr.mxu0 0.0
    %464 = vmatpush1.msra.mxu0 %v448
    %465 = vmatprep.subr.mxu0 0.0
    %466 = vmatpush1.msra.mxu0 0.0
    %467 = vmatprep.subr.mxu0 0.0
    %468 = vmatpush1.msra.mxu0 0.0
    %469 = vmatprep.subr.mxu0 0.0
    %470 = vmatpush1.msra.mxu0 0.0
    %471 = vmatprep.subr.mxu0 0.0
    %472 = vmatpush1.msra.mxu0 0.0
    %473 = vmatprep.subr.mxu0 0.0
    %474 = vmatpush1.msra.mxu0 0.0
    %475 = vmatprep.subr.mxu0 0.0
    %476 = vmatpush1.msra.mxu0 0.0
    %477 = vmatprep.subr.mxu0 0.0
    %478 = vmatpush1.msra.mxu0 0.0
    %479 = vmatprep.subr.mxu0 0.0
    %480 = vmatpush1.msra.mxu0 0.0
    %481 = vmatprep.subr.mxu0 0.0
    %482 = vmatpush1.msra.mxu0 0.0
    %483 = vmatprep.subr.mxu0 0.0
    %484 = vmatpush1.msra.mxu0 0.0
    %485 = vmatprep.subr.mxu0 0.0
    %486 = vmatpush1.msra.mxu0 0.0
    %487 = vmatprep.subr.mxu0 0.0
    %488 = vmatpush1.msra.mxu0 0.0
    %489 = vmatprep.subr.mxu0 0.0
    %490 = vmatpush1.msra.mxu0 0.0
    %491 = vmatprep.subr.mxu0 0.0
    %492 = vmatpush1.msra.mxu0 0.0
    %493 = vmatprep.subr.mxu0 0.0
    %494 = vmatpush1.msra.mxu0 0.0
    %495 = vmatprep.subr.mxu0 0.0
    %496 = vmatpush1.msra.mxu0 0.0
    %497 = vmatprep.subr.mxu0 0.0
    %498 = vmatpush1.msra.mxu0 0.0
    %499 = vmatprep.subr.mxu0 0.0
    %500 = vmatpush1.msra.mxu0 0.0
    %501 = vmatprep.subr.mxu0 0.0
    %502 = vmatpush1.msra.mxu0 0.0
    %503 = vmatprep.subr.mxu0 0.0
    %504 = vmatpush1.msra.mxu0 0.0
    %505 = vmatprep.subr.mxu0 0.0
    %506 = vmatpush1.msra.mxu0 0.0
    %507 = vmatprep.subr.mxu0 0.0
    %508 = vmatpush1.msra.mxu0 0.0
    %509 = vmatprep.subr.mxu0 0.0
    %510 = vmatpush1.msra.mxu0 0.0
    %511 = vmatprep.subr.mxu0 0.0
    %512 = vmatpush1.msra.mxu0 0.0
    %513 = vmatprep.subr.mxu0 0.0
    %514 = vmatpush1.msra.mxu0 0.0
    %515 = vmatprep.subr.mxu0 0.0
    %516 = vmatpush1.msra.mxu0 0.0
    %517 = vmatprep.subr.mxu0 0.0
    %518 = vmatpush1.msra.mxu0 0.0
    %519 = vmatprep.subr.mxu0 0.0
    %520 = vmatpush1.msra.mxu0 0.0
    %521 = vmatprep.subr.mxu0 0.0
    %522 = vmatpush1.msra.mxu0 0.0
    %523 = vmatprep.subr.mxu0 0.0
    %524 = vmatpush1.msra.mxu0 0.0
    %525 = vmatprep.mubr.f32.mxu0 0.0
    %526 = vmatmul.mubr.f32.gmra.mrb[0].mxu0 %v450
    %v527 = vpop.f32.mrb[0].mxu0
    %v528 = vadd.f32 0.0, %v527
    %v529 = vpop.f32.mrb[0].mxu0
    %530 = vmatprep.mubr.f32.mxu0 0.0
    %531 = vmatmul.mubr.f32.gmra.mrb[0].mxu0 %v453
    %v532 = vpop.f32.mrb[0].mxu0
    %v533 = vadd.f32 0.0, %v532
    %v534 = vpop.f32.mrb[0].mxu0
    %535 = vmatprep.mubr.f32.mxu0 0.0
    %536 = vmatmul.mubr.f32.gmra.mrb[0].mxu0 %v456
    %v537 = vpop.f32.mrb[0].mxu0
    %v538 = vadd.f32 0.0, %v537
    %v539 = vpop.f32.mrb[0].mxu0
    %540 = vmatprep.mubr.f32.mxu0 0.0
    %541 = vmatmul.mubr.f32.gmra.mrb[0].mxu0 %v459
    %v542 = vpop.f32.mrb[0].mxu0
    %v543 = vadd.f32 0.0, %v542
    %v544 = vpop.f32.mrb[0].mxu0
    %545 = vdwg.mxu0
    %v546 = vadd.f32 %v357, %v528
    %v547 = vadd.f32 %v357, %v533
    %v548 = vadd.f32 %v357, %v538
    %v549 = vadd.f32 %v357, %v543
    %s550 = scalar_lea.vmem %s3, 32
    %v551 = vld [vmem:[%s550] sm:$0xff]
    %v552 = vld [vmem:[%s550 + $0x8] sm:$0xff]
    %v553 = vld [vmem:[%s550 + $0x10] sm:$0xff]
    %v554 = vld [vmem:[%s550 + $0x18] sm:$0xff]
    %555 = vmatprep.subr.mxu0 0.0
    %556 = vmatpush1.msra.mxu0 %v334
    %557 = vmatprep.subr.mxu0 0.0
    %558 = vmatpush1.msra.mxu0 %v335
    %559 = vmatprep.subr.mxu0 0.0
    %560 = vmatpush1.msra.mxu0 %v336
    %561 = vmatprep.subr.mxu0 0.0
    %562 = vmatpush1.msra.mxu0 %v337
    %563 = vmatprep.subr.mxu0 0.0
    %564 = vmatpush1.msra.mxu0 %v338
    %565 = vmatprep.subr.mxu0 0.0
    %566 = vmatpush1.msra.mxu0 %v339
    %567 = vmatprep.subr.mxu0 0.0
    %568 = vmatpush1.msra.mxu0 %v340
    %569 = vmatprep.subr.mxu0 0.0
    %570 = vmatpush1.msra.mxu0 %v341
    %571 = vmatprep.subr.mxu0 0.0
    %572 = vmatpush1.msra.mxu0 %v342
    %573 = vmatprep.subr.mxu0 0.0
    %574 = vmatpush1.msra.mxu0 %v343
    %575 = vmatprep.subr.mxu0 0.0
    %576 = vmatpush1.msra.mxu0 %v344
    %577 = vmatprep.subr.mxu0 0.0
    %578 = vmatpush1.msra.mxu0 %v345
    %579 = vmatprep.subr.mxu0 0.0
    %580 = vmatpush1.msra.mxu0 %v346
    %581 = vmatprep.subr.mxu0 0.0
    %582 = vmatpush1.msra.mxu0 %v347
    %583 = vmatprep.subr.mxu0 0.0
    %584 = vmatpush1.msra.mxu0 %v348
    %585 = vmatprep.subr.mxu0 0.0
    %586 = vmatpush1.msra.mxu0 %v349
    %587 = vmatprep.subr.mxu0 0.0
    %588 = vmatpush1.msra.mxu0 0.0
    %589 = vmatprep.subr.mxu0 0.0
    %590 = vmatpush1.msra.mxu0 0.0
    %591 = vmatprep.subr.mxu0 0.0
    %592 = vmatpush1.msra.mxu0 0.0
    %593 = vmatprep.subr.mxu0 0.0
    %594 = vmatpush1.msra.mxu0 0.0
    %595 = vmatprep.subr.mxu0 0.0
    %596 = vmatpush1.msra.mxu0 0.0
    %597 = vmatprep.subr.mxu0 0.0
    %598 = vmatpush1.msra.mxu0 0.0
    %599 = vmatprep.subr.mxu0 0.0
    %600 = vmatpush1.msra.mxu0 0.0
    %601 = vmatprep.subr.mxu0 0.0
    %602 = vmatpush1.msra.mxu0 0.0
    %603 = vmatprep.subr.mxu0 0.0
    %604 = vmatpush1.msra.mxu0 0.0
    %605 = vmatprep.subr.mxu0 0.0
    %606 = vmatpush1.msra.mxu0 0.0
    %607 = vmatprep.subr.mxu0 0.0
    %608 = vmatpush1.msra.mxu0 0.0
    %609 = vmatprep.subr.mxu0 0.0
    %610 = vmatpush1.msra.mxu0 0.0
    %611 = vmatprep.subr.mxu0 0.0
    %612 = vmatpush1.msra.mxu0 0.0
    %613 = vmatprep.subr.mxu0 0.0
    %614 = vmatpush1.msra.mxu0 0.0
    %615 = vmatprep.subr.mxu0 0.0
    %616 = vmatpush1.msra.mxu0 0.0
    %617 = vmatprep.subr.mxu0 0.0
    %618 = vmatpush1.msra.mxu0 0.0
    %619 = vmatprep.mubr.f32.mxu0 0.0
    %620 = vmatmul.mubr.f32.gmra.mrb[0].mxu0 %v551
    %v621 = vpop.f32.mrb[0].mxu0
    %v622 = vadd.f32 0.0, %v621
    %v623 = vpop.f32.mrb[0].mxu0
    %624 = vmatprep.mubr.f32.mxu0 0.0
    %625 = vmatmul.mubr.f32.gmra.mrb[0].mxu0 %v552
    %v626 = vpop.f32.mrb[0].mxu0
    %v627 = vadd.f32 0.0, %v626
    %v628 = vpop.f32.mrb[0].mxu0
    %629 = vmatprep.mubr.f32.mxu0 0.0
    %630 = vmatmul.mubr.f32.gmra.mrb[0].mxu0 %v553
    %v631 = vpop.f32.mrb[0].mxu0
    %v632 = vadd.f32 0.0, %v631
    %v633 = vpop.f32.mrb[0].mxu0
    %634 = vmatprep.mubr.f32.mxu0 0.0
    %635 = vmatmul.mubr.f32.gmra.mrb[0].mxu0 %v554
    %v636 = vpop.f32.mrb[0].mxu0
    %v637 = vadd.f32 0.0, %v636
    %v638 = vpop.f32.mrb[0].mxu0
    %639 = vdwg.mxu0
    %s640 = scalar_lea.vmem [#allocation2], 16
    %v641 = vld [vmem:[%s640] sm:$0xff]
    %v642 = vld [vmem:[%s640 + $0x8] sm:$0xff]
    %v644 = vsel %vm108, %v622, 0
    %v647 = vsel %vm108, %v627, 0
    %v650 = vsel %vm108, %v632, 0
    %v653 = vsel %vm108, %v637, 0
    %655 = vmatprep.subr.mxu0 0.0
    %656 = vmatpush1.msra.mxu0 %v641
    %657 = vmatprep.subr.mxu0 0.0
    %658 = vmatpush1.msra.mxu0 %v642
    %659 = vmatprep.subr.mxu0 0.0
    %660 = vmatpush1.msra.mxu0 0.0
    %661 = vmatprep.subr.mxu0 0.0
    %662 = vmatpush1.msra.mxu0 0.0
    %663 = vmatprep.subr.mxu0 0.0
    %664 = vmatpush1.msra.mxu0 0.0
    %665 = vmatprep.subr.mxu0 0.0
    %666 = vmatpush1.msra.mxu0 0.0
    %667 = vmatprep.subr.mxu0 0.0
    %668 = vmatpush1.msra.mxu0 0.0
    %669 = vmatprep.subr.mxu0 0.0
    %670 = vmatpush1.msra.mxu0 0.0
    %671 = vmatprep.subr.mxu0 0.0
    %672 = vmatpush1.msra.mxu0 0.0
    %673 = vmatprep.subr.mxu0 0.0
    %674 = vmatpush1.msra.mxu0 0.0
    %675 = vmatprep.subr.mxu0 0.0
    %676 = vmatpush1.msra.mxu0 0.0
    %677 = vmatprep.subr.mxu0 0.0
    %678 = vmatpush1.msra.mxu0 0.0
    %679 = vmatprep.subr.mxu0 0.0
    %680 = vmatpush1.msra.mxu0 0.0
    %681 = vmatprep.subr.mxu0 0.0
    %682 = vmatpush1.msra.mxu0 0.0
    %683 = vmatprep.subr.mxu0 0.0
    %684 = vmatpush1.msra.mxu0 0.0
    %685 = vmatprep.subr.mxu0 0.0
    %686 = vmatpush1.msra.mxu0 0.0
    %687 = vmatprep.subr.mxu0 0.0
    %688 = vmatpush1.msra.mxu0 0.0
    %689 = vmatprep.subr.mxu0 0.0
    %690 = vmatpush1.msra.mxu0 0.0
    %691 = vmatprep.subr.mxu0 0.0
    %692 = vmatpush1.msra.mxu0 0.0
    %693 = vmatprep.subr.mxu0 0.0
    %694 = vmatpush1.msra.mxu0 0.0
    %695 = vmatprep.subr.mxu0 0.0
    %696 = vmatpush1.msra.mxu0 0.0
    %697 = vmatprep.subr.mxu0 0.0
    %698 = vmatpush1.msra.mxu0 0.0
    %699 = vmatprep.subr.mxu0 0.0
    %700 = vmatpush1.msra.mxu0 0.0
    %701 = vmatprep.subr.mxu0 0.0
    %702 = vmatpush1.msra.mxu0 0.0
    %703 = vmatprep.subr.mxu0 0.0
    %704 = vmatpush1.msra.mxu0 0.0
    %705 = vmatprep.subr.mxu0 0.0
    %706 = vmatpush1.msra.mxu0 0.0
    %707 = vmatprep.subr.mxu0 0.0
    %708 = vmatpush1.msra.mxu0 0.0
    %709 = vmatprep.subr.mxu0 0.0
    %710 = vmatpush1.msra.mxu0 0.0
    %711 = vmatprep.subr.mxu0 0.0
    %712 = vmatpush1.msra.mxu0 0.0
    %713 = vmatprep.subr.mxu0 0.0
    %714 = vmatpush1.msra.mxu0 0.0
    %715 = vmatprep.subr.mxu0 0.0
    %716 = vmatpush1.msra.mxu0 0.0
    %717 = vmatprep.subr.mxu0 0.0
    %718 = vmatpush1.msra.mxu0 0.0
    %719 = vmatprep.mubr.f32.mxu0 0.0
    %720 = vmatmul.mubr.f32.gmra.mrb[0].mxu0 %v644
    %v721 = vpop.f32.mrb[0].mxu0
    %v722 = vadd.f32 0.0, %v721
    %v723 = vpop.f32.mrb[0].mxu0
    %724 = vmatprep.mubr.f32.mxu0 0.0
    %725 = vmatmul.mubr.f32.gmra.mrb[0].mxu0 %v647
    %v726 = vpop.f32.mrb[0].mxu0
    %v727 = vadd.f32 0.0, %v726
    %v728 = vpop.f32.mrb[0].mxu0
    %729 = vmatprep.mubr.f32.mxu0 0.0
    %730 = vmatmul.mubr.f32.gmra.mrb[0].mxu0 %v650
    %v731 = vpop.f32.mrb[0].mxu0
    %v732 = vadd.f32 0.0, %v731
    %v733 = vpop.f32.mrb[0].mxu0
    %734 = vmatprep.mubr.f32.mxu0 0.0
    %735 = vmatmul.mubr.f32.gmra.mrb[0].mxu0 %v653
    %v736 = vpop.f32.mrb[0].mxu0
    %v737 = vadd.f32 0.0, %v736
    %v738 = vpop.f32.mrb[0].mxu0
    %739 = vdwg.mxu0
    %v740 = vadd.f32 %v546, %v722
    %v741 = vadd.f32 %v547, %v727
    %v742 = vadd.f32 %v548, %v732
    %v743 = vadd.f32 %v549, %v737
    %s744 = scalar_lea.vmem %s3, 64
    %v745 = vld [vmem:[%s744] sm:$0xff]
    %v746 = vld [vmem:[%s744 + $0x8] sm:$0xff]
    %v747 = vld [vmem:[%s744 + $0x10] sm:$0xff]
    %v748 = vld [vmem:[%s744 + $0x18] sm:$0xff]
    %749 = vmatprep.subr.mxu0 0.0
    %750 = vmatpush1.msra.mxu0 %v334
    %751 = vmatprep.subr.mxu0 0.0
    %752 = vmatpush1.msra.mxu0 %v335
    %753 = vmatprep.subr.mxu0 0.0
    %754 = vmatpush1.msra.mxu0 %v336
    %755 = vmatprep.subr.mxu0 0.0
    %756 = vmatpush1.msra.mxu0 %v337
    %757 = vmatprep.subr.mxu0 0.0
    %758 = vmatpush1.msra.mxu0 %v338
    %759 = vmatprep.subr.mxu0 0.0
    %760 = vmatpush1.msra.mxu0 %v339
    %761 = vmatprep.subr.mxu0 0.0
    %762 = vmatpush1.msra.mxu0 %v340
    %763 = vmatprep.subr.mxu0 0.0
    %764 = vmatpush1.msra.mxu0 %v341
    %765 = vmatprep.subr.mxu0 0.0
    %766 = vmatpush1.msra.mxu0 %v342
    %767 = vmatprep.subr.mxu0 0.0
    %768 = vmatpush1.msra.mxu0 %v343
    %769 = vmatprep.subr.mxu0 0.0
    %770 = vmatpush1.msra.mxu0 %v344
    %771 = vmatprep.subr.mxu0 0.0
    %772 = vmatpush1.msra.mxu0 %v345
    %773 = vmatprep.subr.mxu0 0.0
    %774 = vmatpush1.msra.mxu0 %v346
    %775 = vmatprep.subr.mxu0 0.0
    %776 = vmatpush1.msra.mxu0 %v347
    %777 = vmatprep.subr.mxu0 0.0
    %778 = vmatpush1.msra.mxu0 %v348
    %779 = vmatprep.subr.mxu0 0.0
    %780 = vmatpush1.msra.mxu0 %v349
    %781 = vmatprep.subr.mxu0 0.0
    %782 = vmatpush1.msra.mxu0 0.0
    %783 = vmatprep.subr.mxu0 0.0
    %784 = vmatpush1.msra.mxu0 0.0
    %785 = vmatprep.subr.mxu0 0.0
    %786 = vmatpush1.msra.mxu0 0.0
    %787 = vmatprep.subr.mxu0 0.0
    %788 = vmatpush1.msra.mxu0 0.0
    %789 = vmatprep.subr.mxu0 0.0
    %790 = vmatpush1.msra.mxu0 0.0
    %791 = vmatprep.subr.mxu0 0.0
    %792 = vmatpush1.msra.mxu0 0.0
    %793 = vmatprep.subr.mxu0 0.0
    %794 = vmatpush1.msra.mxu0 0.0
    %795 = vmatprep.subr.mxu0 0.0
    %796 = vmatpush1.msra.mxu0 0.0
    %797 = vmatprep.subr.mxu0 0.0
    %798 = vmatpush1.msra.mxu0 0.0
    %799 = vmatprep.subr.mxu0 0.0
    %800 = vmatpush1.msra.mxu0 0.0
    %801 = vmatprep.subr.mxu0 0.0
    %802 = vmatpush1.msra.mxu0 0.0
    %803 = vmatprep.subr.mxu0 0.0
    %804 = vmatpush1.msra.mxu0 0.0
    %805 = vmatprep.subr.mxu0 0.0
    %806 = vmatpush1.msra.mxu0 0.0
    %807 = vmatprep.subr.mxu0 0.0
    %808 = vmatpush1.msra.mxu0 0.0
    %809 = vmatprep.subr.mxu0 0.0
    %810 = vmatpush1.msra.mxu0 0.0
    %811 = vmatprep.subr.mxu0 0.0
    %812 = vmatpush1.msra.mxu0 0.0
    %813 = vmatprep.mubr.f32.mxu0 0.0
    %814 = vmatmul.mubr.f32.gmra.mrb[0].mxu0 %v745
    %v815 = vpop.f32.mrb[0].mxu0
    %v816 = vadd.f32 0.0, %v815
    %v817 = vpop.f32.mrb[0].mxu0
    %818 = vmatprep.mubr.f32.mxu0 0.0
    %819 = vmatmul.mubr.f32.gmra.mrb[0].mxu0 %v746
    %v820 = vpop.f32.mrb[0].mxu0
    %v821 = vadd.f32 0.0, %v820
    %v822 = vpop.f32.mrb[0].mxu0
    %823 = vmatprep.mubr.f32.mxu0 0.0
    %824 = vmatmul.mubr.f32.gmra.mrb[0].mxu0 %v747
    %v825 = vpop.f32.mrb[0].mxu0
    %v826 = vadd.f32 0.0, %v825
    %v827 = vpop.f32.mrb[0].mxu0
    %828 = vmatprep.mubr.f32.mxu0 0.0
    %829 = vmatmul.mubr.f32.gmra.mrb[0].mxu0 %v748
    %v830 = vpop.f32.mrb[0].mxu0
    %v831 = vadd.f32 0.0, %v830
    %v832 = vpop.f32.mrb[0].mxu0
    %833 = vdwg.mxu0
    %s834 = scalar_lea.vmem [#allocation2], 32
    %v835 = vld [vmem:[%s834] sm:$0xff]
    %v836 = vld [vmem:[%s834 + $0x8] sm:$0xff]
    %v838 = vsel %vm108, %v816, 0
    %v841 = vsel %vm108, %v821, 0
    %v844 = vsel %vm108, %v826, 0
    %v847 = vsel %vm108, %v831, 0
    %849 = vmatprep.subr.mxu0 0.0
    %850 = vmatpush1.msra.mxu0 %v835
    %851 = vmatprep.subr.mxu0 0.0
    %852 = vmatpush1.msra.mxu0 %v836
    %853 = vmatprep.subr.mxu0 0.0
    %854 = vmatpush1.msra.mxu0 0.0
    %855 = vmatprep.subr.mxu0 0.0
    %856 = vmatpush1.msra.mxu0 0.0
    %857 = vmatprep.subr.mxu0 0.0
    %858 = vmatpush1.msra.mxu0 0.0
    %859 = vmatprep.subr.mxu0 0.0
    %860 = vmatpush1.msra.mxu0 0.0
    %861 = vmatprep.subr.mxu0 0.0
    %862 = vmatpush1.msra.mxu0 0.0
    %863 = vmatprep.subr.mxu0 0.0
    %864 = vmatpush1.msra.mxu0 0.0
    %865 = vmatprep.subr.mxu0 0.0
    %866 = vmatpush1.msra.mxu0 0.0
    %867 = vmatprep.subr.mxu0 0.0
    %868 = vmatpush1.msra.mxu0 0.0
    %869 = vmatprep.subr.mxu0 0.0
    %870 = vmatpush1.msra.mxu0 0.0
    %871 = vmatprep.subr.mxu0 0.0
    %872 = vmatpush1.msra.mxu0 0.0
    %873 = vmatprep.subr.mxu0 0.0
    %874 = vmatpush1.msra.mxu0 0.0
    %875 = vmatprep.subr.mxu0 0.0
    %876 = vmatpush1.msra.mxu0 0.0
    %877 = vmatprep.subr.mxu0 0.0
    %878 = vmatpush1.msra.mxu0 0.0
    %879 = vmatprep.subr.mxu0 0.0
    %880 = vmatpush1.msra.mxu0 0.0
    %881 = vmatprep.subr.mxu0 0.0
    %882 = vmatpush1.msra.mxu0 0.0
    %883 = vmatprep.subr.mxu0 0.0
    %884 = vmatpush1.msra.mxu0 0.0
    %885 = vmatprep.subr.mxu0 0.0
    %886 = vmatpush1.msra.mxu0 0.0
    %887 = vmatprep.subr.mxu0 0.0
    %888 = vmatpush1.msra.mxu0 0.0
    %889 = vmatprep.subr.mxu0 0.0
    %890 = vmatpush1.msra.mxu0 0.0
    %891 = vmatprep.subr.mxu0 0.0
    %892 = vmatpush1.msra.mxu0 0.0
    %893 = vmatprep.subr.mxu0 0.0
    %894 = vmatpush1.msra.mxu0 0.0
    %895 = vmatprep.subr.mxu0 0.0
    %896 = vmatpush1.msra.mxu0 0.0
    %897 = vmatprep.subr.mxu0 0.0
    %898 = vmatpush1.msra.mxu0 0.0
    %899 = vmatprep.subr.mxu0 0.0
    %900 = vmatpush1.msra.mxu0 0.0
    %901 = vmatprep.subr.mxu0 0.0
    %902 = vmatpush1.msra.mxu0 0.0
    %903 = vmatprep.subr.mxu0 0.0
    %904 = vmatpush1.msra.mxu0 0.0
    %905 = vmatprep.subr.mxu0 0.0
    %906 = vmatpush1.msra.mxu0 0.0
    %907 = vmatprep.subr.mxu0 0.0
    %908 = vmatpush1.msra.mxu0 0.0
    %909 = vmatprep.subr.mxu0 0.0
    %910 = vmatpush1.msra.mxu0 0.0
    %911 = vmatprep.subr.mxu0 0.0
    %912 = vmatpush1.msra.mxu0 0.0
    %913 = vmatprep.mubr.f32.mxu0 0.0
    %914 = vmatmul.mubr.f32.gmra.mrb[0].mxu0 %v838
    %v915 = vpop.f32.mrb[0].mxu0
    %v916 = vadd.f32 0.0, %v915
    %v917 = vpop.f32.mrb[0].mxu0
    %918 = vmatprep.mubr.f32.mxu0 0.0
    %919 = vmatmul.mubr.f32.gmra.mrb[0].mxu0 %v841
    %v920 = vpop.f32.mrb[0].mxu0
    %v921 = vadd.f32 0.0, %v920
    %v922 = vpop.f32.mrb[0].mxu0
    %923 = vmatprep.mubr.f32.mxu0 0.0
    %924 = vmatmul.mubr.f32.gmra.mrb[0].mxu0 %v844
    %v925 = vpop.f32.mrb[0].mxu0
    %v926 = vadd.f32 0.0, %v925
    %v927 = vpop.f32.mrb[0].mxu0
    %928 = vmatprep.mubr.f32.mxu0 0.0
    %929 = vmatmul.mubr.f32.gmra.mrb[0].mxu0 %v847
    %v930 = vpop.f32.mrb[0].mxu0
    %v931 = vadd.f32 0.0, %v930
    %v932 = vpop.f32.mrb[0].mxu0
    %933 = vdwg.mxu0
    %v934 = vadd.f32 %v740, %v916
    %v935 = vadd.f32 %v741, %v921
    %v936 = vadd.f32 %v742, %v926
    %v937 = vadd.f32 %v743, %v931
    %s938 = scalar_lea.vmem %s3, 96
    %v939 = vld [vmem:[%s938] sm:$0xff]
    %v940 = vld [vmem:[%s938 + $0x8] sm:$0xff]
    %v941 = vld [vmem:[%s938 + $0x10] sm:$0xff]
    %v942 = vld [vmem:[%s938 + $0x18] sm:$0xff]
    %943 = vmatprep.subr.mxu0 0.0
    %944 = vmatpush1.msra.mxu0 %v334
    %945 = vmatprep.subr.mxu0 0.0
    %946 = vmatpush1.msra.mxu0 %v335
    %947 = vmatprep.subr.mxu0 0.0
    %948 = vmatpush1.msra.mxu0 %v336
    %949 = vmatprep.subr.mxu0 0.0
    %950 = vmatpush1.msra.mxu0 %v337
    %951 = vmatprep.subr.mxu0 0.0
    %952 = vmatpush1.msra.mxu0 %v338
    %953 = vmatprep.subr.mxu0 0.0
    %954 = vmatpush1.msra.mxu0 %v339
    %955 = vmatprep.subr.mxu0 0.0
    %956 = vmatpush1.msra.mxu0 %v340
    %957 = vmatprep.subr.mxu0 0.0
    %958 = vmatpush1.msra.mxu0 %v341
    %959 = vmatprep.subr.mxu0 0.0
    %960 = vmatpush1.msra.mxu0 %v342
    %961 = vmatprep.subr.mxu0 0.0
    %962 = vmatpush1.msra.mxu0 %v343
    %963 = vmatprep.subr.mxu0 0.0
    %964 = vmatpush1.msra.mxu0 %v344
    %965 = vmatprep.subr.mxu0 0.0
    %966 = vmatpush1.msra.mxu0 %v345
    %967 = vmatprep.subr.mxu0 0.0
    %968 = vmatpush1.msra.mxu0 %v346
    %969 = vmatprep.subr.mxu0 0.0
    %970 = vmatpush1.msra.mxu0 %v347
    %971 = vmatprep.subr.mxu0 0.0
    %972 = vmatpush1.msra.mxu0 %v348
    %973 = vmatprep.subr.mxu0 0.0
    %974 = vmatpush1.msra.mxu0 %v349
    %975 = vmatprep.subr.mxu0 0.0
    %976 = vmatpush1.msra.mxu0 0.0
    %977 = vmatprep.subr.mxu0 0.0
    %978 = vmatpush1.msra.mxu0 0.0
    %979 = vmatprep.subr.mxu0 0.0
    %980 = vmatpush1.msra.mxu0 0.0
    %981 = vmatprep.subr.mxu0 0.0
    %982 = vmatpush1.msra.mxu0 0.0
    %983 = vmatprep.subr.mxu0 0.0
    %984 = vmatpush1.msra.mxu0 0.0
    %985 = vmatprep.subr.mxu0 0.0
    %986 = vmatpush1.msra.mxu0 0.0
    %987 = vmatprep.subr.mxu0 0.0
    %988 = vmatpush1.msra.mxu0 0.0
    %989 = vmatprep.subr.mxu0 0.0
    %990 = vmatpush1.msra.mxu0 0.0
    %991 = vmatprep.subr.mxu0 0.0
    %992 = vmatpush1.msra.mxu0 0.0
    %993 = vmatprep.subr.mxu0 0.0
    %994 = vmatpush1.msra.mxu0 0.0
    %995 = vmatprep.subr.mxu0 0.0
    %996 = vmatpush1.msra.mxu0 0.0
    %997 = vmatprep.subr.mxu0 0.0
    %998 = vmatpush1.msra.mxu0 0.0
    %999 = vmatprep.subr.mxu0 0.0
    %1000 = vmatpush1.msra.mxu0 0.0
    %1001 = vmatprep.subr.mxu0 0.0
    %1002 = vmatpush1.msra.mxu0 0.0
    %1003 = vmatprep.subr.mxu0 0.0
    %1004 = vmatpush1.msra.mxu0 0.0
    %1005 = vmatprep.subr.mxu0 0.0
    %1006 = vmatpush1.msra.mxu0 0.0
    %1007 = vmatprep.mubr.f32.mxu0 0.0
    %1008 = vmatmul.mubr.f32.gmra.mrb[0].mxu0 %v939
    %v1009 = vpop.f32.mrb[0].mxu0
    %v1010 = vadd.f32 0.0, %v1009
    %v1011 = vpop.f32.mrb[0].mxu0
    %1012 = vmatprep.mubr.f32.mxu0 0.0
    %1013 = vmatmul.mubr.f32.gmra.mrb[0].mxu0 %v940
    %v1014 = vpop.f32.mrb[0].mxu0
    %v1015 = vadd.f32 0.0, %v1014
    %v1016 = vpop.f32.mrb[0].mxu0
    %1017 = vmatprep.mubr.f32.mxu0 0.0
    %1018 = vmatmul.mubr.f32.gmra.mrb[0].mxu0 %v941
    %v1019 = vpop.f32.mrb[0].mxu0
    %v1020 = vadd.f32 0.0, %v1019
    %v1021 = vpop.f32.mrb[0].mxu0
    %1022 = vmatprep.mubr.f32.mxu0 0.0
    %1023 = vmatmul.mubr.f32.gmra.mrb[0].mxu0 %v942
    %v1024 = vpop.f32.mrb[0].mxu0
    %v1025 = vadd.f32 0.0, %v1024
    %v1026 = vpop.f32.mrb[0].mxu0
    %1027 = vdwg.mxu0
    %s1028 = scalar_lea.vmem [#allocation2], 48
    %v1029 = vld [vmem:[%s1028] sm:$0xff]
    %v1030 = vld [vmem:[%s1028 + $0x8] sm:$0xff]
    %v1032 = vsel %vm108, %v1010, 0
    %v1035 = vsel %vm108, %v1015, 0
    %v1038 = vsel %vm108, %v1020, 0
    %v1041 = vsel %vm108, %v1025, 0
    %1043 = vmatprep.subr.mxu0 0.0
    %1044 = vmatpush1.msra.mxu0 %v1029
    %1045 = vmatprep.subr.mxu0 0.0
    %1046 = vmatpush1.msra.mxu0 %v1030
    %1047 = vmatprep.subr.mxu0 0.0
    %1048 = vmatpush1.msra.mxu0 0.0
    %1049 = vmatprep.subr.mxu0 0.0
    %1050 = vmatpush1.msra.mxu0 0.0
    %1051 = vmatprep.subr.mxu0 0.0
    %1052 = vmatpush1.msra.mxu0 0.0
    %1053 = vmatprep.subr.mxu0 0.0
    %1054 = vmatpush1.msra.mxu0 0.0
    %1055 = vmatprep.subr.mxu0 0.0
    %1056 = vmatpush1.msra.mxu0 0.0
    %1057 = vmatprep.subr.mxu0 0.0
    %1058 = vmatpush1.msra.mxu0 0.0
    %1059 = vmatprep.subr.mxu0 0.0
    %1060 = vmatpush1.msra.mxu0 0.0
    %1061 = vmatprep.subr.mxu0 0.0
    %1062 = vmatpush1.msra.mxu0 0.0
    %1063 = vmatprep.subr.mxu0 0.0
    %1064 = vmatpush1.msra.mxu0 0.0
    %1065 = vmatprep.subr.mxu0 0.0
    %1066 = vmatpush1.msra.mxu0 0.0
    %1067 = vmatprep.subr.mxu0 0.0
    %1068 = vmatpush1.msra.mxu0 0.0
    %1069 = vmatprep.subr.mxu0 0.0
    %1070 = vmatpush1.msra.mxu0 0.0
    %1071 = vmatprep.subr.mxu0 0.0
    %1072 = vmatpush1.msra.mxu0 0.0
    %1073 = vmatprep.subr.mxu0 0.0
    %1074 = vmatpush1.msra.mxu0 0.0
    %1075 = vmatprep.subr.mxu0 0.0
    %1076 = vmatpush1.msra.mxu0 0.0
    %1077 = vmatprep.subr.mxu0 0.0
    %1078 = vmatpush1.msra.mxu0 0.0
    %1079 = vmatprep.subr.mxu0 0.0
    %1080 = vmatpush1.msra.mxu0 0.0
    %1081 = vmatprep.subr.mxu0 0.0
    %1082 = vmatpush1.msra.mxu0 0.0
    %1083 = vmatprep.subr.mxu0 0.0
    %1084 = vmatpush1.msra.mxu0 0.0
    %1085 = vmatprep.subr.mxu0 0.0
    %1086 = vmatpush1.msra.mxu0 0.0
    %1087 = vmatprep.subr.mxu0 0.0
    %1088 = vmatpush1.msra.mxu0 0.0
    %1089 = vmatprep.subr.mxu0 0.0
    %1090 = vmatpush1.msra.mxu0 0.0
    %1091 = vmatprep.subr.mxu0 0.0
    %1092 = vmatpush1.msra.mxu0 0.0
    %1093 = vmatprep.subr.mxu0 0.0
    %1094 = vmatpush1.msra.mxu0 0.0
    %1095 = vmatprep.subr.mxu0 0.0
    %1096 = vmatpush1.msra.mxu0 0.0
    %1097 = vmatprep.subr.mxu0 0.0
    %1098 = vmatpush1.msra.mxu0 0.0
    %1099 = vmatprep.subr.mxu0 0.0
    %1100 = vmatpush1.msra.mxu0 0.0
    %1101 = vmatprep.subr.mxu0 0.0
    %1102 = vmatpush1.msra.mxu0 0.0
    %1103 = vmatprep.subr.mxu0 0.0
    %1104 = vmatpush1.msra.mxu0 0.0
    %1105 = vmatprep.subr.mxu0 0.0
    %1106 = vmatpush1.msra.mxu0 0.0
    %1107 = vmatprep.mubr.f32.mxu0 0.0
    %1108 = vmatmul.mubr.f32.gmra.mrb[0].mxu0 %v1032
    %v1109 = vpop.f32.mrb[0].mxu0
    %v1110 = vadd.f32 0.0, %v1109
    %v1111 = vpop.f32.mrb[0].mxu0
    %1112 = vmatprep.mubr.f32.mxu0 0.0
    %1113 = vmatmul.mubr.f32.gmra.mrb[0].mxu0 %v1035
    %v1114 = vpop.f32.mrb[0].mxu0
    %v1115 = vadd.f32 0.0, %v1114
    %v1116 = vpop.f32.mrb[0].mxu0
    %1117 = vmatprep.mubr.f32.mxu0 0.0
    %1118 = vmatmul.mubr.f32.gmra.mrb[0].mxu0 %v1038
    %v1119 = vpop.f32.mrb[0].mxu0
    %v1120 = vadd.f32 0.0, %v1119
    %v1121 = vpop.f32.mrb[0].mxu0
    %1122 = vmatprep.mubr.f32.mxu0 0.0
    %1123 = vmatmul.mubr.f32.gmra.mrb[0].mxu0 %v1041
    %v1124 = vpop.f32.mrb[0].mxu0
    %v1125 = vadd.f32 0.0, %v1124
    %v1126 = vpop.f32.mrb[0].mxu0
    %1127 = vdwg.mxu0
    %v1128 = vadd.f32 %v934, %v1110
    %v1129 = vadd.f32 %v935, %v1115
    %v1130 = vadd.f32 %v936, %v1120
    %v1131 = vadd.f32 %v937, %v1125
    %s1132 = scalar_lea.vmem %s3, 128
    %v1133 = vld [vmem:[%s1132] sm:$0xff]
    %v1134 = vld [vmem:[%s1132 + $0x8] sm:$0xff]
    %v1135 = vld [vmem:[%s1132 + $0x10] sm:$0xff]
    %v1136 = vld [vmem:[%s1132 + $0x18] sm:$0xff]
    %1137 = vmatprep.subr.mxu0 0.0
    %1138 = vmatpush1.msra.mxu0 %v334
    %1139 = vmatprep.subr.mxu0 0.0
    %1140 = vmatpush1.msra.mxu0 %v335
    %1141 = vmatprep.subr.mxu0 0.0
    %1142 = vmatpush1.msra.mxu0 %v336
    %1143 = vmatprep.subr.mxu0 0.0
    %1144 = vmatpush1.msra.mxu0 %v337
    %1145 = vmatprep.subr.mxu0 0.0
    %1146 = vmatpush1.msra.mxu0 %v338
    %1147 = vmatprep.subr.mxu0 0.0
    %1148 = vmatpush1.msra.mxu0 %v339
    %1149 = vmatprep.subr.mxu0 0.0
    %1150 = vmatpush1.msra.mxu0 %v340
    %1151 = vmatprep.subr.mxu0 0.0
    %1152 = vmatpush1.msra.mxu0 %v341
    %1153 = vmatprep.subr.mxu0 0.0
    %1154 = vmatpush1.msra.mxu0 %v342
    %1155 = vmatprep.subr.mxu0 0.0
    %1156 = vmatpush1.msra.mxu0 %v343
    %1157 = vmatprep.subr.mxu0 0.0
    %1158 = vmatpush1.msra.mxu0 %v344
    %1159 = vmatprep.subr.mxu0 0.0
    %1160 = vmatpush1.msra.mxu0 %v345
    %1161 = vmatprep.subr.mxu0 0.0
    %1162 = vmatpush1.msra.mxu0 %v346
    %1163 = vmatprep.subr.mxu0 0.0
    %1164 = vmatpush1.msra.mxu0 %v347
    %1165 = vmatprep.subr.mxu0 0.0
    %1166 = vmatpush1.msra.mxu0 %v348
    %1167 = vmatprep.subr.mxu0 0.0
    %1168 = vmatpush1.msra.mxu0 %v349
    %1169 = vmatprep.subr.mxu0 0.0
    %1170 = vmatpush1.msra.mxu0 0.0
    %1171 = vmatprep.subr.mxu0 0.0
    %1172 = vmatpush1.msra.mxu0 0.0
    %1173 = vmatprep.subr.mxu0 0.0
    %1174 = vmatpush1.msra.mxu0 0.0
    %1175 = vmatprep.subr.mxu0 0.0
    %1176 = vmatpush1.msra.mxu0 0.0
    %1177 = vmatprep.subr.mxu0 0.0
    %1178 = vmatpush1.msra.mxu0 0.0
    %1179 = vmatprep.subr.mxu0 0.0
    %1180 = vmatpush1.msra.mxu0 0.0
    %1181 = vmatprep.subr.mxu0 0.0
    %1182 = vmatpush1.msra.mxu0 0.0
    %1183 = vmatprep.subr.mxu0 0.0
    %1184 = vmatpush1.msra.mxu0 0.0
    %1185 = vmatprep.subr.mxu0 0.0
    %1186 = vmatpush1.msra.mxu0 0.0
    %1187 = vmatprep.subr.mxu0 0.0
    %1188 = vmatpush1.msra.mxu0 0.0
    %1189 = vmatprep.subr.mxu0 0.0
    %1190 = vmatpush1.msra.mxu0 0.0
    %1191 = vmatprep.subr.mxu0 0.0
    %1192 = vmatpush1.msra.mxu0 0.0
    %1193 = vmatprep.subr.mxu0 0.0
    %1194 = vmatpush1.msra.mxu0 0.0
    %1195 = vmatprep.subr.mxu0 0.0
    %1196 = vmatpush1.msra.mxu0 0.0
    %1197 = vmatprep.subr.mxu0 0.0
    %1198 = vmatpush1.msra.mxu0 0.0
    %1199 = vmatprep.subr.mxu0 0.0
    %1200 = vmatpush1.msra.mxu0 0.0
    %1201 = vmatprep.mubr.f32.mxu0 0.0
    %1202 = vmatmul.mubr.f32.gmra.mrb[0].mxu0 %v1133
    %v1203 = vpop.f32.mrb[0].mxu0
    %v1204 = vadd.f32 0.0, %v1203
    %v1205 = vpop.f32.mrb[0].mxu0
    %1206 = vmatprep.mubr.f32.mxu0 0.0
    %1207 = vmatmul.mubr.f32.gmra.mrb[0].mxu0 %v1134
    %v1208 = vpop.f32.mrb[0].mxu0
    %v1209 = vadd.f32 0.0, %v1208
    %v1210 = vpop.f32.mrb[0].mxu0
    %1211 = vmatprep.mubr.f32.mxu0 0.0
    %1212 = vmatmul.mubr.f32.gmra.mrb[0].mxu0 %v1135
    %v1213 = vpop.f32.mrb[0].mxu0
    %v1214 = vadd.f32 0.0, %v1213
    %v1215 = vpop.f32.mrb[0].mxu0
    %1216 = vmatprep.mubr.f32.mxu0 0.0
    %1217 = vmatmul.mubr.f32.gmra.mrb[0].mxu0 %v1136
    %v1218 = vpop.f32.mrb[0].mxu0
    %v1219 = vadd.f32 0.0, %v1218
    %v1220 = vpop.f32.mrb[0].mxu0
    %1221 = vdwg.mxu0
    %s1222 = scalar_lea.vmem [#allocation2], 64
    %v1223 = vld [vmem:[%s1222] sm:$0xff]
    %v1224 = vld [vmem:[%s1222 + $0x8] sm:$0xff]
    %v1226 = vsel %vm108, %v1204, 0
    %v1229 = vsel %vm108, %v1209, 0
    %v1232 = vsel %vm108, %v1214, 0
    %v1235 = vsel %vm108, %v1219, 0
    %1237 = vmatprep.subr.mxu0 0.0
    %1238 = vmatpush1.msra.mxu0 %v1223
    %1239 = vmatprep.subr.mxu0 0.0
    %1240 = vmatpush1.msra.mxu0 %v1224
    %1241 = vmatprep.subr.mxu0 0.0
    %1242 = vmatpush1.msra.mxu0 0.0
    %1243 = vmatprep.subr.mxu0 0.0
    %1244 = vmatpush1.msra.mxu0 0.0
    %1245 = vmatprep.subr.mxu0 0.0
    %1246 = vmatpush1.msra.mxu0 0.0
    %1247 = vmatprep.subr.mxu0 0.0
    %1248 = vmatpush1.msra.mxu0 0.0
    %1249 = vmatprep.subr.mxu0 0.0
    %1250 = vmatpush1.msra.mxu0 0.0
    %1251 = vmatprep.subr.mxu0 0.0
    %1252 = vmatpush1.msra.mxu0 0.0
    %1253 = vmatprep.subr.mxu0 0.0
    %1254 = vmatpush1.msra.mxu0 0.0
    %1255 = vmatprep.subr.mxu0 0.0
    %1256 = vmatpush1.msra.mxu0 0.0
    %1257 = vmatprep.subr.mxu0 0.0
    %1258 = vmatpush1.msra.mxu0 0.0
    %1259 = vmatprep.subr.mxu0 0.0
    %1260 = vmatpush1.msra.mxu0 0.0
    %1261 = vmatprep.subr.mxu0 0.0
    %1262 = vmatpush1.msra.mxu0 0.0
    %1263 = vmatprep.subr.mxu0 0.0
    %1264 = vmatpush1.msra.mxu0 0.0
    %1265 = vmatprep.subr.mxu0 0.0
    %1266 = vmatpush1.msra.mxu0 0.0
    %1267 = vmatprep.subr.mxu0 0.0
    %1268 = vmatpush1.msra.mxu0 0.0
    %1269 = vmatprep.subr.mxu0 0.0
    %1270 = vmatpush1.msra.mxu0 0.0
    %1271 = vmatprep.subr.mxu0 0.0
    %1272 = vmatpush1.msra.mxu0 0.0
    %1273 = vmatprep.subr.mxu0 0.0
    %1274 = vmatpush1.msra.mxu0 0.0
    %1275 = vmatprep.subr.mxu0 0.0
    %1276 = vmatpush1.msra.mxu0 0.0
    %1277 = vmatprep.subr.mxu0 0.0
    %1278 = vmatpush1.msra.mxu0 0.0
    %1279 = vmatprep.subr.mxu0 0.0
    %1280 = vmatpush1.msra.mxu0 0.0
    %1281 = vmatprep.subr.mxu0 0.0
    %1282 = vmatpush1.msra.mxu0 0.0
    %1283 = vmatprep.subr.mxu0 0.0
    %1284 = vmatpush1.msra.mxu0 0.0
    %1285 = vmatprep.subr.mxu0 0.0
    %1286 = vmatpush1.msra.mxu0 0.0
    %1287 = vmatprep.subr.mxu0 0.0
    %1288 = vmatpush1.msra.mxu0 0.0
    %1289 = vmatprep.subr.mxu0 0.0
    %1290 = vmatpush1.msra.mxu0 0.0
    %1291 = vmatprep.subr.mxu0 0.0
    %1292 = vmatpush1.msra.mxu0 0.0
    %1293 = vmatprep.subr.mxu0 0.0
    %1294 = vmatpush1.msra.mxu0 0.0
    %1295 = vmatprep.subr.mxu0 0.0
    %1296 = vmatpush1.msra.mxu0 0.0
    %1297 = vmatprep.subr.mxu0 0.0
    %1298 = vmatpush1.msra.mxu0 0.0
    %1299 = vmatprep.subr.mxu0 0.0
    %1300 = vmatpush1.msra.mxu0 0.0
    %1301 = vmatprep.mubr.f32.mxu0 0.0
    %1302 = vmatmul.mubr.f32.gmra.mrb[0].mxu0 %v1226
    %v1303 = vpop.f32.mrb[0].mxu0
    %v1304 = vadd.f32 0.0, %v1303
    %v1305 = vpop.f32.mrb[0].mxu0
    %1306 = vmatprep.mubr.f32.mxu0 0.0
    %1307 = vmatmul.mubr.f32.gmra.mrb[0].mxu0 %v1229
    %v1308 = vpop.f32.mrb[0].mxu0
    %v1309 = vadd.f32 0.0, %v1308
    %v1310 = vpop.f32.mrb[0].mxu0
    %1311 = vmatprep.mubr.f32.mxu0 0.0
    %1312 = vmatmul.mubr.f32.gmra.mrb[0].mxu0 %v1232
    %v1313 = vpop.f32.mrb[0].mxu0
    %v1314 = vadd.f32 0.0, %v1313
    %v1315 = vpop.f32.mrb[0].mxu0
    %1316 = vmatprep.mubr.f32.mxu0 0.0
    %1317 = vmatmul.mubr.f32.gmra.mrb[0].mxu0 %v1235
    %v1318 = vpop.f32.mrb[0].mxu0
    %v1319 = vadd.f32 0.0, %v1318
    %v1320 = vpop.f32.mrb[0].mxu0
    %1321 = vdwg.mxu0
    %v1322 = vadd.f32 %v1128, %v1304
    %v1323 = vadd.f32 %v1129, %v1309
    %v1324 = vadd.f32 %v1130, %v1314
    %v1325 = vadd.f32 %v1131, %v1319
    %s1326 = scalar_lea.vmem %s3, 160
    %v1327 = vld [vmem:[%s1326] sm:$0xff]
    %v1328 = vld [vmem:[%s1326 + $0x8] sm:$0xff]
    %v1329 = vld [vmem:[%s1326 + $0x10] sm:$0xff]
    %v1330 = vld [vmem:[%s1326 + $0x18] sm:$0xff]
    %1331 = vmatprep.subr.mxu0 0.0
    %1332 = vmatpush1.msra.mxu0 %v334
    %1333 = vmatprep.subr.mxu0 0.0
    %1334 = vmatpush1.msra.mxu0 %v335
    %1335 = vmatprep.subr.mxu0 0.0
    %1336 = vmatpush1.msra.mxu0 %v336
    %1337 = vmatprep.subr.mxu0 0.0
    %1338 = vmatpush1.msra.mxu0 %v337
    %1339 = vmatprep.subr.mxu0 0.0
    %1340 = vmatpush1.msra.mxu0 %v338
    %1341 = vmatprep.subr.mxu0 0.0
    %1342 = vmatpush1.msra.mxu0 %v339
    %1343 = vmatprep.subr.mxu0 0.0
    %1344 = vmatpush1.msra.mxu0 %v340
    %1345 = vmatprep.subr.mxu0 0.0
    %1346 = vmatpush1.msra.mxu0 %v341
    %1347 = vmatprep.subr.mxu0 0.0
    %1348 = vmatpush1.msra.mxu0 %v342
    %1349 = vmatprep.subr.mxu0 0.0
    %1350 = vmatpush1.msra.mxu0 %v343
    %1351 = vmatprep.subr.mxu0 0.0
    %1352 = vmatpush1.msra.mxu0 %v344
    %1353 = vmatprep.subr.mxu0 0.0
    %1354 = vmatpush1.msra.mxu0 %v345
    %1355 = vmatprep.subr.mxu0 0.0
    %1356 = vmatpush1.msra.mxu0 %v346
    %1357 = vmatprep.subr.mxu0 0.0
    %1358 = vmatpush1.msra.mxu0 %v347
    %1359 = vmatprep.subr.mxu0 0.0
    %1360 = vmatpush1.msra.mxu0 %v348
    %1361 = vmatprep.subr.mxu0 0.0
    %1362 = vmatpush1.msra.mxu0 %v349
    %1363 = vmatprep.subr.mxu0 0.0
    %1364 = vmatpush1.msra.mxu0 0.0
    %1365 = vmatprep.subr.mxu0 0.0
    %1366 = vmatpush1.msra.mxu0 0.0
    %1367 = vmatprep.subr.mxu0 0.0
    %1368 = vmatpush1.msra.mxu0 0.0
    %1369 = vmatprep.subr.mxu0 0.0
    %1370 = vmatpush1.msra.mxu0 0.0
    %1371 = vmatprep.subr.mxu0 0.0
    %1372 = vmatpush1.msra.mxu0 0.0
    %1373 = vmatprep.subr.mxu0 0.0
    %1374 = vmatpush1.msra.mxu0 0.0
    %1375 = vmatprep.subr.mxu0 0.0
    %1376 = vmatpush1.msra.mxu0 0.0
    %1377 = vmatprep.subr.mxu0 0.0
    %1378 = vmatpush1.msra.mxu0 0.0
    %1379 = vmatprep.subr.mxu0 0.0
    %1380 = vmatpush1.msra.mxu0 0.0
    %1381 = vmatprep.subr.mxu0 0.0
    %1382 = vmatpush1.msra.mxu0 0.0
    %1383 = vmatprep.subr.mxu0 0.0
    %1384 = vmatpush1.msra.mxu0 0.0
    %1385 = vmatprep.subr.mxu0 0.0
    %1386 = vmatpush1.msra.mxu0 0.0
    %1387 = vmatprep.subr.mxu0 0.0
    %1388 = vmatpush1.msra.mxu0 0.0
    %1389 = vmatprep.subr.mxu0 0.0
    %1390 = vmatpush1.msra.mxu0 0.0
    %1391 = vmatprep.subr.mxu0 0.0
    %1392 = vmatpush1.msra.mxu0 0.0
    %1393 = vmatprep.subr.mxu0 0.0
    %1394 = vmatpush1.msra.mxu0 0.0
    %1395 = vmatprep.mubr.f32.mxu0 0.0
    %1396 = vmatmul.mubr.f32.gmra.mrb[0].mxu0 %v1327
    %v1397 = vpop.f32.mrb[0].mxu0
    %v1398 = vadd.f32 0.0, %v1397
    %v1399 = vpop.f32.mrb[0].mxu0
    %1400 = vmatprep.mubr.f32.mxu0 0.0
    %1401 = vmatmul.mubr.f32.gmra.mrb[0].mxu0 %v1328
    %v1402 = vpop.f32.mrb[0].mxu0
    %v1403 = vadd.f32 0.0, %v1402
    %v1404 = vpop.f32.mrb[0].mxu0
    %1405 = vmatprep.mubr.f32.mxu0 0.0
    %1406 = vmatmul.mubr.f32.gmra.mrb[0].mxu0 %v1329
    %v1407 = vpop.f32.mrb[0].mxu0
    %v1408 = vadd.f32 0.0, %v1407
    %v1409 = vpop.f32.mrb[0].mxu0
    %1410 = vmatprep.mubr.f32.mxu0 0.0
    %1411 = vmatmul.mubr.f32.gmra.mrb[0].mxu0 %v1330
    %v1412 = vpop.f32.mrb[0].mxu0
    %v1413 = vadd.f32 0.0, %v1412
    %v1414 = vpop.f32.mrb[0].mxu0
    %1415 = vdwg.mxu0
    %s1416 = scalar_lea.vmem [#allocation2], 80
    %v1417 = vld [vmem:[%s1416] sm:$0xff]
    %v1418 = vld [vmem:[%s1416 + $0x8] sm:$0xff]
    %v1420 = vsel %vm108, %v1398, 0
    %v1423 = vsel %vm108, %v1403, 0
    %v1426 = vsel %vm108, %v1408, 0
    %v1429 = vsel %vm108, %v1413, 0
    %1431 = vmatprep.subr.mxu0 0.0
    %1432 = vmatpush1.msra.mxu0 %v1417
    %1433 = vmatprep.subr.mxu0 0.0
    %1434 = vmatpush1.msra.mxu0 %v1418
    %1435 = vmatprep.subr.mxu0 0.0
    %1436 = vmatpush1.msra.mxu0 0.0
    %1437 = vmatprep.subr.mxu0 0.0
    %1438 = vmatpush1.msra.mxu0 0.0
    %1439 = vmatprep.subr.mxu0 0.0
    %1440 = vmatpush1.msra.mxu0 0.0
    %1441 = vmatprep.subr.mxu0 0.0
    %1442 = vmatpush1.msra.mxu0 0.0
    %1443 = vmatprep.subr.mxu0 0.0
    %1444 = vmatpush1.msra.mxu0 0.0
    %1445 = vmatprep.subr.mxu0 0.0
    %1446 = vmatpush1.msra.mxu0 0.0
    %1447 = vmatprep.subr.mxu0 0.0
    %1448 = vmatpush1.msra.mxu0 0.0
    %1449 = vmatprep.subr.mxu0 0.0
    %1450 = vmatpush1.msra.mxu0 0.0
    %1451 = vmatprep.subr.mxu0 0.0
    %1452 = vmatpush1.msra.mxu0 0.0
    %1453 = vmatprep.subr.mxu0 0.0
    %1454 = vmatpush1.msra.mxu0 0.0
    %1455 = vmatprep.subr.mxu0 0.0
    %1456 = vmatpush1.msra.mxu0 0.0
    %1457 = vmatprep.subr.mxu0 0.0
    %1458 = vmatpush1.msra.mxu0 0.0
    %1459 = vmatprep.subr.mxu0 0.0
    %1460 = vmatpush1.msra.mxu0 0.0
    %1461 = vmatprep.subr.mxu0 0.0
    %1462 = vmatpush1.msra.mxu0 0.0
    %1463 = vmatprep.subr.mxu0 0.0
    %1464 = vmatpush1.msra.mxu0 0.0
    %1465 = vmatprep.subr.mxu0 0.0
    %1466 = vmatpush1.msra.mxu0 0.0
    %1467 = vmatprep.subr.mxu0 0.0
    %1468 = vmatpush1.msra.mxu0 0.0
    %1469 = vmatprep.subr.mxu0 0.0
    %1470 = vmatpush1.msra.mxu0 0.0
    %1471 = vmatprep.subr.mxu0 0.0
    %1472 = vmatpush1.msra.mxu0 0.0
    %1473 = vmatprep.subr.mxu0 0.0
    %1474 = vmatpush1.msra.mxu0 0.0
    %1475 = vmatprep.subr.mxu0 0.0
    %1476 = vmatpush1.msra.mxu0 0.0
    %1477 = vmatprep.subr.mxu0 0.0
    %1478 = vmatpush1.msra.mxu0 0.0
    %1479 = vmatprep.subr.mxu0 0.0
    %1480 = vmatpush1.msra.mxu0 0.0
    %1481 = vmatprep.subr.mxu0 0.0
    %1482 = vmatpush1.msra.mxu0 0.0
    %1483 = vmatprep.subr.mxu0 0.0
    %1484 = vmatpush1.msra.mxu0 0.0
    %1485 = vmatprep.subr.mxu0 0.0
    %1486 = vmatpush1.msra.mxu0 0.0
    %1487 = vmatprep.subr.mxu0 0.0
    %1488 = vmatpush1.msra.mxu0 0.0
    %1489 = vmatprep.subr.mxu0 0.0
    %1490 = vmatpush1.msra.mxu0 0.0
    %1491 = vmatprep.subr.mxu0 0.0
    %1492 = vmatpush1.msra.mxu0 0.0
    %1493 = vmatprep.subr.mxu0 0.0
    %1494 = vmatpush1.msra.mxu0 0.0
    %1495 = vmatprep.mubr.f32.mxu0 0.0
    %1496 = vmatmul.mubr.f32.gmra.mrb[0].mxu0 %v1420
    %v1497 = vpop.f32.mrb[0].mxu0
    %v1498 = vadd.f32 0.0, %v1497
    %v1499 = vpop.f32.mrb[0].mxu0
    %1500 = vmatprep.mubr.f32.mxu0 0.0
    %1501 = vmatmul.mubr.f32.gmra.mrb[0].mxu0 %v1423
    %v1502 = vpop.f32.mrb[0].mxu0
    %v1503 = vadd.f32 0.0, %v1502
    %v1504 = vpop.f32.mrb[0].mxu0
    %1505 = vmatprep.mubr.f32.mxu0 0.0
    %1506 = vmatmul.mubr.f32.gmra.mrb[0].mxu0 %v1426
    %v1507 = vpop.f32.mrb[0].mxu0
    %v1508 = vadd.f32 0.0, %v1507
    %v1509 = vpop.f32.mrb[0].mxu0
    %1510 = vmatprep.mubr.f32.mxu0 0.0
    %1511 = vmatmul.mubr.f32.gmra.mrb[0].mxu0 %v1429
    %v1512 = vpop.f32.mrb[0].mxu0
    %v1513 = vadd.f32 0.0, %v1512
    %v1514 = vpop.f32.mrb[0].mxu0
    %1515 = vdwg.mxu0
    %v1516 = vadd.f32 %v1322, %v1498
    %v1517 = vadd.f32 %v1323, %v1503
    %v1518 = vadd.f32 %v1324, %v1508
    %v1519 = vadd.f32 %v1325, %v1513
    %s1520 = scalar_lea.vmem %s3, 192
    %v1521 = vld [vmem:[%s1520] sm:$0xff]
    %v1522 = vld [vmem:[%s1520 + $0x8] sm:$0xff]
    %v1523 = vld [vmem:[%s1520 + $0x10] sm:$0xff]
    %v1524 = vld [vmem:[%s1520 + $0x18] sm:$0xff]
    %1525 = vmatprep.subr.mxu0 0.0
    %1526 = vmatpush1.msra.mxu0 %v334
    %1527 = vmatprep.subr.mxu0 0.0
    %1528 = vmatpush1.msra.mxu0 %v335
    %1529 = vmatprep.subr.mxu0 0.0
    %1530 = vmatpush1.msra.mxu0 %v336
    %1531 = vmatprep.subr.mxu0 0.0
    %1532 = vmatpush1.msra.mxu0 %v337
    %1533 = vmatprep.subr.mxu0 0.0
    %1534 = vmatpush1.msra.mxu0 %v338
    %1535 = vmatprep.subr.mxu0 0.0
    %1536 = vmatpush1.msra.mxu0 %v339
    %1537 = vmatprep.subr.mxu0 0.0
    %1538 = vmatpush1.msra.mxu0 %v340
    %1539 = vmatprep.subr.mxu0 0.0
    %1540 = vmatpush1.msra.mxu0 %v341
    %1541 = vmatprep.subr.mxu0 0.0
    %1542 = vmatpush1.msra.mxu0 %v342
    %1543 = vmatprep.subr.mxu0 0.0
    %1544 = vmatpush1.msra.mxu0 %v343
    %1545 = vmatprep.subr.mxu0 0.0
    %1546 = vmatpush1.msra.mxu0 %v344
    %1547 = vmatprep.subr.mxu0 0.0
    %1548 = vmatpush1.msra.mxu0 %v345
    %1549 = vmatprep.subr.mxu0 0.0
    %1550 = vmatpush1.msra.mxu0 %v346
    %1551 = vmatprep.subr.mxu0 0.0
    %1552 = vmatpush1.msra.mxu0 %v347
    %1553 = vmatprep.subr.mxu0 0.0
    %1554 = vmatpush1.msra.mxu0 %v348
    %1555 = vmatprep.subr.mxu0 0.0
    %1556 = vmatpush1.msra.mxu0 %v349
    %1557 = vmatprep.subr.mxu0 0.0
    %1558 = vmatpush1.msra.mxu0 0.0
    %1559 = vmatprep.subr.mxu0 0.0
    %1560 = vmatpush1.msra.mxu0 0.0
    %1561 = vmatprep.subr.mxu0 0.0
    %1562 = vmatpush1.msra.mxu0 0.0
    %1563 = vmatprep.subr.mxu0 0.0
    %1564 = vmatpush1.msra.mxu0 0.0
    %1565 = vmatprep.subr.mxu0 0.0
    %1566 = vmatpush1.msra.mxu0 0.0
    %1567 = vmatprep.subr.mxu0 0.0
    %1568 = vmatpush1.msra.mxu0 0.0
    %1569 = vmatprep.subr.mxu0 0.0
    %1570 = vmatpush1.msra.mxu0 0.0
    %1571 = vmatprep.subr.mxu0 0.0
    %1572 = vmatpush1.msra.mxu0 0.0
    %1573 = vmatprep.subr.mxu0 0.0
    %1574 = vmatpush1.msra.mxu0 0.0
    %1575 = vmatprep.subr.mxu0 0.0
    %1576 = vmatpush1.msra.mxu0 0.0
    %1577 = vmatprep.subr.mxu0 0.0
    %1578 = vmatpush1.msra.mxu0 0.0
    %1579 = vmatprep.subr.mxu0 0.0
    %1580 = vmatpush1.msra.mxu0 0.0
    %1581 = vmatprep.subr.mxu0 0.0
    %1582 = vmatpush1.msra.mxu0 0.0
    %1583 = vmatprep.subr.mxu0 0.0
    %1584 = vmatpush1.msra.mxu0 0.0
    %1585 = vmatprep.subr.mxu0 0.0
    %1586 = vmatpush1.msra.mxu0 0.0
    %1587 = vmatprep.subr.mxu0 0.0
    %1588 = vmatpush1.msra.mxu0 0.0
    %1589 = vmatprep.mubr.f32.mxu0 0.0
    %1590 = vmatmul.mubr.f32.gmra.mrb[0].mxu0 %v1521
    %v1591 = vpop.f32.mrb[0].mxu0
    %v1592 = vadd.f32 0.0, %v1591
    %v1593 = vpop.f32.mrb[0].mxu0
    %1594 = vmatprep.mubr.f32.mxu0 0.0
    %1595 = vmatmul.mubr.f32.gmra.mrb[0].mxu0 %v1522
    %v1596 = vpop.f32.mrb[0].mxu0
    %v1597 = vadd.f32 0.0, %v1596
    %v1598 = vpop.f32.mrb[0].mxu0
    %1599 = vmatprep.mubr.f32.mxu0 0.0
    %1600 = vmatmul.mubr.f32.gmra.mrb[0].mxu0 %v1523
    %v1601 = vpop.f32.mrb[0].mxu0
    %v1602 = vadd.f32 0.0, %v1601
    %v1603 = vpop.f32.mrb[0].mxu0
    %1604 = vmatprep.mubr.f32.mxu0 0.0
    %1605 = vmatmul.mubr.f32.gmra.mrb[0].mxu0 %v1524
    %v1606 = vpop.f32.mrb[0].mxu0
    %v1607 = vadd.f32 0.0, %v1606
    %v1608 = vpop.f32.mrb[0].mxu0
    %1609 = vdwg.mxu0
    %s1610 = scalar_lea.vmem [#allocation2], 96
    %v1611 = vld [vmem:[%s1610] sm:$0xff]
    %v1612 = vld [vmem:[%s1610 + $0x8] sm:$0xff]
    %v1614 = vsel %vm108, %v1592, 0
    %v1617 = vsel %vm108, %v1597, 0
    %v1620 = vsel %vm108, %v1602, 0
    %v1623 = vsel %vm108, %v1607, 0
    %1625 = vmatprep.subr.mxu0 0.0
    %1626 = vmatpush1.msra.mxu0 %v1611
    %1627 = vmatprep.subr.mxu0 0.0
    %1628 = vmatpush1.msra.mxu0 %v1612
    %1629 = vmatprep.subr.mxu0 0.0
    %1630 = vmatpush1.msra.mxu0 0.0
    %1631 = vmatprep.subr.mxu0 0.0
    %1632 = vmatpush1.msra.mxu0 0.0
    %1633 = vmatprep.subr.mxu0 0.0
    %1634 = vmatpush1.msra.mxu0 0.0
    %1635 = vmatprep.subr.mxu0 0.0
    %1636 = vmatpush1.msra.mxu0 0.0
    %1637 = vmatprep.subr.mxu0 0.0
    %1638 = vmatpush1.msra.mxu0 0.0
    %1639 = vmatprep.subr.mxu0 0.0
    %1640 = vmatpush1.msra.mxu0 0.0
    %1641 = vmatprep.subr.mxu0 0.0
    %1642 = vmatpush1.msra.mxu0 0.0
    %1643 = vmatprep.subr.mxu0 0.0
    %1644 = vmatpush1.msra.mxu0 0.0
    %1645 = vmatprep.subr.mxu0 0.0
    %1646 = vmatpush1.msra.mxu0 0.0
    %1647 = vmatprep.subr.mxu0 0.0
    %1648 = vmatpush1.msra.mxu0 0.0
    %1649 = vmatprep.subr.mxu0 0.0
    %1650 = vmatpush1.msra.mxu0 0.0
    %1651 = vmatprep.subr.mxu0 0.0
    %1652 = vmatpush1.msra.mxu0 0.0
    %1653 = vmatprep.subr.mxu0 0.0
    %1654 = vmatpush1.msra.mxu0 0.0
    %1655 = vmatprep.subr.mxu0 0.0
    %1656 = vmatpush1.msra.mxu0 0.0
    %1657 = vmatprep.subr.mxu0 0.0
    %1658 = vmatpush1.msra.mxu0 0.0
    %1659 = vmatprep.subr.mxu0 0.0
    %1660 = vmatpush1.msra.mxu0 0.0
    %1661 = vmatprep.subr.mxu0 0.0
    %1662 = vmatpush1.msra.mxu0 0.0
    %1663 = vmatprep.subr.mxu0 0.0
    %1664 = vmatpush1.msra.mxu0 0.0
    %1665 = vmatprep.subr.mxu0 0.0
    %1666 = vmatpush1.msra.mxu0 0.0
    %1667 = vmatprep.subr.mxu0 0.0
    %1668 = vmatpush1.msra.mxu0 0.0
    %1669 = vmatprep.subr.mxu0 0.0
    %1670 = vmatpush1.msra.mxu0 0.0
    %1671 = vmatprep.subr.mxu0 0.0
    %1672 = vmatpush1.msra.mxu0 0.0
    %1673 = vmatprep.subr.mxu0 0.0
    %1674 = vmatpush1.msra.mxu0 0.0
    %1675 = vmatprep.subr.mxu0 0.0
    %1676 = vmatpush1.msra.mxu0 0.0
    %1677 = vmatprep.subr.mxu0 0.0
    %1678 = vmatpush1.msra.mxu0 0.0
    %1679 = vmatprep.subr.mxu0 0.0
    %1680 = vmatpush1.msra.mxu0 0.0
    %1681 = vmatprep.subr.mxu0 0.0
    %1682 = vmatpush1.msra.mxu0 0.0
    %1683 = vmatprep.subr.mxu0 0.0
    %1684 = vmatpush1.msra.mxu0 0.0
    %1685 = vmatprep.subr.mxu0 0.0
    %1686 = vmatpush1.msra.mxu0 0.0
    %1687 = vmatprep.subr.mxu0 0.0
    %1688 = vmatpush1.msra.mxu0 0.0
    %1689 = vmatprep.mubr.f32.mxu0 0.0
    %1690 = vmatmul.mubr.f32.gmra.mrb[0].mxu0 %v1614
    %v1691 = vpop.f32.mrb[0].mxu0
    %v1692 = vadd.f32 0.0, %v1691
    %v1693 = vpop.f32.mrb[0].mxu0
    %1694 = vmatprep.mubr.f32.mxu0 0.0
    %1695 = vmatmul.mubr.f32.gmra.mrb[0].mxu0 %v1617
    %v1696 = vpop.f32.mrb[0].mxu0
    %v1697 = vadd.f32 0.0, %v1696
    %v1698 = vpop.f32.mrb[0].mxu0
    %1699 = vmatprep.mubr.f32.mxu0 0.0
    %1700 = vmatmul.mubr.f32.gmra.mrb[0].mxu0 %v1620
    %v1701 = vpop.f32.mrb[0].mxu0
    %v1702 = vadd.f32 0.0, %v1701
    %v1703 = vpop.f32.mrb[0].mxu0
    %1704 = vmatprep.mubr.f32.mxu0 0.0
    %1705 = vmatmul.mubr.f32.gmra.mrb[0].mxu0 %v1623
    %v1706 = vpop.f32.mrb[0].mxu0
    %v1707 = vadd.f32 0.0, %v1706
    %v1708 = vpop.f32.mrb[0].mxu0
    %1709 = vdwg.mxu0
    %v1710 = vadd.f32 %v1516, %v1692
    %v1711 = vadd.f32 %v1517, %v1697
    %v1712 = vadd.f32 %v1518, %v1702
    %v1713 = vadd.f32 %v1519, %v1707
    %s1714 = scalar_lea.vmem %s3, 224
    %v1715 = vld [vmem:[%s1714] sm:$0xff]
    %v1716 = vld [vmem:[%s1714 + $0x8] sm:$0xff]
    %v1717 = vld [vmem:[%s1714 + $0x10] sm:$0xff]
    %v1718 = vld [vmem:[%s1714 + $0x18] sm:$0xff]
    %1719 = vmatprep.subr.mxu0 0.0
    %1720 = vmatpush1.msra.mxu0 %v334
    %1721 = vmatprep.subr.mxu0 0.0
    %1722 = vmatpush1.msra.mxu0 %v335
    %1723 = vmatprep.subr.mxu0 0.0
    %1724 = vmatpush1.msra.mxu0 %v336
    %1725 = vmatprep.subr.mxu0 0.0
    %1726 = vmatpush1.msra.mxu0 %v337
    %1727 = vmatprep.subr.mxu0 0.0
    %1728 = vmatpush1.msra.mxu0 %v338
    %1729 = vmatprep.subr.mxu0 0.0
    %1730 = vmatpush1.msra.mxu0 %v339
    %1731 = vmatprep.subr.mxu0 0.0
    %1732 = vmatpush1.msra.mxu0 %v340
    %1733 = vmatprep.subr.mxu0 0.0
    %1734 = vmatpush1.msra.mxu0 %v341
    %1735 = vmatprep.subr.mxu0 0.0
    %1736 = vmatpush1.msra.mxu0 %v342
    %1737 = vmatprep.subr.mxu0 0.0
    %1738 = vmatpush1.msra.mxu0 %v343
    %1739 = vmatprep.subr.mxu0 0.0
    %1740 = vmatpush1.msra.mxu0 %v344
    %1741 = vmatprep.subr.mxu0 0.0
    %1742 = vmatpush1.msra.mxu0 %v345
    %1743 = vmatprep.subr.mxu0 0.0
    %1744 = vmatpush1.msra.mxu0 %v346
    %1745 = vmatprep.subr.mxu0 0.0
    %1746 = vmatpush1.msra.mxu0 %v347
    %1747 = vmatprep.subr.mxu0 0.0
    %1748 = vmatpush1.msra.mxu0 %v348
    %1749 = vmatprep.subr.mxu0 0.0
    %1750 = vmatpush1.msra.mxu0 %v349
    %1751 = vmatprep.subr.mxu0 0.0
    %1752 = vmatpush1.msra.mxu0 0.0
    %1753 = vmatprep.subr.mxu0 0.0
    %1754 = vmatpush1.msra.mxu0 0.0
    %1755 = vmatprep.subr.mxu0 0.0
    %1756 = vmatpush1.msra.mxu0 0.0
    %1757 = vmatprep.subr.mxu0 0.0
    %1758 = vmatpush1.msra.mxu0 0.0
    %1759 = vmatprep.subr.mxu0 0.0
    %1760 = vmatpush1.msra.mxu0 0.0
    %1761 = vmatprep.subr.mxu0 0.0
    %1762 = vmatpush1.msra.mxu0 0.0
    %1763 = vmatprep.subr.mxu0 0.0
    %1764 = vmatpush1.msra.mxu0 0.0
    %1765 = vmatprep.subr.mxu0 0.0
    %1766 = vmatpush1.msra.mxu0 0.0
    %1767 = vmatprep.subr.mxu0 0.0
    %1768 = vmatpush1.msra.mxu0 0.0
    %1769 = vmatprep.subr.mxu0 0.0
    %1770 = vmatpush1.msra.mxu0 0.0
    %1771 = vmatprep.subr.mxu0 0.0
    %1772 = vmatpush1.msra.mxu0 0.0
    %1773 = vmatprep.subr.mxu0 0.0
    %1774 = vmatpush1.msra.mxu0 0.0
    %1775 = vmatprep.subr.mxu0 0.0
    %1776 = vmatpush1.msra.mxu0 0.0
    %1777 = vmatprep.subr.mxu0 0.0
    %1778 = vmatpush1.msra.mxu0 0.0
    %1779 = vmatprep.subr.mxu0 0.0
    %1780 = vmatpush1.msra.mxu0 0.0
    %1781 = vmatprep.subr.mxu0 0.0
    %1782 = vmatpush1.msra.mxu0 0.0
    %1783 = vmatprep.mubr.f32.mxu0 0.0
    %1784 = vmatmul.mubr.f32.gmra.mrb[0].mxu0 %v1715
    %v1785 = vpop.f32.mrb[0].mxu0
    %v1786 = vadd.f32 0.0, %v1785
    %v1787 = vpop.f32.mrb[0].mxu0
    %1788 = vmatprep.mubr.f32.mxu0 0.0
    %1789 = vmatmul.mubr.f32.gmra.mrb[0].mxu0 %v1716
    %v1790 = vpop.f32.mrb[0].mxu0
    %v1791 = vadd.f32 0.0, %v1790
    %v1792 = vpop.f32.mrb[0].mxu0
    %1793 = vmatprep.mubr.f32.mxu0 0.0
    %1794 = vmatmul.mubr.f32.gmra.mrb[0].mxu0 %v1717
    %v1795 = vpop.f32.mrb[0].mxu0
    %v1796 = vadd.f32 0.0, %v1795
    %v1797 = vpop.f32.mrb[0].mxu0
    %1798 = vmatprep.mubr.f32.mxu0 0.0
    %1799 = vmatmul.mubr.f32.gmra.mrb[0].mxu0 %v1718
    %v1800 = vpop.f32.mrb[0].mxu0
    %v1801 = vadd.f32 0.0, %v1800
    %v1802 = vpop.f32.mrb[0].mxu0
    %1803 = vdwg.mxu0
    %s1804 = scalar_lea.vmem [#allocation2], 112
    %v1805 = vld [vmem:[%s1804] sm:$0xff]
    %v1806 = vld [vmem:[%s1804 + $0x8] sm:$0xff]
    %v1808 = vsel %vm108, %v1786, 0
    %v1811 = vsel %vm108, %v1791, 0
    %v1814 = vsel %vm108, %v1796, 0
    %v1817 = vsel %vm108, %v1801, 0
    %1819 = vmatprep.subr.mxu0 0.0
    %1820 = vmatpush1.msra.mxu0 %v1805
    %1821 = vmatprep.subr.mxu0 0.0
    %1822 = vmatpush1.msra.mxu0 %v1806
    %1823 = vmatprep.subr.mxu0 0.0
    %1824 = vmatpush1.msra.mxu0 0.0
    %1825 = vmatprep.subr.mxu0 0.0
    %1826 = vmatpush1.msra.mxu0 0.0
    %1827 = vmatprep.subr.mxu0 0.0
    %1828 = vmatpush1.msra.mxu0 0.0
    %1829 = vmatprep.subr.mxu0 0.0
    %1830 = vmatpush1.msra.mxu0 0.0
    %1831 = vmatprep.subr.mxu0 0.0
    %1832 = vmatpush1.msra.mxu0 0.0
    %1833 = vmatprep.subr.mxu0 0.0
    %1834 = vmatpush1.msra.mxu0 0.0
    %1835 = vmatprep.subr.mxu0 0.0
    %1836 = vmatpush1.msra.mxu0 0.0
    %1837 = vmatprep.subr.mxu0 0.0
    %1838 = vmatpush1.msra.mxu0 0.0
    %1839 = vmatprep.subr.mxu0 0.0
    %1840 = vmatpush1.msra.mxu0 0.0
    %1841 = vmatprep.subr.mxu0 0.0
    %1842 = vmatpush1.msra.mxu0 0.0
    %1843 = vmatprep.subr.mxu0 0.0
    %1844 = vmatpush1.msra.mxu0 0.0
    %1845 = vmatprep.subr.mxu0 0.0
    %1846 = vmatpush1.msra.mxu0 0.0
    %1847 = vmatprep.subr.mxu0 0.0
    %1848 = vmatpush1.msra.mxu0 0.0
    %1849 = vmatprep.subr.mxu0 0.0
    %1850 = vmatpush1.msra.mxu0 0.0
    %1851 = vmatprep.subr.mxu0 0.0
    %1852 = vmatpush1.msra.mxu0 0.0
    %1853 = vmatprep.subr.mxu0 0.0
    %1854 = vmatpush1.msra.mxu0 0.0
    %1855 = vmatprep.subr.mxu0 0.0
    %1856 = vmatpush1.msra.mxu0 0.0
    %1857 = vmatprep.subr.mxu0 0.0
    %1858 = vmatpush1.msra.mxu0 0.0
    %1859 = vmatprep.subr.mxu0 0.0
    %1860 = vmatpush1.msra.mxu0 0.0
    %1861 = vmatprep.subr.mxu0 0.0
    %1862 = vmatpush1.msra.mxu0 0.0
    %1863 = vmatprep.subr.mxu0 0.0
    %1864 = vmatpush1.msra.mxu0 0.0
    %1865 = vmatprep.subr.mxu0 0.0
    %1866 = vmatpush1.msra.mxu0 0.0
    %1867 = vmatprep.subr.mxu0 0.0
    %1868 = vmatpush1.msra.mxu0 0.0
    %1869 = vmatprep.subr.mxu0 0.0
    %1870 = vmatpush1.msra.mxu0 0.0
    %1871 = vmatprep.subr.mxu0 0.0
    %1872 = vmatpush1.msra.mxu0 0.0
    %1873 = vmatprep.subr.mxu0 0.0
    %1874 = vmatpush1.msra.mxu0 0.0
    %1875 = vmatprep.subr.mxu0 0.0
    %1876 = vmatpush1.msra.mxu0 0.0
    %1877 = vmatprep.subr.mxu0 0.0
    %1878 = vmatpush1.msra.mxu0 0.0
    %1879 = vmatprep.subr.mxu0 0.0
    %1880 = vmatpush1.msra.mxu0 0.0
    %1881 = vmatprep.subr.mxu0 0.0
    %1882 = vmatpush1.msra.mxu0 0.0
    %1883 = vmatprep.mubr.f32.mxu0 0.0
    %1884 = vmatmul.mubr.f32.gmra.mrb[0].mxu0 %v1808
    %v1885 = vpop.f32.mrb[0].mxu0
    %v1886 = vadd.f32 0.0, %v1885
    %v1887 = vpop.f32.mrb[0].mxu0
    %1888 = vmatprep.mubr.f32.mxu0 0.0
    %1889 = vmatmul.mubr.f32.gmra.mrb[0].mxu0 %v1811
    %v1890 = vpop.f32.mrb[0].mxu0
    %v1891 = vadd.f32 0.0, %v1890
    %v1892 = vpop.f32.mrb[0].mxu0
    %1893 = vmatprep.mubr.f32.mxu0 0.0
    %1894 = vmatmul.mubr.f32.gmra.mrb[0].mxu0 %v1814
    %v1895 = vpop.f32.mrb[0].mxu0
    %v1896 = vadd.f32 0.0, %v1895
    %v1897 = vpop.f32.mrb[0].mxu0
    %1898 = vmatprep.mubr.f32.mxu0 0.0
    %1899 = vmatmul.mubr.f32.gmra.mrb[0].mxu0 %v1817
    %v1900 = vpop.f32.mrb[0].mxu0
    %v1901 = vadd.f32 0.0, %v1900
    %v1902 = vpop.f32.mrb[0].mxu0
    %1903 = vdwg.mxu0
    %v1904 = vadd.f32 %v1710, %v1886
    %v1905 = vadd.f32 %v1711, %v1891
    %v1906 = vadd.f32 %v1712, %v1896
    %v1907 = vadd.f32 %v1713, %v1901
    %s1908 = scalar_lea.vmem %s3, 256
    %v1909 = vld [vmem:[%s1908] sm:$0xff]
    %v1910 = vld [vmem:[%s1908 + $0x8] sm:$0xff]
    %v1911 = vld [vmem:[%s1908 + $0x10] sm:$0xff]
    %v1912 = vld [vmem:[%s1908 + $0x18] sm:$0xff]
    %1913 = vmatprep.subr.mxu0 0.0
    %1914 = vmatpush1.msra.mxu0 %v334
    %1915 = vmatprep.subr.mxu0 0.0
    %1916 = vmatpush1.msra.mxu0 %v335
    %1917 = vmatprep.subr.mxu0 0.0
    %1918 = vmatpush1.msra.mxu0 %v336
    %1919 = vmatprep.subr.mxu0 0.0
    %1920 = vmatpush1.msra.mxu0 %v337
    %1921 = vmatprep.subr.mxu0 0.0
    %1922 = vmatpush1.msra.mxu0 %v338
    %1923 = vmatprep.subr.mxu0 0.0
    %1924 = vmatpush1.msra.mxu0 %v339
    %1925 = vmatprep.subr.mxu0 0.0
    %1926 = vmatpush1.msra.mxu0 %v340
    %1927 = vmatprep.subr.mxu0 0.0
    %1928 = vmatpush1.msra.mxu0 %v341
    %1929 = vmatprep.subr.mxu0 0.0
    %1930 = vmatpush1.msra.mxu0 %v342
    %1931 = vmatprep.subr.mxu0 0.0
    %1932 = vmatpush1.msra.mxu0 %v343
    %1933 = vmatprep.subr.mxu0 0.0
    %1934 = vmatpush1.msra.mxu0 %v344
    %1935 = vmatprep.subr.mxu0 0.0
    %1936 = vmatpush1.msra.mxu0 %v345
    %1937 = vmatprep.subr.mxu0 0.0
    %1938 = vmatpush1.msra.mxu0 %v346
    %1939 = vmatprep.subr.mxu0 0.0
    %1940 = vmatpush1.msra.mxu0 %v347
    %1941 = vmatprep.subr.mxu0 0.0
    %1942 = vmatpush1.msra.mxu0 %v348
    %1943 = vmatprep.subr.mxu0 0.0
    %1944 = vmatpush1.msra.mxu0 %v349
    %1945 = vmatprep.subr.mxu0 0.0
    %1946 = vmatpush1.msra.mxu0 0.0
    %1947 = vmatprep.subr.mxu0 0.0
    %1948 = vmatpush1.msra.mxu0 0.0
    %1949 = vmatprep.subr.mxu0 0.0
    %1950 = vmatpush1.msra.mxu0 0.0
    %1951 = vmatprep.subr.mxu0 0.0
    %1952 = vmatpush1.msra.mxu0 0.0
    %1953 = vmatprep.subr.mxu0 0.0
    %1954 = vmatpush1.msra.mxu0 0.0
    %1955 = vmatprep.subr.mxu0 0.0
    %1956 = vmatpush1.msra.mxu0 0.0
    %1957 = vmatprep.subr.mxu0 0.0
    %1958 = vmatpush1.msra.mxu0 0.0
    %1959 = vmatprep.subr.mxu0 0.0
    %1960 = vmatpush1.msra.mxu0 0.0
    %1961 = vmatprep.subr.mxu0 0.0
    %1962 = vmatpush1.msra.mxu0 0.0
    %1963 = vmatprep.subr.mxu0 0.0
    %1964 = vmatpush1.msra.mxu0 0.0
    %1965 = vmatprep.subr.mxu0 0.0
    %1966 = vmatpush1.msra.mxu0 0.0
    %1967 = vmatprep.subr.mxu0 0.0
    %1968 = vmatpush1.msra.mxu0 0.0
    %1969 = vmatprep.subr.mxu0 0.0
    %1970 = vmatpush1.msra.mxu0 0.0
    %1971 = vmatprep.subr.mxu0 0.0
    %1972 = vmatpush1.msra.mxu0 0.0
    %1973 = vmatprep.subr.mxu0 0.0
    %1974 = vmatpush1.msra.mxu0 0.0
    %1975 = vmatprep.subr.mxu0 0.0
    %1976 = vmatpush1.msra.mxu0 0.0
    %1977 = vmatprep.mubr.f32.mxu0 0.0
    %1978 = vmatmul.mubr.f32.gmra.mrb[0].mxu0 %v1909
    %v1979 = vpop.f32.mrb[0].mxu0
    %v1980 = vadd.f32 0.0, %v1979
    %v1981 = vpop.f32.mrb[0].mxu0
    %1982 = vmatprep.mubr.f32.mxu0 0.0
    %1983 = vmatmul.mubr.f32.gmra.mrb[0].mxu0 %v1910
    %v1984 = vpop.f32.mrb[0].mxu0
    %v1985 = vadd.f32 0.0, %v1984
    %v1986 = vpop.f32.mrb[0].mxu0
    %1987 = vmatprep.mubr.f32.mxu0 0.0
    %1988 = vmatmul.mubr.f32.gmra.mrb[0].mxu0 %v1911
    %v1989 = vpop.f32.mrb[0].mxu0
    %v1990 = vadd.f32 0.0, %v1989
    %v1991 = vpop.f32.mrb[0].mxu0
    %1992 = vmatprep.mubr.f32.mxu0 0.0
    %1993 = vmatmul.mubr.f32.gmra.mrb[0].mxu0 %v1912
    %v1994 = vpop.f32.mrb[0].mxu0
    %v1995 = vadd.f32 0.0, %v1994
    %v1996 = vpop.f32.mrb[0].mxu0
    %1997 = vdwg.mxu0
    %s1998 = scalar_lea.vmem [#allocation2], 128
    %v1999 = vld [vmem:[%s1998] sm:$0xff]
    %v2000 = vld [vmem:[%s1998 + $0x8] sm:$0xff]
    %v2002 = vsel %vm108, %v1980, 0
    %v2005 = vsel %vm108, %v1985, 0
    %v2008 = vsel %vm108, %v1990, 0
    %v2011 = vsel %vm108, %v1995, 0
    %2013 = vmatprep.subr.mxu0 0.0
    %2014 = vmatpush1.msra.mxu0 %v1999
    %2015 = vmatprep.subr.mxu0 0.0
    %2016 = vmatpush1.msra.mxu0 %v2000
    %2017 = vmatprep.subr.mxu0 0.0
    %2018 = vmatpush1.msra.mxu0 0.0
    %2019 = vmatprep.subr.mxu0 0.0
    %2020 = vmatpush1.msra.mxu0 0.0
    %2021 = vmatprep.subr.mxu0 0.0
    %2022 = vmatpush1.msra.mxu0 0.0
    %2023 = vmatprep.subr.mxu0 0.0
    %2024 = vmatpush1.msra.mxu0 0.0
    %2025 = vmatprep.subr.mxu0 0.0
    %2026 = vmatpush1.msra.mxu0 0.0
    %2027 = vmatprep.subr.mxu0 0.0
    %2028 = vmatpush1.msra.mxu0 0.0
    %2029 = vmatprep.subr.mxu0 0.0
    %2030 = vmatpush1.msra.mxu0 0.0
    %2031 = vmatprep.subr.mxu0 0.0
    %2032 = vmatpush1.msra.mxu0 0.0
    %2033 = vmatprep.subr.mxu0 0.0
    %2034 = vmatpush1.msra.mxu0 0.0
    %2035 = vmatprep.subr.mxu0 0.0
    %2036 = vmatpush1.msra.mxu0 0.0
    %2037 = vmatprep.subr.mxu0 0.0
    %2038 = vmatpush1.msra.mxu0 0.0
    %2039 = vmatprep.subr.mxu0 0.0
    %2040 = vmatpush1.msra.mxu0 0.0
    %2041 = vmatprep.subr.mxu0 0.0
    %2042 = vmatpush1.msra.mxu0 0.0
    %2043 = vmatprep.subr.mxu0 0.0
    %2044 = vmatpush1.msra.mxu0 0.0
    %2045 = vmatprep.subr.mxu0 0.0
    %2046 = vmatpush1.msra.mxu0 0.0
    %2047 = vmatprep.subr.mxu0 0.0
    %2048 = vmatpush1.msra.mxu0 0.0
    %2049 = vmatprep.subr.mxu0 0.0
    %2050 = vmatpush1.msra.mxu0 0.0
    %2051 = vmatprep.subr.mxu0 0.0
    %2052 = vmatpush1.msra.mxu0 0.0
    %2053 = vmatprep.subr.mxu0 0.0
    %2054 = vmatpush1.msra.mxu0 0.0
    %2055 = vmatprep.subr.mxu0 0.0
    %2056 = vmatpush1.msra.mxu0 0.0
    %2057 = vmatprep.subr.mxu0 0.0
    %2058 = vmatpush1.msra.mxu0 0.0
    %2059 = vmatprep.subr.mxu0 0.0
    %2060 = vmatpush1.msra.mxu0 0.0
    %2061 = vmatprep.subr.mxu0 0.0
    %2062 = vmatpush1.msra.mxu0 0.0
    %2063 = vmatprep.subr.mxu0 0.0
    %2064 = vmatpush1.msra.mxu0 0.0
    %2065 = vmatprep.subr.mxu0 0.0
    %2066 = vmatpush1.msra.mxu0 0.0
    %2067 = vmatprep.subr.mxu0 0.0
    %2068 = vmatpush1.msra.mxu0 0.0
    %2069 = vmatprep.subr.mxu0 0.0
    %2070 = vmatpush1.msra.mxu0 0.0
    %2071 = vmatprep.subr.mxu0 0.0
    %2072 = vmatpush1.msra.mxu0 0.0
    %2073 = vmatprep.subr.mxu0 0.0
    %2074 = vmatpush1.msra.mxu0 0.0
    %2075 = vmatprep.subr.mxu0 0.0
    %2076 = vmatpush1.msra.mxu0 0.0
    %2077 = vmatprep.mubr.f32.mxu0 0.0
    %2078 = vmatmul.mubr.f32.gmra.mrb[0].mxu0 %v2002
    %v2079 = vpop.f32.mrb[0].mxu0
    %v2080 = vadd.f32 0.0, %v2079
    %v2081 = vpop.f32.mrb[0].mxu0
    %2082 = vmatprep.mubr.f32.mxu0 0.0
    %2083 = vmatmul.mubr.f32.gmra.mrb[0].mxu0 %v2005
    %v2084 = vpop.f32.mrb[0].mxu0
    %v2085 = vadd.f32 0.0, %v2084
    %v2086 = vpop.f32.mrb[0].mxu0
    %2087 = vmatprep.mubr.f32.mxu0 0.0
    %2088 = vmatmul.mubr.f32.gmra.mrb[0].mxu0 %v2008
    %v2089 = vpop.f32.mrb[0].mxu0
    %v2090 = vadd.f32 0.0, %v2089
    %v2091 = vpop.f32.mrb[0].mxu0
    %2092 = vmatprep.mubr.f32.mxu0 0.0
    %2093 = vmatmul.mubr.f32.gmra.mrb[0].mxu0 %v2011
    %v2094 = vpop.f32.mrb[0].mxu0
    %v2095 = vadd.f32 0.0, %v2094
    %v2096 = vpop.f32.mrb[0].mxu0
    %2097 = vdwg.mxu0
    %v2098 = vadd.f32 %v1904, %v2080
    %v2099 = vadd.f32 %v1905, %v2085
    %v2100 = vadd.f32 %v1906, %v2090
    %v2101 = vadd.f32 %v1907, %v2095
    %s2102 = scalar_lea.vmem %s3, 288
    %v2103 = vld [vmem:[%s2102] sm:$0xff]
    %v2104 = vld [vmem:[%s2102 + $0x8] sm:$0xff]
    %v2105 = vld [vmem:[%s2102 + $0x10] sm:$0xff]
    %v2106 = vld [vmem:[%s2102 + $0x18] sm:$0xff]
    %2107 = vmatprep.subr.mxu0 0.0
    %2108 = vmatpush1.msra.mxu0 %v334
    %2109 = vmatprep.subr.mxu0 0.0
    %2110 = vmatpush1.msra.mxu0 %v335
    %2111 = vmatprep.subr.mxu0 0.0
    %2112 = vmatpush1.msra.mxu0 %v336
    %2113 = vmatprep.subr.mxu0 0.0
    %2114 = vmatpush1.msra.mxu0 %v337
    %2115 = vmatprep.subr.mxu0 0.0
    %2116 = vmatpush1.msra.mxu0 %v338
    %2117 = vmatprep.subr.mxu0 0.0
    %2118 = vmatpush1.msra.mxu0 %v339
    %2119 = vmatprep.subr.mxu0 0.0
    %2120 = vmatpush1.msra.mxu0 %v340
    %2121 = vmatprep.subr.mxu0 0.0
    %2122 = vmatpush1.msra.mxu0 %v341
    %2123 = vmatprep.subr.mxu0 0.0
    %2124 = vmatpush1.msra.mxu0 %v342
    %2125 = vmatprep.subr.mxu0 0.0
    %2126 = vmatpush1.msra.mxu0 %v343
    %2127 = vmatprep.subr.mxu0 0.0
    %2128 = vmatpush1.msra.mxu0 %v344
    %2129 = vmatprep.subr.mxu0 0.0
    %2130 = vmatpush1.msra.mxu0 %v345
    %2131 = vmatprep.subr.mxu0 0.0
    %2132 = vmatpush1.msra.mxu0 %v346
    %2133 = vmatprep.subr.mxu0 0.0
    %2134 = vmatpush1.msra.mxu0 %v347
    %2135 = vmatprep.subr.mxu0 0.0
    %2136 = vmatpush1.msra.mxu0 %v348
    %2137 = vmatprep.subr.mxu0 0.0
    %2138 = vmatpush1.msra.mxu0 %v349
    %2139 = vmatprep.subr.mxu0 0.0
    %2140 = vmatpush1.msra.mxu0 0.0
    %2141 = vmatprep.subr.mxu0 0.0
    %2142 = vmatpush1.msra.mxu0 0.0
    %2143 = vmatprep.subr.mxu0 0.0
    %2144 = vmatpush1.msra.mxu0 0.0
    %2145 = vmatprep.subr.mxu0 0.0
    %2146 = vmatpush1.msra.mxu0 0.0
    %2147 = vmatprep.subr.mxu0 0.0
    %2148 = vmatpush1.msra.mxu0 0.0
    %2149 = vmatprep.subr.mxu0 0.0
    %2150 = vmatpush1.msra.mxu0 0.0
    %2151 = vmatprep.subr.mxu0 0.0
    %2152 = vmatpush1.msra.mxu0 0.0
    %2153 = vmatprep.subr.mxu0 0.0
    %2154 = vmatpush1.msra.mxu0 0.0
    %2155 = vmatprep.subr.mxu0 0.0
    %2156 = vmatpush1.msra.mxu0 0.0
    %2157 = vmatprep.subr.mxu0 0.0
    %2158 = vmatpush1.msra.mxu0 0.0
    %2159 = vmatprep.subr.mxu0 0.0
    %2160 = vmatpush1.msra.mxu0 0.0
    %2161 = vmatprep.subr.mxu0 0.0
    %2162 = vmatpush1.msra.mxu0 0.0
    %2163 = vmatprep.subr.mxu0 0.0
    %2164 = vmatpush1.msra.mxu0 0.0
    %2165 = vmatprep.subr.mxu0 0.0
    %2166 = vmatpush1.msra.mxu0 0.0
    %2167 = vmatprep.subr.mxu0 0.0
    %2168 = vmatpush1.msra.mxu0 0.0
    %2169 = vmatprep.subr.mxu0 0.0
    %2170 = vmatpush1.msra.mxu0 0.0
    %2171 = vmatprep.mubr.f32.mxu0 0.0
    %2172 = vmatmul.mubr.f32.gmra.mrb[0].mxu0 %v2103
    %v2173 = vpop.f32.mrb[0].mxu0
    %v2174 = vadd.f32 0.0, %v2173
    %v2175 = vpop.f32.mrb[0].mxu0
    %2176 = vmatprep.mubr.f32.mxu0 0.0
    %2177 = vmatmul.mubr.f32.gmra.mrb[0].mxu0 %v2104
    %v2178 = vpop.f32.mrb[0].mxu0
    %v2179 = vadd.f32 0.0, %v2178
    %v2180 = vpop.f32.mrb[0].mxu0
    %2181 = vmatprep.mubr.f32.mxu0 0.0
    %2182 = vmatmul.mubr.f32.gmra.mrb[0].mxu0 %v2105
    %v2183 = vpop.f32.mrb[0].mxu0
    %v2184 = vadd.f32 0.0, %v2183
    %v2185 = vpop.f32.mrb[0].mxu0
    %2186 = vmatprep.mubr.f32.mxu0 0.0
    %2187 = vmatmul.mubr.f32.gmra.mrb[0].mxu0 %v2106
    %v2188 = vpop.f32.mrb[0].mxu0
    %v2189 = vadd.f32 0.0, %v2188
    %v2190 = vpop.f32.mrb[0].mxu0
    %2191 = vdwg.mxu0
    %s2192 = scalar_lea.vmem [#allocation2], 144
    %v2193 = vld [vmem:[%s2192] sm:$0xff]
    %v2194 = vld [vmem:[%s2192 + $0x8] sm:$0xff]
    %v2196 = vsel %vm108, %v2174, 0
    %v2199 = vsel %vm108, %v2179, 0
    %v2202 = vsel %vm108, %v2184, 0
    %v2205 = vsel %vm108, %v2189, 0
    %2207 = vmatprep.subr.mxu0 0.0
    %2208 = vmatpush1.msra.mxu0 %v2193
    %2209 = vmatprep.subr.mxu0 0.0
    %2210 = vmatpush1.msra.mxu0 %v2194
    %2211 = vmatprep.subr.mxu0 0.0
    %2212 = vmatpush1.msra.mxu0 0.0
    %2213 = vmatprep.subr.mxu0 0.0
    %2214 = vmatpush1.msra.mxu0 0.0
    %2215 = vmatprep.subr.mxu0 0.0
    %2216 = vmatpush1.msra.mxu0 0.0
    %2217 = vmatprep.subr.mxu0 0.0
    %2218 = vmatpush1.msra.mxu0 0.0
    %2219 = vmatprep.subr.mxu0 0.0
    %2220 = vmatpush1.msra.mxu0 0.0
    %2221 = vmatprep.subr.mxu0 0.0
    %2222 = vmatpush1.msra.mxu0 0.0
    %2223 = vmatprep.subr.mxu0 0.0
    %2224 = vmatpush1.msra.mxu0 0.0
    %2225 = vmatprep.subr.mxu0 0.0
    %2226 = vmatpush1.msra.mxu0 0.0
    %2227 = vmatprep.subr.mxu0 0.0
    %2228 = vmatpush1.msra.mxu0 0.0
    %2229 = vmatprep.subr.mxu0 0.0
    %2230 = vmatpush1.msra.mxu0 0.0
    %2231 = vmatprep.subr.mxu0 0.0
    %2232 = vmatpush1.msra.mxu0 0.0
    %2233 = vmatprep.subr.mxu0 0.0
    %2234 = vmatpush1.msra.mxu0 0.0
    %2235 = vmatprep.subr.mxu0 0.0
    %2236 = vmatpush1.msra.mxu0 0.0
    %2237 = vmatprep.subr.mxu0 0.0
    %2238 = vmatpush1.msra.mxu0 0.0
    %2239 = vmatprep.subr.mxu0 0.0
    %2240 = vmatpush1.msra.mxu0 0.0
    %2241 = vmatprep.subr.mxu0 0.0
    %2242 = vmatpush1.msra.mxu0 0.0
    %2243 = vmatprep.subr.mxu0 0.0
    %2244 = vmatpush1.msra.mxu0 0.0
    %2245 = vmatprep.subr.mxu0 0.0
    %2246 = vmatpush1.msra.mxu0 0.0
    %2247 = vmatprep.subr.mxu0 0.0
    %2248 = vmatpush1.msra.mxu0 0.0
    %2249 = vmatprep.subr.mxu0 0.0
    %2250 = vmatpush1.msra.mxu0 0.0
    %2251 = vmatprep.subr.mxu0 0.0
    %2252 = vmatpush1.msra.mxu0 0.0
    %2253 = vmatprep.subr.mxu0 0.0
    %2254 = vmatpush1.msra.mxu0 0.0
    %2255 = vmatprep.subr.mxu0 0.0
    %2256 = vmatpush1.msra.mxu0 0.0
    %2257 = vmatprep.subr.mxu0 0.0
    %2258 = vmatpush1.msra.mxu0 0.0
    %2259 = vmatprep.subr.mxu0 0.0
    %2260 = vmatpush1.msra.mxu0 0.0
    %2261 = vmatprep.subr.mxu0 0.0
    %2262 = vmatpush1.msra.mxu0 0.0
    %2263 = vmatprep.subr.mxu0 0.0
    %2264 = vmatpush1.msra.mxu0 0.0
    %2265 = vmatprep.subr.mxu0 0.0
    %2266 = vmatpush1.msra.mxu0 0.0
    %2267 = vmatprep.subr.mxu0 0.0
    %2268 = vmatpush1.msra.mxu0 0.0
    %2269 = vmatprep.subr.mxu0 0.0
    %2270 = vmatpush1.msra.mxu0 0.0
    %2271 = vmatprep.mubr.f32.mxu0 0.0
    %2272 = vmatmul.mubr.f32.gmra.mrb[0].mxu0 %v2196
    %v2273 = vpop.f32.mrb[0].mxu0
    %v2274 = vadd.f32 0.0, %v2273
    %v2275 = vpop.f32.mrb[0].mxu0
    %2276 = vmatprep.mubr.f32.mxu0 0.0
    %2277 = vmatmul.mubr.f32.gmra.mrb[0].mxu0 %v2199
    %v2278 = vpop.f32.mrb[0].mxu0
    %v2279 = vadd.f32 0.0, %v2278
    %v2280 = vpop.f32.mrb[0].mxu0
    %2281 = vmatprep.mubr.f32.mxu0 0.0
    %2282 = vmatmul.mubr.f32.gmra.mrb[0].mxu0 %v2202
    %v2283 = vpop.f32.mrb[0].mxu0
    %v2284 = vadd.f32 0.0, %v2283
    %v2285 = vpop.f32.mrb[0].mxu0
    %2286 = vmatprep.mubr.f32.mxu0 0.0
    %2287 = vmatmul.mubr.f32.gmra.mrb[0].mxu0 %v2205
    %v2288 = vpop.f32.mrb[0].mxu0
    %v2289 = vadd.f32 0.0, %v2288
    %v2290 = vpop.f32.mrb[0].mxu0
    %2291 = vdwg.mxu0
    %v2292 = vadd.f32 %v2098, %v2274
    %v2293 = vadd.f32 %v2099, %v2279
    %v2294 = vadd.f32 %v2100, %v2284
    %v2295 = vadd.f32 %v2101, %v2289
    %s2296 = scalar_lea.vmem %s3, 320
    %v2297 = vld [vmem:[%s2296] sm:$0xff]
    %v2298 = vld [vmem:[%s2296 + $0x8] sm:$0xff]
    %v2299 = vld [vmem:[%s2296 + $0x10] sm:$0xff]
    %v2300 = vld [vmem:[%s2296 + $0x18] sm:$0xff]
    %2301 = vmatprep.subr.mxu0 0.0
    %2302 = vmatpush1.msra.mxu0 %v334
    %2303 = vmatprep.subr.mxu0 0.0
    %2304 = vmatpush1.msra.mxu0 %v335
    %2305 = vmatprep.subr.mxu0 0.0
    %2306 = vmatpush1.msra.mxu0 %v336
    %2307 = vmatprep.subr.mxu0 0.0
    %2308 = vmatpush1.msra.mxu0 %v337
    %2309 = vmatprep.subr.mxu0 0.0
    %2310 = vmatpush1.msra.mxu0 %v338
    %2311 = vmatprep.subr.mxu0 0.0
    %2312 = vmatpush1.msra.mxu0 %v339
    %2313 = vmatprep.subr.mxu0 0.0
    %2314 = vmatpush1.msra.mxu0 %v340
    %2315 = vmatprep.subr.mxu0 0.0
    %2316 = vmatpush1.msra.mxu0 %v341
    %2317 = vmatprep.subr.mxu0 0.0
    %2318 = vmatpush1.msra.mxu0 %v342
    %2319 = vmatprep.subr.mxu0 0.0
    %2320 = vmatpush1.msra.mxu0 %v343
    %2321 = vmatprep.subr.mxu0 0.0
    %2322 = vmatpush1.msra.mxu0 %v344
    %2323 = vmatprep.subr.mxu0 0.0
    %2324 = vmatpush1.msra.mxu0 %v345
    %2325 = vmatprep.subr.mxu0 0.0
    %2326 = vmatpush1.msra.mxu0 %v346
    %2327 = vmatprep.subr.mxu0 0.0
    %2328 = vmatpush1.msra.mxu0 %v347
    %2329 = vmatprep.subr.mxu0 0.0
    %2330 = vmatpush1.msra.mxu0 %v348
    %2331 = vmatprep.subr.mxu0 0.0
    %2332 = vmatpush1.msra.mxu0 %v349
    %2333 = vmatprep.subr.mxu0 0.0
    %2334 = vmatpush1.msra.mxu0 0.0
    %2335 = vmatprep.subr.mxu0 0.0
    %2336 = vmatpush1.msra.mxu0 0.0
    %2337 = vmatprep.subr.mxu0 0.0
    %2338 = vmatpush1.msra.mxu0 0.0
    %2339 = vmatprep.subr.mxu0 0.0
    %2340 = vmatpush1.msra.mxu0 0.0
    %2341 = vmatprep.subr.mxu0 0.0
    %2342 = vmatpush1.msra.mxu0 0.0
    %2343 = vmatprep.subr.mxu0 0.0
    %2344 = vmatpush1.msra.mxu0 0.0
    %2345 = vmatprep.subr.mxu0 0.0
    %2346 = vmatpush1.msra.mxu0 0.0
    %2347 = vmatprep.subr.mxu0 0.0
    %2348 = vmatpush1.msra.mxu0 0.0
    %2349 = vmatprep.subr.mxu0 0.0
    %2350 = vmatpush1.msra.mxu0 0.0
    %2351 = vmatprep.subr.mxu0 0.0
    %2352 = vmatpush1.msra.mxu0 0.0
    %2353 = vmatprep.subr.mxu0 0.0
    %2354 = vmatpush1.msra.mxu0 0.0
    %2355 = vmatprep.subr.mxu0 0.0
    %2356 = vmatpush1.msra.mxu0 0.0
    %2357 = vmatprep.subr.mxu0 0.0
    %2358 = vmatpush1.msra.mxu0 0.0
    %2359 = vmatprep.subr.mxu0 0.0
    %2360 = vmatpush1.msra.mxu0 0.0
    %2361 = vmatprep.subr.mxu0 0.0
    %2362 = vmatpush1.msra.mxu0 0.0
    %2363 = vmatprep.subr.mxu0 0.0
    %2364 = vmatpush1.msra.mxu0 0.0
    %2365 = vmatprep.mubr.f32.mxu0 0.0
    %2366 = vmatmul.mubr.f32.gmra.mrb[0].mxu0 %v2297
    %v2367 = vpop.f32.mrb[0].mxu0
    %v2368 = vadd.f32 0.0, %v2367
    %v2369 = vpop.f32.mrb[0].mxu0
    %2370 = vmatprep.mubr.f32.mxu0 0.0
    %2371 = vmatmul.mubr.f32.gmra.mrb[0].mxu0 %v2298
    %v2372 = vpop.f32.mrb[0].mxu0
    %v2373 = vadd.f32 0.0, %v2372
    %v2374 = vpop.f32.mrb[0].mxu0
    %2375 = vmatprep.mubr.f32.mxu0 0.0
    %2376 = vmatmul.mubr.f32.gmra.mrb[0].mxu0 %v2299
    %v2377 = vpop.f32.mrb[0].mxu0
    %v2378 = vadd.f32 0.0, %v2377
    %v2379 = vpop.f32.mrb[0].mxu0
    %2380 = vmatprep.mubr.f32.mxu0 0.0
    %2381 = vmatmul.mubr.f32.gmra.mrb[0].mxu0 %v2300
    %v2382 = vpop.f32.mrb[0].mxu0
    %v2383 = vadd.f32 0.0, %v2382
    %v2384 = vpop.f32.mrb[0].mxu0
    %2385 = vdwg.mxu0
    %s2386 = scalar_lea.vmem [#allocation2], 160
    %v2387 = vld [vmem:[%s2386] sm:$0xff]
    %v2388 = vld [vmem:[%s2386 + $0x8] sm:$0xff]
    %v2390 = vsel %vm108, %v2368, 0
    %v2393 = vsel %vm108, %v2373, 0
    %v2396 = vsel %vm108, %v2378, 0
    %v2399 = vsel %vm108, %v2383, 0
    %2401 = vmatprep.subr.mxu0 0.0
    %2402 = vmatpush1.msra.mxu0 %v2387
    %2403 = vmatprep.subr.mxu0 0.0
    %2404 = vmatpush1.msra.mxu0 %v2388
    %2405 = vmatprep.subr.mxu0 0.0
    %2406 = vmatpush1.msra.mxu0 0.0
    %2407 = vmatprep.subr.mxu0 0.0
    %2408 = vmatpush1.msra.mxu0 0.0
    %2409 = vmatprep.subr.mxu0 0.0
    %2410 = vmatpush1.msra.mxu0 0.0
    %2411 = vmatprep.subr.mxu0 0.0
    %2412 = vmatpush1.msra.mxu0 0.0
    %2413 = vmatprep.subr.mxu0 0.0
    %2414 = vmatpush1.msra.mxu0 0.0
    %2415 = vmatprep.subr.mxu0 0.0
    %2416 = vmatpush1.msra.mxu0 0.0
    %2417 = vmatprep.subr.mxu0 0.0
    %2418 = vmatpush1.msra.mxu0 0.0
    %2419 = vmatprep.subr.mxu0 0.0
    %2420 = vmatpush1.msra.mxu0 0.0
    %2421 = vmatprep.subr.mxu0 0.0
    %2422 = vmatpush1.msra.mxu0 0.0
    %2423 = vmatprep.subr.mxu0 0.0
    %2424 = vmatpush1.msra.mxu0 0.0
    %2425 = vmatprep.subr.mxu0 0.0
    %2426 = vmatpush1.msra.mxu0 0.0
    %2427 = vmatprep.subr.mxu0 0.0
    %2428 = vmatpush1.msra.mxu0 0.0
    %2429 = vmatprep.subr.mxu0 0.0
    %2430 = vmatpush1.msra.mxu0 0.0
    %2431 = vmatprep.subr.mxu0 0.0
    %2432 = vmatpush1.msra.mxu0 0.0
    %2433 = vmatprep.subr.mxu0 0.0
    %2434 = vmatpush1.msra.mxu0 0.0
    %2435 = vmatprep.subr.mxu0 0.0
    %2436 = vmatpush1.msra.mxu0 0.0
    %2437 = vmatprep.subr.mxu0 0.0
    %2438 = vmatpush1.msra.mxu0 0.0
    %2439 = vmatprep.subr.mxu0 0.0
    %2440 = vmatpush1.msra.mxu0 0.0
    %2441 = vmatprep.subr.mxu0 0.0
    %2442 = vmatpush1.msra.mxu0 0.0
    %2443 = vmatprep.subr.mxu0 0.0
    %2444 = vmatpush1.msra.mxu0 0.0
    %2445 = vmatprep.subr.mxu0 0.0
    %2446 = vmatpush1.msra.mxu0 0.0
    %2447 = vmatprep.subr.mxu0 0.0
    %2448 = vmatpush1.msra.mxu0 0.0
    %2449 = vmatprep.subr.mxu0 0.0
    %2450 = vmatpush1.msra.mxu0 0.0
    %2451 = vmatprep.subr.mxu0 0.0
    %2452 = vmatpush1.msra.mxu0 0.0
    %2453 = vmatprep.subr.mxu0 0.0
    %2454 = vmatpush1.msra.mxu0 0.0
    %2455 = vmatprep.subr.mxu0 0.0
    %2456 = vmatpush1.msra.mxu0 0.0
    %2457 = vmatprep.subr.mxu0 0.0
    %2458 = vmatpush1.msra.mxu0 0.0
    %2459 = vmatprep.subr.mxu0 0.0
    %2460 = vmatpush1.msra.mxu0 0.0
    %2461 = vmatprep.subr.mxu0 0.0
    %2462 = vmatpush1.msra.mxu0 0.0
    %2463 = vmatprep.subr.mxu0 0.0
    %2464 = vmatpush1.msra.mxu0 0.0
    %2465 = vmatprep.mubr.f32.mxu0 0.0
    %2466 = vmatmul.mubr.f32.gmra.mrb[0].mxu0 %v2390
    %v2467 = vpop.f32.mrb[0].mxu0
    %v2468 = vadd.f32 0.0, %v2467
    %v2469 = vpop.f32.mrb[0].mxu0
    %2470 = vmatprep.mubr.f32.mxu0 0.0
    %2471 = vmatmul.mubr.f32.gmra.mrb[0].mxu0 %v2393
    %v2472 = vpop.f32.mrb[0].mxu0
    %v2473 = vadd.f32 0.0, %v2472
    %v2474 = vpop.f32.mrb[0].mxu0
    %2475 = vmatprep.mubr.f32.mxu0 0.0
    %2476 = vmatmul.mubr.f32.gmra.mrb[0].mxu0 %v2396
    %v2477 = vpop.f32.mrb[0].mxu0
    %v2478 = vadd.f32 0.0, %v2477
    %v2479 = vpop.f32.mrb[0].mxu0
    %2480 = vmatprep.mubr.f32.mxu0 0.0
    %2481 = vmatmul.mubr.f32.gmra.mrb[0].mxu0 %v2399
    %v2482 = vpop.f32.mrb[0].mxu0
    %v2483 = vadd.f32 0.0, %v2482
    %v2484 = vpop.f32.mrb[0].mxu0
    %2485 = vdwg.mxu0
    %v2486 = vadd.f32 %v2292, %v2468
    %v2487 = vadd.f32 %v2293, %v2473
    %v2488 = vadd.f32 %v2294, %v2478
    %v2489 = vadd.f32 %v2295, %v2483
    %s2490 = scalar_lea.vmem %s3, 352
    %v2491 = vld [vmem:[%s2490] sm:$0xff]
    %v2492 = vld [vmem:[%s2490 + $0x8] sm:$0xff]
    %v2493 = vld [vmem:[%s2490 + $0x10] sm:$0xff]
    %v2494 = vld [vmem:[%s2490 + $0x18] sm:$0xff]
    %2495 = vmatprep.subr.mxu0 0.0
    %2496 = vmatpush1.msra.mxu0 %v334
    %2497 = vmatprep.subr.mxu0 0.0
    %2498 = vmatpush1.msra.mxu0 %v335
    %2499 = vmatprep.subr.mxu0 0.0
    %2500 = vmatpush1.msra.mxu0 %v336
    %2501 = vmatprep.subr.mxu0 0.0
    %2502 = vmatpush1.msra.mxu0 %v337
    %2503 = vmatprep.subr.mxu0 0.0
    %2504 = vmatpush1.msra.mxu0 %v338
    %2505 = vmatprep.subr.mxu0 0.0
    %2506 = vmatpush1.msra.mxu0 %v339
    %2507 = vmatprep.subr.mxu0 0.0
    %2508 = vmatpush1.msra.mxu0 %v340
    %2509 = vmatprep.subr.mxu0 0.0
    %2510 = vmatpush1.msra.mxu0 %v341
    %2511 = vmatprep.subr.mxu0 0.0
    %2512 = vmatpush1.msra.mxu0 %v342
    %2513 = vmatprep.subr.mxu0 0.0
    %2514 = vmatpush1.msra.mxu0 %v343
    %2515 = vmatprep.subr.mxu0 0.0
    %2516 = vmatpush1.msra.mxu0 %v344
    %2517 = vmatprep.subr.mxu0 0.0
    %2518 = vmatpush1.msra.mxu0 %v345
    %2519 = vmatprep.subr.mxu0 0.0
    %2520 = vmatpush1.msra.mxu0 %v346
    %2521 = vmatprep.subr.mxu0 0.0
    %2522 = vmatpush1.msra.mxu0 %v347
    %2523 = vmatprep.subr.mxu0 0.0
    %2524 = vmatpush1.msra.mxu0 %v348
    %2525 = vmatprep.subr.mxu0 0.0
    %2526 = vmatpush1.msra.mxu0 %v349
    %2527 = vmatprep.subr.mxu0 0.0
    %2528 = vmatpush1.msra.mxu0 0.0
    %2529 = vmatprep.subr.mxu0 0.0
    %2530 = vmatpush1.msra.mxu0 0.0
    %2531 = vmatprep.subr.mxu0 0.0
    %2532 = vmatpush1.msra.mxu0 0.0
    %2533 = vmatprep.subr.mxu0 0.0
    %2534 = vmatpush1.msra.mxu0 0.0
    %2535 = vmatprep.subr.mxu0 0.0
    %2536 = vmatpush1.msra.mxu0 0.0
    %2537 = vmatprep.subr.mxu0 0.0
    %2538 = vmatpush1.msra.mxu0 0.0
    %2539 = vmatprep.subr.mxu0 0.0
    %2540 = vmatpush1.msra.mxu0 0.0
    %2541 = vmatprep.subr.mxu0 0.0
    %2542 = vmatpush1.msra.mxu0 0.0
    %2543 = vmatprep.subr.mxu0 0.0
    %2544 = vmatpush1.msra.mxu0 0.0
    %2545 = vmatprep.subr.mxu0 0.0
    %2546 = vmatpush1.msra.mxu0 0.0
    %2547 = vmatprep.subr.mxu0 0.0
    %2548 = vmatpush1.msra.mxu0 0.0
    %2549 = vmatprep.subr.mxu0 0.0
    %2550 = vmatpush1.msra.mxu0 0.0
    %2551 = vmatprep.subr.mxu0 0.0
    %2552 = vmatpush1.msra.mxu0 0.0
    %2553 = vmatprep.subr.mxu0 0.0
    %2554 = vmatpush1.msra.mxu0 0.0
    %2555 = vmatprep.subr.mxu0 0.0
    %2556 = vmatpush1.msra.mxu0 0.0
    %2557 = vmatprep.subr.mxu0 0.0
    %2558 = vmatpush1.msra.mxu0 0.0
    %2559 = vmatprep.mubr.f32.mxu0 0.0
    %2560 = vmatmul.mubr.f32.gmra.mrb[0].mxu0 %v2491
    %v2561 = vpop.f32.mrb[0].mxu0
    %v2562 = vadd.f32 0.0, %v2561
    %v2563 = vpop.f32.mrb[0].mxu0
    %2564 = vmatprep.mubr.f32.mxu0 0.0
    %2565 = vmatmul.mubr.f32.gmra.mrb[0].mxu0 %v2492
    %v2566 = vpop.f32.mrb[0].mxu0
    %v2567 = vadd.f32 0.0, %v2566
    %v2568 = vpop.f32.mrb[0].mxu0
    %2569 = vmatprep.mubr.f32.mxu0 0.0
    %2570 = vmatmul.mubr.f32.gmra.mrb[0].mxu0 %v2493
    %v2571 = vpop.f32.mrb[0].mxu0
    %v2572 = vadd.f32 0.0, %v2571
    %v2573 = vpop.f32.mrb[0].mxu0
    %2574 = vmatprep.mubr.f32.mxu0 0.0
    %2575 = vmatmul.mubr.f32.gmra.mrb[0].mxu0 %v2494
    %v2576 = vpop.f32.mrb[0].mxu0
    %v2577 = vadd.f32 0.0, %v2576
    %v2578 = vpop.f32.mrb[0].mxu0
    %2579 = vdwg.mxu0
    %s2580 = scalar_lea.vmem [#allocation2], 176
    %v2581 = vld [vmem:[%s2580] sm:$0xff]
    %v2582 = vld [vmem:[%s2580 + $0x8] sm:$0xff]
    %v2584 = vsel %vm108, %v2562, 0
    %v2587 = vsel %vm108, %v2567, 0
    %v2590 = vsel %vm108, %v2572, 0
    %v2593 = vsel %vm108, %v2577, 0
    %2595 = vmatprep.subr.mxu0 0.0
    %2596 = vmatpush1.msra.mxu0 %v2581
    %2597 = vmatprep.subr.mxu0 0.0
    %2598 = vmatpush1.msra.mxu0 %v2582
    %2599 = vmatprep.subr.mxu0 0.0
    %2600 = vmatpush1.msra.mxu0 0.0
    %2601 = vmatprep.subr.mxu0 0.0
    %2602 = vmatpush1.msra.mxu0 0.0
    %2603 = vmatprep.subr.mxu0 0.0
    %2604 = vmatpush1.msra.mxu0 0.0
    %2605 = vmatprep.subr.mxu0 0.0
    %2606 = vmatpush1.msra.mxu0 0.0
    %2607 = vmatprep.subr.mxu0 0.0
    %2608 = vmatpush1.msra.mxu0 0.0
    %2609 = vmatprep.subr.mxu0 0.0
    %2610 = vmatpush1.msra.mxu0 0.0
    %2611 = vmatprep.subr.mxu0 0.0
    %2612 = vmatpush1.msra.mxu0 0.0
    %2613 = vmatprep.subr.mxu0 0.0
    %2614 = vmatpush1.msra.mxu0 0.0
    %2615 = vmatprep.subr.mxu0 0.0
    %2616 = vmatpush1.msra.mxu0 0.0
    %2617 = vmatprep.subr.mxu0 0.0
    %2618 = vmatpush1.msra.mxu0 0.0
    %2619 = vmatprep.subr.mxu0 0.0
    %2620 = vmatpush1.msra.mxu0 0.0
    %2621 = vmatprep.subr.mxu0 0.0
    %2622 = vmatpush1.msra.mxu0 0.0
    %2623 = vmatprep.subr.mxu0 0.0
    %2624 = vmatpush1.msra.mxu0 0.0
    %2625 = vmatprep.subr.mxu0 0.0
    %2626 = vmatpush1.msra.mxu0 0.0
    %2627 = vmatprep.subr.mxu0 0.0
    %2628 = vmatpush1.msra.mxu0 0.0
    %2629 = vmatprep.subr.mxu0 0.0
    %2630 = vmatpush1.msra.mxu0 0.0
    %2631 = vmatprep.subr.mxu0 0.0
    %2632 = vmatpush1.msra.mxu0 0.0
    %2633 = vmatprep.subr.mxu0 0.0
    %2634 = vmatpush1.msra.mxu0 0.0
    %2635 = vmatprep.subr.mxu0 0.0
    %2636 = vmatpush1.msra.mxu0 0.0
    %2637 = vmatprep.subr.mxu0 0.0
    %2638 = vmatpush1.msra.mxu0 0.0
    %2639 = vmatprep.subr.mxu0 0.0
    %2640 = vmatpush1.msra.mxu0 0.0
    %2641 = vmatprep.subr.mxu0 0.0
    %2642 = vmatpush1.msra.mxu0 0.0
    %2643 = vmatprep.subr.mxu0 0.0
    %2644 = vmatpush1.msra.mxu0 0.0
    %2645 = vmatprep.subr.mxu0 0.0
    %2646 = vmatpush1.msra.mxu0 0.0
    %2647 = vmatprep.subr.mxu0 0.0
    %2648 = vmatpush1.msra.mxu0 0.0
    %2649 = vmatprep.subr.mxu0 0.0
    %2650 = vmatpush1.msra.mxu0 0.0
    %2651 = vmatprep.subr.mxu0 0.0
    %2652 = vmatpush1.msra.mxu0 0.0
    %2653 = vmatprep.subr.mxu0 0.0
    %2654 = vmatpush1.msra.mxu0 0.0
    %2655 = vmatprep.subr.mxu0 0.0
    %2656 = vmatpush1.msra.mxu0 0.0
    %2657 = vmatprep.subr.mxu0 0.0
    %2658 = vmatpush1.msra.mxu0 0.0
    %2659 = vmatprep.mubr.f32.mxu0 0.0
    %2660 = vmatmul.mubr.f32.gmra.mrb[0].mxu0 %v2584
    %v2661 = vpop.f32.mrb[0].mxu0
    %v2662 = vadd.f32 0.0, %v2661
    %v2663 = vpop.f32.mrb[0].mxu0
    %2664 = vmatprep.mubr.f32.mxu0 0.0
    %2665 = vmatmul.mubr.f32.gmra.mrb[0].mxu0 %v2587
    %v2666 = vpop.f32.mrb[0].mxu0
    %v2667 = vadd.f32 0.0, %v2666
    %v2668 = vpop.f32.mrb[0].mxu0
    %2669 = vmatprep.mubr.f32.mxu0 0.0
    %2670 = vmatmul.mubr.f32.gmra.mrb[0].mxu0 %v2590
    %v2671 = vpop.f32.mrb[0].mxu0
    %v2672 = vadd.f32 0.0, %v2671
    %v2673 = vpop.f32.mrb[0].mxu0
    %2674 = vmatprep.mubr.f32.mxu0 0.0
    %2675 = vmatmul.mubr.f32.gmra.mrb[0].mxu0 %v2593
    %v2676 = vpop.f32.mrb[0].mxu0
    %v2677 = vadd.f32 0.0, %v2676
    %v2678 = vpop.f32.mrb[0].mxu0
    %2679 = vdwg.mxu0
    %v2680 = vadd.f32 %v2486, %v2662
    %v2681 = vadd.f32 %v2487, %v2667
    %v2682 = vadd.f32 %v2488, %v2672
    %v2683 = vadd.f32 %v2489, %v2677
    %s2684 = scalar_lea.vmem %s3, 384
    %v2685 = vld [vmem:[%s2684] sm:$0xff]
    %v2686 = vld [vmem:[%s2684 + $0x8] sm:$0xff]
    %v2687 = vld [vmem:[%s2684 + $0x10] sm:$0xff]
    %v2688 = vld [vmem:[%s2684 + $0x18] sm:$0xff]
    %2689 = vmatprep.subr.mxu0 0.0
    %2690 = vmatpush1.msra.mxu0 %v334
    %2691 = vmatprep.subr.mxu0 0.0
    %2692 = vmatpush1.msra.mxu0 %v335
    %2693 = vmatprep.subr.mxu0 0.0
    %2694 = vmatpush1.msra.mxu0 %v336
    %2695 = vmatprep.subr.mxu0 0.0
    %2696 = vmatpush1.msra.mxu0 %v337
    %2697 = vmatprep.subr.mxu0 0.0
    %2698 = vmatpush1.msra.mxu0 %v338
    %2699 = vmatprep.subr.mxu0 0.0
    %2700 = vmatpush1.msra.mxu0 %v339
    %2701 = vmatprep.subr.mxu0 0.0
    %2702 = vmatpush1.msra.mxu0 %v340
    %2703 = vmatprep.subr.mxu0 0.0
    %2704 = vmatpush1.msra.mxu0 %v341
    %2705 = vmatprep.subr.mxu0 0.0
    %2706 = vmatpush1.msra.mxu0 %v342
    %2707 = vmatprep.subr.mxu0 0.0
    %2708 = vmatpush1.msra.mxu0 %v343
    %2709 = vmatprep.subr.mxu0 0.0
    %2710 = vmatpush1.msra.mxu0 %v344
    %2711 = vmatprep.subr.mxu0 0.0
    %2712 = vmatpush1.msra.mxu0 %v345
    %2713 = vmatprep.subr.mxu0 0.0
    %2714 = vmatpush1.msra.mxu0 %v346
    %2715 = vmatprep.subr.mxu0 0.0
    %2716 = vmatpush1.msra.mxu0 %v347
    %2717 = vmatprep.subr.mxu0 0.0
    %2718 = vmatpush1.msra.mxu0 %v348
    %2719 = vmatprep.subr.mxu0 0.0
    %2720 = vmatpush1.msra.mxu0 %v349
    %2721 = vmatprep.subr.mxu0 0.0
    %2722 = vmatpush1.msra.mxu0 0.0
    %2723 = vmatprep.subr.mxu0 0.0
    %2724 = vmatpush1.msra.mxu0 0.0
    %2725 = vmatprep.subr.mxu0 0.0
    %2726 = vmatpush1.msra.mxu0 0.0
    %2727 = vmatprep.subr.mxu0 0.0
    %2728 = vmatpush1.msra.mxu0 0.0
    %2729 = vmatprep.subr.mxu0 0.0
    %2730 = vmatpush1.msra.mxu0 0.0
    %2731 = vmatprep.subr.mxu0 0.0
    %2732 = vmatpush1.msra.mxu0 0.0
    %2733 = vmatprep.subr.mxu0 0.0
    %2734 = vmatpush1.msra.mxu0 0.0
    %2735 = vmatprep.subr.mxu0 0.0
    %2736 = vmatpush1.msra.mxu0 0.0
    %2737 = vmatprep.subr.mxu0 0.0
    %2738 = vmatpush1.msra.mxu0 0.0
    %2739 = vmatprep.subr.mxu0 0.0
    %2740 = vmatpush1.msra.mxu0 0.0
    %2741 = vmatprep.subr.mxu0 0.0
    %2742 = vmatpush1.msra.mxu0 0.0
    %2743 = vmatprep.subr.mxu0 0.0
    %2744 = vmatpush1.msra.mxu0 0.0
    %2745 = vmatprep.subr.mxu0 0.0
    %2746 = vmatpush1.msra.mxu0 0.0
    %2747 = vmatprep.subr.mxu0 0.0
    %2748 = vmatpush1.msra.mxu0 0.0
    %2749 = vmatprep.subr.mxu0 0.0
    %2750 = vmatpush1.msra.mxu0 0.0
    %2751 = vmatprep.subr.mxu0 0.0
    %2752 = vmatpush1.msra.mxu0 0.0
    %2753 = vmatprep.mubr.f32.mxu0 0.0
    %2754 = vmatmul.mubr.f32.gmra.mrb[0].mxu0 %v2685
    %v2755 = vpop.f32.mrb[0].mxu0
    %v2756 = vadd.f32 0.0, %v2755
    %v2757 = vpop.f32.mrb[0].mxu0
    %2758 = vmatprep.mubr.f32.mxu0 0.0
    %2759 = vmatmul.mubr.f32.gmra.mrb[0].mxu0 %v2686
    %v2760 = vpop.f32.mrb[0].mxu0
    %v2761 = vadd.f32 0.0, %v2760
    %v2762 = vpop.f32.mrb[0].mxu0
    %2763 = vmatprep.mubr.f32.mxu0 0.0
    %2764 = vmatmul.mubr.f32.gmra.mrb[0].mxu0 %v2687
    %v2765 = vpop.f32.mrb[0].mxu0
    %v2766 = vadd.f32 0.0, %v2765
    %v2767 = vpop.f32.mrb[0].mxu0
    %2768 = vmatprep.mubr.f32.mxu0 0.0
    %2769 = vmatmul.mubr.f32.gmra.mrb[0].mxu0 %v2688
    %v2770 = vpop.f32.mrb[0].mxu0
    %v2771 = vadd.f32 0.0, %v2770
    %v2772 = vpop.f32.mrb[0].mxu0
    %2773 = vdwg.mxu0
    %s2774 = scalar_lea.vmem [#allocation2], 192
    %v2775 = vld [vmem:[%s2774] sm:$0xff]
    %v2776 = vld [vmem:[%s2774 + $0x8] sm:$0xff]
    %v2778 = vsel %vm108, %v2756, 0
    %v2781 = vsel %vm108, %v2761, 0
    %v2784 = vsel %vm108, %v2766, 0
    %v2787 = vsel %vm108, %v2771, 0
    %2789 = vmatprep.subr.mxu0 0.0
    %2790 = vmatpush1.msra.mxu0 %v2775
    %2791 = vmatprep.subr.mxu0 0.0
    %2792 = vmatpush1.msra.mxu0 %v2776
    %2793 = vmatprep.subr.mxu0 0.0
    %2794 = vmatpush1.msra.mxu0 0.0
    %2795 = vmatprep.subr.mxu0 0.0
    %2796 = vmatpush1.msra.mxu0 0.0
    %2797 = vmatprep.subr.mxu0 0.0
    %2798 = vmatpush1.msra.mxu0 0.0
    %2799 = vmatprep.subr.mxu0 0.0
    %2800 = vmatpush1.msra.mxu0 0.0
    %2801 = vmatprep.subr.mxu0 0.0
    %2802 = vmatpush1.msra.mxu0 0.0
    %2803 = vmatprep.subr.mxu0 0.0
    %2804 = vmatpush1.msra.mxu0 0.0
    %2805 = vmatprep.subr.mxu0 0.0
    %2806 = vmatpush1.msra.mxu0 0.0
    %2807 = vmatprep.subr.mxu0 0.0
    %2808 = vmatpush1.msra.mxu0 0.0
    %2809 = vmatprep.subr.mxu0 0.0
    %2810 = vmatpush1.msra.mxu0 0.0
    %2811 = vmatprep.subr.mxu0 0.0
    %2812 = vmatpush1.msra.mxu0 0.0
    %2813 = vmatprep.subr.mxu0 0.0
    %2814 = vmatpush1.msra.mxu0 0.0
    %2815 = vmatprep.subr.mxu0 0.0
    %2816 = vmatpush1.msra.mxu0 0.0
    %2817 = vmatprep.subr.mxu0 0.0
    %2818 = vmatpush1.msra.mxu0 0.0
    %2819 = vmatprep.subr.mxu0 0.0
    %2820 = vmatpush1.msra.mxu0 0.0
    %2821 = vmatprep.subr.mxu0 0.0
    %2822 = vmatpush1.msra.mxu0 0.0
    %2823 = vmatprep.subr.mxu0 0.0
    %2824 = vmatpush1.msra.mxu0 0.0
    %2825 = vmatprep.subr.mxu0 0.0
    %2826 = vmatpush1.msra.mxu0 0.0
    %2827 = vmatprep.subr.mxu0 0.0
    %2828 = vmatpush1.msra.mxu0 0.0
    %2829 = vmatprep.subr.mxu0 0.0
    %2830 = vmatpush1.msra.mxu0 0.0
    %2831 = vmatprep.subr.mxu0 0.0
    %2832 = vmatpush1.msra.mxu0 0.0
    %2833 = vmatprep.subr.mxu0 0.0
    %2834 = vmatpush1.msra.mxu0 0.0
    %2835 = vmatprep.subr.mxu0 0.0
    %2836 = vmatpush1.msra.mxu0 0.0
    %2837 = vmatprep.subr.mxu0 0.0
    %2838 = vmatpush1.msra.mxu0 0.0
    %2839 = vmatprep.subr.mxu0 0.0
    %2840 = vmatpush1.msra.mxu0 0.0
    %2841 = vmatprep.subr.mxu0 0.0
    %2842 = vmatpush1.msra.mxu0 0.0
    %2843 = vmatprep.subr.mxu0 0.0
    %2844 = vmatpush1.msra.mxu0 0.0
    %2845 = vmatprep.subr.mxu0 0.0
    %2846 = vmatpush1.msra.mxu0 0.0
    %2847 = vmatprep.subr.mxu0 0.0
    %2848 = vmatpush1.msra.mxu0 0.0
    %2849 = vmatprep.subr.mxu0 0.0
    %2850 = vmatpush1.msra.mxu0 0.0
    %2851 = vmatprep.subr.mxu0 0.0
    %2852 = vmatpush1.msra.mxu0 0.0
    %2853 = vmatprep.mubr.f32.mxu0 0.0
    %2854 = vmatmul.mubr.f32.gmra.mrb[0].mxu0 %v2778
    %v2855 = vpop.f32.mrb[0].mxu0
    %v2856 = vadd.f32 0.0, %v2855
    %v2857 = vpop.f32.mrb[0].mxu0
    %2858 = vmatprep.mubr.f32.mxu0 0.0
    %2859 = vmatmul.mubr.f32.gmra.mrb[0].mxu0 %v2781
    %v2860 = vpop.f32.mrb[0].mxu0
    %v2861 = vadd.f32 0.0, %v2860
    %v2862 = vpop.f32.mrb[0].mxu0
    %2863 = vmatprep.mubr.f32.mxu0 0.0
    %2864 = vmatmul.mubr.f32.gmra.mrb[0].mxu0 %v2784
    %v2865 = vpop.f32.mrb[0].mxu0
    %v2866 = vadd.f32 0.0, %v2865
    %v2867 = vpop.f32.mrb[0].mxu0
    %2868 = vmatprep.mubr.f32.mxu0 0.0
    %2869 = vmatmul.mubr.f32.gmra.mrb[0].mxu0 %v2787
    %v2870 = vpop.f32.mrb[0].mxu0
    %v2871 = vadd.f32 0.0, %v2870
    %v2872 = vpop.f32.mrb[0].mxu0
    %2873 = vdwg.mxu0
    %v2874 = vadd.f32 %v2680, %v2856
    %v2875 = vadd.f32 %v2681, %v2861
    %v2876 = vadd.f32 %v2682, %v2866
    %v2877 = vadd.f32 %v2683, %v2871
    %s2878 = scalar_lea.vmem %s3, 416
    %v2879 = vld [vmem:[%s2878] sm:$0xff]
    %v2880 = vld [vmem:[%s2878 + $0x8] sm:$0xff]
    %v2881 = vld [vmem:[%s2878 + $0x10] sm:$0xff]
    %v2882 = vld [vmem:[%s2878 + $0x18] sm:$0xff]
    %2883 = vmatprep.subr.mxu0 0.0
    %2884 = vmatpush1.msra.mxu0 %v334
    %2885 = vmatprep.subr.mxu0 0.0
    %2886 = vmatpush1.msra.mxu0 %v335
    %2887 = vmatprep.subr.mxu0 0.0
    %2888 = vmatpush1.msra.mxu0 %v336
    %2889 = vmatprep.subr.mxu0 0.0
    %2890 = vmatpush1.msra.mxu0 %v337
    %2891 = vmatprep.subr.mxu0 0.0
    %2892 = vmatpush1.msra.mxu0 %v338
    %2893 = vmatprep.subr.mxu0 0.0
    %2894 = vmatpush1.msra.mxu0 %v339
    %2895 = vmatprep.subr.mxu0 0.0
    %2896 = vmatpush1.msra.mxu0 %v340
    %2897 = vmatprep.subr.mxu0 0.0
    %2898 = vmatpush1.msra.mxu0 %v341
    %2899 = vmatprep.subr.mxu0 0.0
    %2900 = vmatpush1.msra.mxu0 %v342
    %2901 = vmatprep.subr.mxu0 0.0
    %2902 = vmatpush1.msra.mxu0 %v343
    %2903 = vmatprep.subr.mxu0 0.0
    %2904 = vmatpush1.msra.mxu0 %v344
    %2905 = vmatprep.subr.mxu0 0.0
    %2906 = vmatpush1.msra.mxu0 %v345
    %2907 = vmatprep.subr.mxu0 0.0
    %2908 = vmatpush1.msra.mxu0 %v346
    %2909 = vmatprep.subr.mxu0 0.0
    %2910 = vmatpush1.msra.mxu0 %v347
    %2911 = vmatprep.subr.mxu0 0.0
    %2912 = vmatpush1.msra.mxu0 %v348
    %2913 = vmatprep.subr.mxu0 0.0
    %2914 = vmatpush1.msra.mxu0 %v349
    %2915 = vmatprep.subr.mxu0 0.0
    %2916 = vmatpush1.msra.mxu0 0.0
    %2917 = vmatprep.subr.mxu0 0.0
    %2918 = vmatpush1.msra.mxu0 0.0
    %2919 = vmatprep.subr.mxu0 0.0
    %2920 = vmatpush1.msra.mxu0 0.0
    %2921 = vmatprep.subr.mxu0 0.0
    %2922 = vmatpush1.msra.mxu0 0.0
    %2923 = vmatprep.subr.mxu0 0.0
    %2924 = vmatpush1.msra.mxu0 0.0
    %2925 = vmatprep.subr.mxu0 0.0
    %2926 = vmatpush1.msra.mxu0 0.0
    %2927 = vmatprep.subr.mxu0 0.0
    %2928 = vmatpush1.msra.mxu0 0.0
    %2929 = vmatprep.subr.mxu0 0.0
    %2930 = vmatpush1.msra.mxu0 0.0
    %2931 = vmatprep.subr.mxu0 0.0
    %2932 = vmatpush1.msra.mxu0 0.0
    %2933 = vmatprep.subr.mxu0 0.0
    %2934 = vmatpush1.msra.mxu0 0.0
    %2935 = vmatprep.subr.mxu0 0.0
    %2936 = vmatpush1.msra.mxu0 0.0
    %2937 = vmatprep.subr.mxu0 0.0
    %2938 = vmatpush1.msra.mxu0 0.0
    %2939 = vmatprep.subr.mxu0 0.0
    %2940 = vmatpush1.msra.mxu0 0.0
    %2941 = vmatprep.subr.mxu0 0.0
    %2942 = vmatpush1.msra.mxu0 0.0
    %2943 = vmatprep.subr.mxu0 0.0
    %2944 = vmatpush1.msra.mxu0 0.0
    %2945 = vmatprep.subr.mxu0 0.0
    %2946 = vmatpush1.msra.mxu0 0.0
    %2947 = vmatprep.mubr.f32.mxu0 0.0
    %2948 = vmatmul.mubr.f32.gmra.mrb[0].mxu0 %v2879
    %v2949 = vpop.f32.mrb[0].mxu0
    %v2950 = vadd.f32 0.0, %v2949
    %v2951 = vpop.f32.mrb[0].mxu0
    %2952 = vmatprep.mubr.f32.mxu0 0.0
    %2953 = vmatmul.mubr.f32.gmra.mrb[0].mxu0 %v2880
    %v2954 = vpop.f32.mrb[0].mxu0
    %v2955 = vadd.f32 0.0, %v2954
    %v2956 = vpop.f32.mrb[0].mxu0
    %2957 = vmatprep.mubr.f32.mxu0 0.0
    %2958 = vmatmul.mubr.f32.gmra.mrb[0].mxu0 %v2881
    %v2959 = vpop.f32.mrb[0].mxu0
    %v2960 = vadd.f32 0.0, %v2959
    %v2961 = vpop.f32.mrb[0].mxu0
    %2962 = vmatprep.mubr.f32.mxu0 0.0
    %2963 = vmatmul.mubr.f32.gmra.mrb[0].mxu0 %v2882
    %v2964 = vpop.f32.mrb[0].mxu0
    %v2965 = vadd.f32 0.0, %v2964
    %v2966 = vpop.f32.mrb[0].mxu0
    %2967 = vdwg.mxu0
    %s2968 = scalar_lea.vmem [#allocation2], 208
    %v2969 = vld [vmem:[%s2968] sm:$0xff]
    %v2970 = vld [vmem:[%s2968 + $0x8] sm:$0xff]
    %v2972 = vsel %vm108, %v2950, 0
    %v2975 = vsel %vm108, %v2955, 0
    %v2978 = vsel %vm108, %v2960, 0
    %v2981 = vsel %vm108, %v2965, 0
    %2983 = vmatprep.subr.mxu0 0.0
    %2984 = vmatpush1.msra.mxu0 %v2969
    %2985 = vmatprep.subr.mxu0 0.0
    %2986 = vmatpush1.msra.mxu0 %v2970
    %2987 = vmatprep.subr.mxu0 0.0
    %2988 = vmatpush1.msra.mxu0 0.0
    %2989 = vmatprep.subr.mxu0 0.0
    %2990 = vmatpush1.msra.mxu0 0.0
    %2991 = vmatprep.subr.mxu0 0.0
    %2992 = vmatpush1.msra.mxu0 0.0
    %2993 = vmatprep.subr.mxu0 0.0
    %2994 = vmatpush1.msra.mxu0 0.0
    %2995 = vmatprep.subr.mxu0 0.0
    %2996 = vmatpush1.msra.mxu0 0.0
    %2997 = vmatprep.subr.mxu0 0.0
    %2998 = vmatpush1.msra.mxu0 0.0
    %2999 = vmatprep.subr.mxu0 0.0
    %3000 = vmatpush1.msra.mxu0 0.0
    %3001 = vmatprep.subr.mxu0 0.0
    %3002 = vmatpush1.msra.mxu0 0.0
    %3003 = vmatprep.subr.mxu0 0.0
    %3004 = vmatpush1.msra.mxu0 0.0
    %3005 = vmatprep.subr.mxu0 0.0
    %3006 = vmatpush1.msra.mxu0 0.0
    %3007 = vmatprep.subr.mxu0 0.0
    %3008 = vmatpush1.msra.mxu0 0.0
    %3009 = vmatprep.subr.mxu0 0.0
    %3010 = vmatpush1.msra.mxu0 0.0
    %3011 = vmatprep.subr.mxu0 0.0
    %3012 = vmatpush1.msra.mxu0 0.0
    %3013 = vmatprep.subr.mxu0 0.0
    %3014 = vmatpush1.msra.mxu0 0.0
    %3015 = vmatprep.subr.mxu0 0.0
    %3016 = vmatpush1.msra.mxu0 0.0
    %3017 = vmatprep.subr.mxu0 0.0
    %3018 = vmatpush1.msra.mxu0 0.0
    %3019 = vmatprep.subr.mxu0 0.0
    %3020 = vmatpush1.msra.mxu0 0.0
    %3021 = vmatprep.subr.mxu0 0.0
    %3022 = vmatpush1.msra.mxu0 0.0
    %3023 = vmatprep.subr.mxu0 0.0
    %3024 = vmatpush1.msra.mxu0 0.0
    %3025 = vmatprep.subr.mxu0 0.0
    %3026 = vmatpush1.msra.mxu0 0.0
    %3027 = vmatprep.subr.mxu0 0.0
    %3028 = vmatpush1.msra.mxu0 0.0
    %3029 = vmatprep.subr.mxu0 0.0
    %3030 = vmatpush1.msra.mxu0 0.0
    %3031 = vmatprep.subr.mxu0 0.0
    %3032 = vmatpush1.msra.mxu0 0.0
    %3033 = vmatprep.subr.mxu0 0.0
    %3034 = vmatpush1.msra.mxu0 0.0
    %3035 = vmatprep.subr.mxu0 0.0
    %3036 = vmatpush1.msra.mxu0 0.0
    %3037 = vmatprep.subr.mxu0 0.0
    %3038 = vmatpush1.msra.mxu0 0.0
    %3039 = vmatprep.subr.mxu0 0.0
    %3040 = vmatpush1.msra.mxu0 0.0
    %3041 = vmatprep.subr.mxu0 0.0
    %3042 = vmatpush1.msra.mxu0 0.0
    %3043 = vmatprep.subr.mxu0 0.0
    %3044 = vmatpush1.msra.mxu0 0.0
    %3045 = vmatprep.subr.mxu0 0.0
    %3046 = vmatpush1.msra.mxu0 0.0
    %3047 = vmatprep.mubr.f32.mxu0 0.0
    %3048 = vmatmul.mubr.f32.gmra.mrb[0].mxu0 %v2972
    %v3049 = vpop.f32.mrb[0].mxu0
    %v3050 = vadd.f32 0.0, %v3049
    %v3051 = vpop.f32.mrb[0].mxu0
    %3052 = vmatprep.mubr.f32.mxu0 0.0
    %3053 = vmatmul.mubr.f32.gmra.mrb[0].mxu0 %v2975
    %v3054 = vpop.f32.mrb[0].mxu0
    %v3055 = vadd.f32 0.0, %v3054
    %v3056 = vpop.f32.mrb[0].mxu0
    %3057 = vmatprep.mubr.f32.mxu0 0.0
    %3058 = vmatmul.mubr.f32.gmra.mrb[0].mxu0 %v2978
    %v3059 = vpop.f32.mrb[0].mxu0
    %v3060 = vadd.f32 0.0, %v3059
    %v3061 = vpop.f32.mrb[0].mxu0
    %3062 = vmatprep.mubr.f32.mxu0 0.0
    %3063 = vmatmul.mubr.f32.gmra.mrb[0].mxu0 %v2981
    %v3064 = vpop.f32.mrb[0].mxu0
    %v3065 = vadd.f32 0.0, %v3064
    %v3066 = vpop.f32.mrb[0].mxu0
    %3067 = vdwg.mxu0
    %v3068 = vadd.f32 %v2874, %v3050
    %v3069 = vadd.f32 %v2875, %v3055
    %v3070 = vadd.f32 %v2876, %v3060
    %v3071 = vadd.f32 %v2877, %v3065
    %s3072 = scalar_lea.vmem %s3, 448
    %v3073 = vld [vmem:[%s3072] sm:$0xff]
    %v3074 = vld [vmem:[%s3072 + $0x8] sm:$0xff]
    %v3075 = vld [vmem:[%s3072 + $0x10] sm:$0xff]
    %v3076 = vld [vmem:[%s3072 + $0x18] sm:$0xff]
    %3077 = vmatprep.subr.mxu0 0.0
    %3078 = vmatpush1.msra.mxu0 %v334
    %3079 = vmatprep.subr.mxu0 0.0
    %3080 = vmatpush1.msra.mxu0 %v335
    %3081 = vmatprep.subr.mxu0 0.0
    %3082 = vmatpush1.msra.mxu0 %v336
    %3083 = vmatprep.subr.mxu0 0.0
    %3084 = vmatpush1.msra.mxu0 %v337
    %3085 = vmatprep.subr.mxu0 0.0
    %3086 = vmatpush1.msra.mxu0 %v338
    %3087 = vmatprep.subr.mxu0 0.0
    %3088 = vmatpush1.msra.mxu0 %v339
    %3089 = vmatprep.subr.mxu0 0.0
    %3090 = vmatpush1.msra.mxu0 %v340
    %3091 = vmatprep.subr.mxu0 0.0
    %3092 = vmatpush1.msra.mxu0 %v341
    %3093 = vmatprep.subr.mxu0 0.0
    %3094 = vmatpush1.msra.mxu0 %v342
    %3095 = vmatprep.subr.mxu0 0.0
    %3096 = vmatpush1.msra.mxu0 %v343
    %3097 = vmatprep.subr.mxu0 0.0
    %3098 = vmatpush1.msra.mxu0 %v344
    %3099 = vmatprep.subr.mxu0 0.0
    %3100 = vmatpush1.msra.mxu0 %v345
    %3101 = vmatprep.subr.mxu0 0.0
    %3102 = vmatpush1.msra.mxu0 %v346
    %3103 = vmatprep.subr.mxu0 0.0
    %3104 = vmatpush1.msra.mxu0 %v347
    %3105 = vmatprep.subr.mxu0 0.0
    %3106 = vmatpush1.msra.mxu0 %v348
    %3107 = vmatprep.subr.mxu0 0.0
    %3108 = vmatpush1.msra.mxu0 %v349
    %3109 = vmatprep.subr.mxu0 0.0
    %3110 = vmatpush1.msra.mxu0 0.0
    %3111 = vmatprep.subr.mxu0 0.0
    %3112 = vmatpush1.msra.mxu0 0.0
    %3113 = vmatprep.subr.mxu0 0.0
    %3114 = vmatpush1.msra.mxu0 0.0
    %3115 = vmatprep.subr.mxu0 0.0
    %3116 = vmatpush1.msra.mxu0 0.0
    %3117 = vmatprep.subr.mxu0 0.0
    %3118 = vmatpush1.msra.mxu0 0.0
    %3119 = vmatprep.subr.mxu0 0.0
    %3120 = vmatpush1.msra.mxu0 0.0
    %3121 = vmatprep.subr.mxu0 0.0
    %3122 = vmatpush1.msra.mxu0 0.0
    %3123 = vmatprep.subr.mxu0 0.0
    %3124 = vmatpush1.msra.mxu0 0.0
    %3125 = vmatprep.subr.mxu0 0.0
    %3126 = vmatpush1.msra.mxu0 0.0
    %3127 = vmatprep.subr.mxu0 0.0
    %3128 = vmatpush1.msra.mxu0 0.0
    %3129 = vmatprep.subr.mxu0 0.0
    %3130 = vmatpush1.msra.mxu0 0.0
    %3131 = vmatprep.subr.mxu0 0.0
    %3132 = vmatpush1.msra.mxu0 0.0
    %3133 = vmatprep.subr.mxu0 0.0
    %3134 = vmatpush1.msra.mxu0 0.0
    %3135 = vmatprep.subr.mxu0 0.0
    %3136 = vmatpush1.msra.mxu0 0.0
    %3137 = vmatprep.subr.mxu0 0.0
    %3138 = vmatpush1.msra.mxu0 0.0
    %3139 = vmatprep.subr.mxu0 0.0
    %3140 = vmatpush1.msra.mxu0 0.0
    %3141 = vmatprep.mubr.f32.mxu0 0.0
    %3142 = vmatmul.mubr.f32.gmra.mrb[0].mxu0 %v3073
    %v3143 = vpop.f32.mrb[0].mxu0
    %v3144 = vadd.f32 0.0, %v3143
    %v3145 = vpop.f32.mrb[0].mxu0
    %3146 = vmatprep.mubr.f32.mxu0 0.0
    %3147 = vmatmul.mubr.f32.gmra.mrb[0].mxu0 %v3074
    %v3148 = vpop.f32.mrb[0].mxu0
    %v3149 = vadd.f32 0.0, %v3148
    %v3150 = vpop.f32.mrb[0].mxu0
    %3151 = vmatprep.mubr.f32.mxu0 0.0
    %3152 = vmatmul.mubr.f32.gmra.mrb[0].mxu0 %v3075
    %v3153 = vpop.f32.mrb[0].mxu0
    %v3154 = vadd.f32 0.0, %v3153
    %v3155 = vpop.f32.mrb[0].mxu0
    %3156 = vmatprep.mubr.f32.mxu0 0.0
    %3157 = vmatmul.mubr.f32.gmra.mrb[0].mxu0 %v3076
    %v3158 = vpop.f32.mrb[0].mxu0
    %v3159 = vadd.f32 0.0, %v3158
    %v3160 = vpop.f32.mrb[0].mxu0
    %3161 = vdwg.mxu0
    %s3162 = scalar_lea.vmem [#allocation2], 224
    %v3163 = vld [vmem:[%s3162] sm:$0xff]
    %v3164 = vld [vmem:[%s3162 + $0x8] sm:$0xff]
    %v3166 = vsel %vm108, %v3144, 0
    %v3169 = vsel %vm108, %v3149, 0
    %v3172 = vsel %vm108, %v3154, 0
    %v3175 = vsel %vm108, %v3159, 0
    %3177 = vmatprep.subr.mxu0 0.0
    %3178 = vmatpush1.msra.mxu0 %v3163
    %3179 = vmatprep.subr.mxu0 0.0
    %3180 = vmatpush1.msra.mxu0 %v3164
    %3181 = vmatprep.subr.mxu0 0.0
    %3182 = vmatpush1.msra.mxu0 0.0
    %3183 = vmatprep.subr.mxu0 0.0
    %3184 = vmatpush1.msra.mxu0 0.0
    %3185 = vmatprep.subr.mxu0 0.0
    %3186 = vmatpush1.msra.mxu0 0.0
    %3187 = vmatprep.subr.mxu0 0.0
    %3188 = vmatpush1.msra.mxu0 0.0
    %3189 = vmatprep.subr.mxu0 0.0
    %3190 = vmatpush1.msra.mxu0 0.0
    %3191 = vmatprep.subr.mxu0 0.0
    %3192 = vmatpush1.msra.mxu0 0.0
    %3193 = vmatprep.subr.mxu0 0.0
    %3194 = vmatpush1.msra.mxu0 0.0
    %3195 = vmatprep.subr.mxu0 0.0
    %3196 = vmatpush1.msra.mxu0 0.0
    %3197 = vmatprep.subr.mxu0 0.0
    %3198 = vmatpush1.msra.mxu0 0.0
    %3199 = vmatprep.subr.mxu0 0.0
    %3200 = vmatpush1.msra.mxu0 0.0
    %3201 = vmatprep.subr.mxu0 0.0
    %3202 = vmatpush1.msra.mxu0 0.0
    %3203 = vmatprep.subr.mxu0 0.0
    %3204 = vmatpush1.msra.mxu0 0.0
    %3205 = vmatprep.subr.mxu0 0.0
    %3206 = vmatpush1.msra.mxu0 0.0
    %3207 = vmatprep.subr.mxu0 0.0
    %3208 = vmatpush1.msra.mxu0 0.0
    %3209 = vmatprep.subr.mxu0 0.0
    %3210 = vmatpush1.msra.mxu0 0.0
    %3211 = vmatprep.subr.mxu0 0.0
    %3212 = vmatpush1.msra.mxu0 0.0
    %3213 = vmatprep.subr.mxu0 0.0
    %3214 = vmatpush1.msra.mxu0 0.0
    %3215 = vmatprep.subr.mxu0 0.0
    %3216 = vmatpush1.msra.mxu0 0.0
    %3217 = vmatprep.subr.mxu0 0.0
    %3218 = vmatpush1.msra.mxu0 0.0
    %3219 = vmatprep.subr.mxu0 0.0
    %3220 = vmatpush1.msra.mxu0 0.0
    %3221 = vmatprep.subr.mxu0 0.0
    %3222 = vmatpush1.msra.mxu0 0.0
    %3223 = vmatprep.subr.mxu0 0.0
    %3224 = vmatpush1.msra.mxu0 0.0
    %3225 = vmatprep.subr.mxu0 0.0
    %3226 = vmatpush1.msra.mxu0 0.0
    %3227 = vmatprep.subr.mxu0 0.0
    %3228 = vmatpush1.msra.mxu0 0.0
    %3229 = vmatprep.subr.mxu0 0.0
    %3230 = vmatpush1.msra.mxu0 0.0
    %3231 = vmatprep.subr.mxu0 0.0
    %3232 = vmatpush1.msra.mxu0 0.0
    %3233 = vmatprep.subr.mxu0 0.0
    %3234 = vmatpush1.msra.mxu0 0.0
    %3235 = vmatprep.subr.mxu0 0.0
    %3236 = vmatpush1.msra.mxu0 0.0
    %3237 = vmatprep.subr.mxu0 0.0
    %3238 = vmatpush1.msra.mxu0 0.0
    %3239 = vmatprep.subr.mxu0 0.0
    %3240 = vmatpush1.msra.mxu0 0.0
    %3241 = vmatprep.mubr.f32.mxu0 0.0
    %3242 = vmatmul.mubr.f32.gmra.mrb[0].mxu0 %v3166
    %v3243 = vpop.f32.mrb[0].mxu0
    %v3244 = vadd.f32 0.0, %v3243
    %v3245 = vpop.f32.mrb[0].mxu0
    %3246 = vmatprep.mubr.f32.mxu0 0.0
    %3247 = vmatmul.mubr.f32.gmra.mrb[0].mxu0 %v3169
    %v3248 = vpop.f32.mrb[0].mxu0
    %v3249 = vadd.f32 0.0, %v3248
    %v3250 = vpop.f32.mrb[0].mxu0
    %3251 = vmatprep.mubr.f32.mxu0 0.0
    %3252 = vmatmul.mubr.f32.gmra.mrb[0].mxu0 %v3172
    %v3253 = vpop.f32.mrb[0].mxu0
    %v3254 = vadd.f32 0.0, %v3253
    %v3255 = vpop.f32.mrb[0].mxu0
    %3256 = vmatprep.mubr.f32.mxu0 0.0
    %3257 = vmatmul.mubr.f32.gmra.mrb[0].mxu0 %v3175
    %v3258 = vpop.f32.mrb[0].mxu0
    %v3259 = vadd.f32 0.0, %v3258
    %v3260 = vpop.f32.mrb[0].mxu0
    %3261 = vdwg.mxu0
    %v3262 = vadd.f32 %v3068, %v3244
    %v3263 = vadd.f32 %v3069, %v3249
    %v3264 = vadd.f32 %v3070, %v3254
    %v3265 = vadd.f32 %v3071, %v3259
    %s3266 = scalar_lea.vmem %s3, 480
    %v3267 = vld [vmem:[%s3266] sm:$0xff]
    %v3268 = vld [vmem:[%s3266 + $0x8] sm:$0xff]
    %v3269 = vld [vmem:[%s3266 + $0x10] sm:$0xff]
    %v3270 = vld [vmem:[%s3266 + $0x18] sm:$0xff]
    %3271 = vmatprep.subr.mxu0 0.0
    %3272 = vmatpush1.msra.mxu0 %v334
    %3273 = vmatprep.subr.mxu0 0.0
    %3274 = vmatpush1.msra.mxu0 %v335
    %3275 = vmatprep.subr.mxu0 0.0
    %3276 = vmatpush1.msra.mxu0 %v336
    %3277 = vmatprep.subr.mxu0 0.0
    %3278 = vmatpush1.msra.mxu0 %v337
    %3279 = vmatprep.subr.mxu0 0.0
    %3280 = vmatpush1.msra.mxu0 %v338
    %3281 = vmatprep.subr.mxu0 0.0
    %3282 = vmatpush1.msra.mxu0 %v339
    %3283 = vmatprep.subr.mxu0 0.0
    %3284 = vmatpush1.msra.mxu0 %v340
    %3285 = vmatprep.subr.mxu0 0.0
    %3286 = vmatpush1.msra.mxu0 %v341
    %3287 = vmatprep.subr.mxu0 0.0
    %3288 = vmatpush1.msra.mxu0 %v342
    %3289 = vmatprep.subr.mxu0 0.0
    %3290 = vmatpush1.msra.mxu0 %v343
    %3291 = vmatprep.subr.mxu0 0.0
    %3292 = vmatpush1.msra.mxu0 %v344
    %3293 = vmatprep.subr.mxu0 0.0
    %3294 = vmatpush1.msra.mxu0 %v345
    %3295 = vmatprep.subr.mxu0 0.0
    %3296 = vmatpush1.msra.mxu0 %v346
    %3297 = vmatprep.subr.mxu0 0.0
    %3298 = vmatpush1.msra.mxu0 %v347
    %3299 = vmatprep.subr.mxu0 0.0
    %3300 = vmatpush1.msra.mxu0 %v348
    %3301 = vmatprep.subr.mxu0 0.0
    %3302 = vmatpush1.msra.mxu0 %v349
    %3303 = vmatprep.subr.mxu0 0.0
    %3304 = vmatpush1.msra.mxu0 0.0
    %3305 = vmatprep.subr.mxu0 0.0
    %3306 = vmatpush1.msra.mxu0 0.0
    %3307 = vmatprep.subr.mxu0 0.0
    %3308 = vmatpush1.msra.mxu0 0.0
    %3309 = vmatprep.subr.mxu0 0.0
    %3310 = vmatpush1.msra.mxu0 0.0
    %3311 = vmatprep.subr.mxu0 0.0
    %3312 = vmatpush1.msra.mxu0 0.0
    %3313 = vmatprep.subr.mxu0 0.0
    %3314 = vmatpush1.msra.mxu0 0.0
    %3315 = vmatprep.subr.mxu0 0.0
    %3316 = vmatpush1.msra.mxu0 0.0
    %3317 = vmatprep.subr.mxu0 0.0
    %3318 = vmatpush1.msra.mxu0 0.0
    %3319 = vmatprep.subr.mxu0 0.0
    %3320 = vmatpush1.msra.mxu0 0.0
    %3321 = vmatprep.subr.mxu0 0.0
    %3322 = vmatpush1.msra.mxu0 0.0
    %3323 = vmatprep.subr.mxu0 0.0
    %3324 = vmatpush1.msra.mxu0 0.0
    %3325 = vmatprep.subr.mxu0 0.0
    %3326 = vmatpush1.msra.mxu0 0.0
    %3327 = vmatprep.subr.mxu0 0.0
    %3328 = vmatpush1.msra.mxu0 0.0
    %3329 = vmatprep.subr.mxu0 0.0
    %3330 = vmatpush1.msra.mxu0 0.0
    %3331 = vmatprep.subr.mxu0 0.0
    %3332 = vmatpush1.msra.mxu0 0.0
    %3333 = vmatprep.subr.mxu0 0.0
    %3334 = vmatpush1.msra.mxu0 0.0
    %3335 = vmatprep.mubr.f32.mxu0 0.0
    %3336 = vmatmul.mubr.f32.gmra.mrb[0].mxu0 %v3267
    %v3337 = vpop.f32.mrb[0].mxu0
    %v3338 = vadd.f32 0.0, %v3337
    %v3339 = vpop.f32.mrb[0].mxu0
    %3340 = vmatprep.mubr.f32.mxu0 0.0
    %3341 = vmatmul.mubr.f32.gmra.mrb[0].mxu0 %v3268
    %v3342 = vpop.f32.mrb[0].mxu0
    %v3343 = vadd.f32 0.0, %v3342
    %v3344 = vpop.f32.mrb[0].mxu0
    %3345 = vmatprep.mubr.f32.mxu0 0.0
    %3346 = vmatmul.mubr.f32.gmra.mrb[0].mxu0 %v3269
    %v3347 = vpop.f32.mrb[0].mxu0
    %v3348 = vadd.f32 0.0, %v3347
    %v3349 = vpop.f32.mrb[0].mxu0
    %3350 = vmatprep.mubr.f32.mxu0 0.0
    %3351 = vmatmul.mubr.f32.gmra.mrb[0].mxu0 %v3270
    %v3352 = vpop.f32.mrb[0].mxu0
    %v3353 = vadd.f32 0.0, %v3352
    %v3354 = vpop.f32.mrb[0].mxu0
    %3355 = vdwg.mxu0
    %s3356 = scalar_lea.vmem [#allocation2], 240
    %v3357 = vld [vmem:[%s3356] sm:$0xff]
    %v3358 = vld [vmem:[%s3356 + $0x8] sm:$0xff]
    %v3360 = vsel %vm108, %v3338, 0
    %v3363 = vsel %vm108, %v3343, 0
    %v3366 = vsel %vm108, %v3348, 0
    %v3369 = vsel %vm108, %v3353, 0
    %3371 = vmatprep.subr.mxu0 0.0
    %3372 = vmatpush1.msra.mxu0 %v3357
    %3373 = vmatprep.subr.mxu0 0.0
    %3374 = vmatpush1.msra.mxu0 %v3358
    %3375 = vmatprep.subr.mxu0 0.0
    %3376 = vmatpush1.msra.mxu0 0.0
    %3377 = vmatprep.subr.mxu0 0.0
    %3378 = vmatpush1.msra.mxu0 0.0
    %3379 = vmatprep.subr.mxu0 0.0
    %3380 = vmatpush1.msra.mxu0 0.0
    %3381 = vmatprep.subr.mxu0 0.0
    %3382 = vmatpush1.msra.mxu0 0.0
    %3383 = vmatprep.subr.mxu0 0.0
    %3384 = vmatpush1.msra.mxu0 0.0
    %3385 = vmatprep.subr.mxu0 0.0
    %3386 = vmatpush1.msra.mxu0 0.0
    %3387 = vmatprep.subr.mxu0 0.0
    %3388 = vmatpush1.msra.mxu0 0.0
    %3389 = vmatprep.subr.mxu0 0.0
    %3390 = vmatpush1.msra.mxu0 0.0
    %3391 = vmatprep.subr.mxu0 0.0
    %3392 = vmatpush1.msra.mxu0 0.0
    %3393 = vmatprep.subr.mxu0 0.0
    %3394 = vmatpush1.msra.mxu0 0.0
    %3395 = vmatprep.subr.mxu0 0.0
    %3396 = vmatpush1.msra.mxu0 0.0
    %3397 = vmatprep.subr.mxu0 0.0
    %3398 = vmatpush1.msra.mxu0 0.0
    %3399 = vmatprep.subr.mxu0 0.0
    %3400 = vmatpush1.msra.mxu0 0.0
    %3401 = vmatprep.subr.mxu0 0.0
    %3402 = vmatpush1.msra.mxu0 0.0
    %3403 = vmatprep.subr.mxu0 0.0
    %3404 = vmatpush1.msra.mxu0 0.0
    %3405 = vmatprep.subr.mxu0 0.0
    %3406 = vmatpush1.msra.mxu0 0.0
    %3407 = vmatprep.subr.mxu0 0.0
    %3408 = vmatpush1.msra.mxu0 0.0
    %3409 = vmatprep.subr.mxu0 0.0
    %3410 = vmatpush1.msra.mxu0 0.0
    %3411 = vmatprep.subr.mxu0 0.0
    %3412 = vmatpush1.msra.mxu0 0.0
    %3413 = vmatprep.subr.mxu0 0.0
    %3414 = vmatpush1.msra.mxu0 0.0
    %3415 = vmatprep.subr.mxu0 0.0
    %3416 = vmatpush1.msra.mxu0 0.0
    %3417 = vmatprep.subr.mxu0 0.0
    %3418 = vmatpush1.msra.mxu0 0.0
    %3419 = vmatprep.subr.mxu0 0.0
    %3420 = vmatpush1.msra.mxu0 0.0
    %3421 = vmatprep.subr.mxu0 0.0
    %3422 = vmatpush1.msra.mxu0 0.0
    %3423 = vmatprep.subr.mxu0 0.0
    %3424 = vmatpush1.msra.mxu0 0.0
    %3425 = vmatprep.subr.mxu0 0.0
    %3426 = vmatpush1.msra.mxu0 0.0
    %3427 = vmatprep.subr.mxu0 0.0
    %3428 = vmatpush1.msra.mxu0 0.0
    %3429 = vmatprep.subr.mxu0 0.0
    %3430 = vmatpush1.msra.mxu0 0.0
    %3431 = vmatprep.subr.mxu0 0.0
    %3432 = vmatpush1.msra.mxu0 0.0
    %3433 = vmatprep.subr.mxu0 0.0
    %3434 = vmatpush1.msra.mxu0 0.0
    %3435 = vmatprep.mubr.f32.mxu0 0.0
    %3436 = vmatmul.mubr.f32.gmra.mrb[0].mxu0 %v3360
    %v3437 = vpop.f32.mrb[0].mxu0
    %v3438 = vadd.f32 0.0, %v3437
    %v3439 = vpop.f32.mrb[0].mxu0
    %3440 = vmatprep.mubr.f32.mxu0 0.0
    %3441 = vmatmul.mubr.f32.gmra.mrb[0].mxu0 %v3363
    %v3442 = vpop.f32.mrb[0].mxu0
    %v3443 = vadd.f32 0.0, %v3442
    %v3444 = vpop.f32.mrb[0].mxu0
    %3445 = vmatprep.mubr.f32.mxu0 0.0
    %3446 = vmatmul.mubr.f32.gmra.mrb[0].mxu0 %v3366
    %v3447 = vpop.f32.mrb[0].mxu0
    %v3448 = vadd.f32 0.0, %v3447
    %v3449 = vpop.f32.mrb[0].mxu0
    %3450 = vmatprep.mubr.f32.mxu0 0.0
    %3451 = vmatmul.mubr.f32.gmra.mrb[0].mxu0 %v3369
    %v3452 = vpop.f32.mrb[0].mxu0
    %v3453 = vadd.f32 0.0, %v3452
    %v3454 = vpop.f32.mrb[0].mxu0
    %3455 = vdwg.mxu0
    %v3456 = vadd.f32 %v3262, %v3438
    %v3457 = vadd.f32 %v3263, %v3443
    %v3458 = vadd.f32 %v3264, %v3448
    %v3459 = vadd.f32 %v3265, %v3453
    %vm3460 = vcmp.ge.f32.partialorder %v3456, 0.0
    %vm3461 = vcmp.ge.f32.partialorder %v3457, 0.0
    %vm3462 = vcmp.ge.f32.partialorder %v3458, 0.0
    %vm3463 = vcmp.ge.f32.partialorder %v3459, 0.0
    %v3464 = vmul.f32 %v3456, 0.01
    %v3465 = vmul.f32 %v3457, 0.01
    %v3466 = vmul.f32 %v3458, 0.01
    %v3467 = vmul.f32 %v3459, 0.01
    %v3468 = vsel %vm3460, %v3456, %v3464
    %v3469 = vsel %vm3461, %v3457, %v3465
    %v3470 = vsel %vm3462, %v3458, %v3466
    %v3471 = vsel %vm3463, %v3459, %v3467
    %v3472 = vld [vmem:[%s8] sm:$0x1]
    %v3474 = vlaneseq
    %v3475 = vshrl.u32 %v3474, 7
    %v3476 = vsub.s32 0, %v3475
    %v3477 = vrot.slane %v3472, %v3476
    %v3479 = vadd.f32 %v3477, 0.0
    %v3480 = vld [vmem:[%s6] sm:$0xff]
    %vm3481 = vcmask 261120
    %v3483 = vsel %vm3481, %v3480, 0
    %3485 = vmatprep.subr.mxu0 0.0
    %3486 = vmatpush1.msra.mxu0 %v3468
    %3487 = vmatprep.subr.mxu0 0.0
    %3488 = vmatpush1.msra.mxu0 %v3469
    %3489 = vmatprep.subr.mxu0 0.0
    %3490 = vmatpush1.msra.mxu0 %v3470
    %3491 = vmatprep.subr.mxu0 0.0
    %3492 = vmatpush1.msra.mxu0 %v3471
    %3493 = vmatprep.subr.mxu0 0.0
    %3494 = vmatpush1.msra.mxu0 0.0
    %3495 = vmatprep.subr.mxu0 0.0
    %3496 = vmatpush1.msra.mxu0 0.0
    %3497 = vmatprep.subr.mxu0 0.0
    %3498 = vmatpush1.msra.mxu0 0.0
    %3499 = vmatprep.subr.mxu0 0.0
    %3500 = vmatpush1.msra.mxu0 0.0
    %3501 = vmatprep.subr.mxu0 0.0
    %3502 = vmatpush1.msra.mxu0 0.0
    %3503 = vmatprep.subr.mxu0 0.0
    %3504 = vmatpush1.msra.mxu0 0.0
    %3505 = vmatprep.subr.mxu0 0.0
    %3506 = vmatpush1.msra.mxu0 0.0
    %3507 = vmatprep.subr.mxu0 0.0
    %3508 = vmatpush1.msra.mxu0 0.0
    %3509 = vmatprep.subr.mxu0 0.0
    %3510 = vmatpush1.msra.mxu0 0.0
    %3511 = vmatprep.subr.mxu0 0.0
    %3512 = vmatpush1.msra.mxu0 0.0
    %3513 = vmatprep.subr.mxu0 0.0
    %3514 = vmatpush1.msra.mxu0 0.0
    %3515 = vmatprep.subr.mxu0 0.0
    %3516 = vmatpush1.msra.mxu0 0.0
    %3517 = vmatprep.subr.mxu0 0.0
    %3518 = vmatpush1.msra.mxu0 0.0
    %3519 = vmatprep.subr.mxu0 0.0
    %3520 = vmatpush1.msra.mxu0 0.0
    %3521 = vmatprep.subr.mxu0 0.0
    %3522 = vmatpush1.msra.mxu0 0.0
    %3523 = vmatprep.subr.mxu0 0.0
    %3524 = vmatpush1.msra.mxu0 0.0
    %3525 = vmatprep.subr.mxu0 0.0
    %3526 = vmatpush1.msra.mxu0 0.0
    %3527 = vmatprep.subr.mxu0 0.0
    %3528 = vmatpush1.msra.mxu0 0.0
    %3529 = vmatprep.subr.mxu0 0.0
    %3530 = vmatpush1.msra.mxu0 0.0
    %3531 = vmatprep.subr.mxu0 0.0
    %3532 = vmatpush1.msra.mxu0 0.0
    %3533 = vmatprep.subr.mxu0 0.0
    %3534 = vmatpush1.msra.mxu0 0.0
    %3535 = vmatprep.subr.mxu0 0.0
    %3536 = vmatpush1.msra.mxu0 0.0
    %3537 = vmatprep.subr.mxu0 0.0
    %3538 = vmatpush1.msra.mxu0 0.0
    %3539 = vmatprep.subr.mxu0 0.0
    %3540 = vmatpush1.msra.mxu0 0.0
    %3541 = vmatprep.subr.mxu0 0.0
    %3542 = vmatpush1.msra.mxu0 0.0
    %3543 = vmatprep.subr.mxu0 0.0
    %3544 = vmatpush1.msra.mxu0 0.0
    %3545 = vmatprep.subr.mxu0 0.0
    %3546 = vmatpush1.msra.mxu0 0.0
    %3547 = vmatprep.subr.mxu0 0.0
    %3548 = vmatpush1.msra.mxu0 0.0
    %3549 = vmatprep.mubr.f32.mxu0 0.0
    %3550 = vmatmul.mubr.f32.gmra.mrb[0].mxu0 %v3483
    %v3551 = vpop.f32.mrb[0].mxu0
    %v3552 = vadd.f32 0.0, %v3551
    %v3553 = vpop.f32.mrb[0].mxu0
    %3554 = vdwg.mxu0
    %v3555 = vld [vmem:[#allocation5] sm:$0xff]
    %v3556 = vld [vmem:[#allocation5 + $0x8] sm:$0xff]
    %v3557 = vld [vmem:[#allocation5 + $0x10] sm:$0xff]
    %v3558 = vld [vmem:[#allocation5 + $0x18] sm:$0xff]
    %v3560 = vsel %vm3481, %v3552, 0
    %3562 = vmatprep.subr.mxu0 0.0
    %3563 = vmatpush1.msra.mxu0 %v3555
    %3564 = vmatprep.subr.mxu0 0.0
    %3565 = vmatpush1.msra.mxu0 %v3556
    %3566 = vmatprep.subr.mxu0 0.0
    %3567 = vmatpush1.msra.mxu0 %v3557
    %3568 = vmatprep.subr.mxu0 0.0
    %3569 = vmatpush1.msra.mxu0 %v3558
    %3570 = vmatprep.subr.mxu0 0.0
    %3571 = vmatpush1.msra.mxu0 0.0
    %3572 = vmatprep.subr.mxu0 0.0
    %3573 = vmatpush1.msra.mxu0 0.0
    %3574 = vmatprep.subr.mxu0 0.0
    %3575 = vmatpush1.msra.mxu0 0.0
    %3576 = vmatprep.subr.mxu0 0.0
    %3577 = vmatpush1.msra.mxu0 0.0
    %3578 = vmatprep.subr.mxu0 0.0
    %3579 = vmatpush1.msra.mxu0 0.0
    %3580 = vmatprep.subr.mxu0 0.0
    %3581 = vmatpush1.msra.mxu0 0.0
    %3582 = vmatprep.subr.mxu0 0.0
    %3583 = vmatpush1.msra.mxu0 0.0
    %3584 = vmatprep.subr.mxu0 0.0
    %3585 = vmatpush1.msra.mxu0 0.0
    %3586 = vmatprep.subr.mxu0 0.0
    %3587 = vmatpush1.msra.mxu0 0.0
    %3588 = vmatprep.subr.mxu0 0.0
    %3589 = vmatpush1.msra.mxu0 0.0
    %3590 = vmatprep.subr.mxu0 0.0
    %3591 = vmatpush1.msra.mxu0 0.0
    %3592 = vmatprep.subr.mxu0 0.0
    %3593 = vmatpush1.msra.mxu0 0.0
    %3594 = vmatprep.subr.mxu0 0.0
    %3595 = vmatpush1.msra.mxu0 0.0
    %3596 = vmatprep.subr.mxu0 0.0
    %3597 = vmatpush1.msra.mxu0 0.0
    %3598 = vmatprep.subr.mxu0 0.0
    %3599 = vmatpush1.msra.mxu0 0.0
    %3600 = vmatprep.subr.mxu0 0.0
    %3601 = vmatpush1.msra.mxu0 0.0
    %3602 = vmatprep.subr.mxu0 0.0
    %3603 = vmatpush1.msra.mxu0 0.0
    %3604 = vmatprep.subr.mxu0 0.0
    %3605 = vmatpush1.msra.mxu0 0.0
    %3606 = vmatprep.subr.mxu0 0.0
    %3607 = vmatpush1.msra.mxu0 0.0
    %3608 = vmatprep.subr.mxu0 0.0
    %3609 = vmatpush1.msra.mxu0 0.0
    %3610 = vmatprep.subr.mxu0 0.0
    %3611 = vmatpush1.msra.mxu0 0.0
    %3612 = vmatprep.subr.mxu0 0.0
    %3613 = vmatpush1.msra.mxu0 0.0
    %3614 = vmatprep.subr.mxu0 0.0
    %3615 = vmatpush1.msra.mxu0 0.0
    %3616 = vmatprep.subr.mxu0 0.0
    %3617 = vmatpush1.msra.mxu0 0.0
    %3618 = vmatprep.subr.mxu0 0.0
    %3619 = vmatpush1.msra.mxu0 0.0
    %3620 = vmatprep.subr.mxu0 0.0
    %3621 = vmatpush1.msra.mxu0 0.0
    %3622 = vmatprep.subr.mxu0 0.0
    %3623 = vmatpush1.msra.mxu0 0.0
    %3624 = vmatprep.subr.mxu0 0.0
    %3625 = vmatpush1.msra.mxu0 0.0
    %3626 = vmatprep.mubr.f32.mxu0 0.0
    %3627 = vmatmul.mubr.f32.gmra.mrb[0].mxu0 %v3560
    %v3628 = vpop.f32.mrb[0].mxu0
    %v3629 = vadd.f32 0.0, %v3628
    %v3630 = vpop.f32.mrb[0].mxu0
    %3631 = vdwg.mxu0
    %v3632 = vadd.f32 %v3479, %v3629
    %s3633 = scalar_lea.vmem %s6, 8
    %v3634 = vld [vmem:[%s3633] sm:$0xff]
    %v3636 = vsel %vm3481, %v3634, 0
    %3638 = vmatprep.subr.mxu0 0.0
    %3639 = vmatpush1.msra.mxu0 %v3468
    %3640 = vmatprep.subr.mxu0 0.0
    %3641 = vmatpush1.msra.mxu0 %v3469
    %3642 = vmatprep.subr.mxu0 0.0
    %3643 = vmatpush1.msra.mxu0 %v3470
    %3644 = vmatprep.subr.mxu0 0.0
    %3645 = vmatpush1.msra.mxu0 %v3471
    %3646 = vmatprep.subr.mxu0 0.0
    %3647 = vmatpush1.msra.mxu0 0.0
    %3648 = vmatprep.subr.mxu0 0.0
    %3649 = vmatpush1.msra.mxu0 0.0
    %3650 = vmatprep.subr.mxu0 0.0
    %3651 = vmatpush1.msra.mxu0 0.0
    %3652 = vmatprep.subr.mxu0 0.0
    %3653 = vmatpush1.msra.mxu0 0.0
    %3654 = vmatprep.subr.mxu0 0.0
    %3655 = vmatpush1.msra.mxu0 0.0
    %3656 = vmatprep.subr.mxu0 0.0
    %3657 = vmatpush1.msra.mxu0 0.0
    %3658 = vmatprep.subr.mxu0 0.0
    %3659 = vmatpush1.msra.mxu0 0.0
    %3660 = vmatprep.subr.mxu0 0.0
    %3661 = vmatpush1.msra.mxu0 0.0
    %3662 = vmatprep.subr.mxu0 0.0
    %3663 = vmatpush1.msra.mxu0 0.0
    %3664 = vmatprep.subr.mxu0 0.0
    %3665 = vmatpush1.msra.mxu0 0.0
    %3666 = vmatprep.subr.mxu0 0.0
    %3667 = vmatpush1.msra.mxu0 0.0
    %3668 = vmatprep.subr.mxu0 0.0
    %3669 = vmatpush1.msra.mxu0 0.0
    %3670 = vmatprep.subr.mxu0 0.0
    %3671 = vmatpush1.msra.mxu0 0.0
    %3672 = vmatprep.subr.mxu0 0.0
    %3673 = vmatpush1.msra.mxu0 0.0
    %3674 = vmatprep.subr.mxu0 0.0
    %3675 = vmatpush1.msra.mxu0 0.0
    %3676 = vmatprep.subr.mxu0 0.0
    %3677 = vmatpush1.msra.mxu0 0.0
    %3678 = vmatprep.subr.mxu0 0.0
    %3679 = vmatpush1.msra.mxu0 0.0
    %3680 = vmatprep.subr.mxu0 0.0
    %3681 = vmatpush1.msra.mxu0 0.0
    %3682 = vmatprep.subr.mxu0 0.0
    %3683 = vmatpush1.msra.mxu0 0.0
    %3684 = vmatprep.subr.mxu0 0.0
    %3685 = vmatpush1.msra.mxu0 0.0
    %3686 = vmatprep.subr.mxu0 0.0
    %3687 = vmatpush1.msra.mxu0 0.0
    %3688 = vmatprep.subr.mxu0 0.0
    %3689 = vmatpush1.msra.mxu0 0.0
    %3690 = vmatprep.subr.mxu0 0.0
    %3691 = vmatpush1.msra.mxu0 0.0
    %3692 = vmatprep.subr.mxu0 0.0
    %3693 = vmatpush1.msra.mxu0 0.0
    %3694 = vmatprep.subr.mxu0 0.0
    %3695 = vmatpush1.msra.mxu0 0.0
    %3696 = vmatprep.subr.mxu0 0.0
    %3697 = vmatpush1.msra.mxu0 0.0
    %3698 = vmatprep.subr.mxu0 0.0
    %3699 = vmatpush1.msra.mxu0 0.0
    %3700 = vmatprep.subr.mxu0 0.0
    %3701 = vmatpush1.msra.mxu0 0.0
    %3702 = vmatprep.mubr.f32.mxu0 0.0
    %3703 = vmatmul.mubr.f32.gmra.mrb[0].mxu0 %v3636
    %v3704 = vpop.f32.mrb[0].mxu0
    %v3705 = vadd.f32 0.0, %v3704
    %v3706 = vpop.f32.mrb[0].mxu0
    %3707 = vdwg.mxu0
    %s3708 = scalar_lea.vmem [#allocation5], 32
    %v3709 = vld [vmem:[%s3708] sm:$0xff]
    %v3710 = vld [vmem:[%s3708 + $0x8] sm:$0xff]
    %v3711 = vld [vmem:[%s3708 + $0x10] sm:$0xff]
    %v3712 = vld [vmem:[%s3708 + $0x18] sm:$0xff]
    %v3714 = vsel %vm3481, %v3705, 0
    %3716 = vmatprep.subr.mxu0 0.0
    %3717 = vmatpush1.msra.mxu0 %v3709
    %3718 = vmatprep.subr.mxu0 0.0
    %3719 = vmatpush1.msra.mxu0 %v3710
    %3720 = vmatprep.subr.mxu0 0.0
    %3721 = vmatpush1.msra.mxu0 %v3711
    %3722 = vmatprep.subr.mxu0 0.0
    %3723 = vmatpush1.msra.mxu0 %v3712
    %3724 = vmatprep.subr.mxu0 0.0
    %3725 = vmatpush1.msra.mxu0 0.0
    %3726 = vmatprep.subr.mxu0 0.0
    %3727 = vmatpush1.msra.mxu0 0.0
    %3728 = vmatprep.subr.mxu0 0.0
    %3729 = vmatpush1.msra.mxu0 0.0
    %3730 = vmatprep.subr.mxu0 0.0
    %3731 = vmatpush1.msra.mxu0 0.0
    %3732 = vmatprep.subr.mxu0 0.0
    %3733 = vmatpush1.msra.mxu0 0.0
    %3734 = vmatprep.subr.mxu0 0.0
    %3735 = vmatpush1.msra.mxu0 0.0
    %3736 = vmatprep.subr.mxu0 0.0
    %3737 = vmatpush1.msra.mxu0 0.0
    %3738 = vmatprep.subr.mxu0 0.0
    %3739 = vmatpush1.msra.mxu0 0.0
    %3740 = vmatprep.subr.mxu0 0.0
    %3741 = vmatpush1.msra.mxu0 0.0
    %3742 = vmatprep.subr.mxu0 0.0
    %3743 = vmatpush1.msra.mxu0 0.0
    %3744 = vmatprep.subr.mxu0 0.0
    %3745 = vmatpush1.msra.mxu0 0.0
    %3746 = vmatprep.subr.mxu0 0.0
    %3747 = vmatpush1.msra.mxu0 0.0
    %3748 = vmatprep.subr.mxu0 0.0
    %3749 = vmatpush1.msra.mxu0 0.0
    %3750 = vmatprep.subr.mxu0 0.0
    %3751 = vmatpush1.msra.mxu0 0.0
    %3752 = vmatprep.subr.mxu0 0.0
    %3753 = vmatpush1.msra.mxu0 0.0
    %3754 = vmatprep.subr.mxu0 0.0
    %3755 = vmatpush1.msra.mxu0 0.0
    %3756 = vmatprep.subr.mxu0 0.0
    %3757 = vmatpush1.msra.mxu0 0.0
    %3758 = vmatprep.subr.mxu0 0.0
    %3759 = vmatpush1.msra.mxu0 0.0
    %3760 = vmatprep.subr.mxu0 0.0
    %3761 = vmatpush1.msra.mxu0 0.0
    %3762 = vmatprep.subr.mxu0 0.0
    %3763 = vmatpush1.msra.mxu0 0.0
    %3764 = vmatprep.subr.mxu0 0.0
    %3765 = vmatpush1.msra.mxu0 0.0
    %3766 = vmatprep.subr.mxu0 0.0
    %3767 = vmatpush1.msra.mxu0 0.0
    %3768 = vmatprep.subr.mxu0 0.0
    %3769 = vmatpush1.msra.mxu0 0.0
    %3770 = vmatprep.subr.mxu0 0.0
    %3771 = vmatpush1.msra.mxu0 0.0
    %3772 = vmatprep.subr.mxu0 0.0
    %3773 = vmatpush1.msra.mxu0 0.0
    %3774 = vmatprep.subr.mxu0 0.0
    %3775 = vmatpush1.msra.mxu0 0.0
    %3776 = vmatprep.subr.mxu0 0.0
    %3777 = vmatpush1.msra.mxu0 0.0
    %3778 = vmatprep.subr.mxu0 0.0
    %3779 = vmatpush1.msra.mxu0 0.0
    %3780 = vmatprep.mubr.f32.mxu0 0.0
    %3781 = vmatmul.mubr.f32.gmra.mrb[0].mxu0 %v3714
    %v3782 = vpop.f32.mrb[0].mxu0
    %v3783 = vadd.f32 0.0, %v3782
    %v3784 = vpop.f32.mrb[0].mxu0
    %3785 = vdwg.mxu0
    %v3786 = vadd.f32 %v3632, %v3783
    %s3787 = scalar_lea.vmem %s6, 16
    %v3788 = vld [vmem:[%s3787] sm:$0xff]
    %v3790 = vsel %vm3481, %v3788, 0
    %3792 = vmatprep.subr.mxu0 0.0
    %3793 = vmatpush1.msra.mxu0 %v3468
    %3794 = vmatprep.subr.mxu0 0.0
    %3795 = vmatpush1.msra.mxu0 %v3469
    %3796 = vmatprep.subr.mxu0 0.0
    %3797 = vmatpush1.msra.mxu0 %v3470
    %3798 = vmatprep.subr.mxu0 0.0
    %3799 = vmatpush1.msra.mxu0 %v3471
    %3800 = vmatprep.subr.mxu0 0.0
    %3801 = vmatpush1.msra.mxu0 0.0
    %3802 = vmatprep.subr.mxu0 0.0
    %3803 = vmatpush1.msra.mxu0 0.0
    %3804 = vmatprep.subr.mxu0 0.0
    %3805 = vmatpush1.msra.mxu0 0.0
    %3806 = vmatprep.subr.mxu0 0.0
    %3807 = vmatpush1.msra.mxu0 0.0
    %3808 = vmatprep.subr.mxu0 0.0
    %3809 = vmatpush1.msra.mxu0 0.0
    %3810 = vmatprep.subr.mxu0 0.0
    %3811 = vmatpush1.msra.mxu0 0.0
    %3812 = vmatprep.subr.mxu0 0.0
    %3813 = vmatpush1.msra.mxu0 0.0
    %3814 = vmatprep.subr.mxu0 0.0
    %3815 = vmatpush1.msra.mxu0 0.0
    %3816 = vmatprep.subr.mxu0 0.0
    %3817 = vmatpush1.msra.mxu0 0.0
    %3818 = vmatprep.subr.mxu0 0.0
    %3819 = vmatpush1.msra.mxu0 0.0
    %3820 = vmatprep.subr.mxu0 0.0
    %3821 = vmatpush1.msra.mxu0 0.0
    %3822 = vmatprep.subr.mxu0 0.0
    %3823 = vmatpush1.msra.mxu0 0.0
    %3824 = vmatprep.subr.mxu0 0.0
    %3825 = vmatpush1.msra.mxu0 0.0
    %3826 = vmatprep.subr.mxu0 0.0
    %3827 = vmatpush1.msra.mxu0 0.0
    %3828 = vmatprep.subr.mxu0 0.0
    %3829 = vmatpush1.msra.mxu0 0.0
    %3830 = vmatprep.subr.mxu0 0.0
    %3831 = vmatpush1.msra.mxu0 0.0
    %3832 = vmatprep.subr.mxu0 0.0
    %3833 = vmatpush1.msra.mxu0 0.0
    %3834 = vmatprep.subr.mxu0 0.0
    %3835 = vmatpush1.msra.mxu0 0.0
    %3836 = vmatprep.subr.mxu0 0.0
    %3837 = vmatpush1.msra.mxu0 0.0
    %3838 = vmatprep.subr.mxu0 0.0
    %3839 = vmatpush1.msra.mxu0 0.0
    %3840 = vmatprep.subr.mxu0 0.0
    %3841 = vmatpush1.msra.mxu0 0.0
    %3842 = vmatprep.subr.mxu0 0.0
    %3843 = vmatpush1.msra.mxu0 0.0
    %3844 = vmatprep.subr.mxu0 0.0
    %3845 = vmatpush1.msra.mxu0 0.0
    %3846 = vmatprep.subr.mxu0 0.0
    %3847 = vmatpush1.msra.mxu0 0.0
    %3848 = vmatprep.subr.mxu0 0.0
    %3849 = vmatpush1.msra.mxu0 0.0
    %3850 = vmatprep.subr.mxu0 0.0
    %3851 = vmatpush1.msra.mxu0 0.0
    %3852 = vmatprep.subr.mxu0 0.0
    %3853 = vmatpush1.msra.mxu0 0.0
    %3854 = vmatprep.subr.mxu0 0.0
    %3855 = vmatpush1.msra.mxu0 0.0
    %3856 = vmatprep.mubr.f32.mxu0 0.0
    %3857 = vmatmul.mubr.f32.gmra.mrb[0].mxu0 %v3790
    %v3858 = vpop.f32.mrb[0].mxu0
    %v3859 = vadd.f32 0.0, %v3858
    %v3860 = vpop.f32.mrb[0].mxu0
    %3861 = vdwg.mxu0
    %s3862 = scalar_lea.vmem [#allocation5], 64
    %v3863 = vld [vmem:[%s3862] sm:$0xff]
    %v3864 = vld [vmem:[%s3862 + $0x8] sm:$0xff]
    %v3865 = vld [vmem:[%s3862 + $0x10] sm:$0xff]
    %v3866 = vld [vmem:[%s3862 + $0x18] sm:$0xff]
    %v3868 = vsel %vm3481, %v3859, 0
    %3870 = vmatprep.subr.mxu0 0.0
    %3871 = vmatpush1.msra.mxu0 %v3863
    %3872 = vmatprep.subr.mxu0 0.0
    %3873 = vmatpush1.msra.mxu0 %v3864
    %3874 = vmatprep.subr.mxu0 0.0
    %3875 = vmatpush1.msra.mxu0 %v3865
    %3876 = vmatprep.subr.mxu0 0.0
    %3877 = vmatpush1.msra.mxu0 %v3866
    %3878 = vmatprep.subr.mxu0 0.0
    %3879 = vmatpush1.msra.mxu0 0.0
    %3880 = vmatprep.subr.mxu0 0.0
    %3881 = vmatpush1.msra.mxu0 0.0
    %3882 = vmatprep.subr.mxu0 0.0
    %3883 = vmatpush1.msra.mxu0 0.0
    %3884 = vmatprep.subr.mxu0 0.0
    %3885 = vmatpush1.msra.mxu0 0.0
    %3886 = vmatprep.subr.mxu0 0.0
    %3887 = vmatpush1.msra.mxu0 0.0
    %3888 = vmatprep.subr.mxu0 0.0
    %3889 = vmatpush1.msra.mxu0 0.0
    %3890 = vmatprep.subr.mxu0 0.0
    %3891 = vmatpush1.msra.mxu0 0.0
    %3892 = vmatprep.subr.mxu0 0.0
    %3893 = vmatpush1.msra.mxu0 0.0
    %3894 = vmatprep.subr.mxu0 0.0
    %3895 = vmatpush1.msra.mxu0 0.0
    %3896 = vmatprep.subr.mxu0 0.0
    %3897 = vmatpush1.msra.mxu0 0.0
    %3898 = vmatprep.subr.mxu0 0.0
    %3899 = vmatpush1.msra.mxu0 0.0
    %3900 = vmatprep.subr.mxu0 0.0
    %3901 = vmatpush1.msra.mxu0 0.0
    %3902 = vmatprep.subr.mxu0 0.0
    %3903 = vmatpush1.msra.mxu0 0.0
    %3904 = vmatprep.subr.mxu0 0.0
    %3905 = vmatpush1.msra.mxu0 0.0
    %3906 = vmatprep.subr.mxu0 0.0
    %3907 = vmatpush1.msra.mxu0 0.0
    %3908 = vmatprep.subr.mxu0 0.0
    %3909 = vmatpush1.msra.mxu0 0.0
    %3910 = vmatprep.subr.mxu0 0.0
    %3911 = vmatpush1.msra.mxu0 0.0
    %3912 = vmatprep.subr.mxu0 0.0
    %3913 = vmatpush1.msra.mxu0 0.0
    %3914 = vmatprep.subr.mxu0 0.0
    %3915 = vmatpush1.msra.mxu0 0.0
    %3916 = vmatprep.subr.mxu0 0.0
    %3917 = vmatpush1.msra.mxu0 0.0
    %3918 = vmatprep.subr.mxu0 0.0
    %3919 = vmatpush1.msra.mxu0 0.0
    %3920 = vmatprep.subr.mxu0 0.0
    %3921 = vmatpush1.msra.mxu0 0.0
    %3922 = vmatprep.subr.mxu0 0.0
    %3923 = vmatpush1.msra.mxu0 0.0
    %3924 = vmatprep.subr.mxu0 0.0
    %3925 = vmatpush1.msra.mxu0 0.0
    %3926 = vmatprep.subr.mxu0 0.0
    %3927 = vmatpush1.msra.mxu0 0.0
    %3928 = vmatprep.subr.mxu0 0.0
    %3929 = vmatpush1.msra.mxu0 0.0
    %3930 = vmatprep.subr.mxu0 0.0
    %3931 = vmatpush1.msra.mxu0 0.0
    %3932 = vmatprep.subr.mxu0 0.0
    %3933 = vmatpush1.msra.mxu0 0.0
    %3934 = vmatprep.mubr.f32.mxu0 0.0
    %3935 = vmatmul.mubr.f32.gmra.mrb[0].mxu0 %v3868
    %v3936 = vpop.f32.mrb[0].mxu0
    %v3937 = vadd.f32 0.0, %v3936
    %v3938 = vpop.f32.mrb[0].mxu0
    %3939 = vdwg.mxu0
    %v3940 = vadd.f32 %v3786, %v3937
    %s3941 = scalar_lea.vmem %s6, 24
    %v3942 = vld [vmem:[%s3941] sm:$0xff]
    %v3944 = vsel %vm3481, %v3942, 0
    %3946 = vmatprep.subr.mxu0 0.0
    %3947 = vmatpush1.msra.mxu0 %v3468
    %3948 = vmatprep.subr.mxu0 0.0
    %3949 = vmatpush1.msra.mxu0 %v3469
    %3950 = vmatprep.subr.mxu0 0.0
    %3951 = vmatpush1.msra.mxu0 %v3470
    %3952 = vmatprep.subr.mxu0 0.0
    %3953 = vmatpush1.msra.mxu0 %v3471
    %3954 = vmatprep.subr.mxu0 0.0
    %3955 = vmatpush1.msra.mxu0 0.0
    %3956 = vmatprep.subr.mxu0 0.0
    %3957 = vmatpush1.msra.mxu0 0.0
    %3958 = vmatprep.subr.mxu0 0.0
    %3959 = vmatpush1.msra.mxu0 0.0
    %3960 = vmatprep.subr.mxu0 0.0
    %3961 = vmatpush1.msra.mxu0 0.0
    %3962 = vmatprep.subr.mxu0 0.0
    %3963 = vmatpush1.msra.mxu0 0.0
    %3964 = vmatprep.subr.mxu0 0.0
    %3965 = vmatpush1.msra.mxu0 0.0
    %3966 = vmatprep.subr.mxu0 0.0
    %3967 = vmatpush1.msra.mxu0 0.0
    %3968 = vmatprep.subr.mxu0 0.0
    %3969 = vmatpush1.msra.mxu0 0.0
    %3970 = vmatprep.subr.mxu0 0.0
    %3971 = vmatpush1.msra.mxu0 0.0
    %3972 = vmatprep.subr.mxu0 0.0
    %3973 = vmatpush1.msra.mxu0 0.0
    %3974 = vmatprep.subr.mxu0 0.0
    %3975 = vmatpush1.msra.mxu0 0.0
    %3976 = vmatprep.subr.mxu0 0.0
    %3977 = vmatpush1.msra.mxu0 0.0
    %3978 = vmatprep.subr.mxu0 0.0
    %3979 = vmatpush1.msra.mxu0 0.0
    %3980 = vmatprep.subr.mxu0 0.0
    %3981 = vmatpush1.msra.mxu0 0.0
    %3982 = vmatprep.subr.mxu0 0.0
    %3983 = vmatpush1.msra.mxu0 0.0
    %3984 = vmatprep.subr.mxu0 0.0
    %3985 = vmatpush1.msra.mxu0 0.0
    %3986 = vmatprep.subr.mxu0 0.0
    %3987 = vmatpush1.msra.mxu0 0.0
    %3988 = vmatprep.subr.mxu0 0.0
    %3989 = vmatpush1.msra.mxu0 0.0
    %3990 = vmatprep.subr.mxu0 0.0
    %3991 = vmatpush1.msra.mxu0 0.0
    %3992 = vmatprep.subr.mxu0 0.0
    %3993 = vmatpush1.msra.mxu0 0.0
    %3994 = vmatprep.subr.mxu0 0.0
    %3995 = vmatpush1.msra.mxu0 0.0
    %3996 = vmatprep.subr.mxu0 0.0
    %3997 = vmatpush1.msra.mxu0 0.0
    %3998 = vmatprep.subr.mxu0 0.0
    %3999 = vmatpush1.msra.mxu0 0.0
    %4000 = vmatprep.subr.mxu0 0.0
    %4001 = vmatpush1.msra.mxu0 0.0
    %4002 = vmatprep.subr.mxu0 0.0
    %4003 = vmatpush1.msra.mxu0 0.0
    %4004 = vmatprep.subr.mxu0 0.0
    %4005 = vmatpush1.msra.mxu0 0.0
    %4006 = vmatprep.subr.mxu0 0.0
    %4007 = vmatpush1.msra.mxu0 0.0
    %4008 = vmatprep.subr.mxu0 0.0
    %4009 = vmatpush1.msra.mxu0 0.0
    %4010 = vmatprep.mubr.f32.mxu0 0.0
    %4011 = vmatmul.mubr.f32.gmra.mrb[0].mxu0 %v3944
    %v4012 = vpop.f32.mrb[0].mxu0
    %v4013 = vadd.f32 0.0, %v4012
    %v4014 = vpop.f32.mrb[0].mxu0
    %4015 = vdwg.mxu0
    %s4016 = scalar_lea.vmem [#allocation5], 96
    %v4017 = vld [vmem:[%s4016] sm:$0xff]
    %v4018 = vld [vmem:[%s4016 + $0x8] sm:$0xff]
    %v4019 = vld [vmem:[%s4016 + $0x10] sm:$0xff]
    %v4020 = vld [vmem:[%s4016 + $0x18] sm:$0xff]
    %v4022 = vsel %vm3481, %v4013, 0
    %4024 = vmatprep.subr.mxu0 0.0
    %4025 = vmatpush1.msra.mxu0 %v4017
    %4026 = vmatprep.subr.mxu0 0.0
    %4027 = vmatpush1.msra.mxu0 %v4018
    %4028 = vmatprep.subr.mxu0 0.0
    %4029 = vmatpush1.msra.mxu0 %v4019
    %4030 = vmatprep.subr.mxu0 0.0
    %4031 = vmatpush1.msra.mxu0 %v4020
    %4032 = vmatprep.subr.mxu0 0.0
    %4033 = vmatpush1.msra.mxu0 0.0
    %4034 = vmatprep.subr.mxu0 0.0
    %4035 = vmatpush1.msra.mxu0 0.0
    %4036 = vmatprep.subr.mxu0 0.0
    %4037 = vmatpush1.msra.mxu0 0.0
    %4038 = vmatprep.subr.mxu0 0.0
    %4039 = vmatpush1.msra.mxu0 0.0
    %4040 = vmatprep.subr.mxu0 0.0
    %4041 = vmatpush1.msra.mxu0 0.0
    %4042 = vmatprep.subr.mxu0 0.0
    %4043 = vmatpush1.msra.mxu0 0.0
    %4044 = vmatprep.subr.mxu0 0.0
    %4045 = vmatpush1.msra.mxu0 0.0
    %4046 = vmatprep.subr.mxu0 0.0
    %4047 = vmatpush1.msra.mxu0 0.0
    %4048 = vmatprep.subr.mxu0 0.0
    %4049 = vmatpush1.msra.mxu0 0.0
    %4050 = vmatprep.subr.mxu0 0.0
    %4051 = vmatpush1.msra.mxu0 0.0
    %4052 = vmatprep.subr.mxu0 0.0
    %4053 = vmatpush1.msra.mxu0 0.0
    %4054 = vmatprep.subr.mxu0 0.0
    %4055 = vmatpush1.msra.mxu0 0.0
    %4056 = vmatprep.subr.mxu0 0.0
    %4057 = vmatpush1.msra.mxu0 0.0
    %4058 = vmatprep.subr.mxu0 0.0
    %4059 = vmatpush1.msra.mxu0 0.0
    %4060 = vmatprep.subr.mxu0 0.0
    %4061 = vmatpush1.msra.mxu0 0.0
    %4062 = vmatprep.subr.mxu0 0.0
    %4063 = vmatpush1.msra.mxu0 0.0
    %4064 = vmatprep.subr.mxu0 0.0
    %4065 = vmatpush1.msra.mxu0 0.0
    %4066 = vmatprep.subr.mxu0 0.0
    %4067 = vmatpush1.msra.mxu0 0.0
    %4068 = vmatprep.subr.mxu0 0.0
    %4069 = vmatpush1.msra.mxu0 0.0
    %4070 = vmatprep.subr.mxu0 0.0
    %4071 = vmatpush1.msra.mxu0 0.0
    %4072 = vmatprep.subr.mxu0 0.0
    %4073 = vmatpush1.msra.mxu0 0.0
    %4074 = vmatprep.subr.mxu0 0.0
    %4075 = vmatpush1.msra.mxu0 0.0
    %4076 = vmatprep.subr.mxu0 0.0
    %4077 = vmatpush1.msra.mxu0 0.0
    %4078 = vmatprep.subr.mxu0 0.0
    %4079 = vmatpush1.msra.mxu0 0.0
    %4080 = vmatprep.subr.mxu0 0.0
    %4081 = vmatpush1.msra.mxu0 0.0
    %4082 = vmatprep.subr.mxu0 0.0
    %4083 = vmatpush1.msra.mxu0 0.0
    %4084 = vmatprep.subr.mxu0 0.0
    %4085 = vmatpush1.msra.mxu0 0.0
    %4086 = vmatprep.subr.mxu0 0.0
    %4087 = vmatpush1.msra.mxu0 0.0
    %4088 = vmatprep.mubr.f32.mxu0 0.0
    %4089 = vmatmul.mubr.f32.gmra.mrb[0].mxu0 %v4022
    %v4090 = vpop.f32.mrb[0].mxu0
    %v4091 = vadd.f32 0.0, %v4090
    %v4092 = vpop.f32.mrb[0].mxu0
    %4093 = vdwg.mxu0
    %v4094 = vadd.f32 %v3940, %v4091
    %s4095 = scalar_lea.vmem %s6, 32
    %v4096 = vld [vmem:[%s4095] sm:$0xff]
    %v4098 = vsel %vm3481, %v4096, 0
    %4100 = vmatprep.subr.mxu0 0.0
    %4101 = vmatpush1.msra.mxu0 %v3468
    %4102 = vmatprep.subr.mxu0 0.0
    %4103 = vmatpush1.msra.mxu0 %v3469
    %4104 = vmatprep.subr.mxu0 0.0
    %4105 = vmatpush1.msra.mxu0 %v3470
    %4106 = vmatprep.subr.mxu0 0.0
    %4107 = vmatpush1.msra.mxu0 %v3471
    %4108 = vmatprep.subr.mxu0 0.0
    %4109 = vmatpush1.msra.mxu0 0.0
    %4110 = vmatprep.subr.mxu0 0.0
    %4111 = vmatpush1.msra.mxu0 0.0
    %4112 = vmatprep.subr.mxu0 0.0
    %4113 = vmatpush1.msra.mxu0 0.0
    %4114 = vmatprep.subr.mxu0 0.0
    %4115 = vmatpush1.msra.mxu0 0.0
    %4116 = vmatprep.subr.mxu0 0.0
    %4117 = vmatpush1.msra.mxu0 0.0
    %4118 = vmatprep.subr.mxu0 0.0
    %4119 = vmatpush1.msra.mxu0 0.0
    %4120 = vmatprep.subr.mxu0 0.0
    %4121 = vmatpush1.msra.mxu0 0.0
    %4122 = vmatprep.subr.mxu0 0.0
    %4123 = vmatpush1.msra.mxu0 0.0
    %4124 = vmatprep.subr.mxu0 0.0
    %4125 = vmatpush1.msra.mxu0 0.0
    %4126 = vmatprep.subr.mxu0 0.0
    %4127 = vmatpush1.msra.mxu0 0.0
    %4128 = vmatprep.subr.mxu0 0.0
    %4129 = vmatpush1.msra.mxu0 0.0
    %4130 = vmatprep.subr.mxu0 0.0
    %4131 = vmatpush1.msra.mxu0 0.0
    %4132 = vmatprep.subr.mxu0 0.0
    %4133 = vmatpush1.msra.mxu0 0.0
    %4134 = vmatprep.subr.mxu0 0.0
    %4135 = vmatpush1.msra.mxu0 0.0
    %4136 = vmatprep.subr.mxu0 0.0
    %4137 = vmatpush1.msra.mxu0 0.0
    %4138 = vmatprep.subr.mxu0 0.0
    %4139 = vmatpush1.msra.mxu0 0.0
    %4140 = vmatprep.subr.mxu0 0.0
    %4141 = vmatpush1.msra.mxu0 0.0
    %4142 = vmatprep.subr.mxu0 0.0
    %4143 = vmatpush1.msra.mxu0 0.0
    %4144 = vmatprep.subr.mxu0 0.0
    %4145 = vmatpush1.msra.mxu0 0.0
    %4146 = vmatprep.subr.mxu0 0.0
    %4147 = vmatpush1.msra.mxu0 0.0
    %4148 = vmatprep.subr.mxu0 0.0
    %4149 = vmatpush1.msra.mxu0 0.0
    %4150 = vmatprep.subr.mxu0 0.0
    %4151 = vmatpush1.msra.mxu0 0.0
    %4152 = vmatprep.subr.mxu0 0.0
    %4153 = vmatpush1.msra.mxu0 0.0
    %4154 = vmatprep.subr.mxu0 0.0
    %4155 = vmatpush1.msra.mxu0 0.0
    %4156 = vmatprep.subr.mxu0 0.0
    %4157 = vmatpush1.msra.mxu0 0.0
    %4158 = vmatprep.subr.mxu0 0.0
    %4159 = vmatpush1.msra.mxu0 0.0
    %4160 = vmatprep.subr.mxu0 0.0
    %4161 = vmatpush1.msra.mxu0 0.0
    %4162 = vmatprep.subr.mxu0 0.0
    %4163 = vmatpush1.msra.mxu0 0.0
    %4164 = vmatprep.mubr.f32.mxu0 0.0
    %4165 = vmatmul.mubr.f32.gmra.mrb[0].mxu0 %v4098
    %v4166 = vpop.f32.mrb[0].mxu0
    %v4167 = vadd.f32 0.0, %v4166
    %v4168 = vpop.f32.mrb[0].mxu0
    %4169 = vdwg.mxu0
    %s4170 = scalar_lea.vmem [#allocation5], 128
    %v4171 = vld [vmem:[%s4170] sm:$0xff]
    %v4172 = vld [vmem:[%s4170 + $0x8] sm:$0xff]
    %v4173 = vld [vmem:[%s4170 + $0x10] sm:$0xff]
    %v4174 = vld [vmem:[%s4170 + $0x18] sm:$0xff]
    %v4176 = vsel %vm3481, %v4167, 0
    %4178 = vmatprep.subr.mxu0 0.0
    %4179 = vmatpush1.msra.mxu0 %v4171
    %4180 = vmatprep.subr.mxu0 0.0
    %4181 = vmatpush1.msra.mxu0 %v4172
    %4182 = vmatprep.subr.mxu0 0.0
    %4183 = vmatpush1.msra.mxu0 %v4173
    %4184 = vmatprep.subr.mxu0 0.0
    %4185 = vmatpush1.msra.mxu0 %v4174
    %4186 = vmatprep.subr.mxu0 0.0
    %4187 = vmatpush1.msra.mxu0 0.0
    %4188 = vmatprep.subr.mxu0 0.0
    %4189 = vmatpush1.msra.mxu0 0.0
    %4190 = vmatprep.subr.mxu0 0.0
    %4191 = vmatpush1.msra.mxu0 0.0
    %4192 = vmatprep.subr.mxu0 0.0
    %4193 = vmatpush1.msra.mxu0 0.0
    %4194 = vmatprep.subr.mxu0 0.0
    %4195 = vmatpush1.msra.mxu0 0.0
    %4196 = vmatprep.subr.mxu0 0.0
    %4197 = vmatpush1.msra.mxu0 0.0
    %4198 = vmatprep.subr.mxu0 0.0
    %4199 = vmatpush1.msra.mxu0 0.0
    %4200 = vmatprep.subr.mxu0 0.0
    %4201 = vmatpush1.msra.mxu0 0.0
    %4202 = vmatprep.subr.mxu0 0.0
    %4203 = vmatpush1.msra.mxu0 0.0
    %4204 = vmatprep.subr.mxu0 0.0
    %4205 = vmatpush1.msra.mxu0 0.0
    %4206 = vmatprep.subr.mxu0 0.0
    %4207 = vmatpush1.msra.mxu0 0.0
    %4208 = vmatprep.subr.mxu0 0.0
    %4209 = vmatpush1.msra.mxu0 0.0
    %4210 = vmatprep.subr.mxu0 0.0
    %4211 = vmatpush1.msra.mxu0 0.0
    %4212 = vmatprep.subr.mxu0 0.0
    %4213 = vmatpush1.msra.mxu0 0.0
    %4214 = vmatprep.subr.mxu0 0.0
    %4215 = vmatpush1.msra.mxu0 0.0
    %4216 = vmatprep.subr.mxu0 0.0
    %4217 = vmatpush1.msra.mxu0 0.0
    %4218 = vmatprep.subr.mxu0 0.0
    %4219 = vmatpush1.msra.mxu0 0.0
    %4220 = vmatprep.subr.mxu0 0.0
    %4221 = vmatpush1.msra.mxu0 0.0
    %4222 = vmatprep.subr.mxu0 0.0
    %4223 = vmatpush1.msra.mxu0 0.0
    %4224 = vmatprep.subr.mxu0 0.0
    %4225 = vmatpush1.msra.mxu0 0.0
    %4226 = vmatprep.subr.mxu0 0.0
    %4227 = vmatpush1.msra.mxu0 0.0
    %4228 = vmatprep.subr.mxu0 0.0
    %4229 = vmatpush1.msra.mxu0 0.0
    %4230 = vmatprep.subr.mxu0 0.0
    %4231 = vmatpush1.msra.mxu0 0.0
    %4232 = vmatprep.subr.mxu0 0.0
    %4233 = vmatpush1.msra.mxu0 0.0
    %4234 = vmatprep.subr.mxu0 0.0
    %4235 = vmatpush1.msra.mxu0 0.0
    %4236 = vmatprep.subr.mxu0 0.0
    %4237 = vmatpush1.msra.mxu0 0.0
    %4238 = vmatprep.subr.mxu0 0.0
    %4239 = vmatpush1.msra.mxu0 0.0
    %4240 = vmatprep.subr.mxu0 0.0
    %4241 = vmatpush1.msra.mxu0 0.0
    %4242 = vmatprep.mubr.f32.mxu0 0.0
    %4243 = vmatmul.mubr.f32.gmra.mrb[0].mxu0 %v4176
    %v4244 = vpop.f32.mrb[0].mxu0
    %v4245 = vadd.f32 0.0, %v4244
    %v4246 = vpop.f32.mrb[0].mxu0
    %4247 = vdwg.mxu0
    %v4248 = vadd.f32 %v4094, %v4245
    %s4249 = scalar_lea.vmem %s6, 40
    %v4250 = vld [vmem:[%s4249] sm:$0xff]
    %v4252 = vsel %vm3481, %v4250, 0
    %4254 = vmatprep.subr.mxu0 0.0
    %4255 = vmatpush1.msra.mxu0 %v3468
    %4256 = vmatprep.subr.mxu0 0.0
    %4257 = vmatpush1.msra.mxu0 %v3469
    %4258 = vmatprep.subr.mxu0 0.0
    %4259 = vmatpush1.msra.mxu0 %v3470
    %4260 = vmatprep.subr.mxu0 0.0
    %4261 = vmatpush1.msra.mxu0 %v3471
    %4262 = vmatprep.subr.mxu0 0.0
    %4263 = vmatpush1.msra.mxu0 0.0
    %4264 = vmatprep.subr.mxu0 0.0
    %4265 = vmatpush1.msra.mxu0 0.0
    %4266 = vmatprep.subr.mxu0 0.0
    %4267 = vmatpush1.msra.mxu0 0.0
    %4268 = vmatprep.subr.mxu0 0.0
    %4269 = vmatpush1.msra.mxu0 0.0
    %4270 = vmatprep.subr.mxu0 0.0
    %4271 = vmatpush1.msra.mxu0 0.0
    %4272 = vmatprep.subr.mxu0 0.0
    %4273 = vmatpush1.msra.mxu0 0.0
    %4274 = vmatprep.subr.mxu0 0.0
    %4275 = vmatpush1.msra.mxu0 0.0
    %4276 = vmatprep.subr.mxu0 0.0
    %4277 = vmatpush1.msra.mxu0 0.0
    %4278 = vmatprep.subr.mxu0 0.0
    %4279 = vmatpush1.msra.mxu0 0.0
    %4280 = vmatprep.subr.mxu0 0.0
    %4281 = vmatpush1.msra.mxu0 0.0
    %4282 = vmatprep.subr.mxu0 0.0
    %4283 = vmatpush1.msra.mxu0 0.0
    %4284 = vmatprep.subr.mxu0 0.0
    %4285 = vmatpush1.msra.mxu0 0.0
    %4286 = vmatprep.subr.mxu0 0.0
    %4287 = vmatpush1.msra.mxu0 0.0
    %4288 = vmatprep.subr.mxu0 0.0
    %4289 = vmatpush1.msra.mxu0 0.0
    %4290 = vmatprep.subr.mxu0 0.0
    %4291 = vmatpush1.msra.mxu0 0.0
    %4292 = vmatprep.subr.mxu0 0.0
    %4293 = vmatpush1.msra.mxu0 0.0
    %4294 = vmatprep.subr.mxu0 0.0
    %4295 = vmatpush1.msra.mxu0 0.0
    %4296 = vmatprep.subr.mxu0 0.0
    %4297 = vmatpush1.msra.mxu0 0.0
    %4298 = vmatprep.subr.mxu0 0.0
    %4299 = vmatpush1.msra.mxu0 0.0
    %4300 = vmatprep.subr.mxu0 0.0
    %4301 = vmatpush1.msra.mxu0 0.0
    %4302 = vmatprep.subr.mxu0 0.0
    %4303 = vmatpush1.msra.mxu0 0.0
    %4304 = vmatprep.subr.mxu0 0.0
    %4305 = vmatpush1.msra.mxu0 0.0
    %4306 = vmatprep.subr.mxu0 0.0
    %4307 = vmatpush1.msra.mxu0 0.0
    %4308 = vmatprep.subr.mxu0 0.0
    %4309 = vmatpush1.msra.mxu0 0.0
    %4310 = vmatprep.subr.mxu0 0.0
    %4311 = vmatpush1.msra.mxu0 0.0
    %4312 = vmatprep.subr.mxu0 0.0
    %4313 = vmatpush1.msra.mxu0 0.0
    %4314 = vmatprep.subr.mxu0 0.0
    %4315 = vmatpush1.msra.mxu0 0.0
    %4316 = vmatprep.subr.mxu0 0.0
    %4317 = vmatpush1.msra.mxu0 0.0
    %4318 = vmatprep.mubr.f32.mxu0 0.0
    %4319 = vmatmul.mubr.f32.gmra.mrb[0].mxu0 %v4252
    %v4320 = vpop.f32.mrb[0].mxu0
    %v4321 = vadd.f32 0.0, %v4320
    %v4322 = vpop.f32.mrb[0].mxu0
    %4323 = vdwg.mxu0
    %s4324 = scalar_lea.vmem [#allocation5], 160
    %v4325 = vld [vmem:[%s4324] sm:$0xff]
    %v4326 = vld [vmem:[%s4324 + $0x8] sm:$0xff]
    %v4327 = vld [vmem:[%s4324 + $0x10] sm:$0xff]
    %v4328 = vld [vmem:[%s4324 + $0x18] sm:$0xff]
    %v4330 = vsel %vm3481, %v4321, 0
    %4332 = vmatprep.subr.mxu0 0.0
    %4333 = vmatpush1.msra.mxu0 %v4325
    %4334 = vmatprep.subr.mxu0 0.0
    %4335 = vmatpush1.msra.mxu0 %v4326
    %4336 = vmatprep.subr.mxu0 0.0
    %4337 = vmatpush1.msra.mxu0 %v4327
    %4338 = vmatprep.subr.mxu0 0.0
    %4339 = vmatpush1.msra.mxu0 %v4328
    %4340 = vmatprep.subr.mxu0 0.0
    %4341 = vmatpush1.msra.mxu0 0.0
    %4342 = vmatprep.subr.mxu0 0.0
    %4343 = vmatpush1.msra.mxu0 0.0
    %4344 = vmatprep.subr.mxu0 0.0
    %4345 = vmatpush1.msra.mxu0 0.0
    %4346 = vmatprep.subr.mxu0 0.0
    %4347 = vmatpush1.msra.mxu0 0.0
    %4348 = vmatprep.subr.mxu0 0.0
    %4349 = vmatpush1.msra.mxu0 0.0
    %4350 = vmatprep.subr.mxu0 0.0
    %4351 = vmatpush1.msra.mxu0 0.0
    %4352 = vmatprep.subr.mxu0 0.0
    %4353 = vmatpush1.msra.mxu0 0.0
    %4354 = vmatprep.subr.mxu0 0.0
    %4355 = vmatpush1.msra.mxu0 0.0
    %4356 = vmatprep.subr.mxu0 0.0
    %4357 = vmatpush1.msra.mxu0 0.0
    %4358 = vmatprep.subr.mxu0 0.0
    %4359 = vmatpush1.msra.mxu0 0.0
    %4360 = vmatprep.subr.mxu0 0.0
    %4361 = vmatpush1.msra.mxu0 0.0
    %4362 = vmatprep.subr.mxu0 0.0
    %4363 = vmatpush1.msra.mxu0 0.0
    %4364 = vmatprep.subr.mxu0 0.0
    %4365 = vmatpush1.msra.mxu0 0.0
    %4366 = vmatprep.subr.mxu0 0.0
    %4367 = vmatpush1.msra.mxu0 0.0
    %4368 = vmatprep.subr.mxu0 0.0
    %4369 = vmatpush1.msra.mxu0 0.0
    %4370 = vmatprep.subr.mxu0 0.0
    %4371 = vmatpush1.msra.mxu0 0.0
    %4372 = vmatprep.subr.mxu0 0.0
    %4373 = vmatpush1.msra.mxu0 0.0
    %4374 = vmatprep.subr.mxu0 0.0
    %4375 = vmatpush1.msra.mxu0 0.0
    %4376 = vmatprep.subr.mxu0 0.0
    %4377 = vmatpush1.msra.mxu0 0.0
    %4378 = vmatprep.subr.mxu0 0.0
    %4379 = vmatpush1.msra.mxu0 0.0
    %4380 = vmatprep.subr.mxu0 0.0
    %4381 = vmatpush1.msra.mxu0 0.0
    %4382 = vmatprep.subr.mxu0 0.0
    %4383 = vmatpush1.msra.mxu0 0.0
    %4384 = vmatprep.subr.mxu0 0.0
    %4385 = vmatpush1.msra.mxu0 0.0
    %4386 = vmatprep.subr.mxu0 0.0
    %4387 = vmatpush1.msra.mxu0 0.0
    %4388 = vmatprep.subr.mxu0 0.0
    %4389 = vmatpush1.msra.mxu0 0.0
    %4390 = vmatprep.subr.mxu0 0.0
    %4391 = vmatpush1.msra.mxu0 0.0
    %4392 = vmatprep.subr.mxu0 0.0
    %4393 = vmatpush1.msra.mxu0 0.0
    %4394 = vmatprep.subr.mxu0 0.0
    %4395 = vmatpush1.msra.mxu0 0.0
    %4396 = vmatprep.mubr.f32.mxu0 0.0
    %4397 = vmatmul.mubr.f32.gmra.mrb[0].mxu0 %v4330
    %v4398 = vpop.f32.mrb[0].mxu0
    %v4399 = vadd.f32 0.0, %v4398
    %v4400 = vpop.f32.mrb[0].mxu0
    %4401 = vdwg.mxu0
    %v4402 = vadd.f32 %v4248, %v4399
    %s4403 = scalar_lea.vmem %s6, 48
    %v4404 = vld [vmem:[%s4403] sm:$0xff]
    %v4406 = vsel %vm3481, %v4404, 0
    %4408 = vmatprep.subr.mxu0 0.0
    %4409 = vmatpush1.msra.mxu0 %v3468
    %4410 = vmatprep.subr.mxu0 0.0
    %4411 = vmatpush1.msra.mxu0 %v3469
    %4412 = vmatprep.subr.mxu0 0.0
    %4413 = vmatpush1.msra.mxu0 %v3470
    %4414 = vmatprep.subr.mxu0 0.0
    %4415 = vmatpush1.msra.mxu0 %v3471
    %4416 = vmatprep.subr.mxu0 0.0
    %4417 = vmatpush1.msra.mxu0 0.0
    %4418 = vmatprep.subr.mxu0 0.0
    %4419 = vmatpush1.msra.mxu0 0.0
    %4420 = vmatprep.subr.mxu0 0.0
    %4421 = vmatpush1.msra.mxu0 0.0
    %4422 = vmatprep.subr.mxu0 0.0
    %4423 = vmatpush1.msra.mxu0 0.0
    %4424 = vmatprep.subr.mxu0 0.0
    %4425 = vmatpush1.msra.mxu0 0.0
    %4426 = vmatprep.subr.mxu0 0.0
    %4427 = vmatpush1.msra.mxu0 0.0
    %4428 = vmatprep.subr.mxu0 0.0
    %4429 = vmatpush1.msra.mxu0 0.0
    %4430 = vmatprep.subr.mxu0 0.0
    %4431 = vmatpush1.msra.mxu0 0.0
    %4432 = vmatprep.subr.mxu0 0.0
    %4433 = vmatpush1.msra.mxu0 0.0
    %4434 = vmatprep.subr.mxu0 0.0
    %4435 = vmatpush1.msra.mxu0 0.0
    %4436 = vmatprep.subr.mxu0 0.0
    %4437 = vmatpush1.msra.mxu0 0.0
    %4438 = vmatprep.subr.mxu0 0.0
    %4439 = vmatpush1.msra.mxu0 0.0
    %4440 = vmatprep.subr.mxu0 0.0
    %4441 = vmatpush1.msra.mxu0 0.0
    %4442 = vmatprep.subr.mxu0 0.0
    %4443 = vmatpush1.msra.mxu0 0.0
    %4444 = vmatprep.subr.mxu0 0.0
    %4445 = vmatpush1.msra.mxu0 0.0
    %4446 = vmatprep.subr.mxu0 0.0
    %4447 = vmatpush1.msra.mxu0 0.0
    %4448 = vmatprep.subr.mxu0 0.0
    %4449 = vmatpush1.msra.mxu0 0.0
    %4450 = vmatprep.subr.mxu0 0.0
    %4451 = vmatpush1.msra.mxu0 0.0
    %4452 = vmatprep.subr.mxu0 0.0
    %4453 = vmatpush1.msra.mxu0 0.0
    %4454 = vmatprep.subr.mxu0 0.0
    %4455 = vmatpush1.msra.mxu0 0.0
    %4456 = vmatprep.subr.mxu0 0.0
    %4457 = vmatpush1.msra.mxu0 0.0
    %4458 = vmatprep.subr.mxu0 0.0
    %4459 = vmatpush1.msra.mxu0 0.0
    %4460 = vmatprep.subr.mxu0 0.0
    %4461 = vmatpush1.msra.mxu0 0.0
    %4462 = vmatprep.subr.mxu0 0.0
    %4463 = vmatpush1.msra.mxu0 0.0
    %4464 = vmatprep.subr.mxu0 0.0
    %4465 = vmatpush1.msra.mxu0 0.0
    %4466 = vmatprep.subr.mxu0 0.0
    %4467 = vmatpush1.msra.mxu0 0.0
    %4468 = vmatprep.subr.mxu0 0.0
    %4469 = vmatpush1.msra.mxu0 0.0
    %4470 = vmatprep.subr.mxu0 0.0
    %4471 = vmatpush1.msra.mxu0 0.0
    %4472 = vmatprep.mubr.f32.mxu0 0.0
    %4473 = vmatmul.mubr.f32.gmra.mrb[0].mxu0 %v4406
    %v4474 = vpop.f32.mrb[0].mxu0
    %v4475 = vadd.f32 0.0, %v4474
    %v4476 = vpop.f32.mrb[0].mxu0
    %4477 = vdwg.mxu0
    %s4478 = scalar_lea.vmem [#allocation5], 192
    %v4479 = vld [vmem:[%s4478] sm:$0xff]
    %v4480 = vld [vmem:[%s4478 + $0x8] sm:$0xff]
    %v4481 = vld [vmem:[%s4478 + $0x10] sm:$0xff]
    %v4482 = vld [vmem:[%s4478 + $0x18] sm:$0xff]
    %v4484 = vsel %vm3481, %v4475, 0
    %4486 = vmatprep.subr.mxu0 0.0
    %4487 = vmatpush1.msra.mxu0 %v4479
    %4488 = vmatprep.subr.mxu0 0.0
    %4489 = vmatpush1.msra.mxu0 %v4480
    %4490 = vmatprep.subr.mxu0 0.0
    %4491 = vmatpush1.msra.mxu0 %v4481
    %4492 = vmatprep.subr.mxu0 0.0
    %4493 = vmatpush1.msra.mxu0 %v4482
    %4494 = vmatprep.subr.mxu0 0.0
    %4495 = vmatpush1.msra.mxu0 0.0
    %4496 = vmatprep.subr.mxu0 0.0
    %4497 = vmatpush1.msra.mxu0 0.0
    %4498 = vmatprep.subr.mxu0 0.0
    %4499 = vmatpush1.msra.mxu0 0.0
    %4500 = vmatprep.subr.mxu0 0.0
    %4501 = vmatpush1.msra.mxu0 0.0
    %4502 = vmatprep.subr.mxu0 0.0
    %4503 = vmatpush1.msra.mxu0 0.0
    %4504 = vmatprep.subr.mxu0 0.0
    %4505 = vmatpush1.msra.mxu0 0.0
    %4506 = vmatprep.subr.mxu0 0.0
    %4507 = vmatpush1.msra.mxu0 0.0
    %4508 = vmatprep.subr.mxu0 0.0
    %4509 = vmatpush1.msra.mxu0 0.0
    %4510 = vmatprep.subr.mxu0 0.0
    %4511 = vmatpush1.msra.mxu0 0.0
    %4512 = vmatprep.subr.mxu0 0.0
    %4513 = vmatpush1.msra.mxu0 0.0
    %4514 = vmatprep.subr.mxu0 0.0
    %4515 = vmatpush1.msra.mxu0 0.0
    %4516 = vmatprep.subr.mxu0 0.0
    %4517 = vmatpush1.msra.mxu0 0.0
    %4518 = vmatprep.subr.mxu0 0.0
    %4519 = vmatpush1.msra.mxu0 0.0
    %4520 = vmatprep.subr.mxu0 0.0
    %4521 = vmatpush1.msra.mxu0 0.0
    %4522 = vmatprep.subr.mxu0 0.0
    %4523 = vmatpush1.msra.mxu0 0.0
    %4524 = vmatprep.subr.mxu0 0.0
    %4525 = vmatpush1.msra.mxu0 0.0
    %4526 = vmatprep.subr.mxu0 0.0
    %4527 = vmatpush1.msra.mxu0 0.0
    %4528 = vmatprep.subr.mxu0 0.0
    %4529 = vmatpush1.msra.mxu0 0.0
    %4530 = vmatprep.subr.mxu0 0.0
    %4531 = vmatpush1.msra.mxu0 0.0
    %4532 = vmatprep.subr.mxu0 0.0
    %4533 = vmatpush1.msra.mxu0 0.0
    %4534 = vmatprep.subr.mxu0 0.0
    %4535 = vmatpush1.msra.mxu0 0.0
    %4536 = vmatprep.subr.mxu0 0.0
    %4537 = vmatpush1.msra.mxu0 0.0
    %4538 = vmatprep.subr.mxu0 0.0
    %4539 = vmatpush1.msra.mxu0 0.0
    %4540 = vmatprep.subr.mxu0 0.0
    %4541 = vmatpush1.msra.mxu0 0.0
    %4542 = vmatprep.subr.mxu0 0.0
    %4543 = vmatpush1.msra.mxu0 0.0
    %4544 = vmatprep.subr.mxu0 0.0
    %4545 = vmatpush1.msra.mxu0 0.0
    %4546 = vmatprep.subr.mxu0 0.0
    %4547 = vmatpush1.msra.mxu0 0.0
    %4548 = vmatprep.subr.mxu0 0.0
    %4549 = vmatpush1.msra.mxu0 0.0
    %4550 = vmatprep.mubr.f32.mxu0 0.0
    %4551 = vmatmul.mubr.f32.gmra.mrb[0].mxu0 %v4484
    %v4552 = vpop.f32.mrb[0].mxu0
    %v4553 = vadd.f32 0.0, %v4552
    %v4554 = vpop.f32.mrb[0].mxu0
    %4555 = vdwg.mxu0
    %v4556 = vadd.f32 %v4402, %v4553
    %s4557 = scalar_lea.vmem %s6, 56
    %v4558 = vld [vmem:[%s4557] sm:$0xff]
    %v4560 = vsel %vm3481, %v4558, 0
    %4562 = vmatprep.subr.mxu0 0.0
    %4563 = vmatpush1.msra.mxu0 %v3468
    %4564 = vmatprep.subr.mxu0 0.0
    %4565 = vmatpush1.msra.mxu0 %v3469
    %4566 = vmatprep.subr.mxu0 0.0
    %4567 = vmatpush1.msra.mxu0 %v3470
    %4568 = vmatprep.subr.mxu0 0.0
    %4569 = vmatpush1.msra.mxu0 %v3471
    %4570 = vmatprep.subr.mxu0 0.0
    %4571 = vmatpush1.msra.mxu0 0.0
    %4572 = vmatprep.subr.mxu0 0.0
    %4573 = vmatpush1.msra.mxu0 0.0
    %4574 = vmatprep.subr.mxu0 0.0
    %4575 = vmatpush1.msra.mxu0 0.0
    %4576 = vmatprep.subr.mxu0 0.0
    %4577 = vmatpush1.msra.mxu0 0.0
    %4578 = vmatprep.subr.mxu0 0.0
    %4579 = vmatpush1.msra.mxu0 0.0
    %4580 = vmatprep.subr.mxu0 0.0
    %4581 = vmatpush1.msra.mxu0 0.0
    %4582 = vmatprep.subr.mxu0 0.0
    %4583 = vmatpush1.msra.mxu0 0.0
    %4584 = vmatprep.subr.mxu0 0.0
    %4585 = vmatpush1.msra.mxu0 0.0
    %4586 = vmatprep.subr.mxu0 0.0
    %4587 = vmatpush1.msra.mxu0 0.0
    %4588 = vmatprep.subr.mxu0 0.0
    %4589 = vmatpush1.msra.mxu0 0.0
    %4590 = vmatprep.subr.mxu0 0.0
    %4591 = vmatpush1.msra.mxu0 0.0
    %4592 = vmatprep.subr.mxu0 0.0
    %4593 = vmatpush1.msra.mxu0 0.0
    %4594 = vmatprep.subr.mxu0 0.0
    %4595 = vmatpush1.msra.mxu0 0.0
    %4596 = vmatprep.subr.mxu0 0.0
    %4597 = vmatpush1.msra.mxu0 0.0
    %4598 = vmatprep.subr.mxu0 0.0
    %4599 = vmatpush1.msra.mxu0 0.0
    %4600 = vmatprep.subr.mxu0 0.0
    %4601 = vmatpush1.msra.mxu0 0.0
    %4602 = vmatprep.subr.mxu0 0.0
    %4603 = vmatpush1.msra.mxu0 0.0
    %4604 = vmatprep.subr.mxu0 0.0
    %4605 = vmatpush1.msra.mxu0 0.0
    %4606 = vmatprep.subr.mxu0 0.0
    %4607 = vmatpush1.msra.mxu0 0.0
    %4608 = vmatprep.subr.mxu0 0.0
    %4609 = vmatpush1.msra.mxu0 0.0
    %4610 = vmatprep.subr.mxu0 0.0
    %4611 = vmatpush1.msra.mxu0 0.0
    %4612 = vmatprep.subr.mxu0 0.0
    %4613 = vmatpush1.msra.mxu0 0.0
    %4614 = vmatprep.subr.mxu0 0.0
    %4615 = vmatpush1.msra.mxu0 0.0
    %4616 = vmatprep.subr.mxu0 0.0
    %4617 = vmatpush1.msra.mxu0 0.0
    %4618 = vmatprep.subr.mxu0 0.0
    %4619 = vmatpush1.msra.mxu0 0.0
    %4620 = vmatprep.subr.mxu0 0.0
    %4621 = vmatpush1.msra.mxu0 0.0
    %4622 = vmatprep.subr.mxu0 0.0
    %4623 = vmatpush1.msra.mxu0 0.0
    %4624 = vmatprep.subr.mxu0 0.0
    %4625 = vmatpush1.msra.mxu0 0.0
    %4626 = vmatprep.mubr.f32.mxu0 0.0
    %4627 = vmatmul.mubr.f32.gmra.mrb[0].mxu0 %v4560
    %v4628 = vpop.f32.mrb[0].mxu0
    %v4629 = vadd.f32 0.0, %v4628
    %v4630 = vpop.f32.mrb[0].mxu0
    %4631 = vdwg.mxu0
    %s4632 = scalar_lea.vmem [#allocation5], 224
    %v4633 = vld [vmem:[%s4632] sm:$0xff]
    %v4634 = vld [vmem:[%s4632 + $0x8] sm:$0xff]
    %v4635 = vld [vmem:[%s4632 + $0x10] sm:$0xff]
    %v4636 = vld [vmem:[%s4632 + $0x18] sm:$0xff]
    %v4638 = vsel %vm3481, %v4629, 0
    %4640 = vmatprep.subr.mxu0 0.0
    %4641 = vmatpush1.msra.mxu0 %v4633
    %4642 = vmatprep.subr.mxu0 0.0
    %4643 = vmatpush1.msra.mxu0 %v4634
    %4644 = vmatprep.subr.mxu0 0.0
    %4645 = vmatpush1.msra.mxu0 %v4635
    %4646 = vmatprep.subr.mxu0 0.0
    %4647 = vmatpush1.msra.mxu0 %v4636
    %4648 = vmatprep.subr.mxu0 0.0
    %4649 = vmatpush1.msra.mxu0 0.0
    %4650 = vmatprep.subr.mxu0 0.0
    %4651 = vmatpush1.msra.mxu0 0.0
    %4652 = vmatprep.subr.mxu0 0.0
    %4653 = vmatpush1.msra.mxu0 0.0
    %4654 = vmatprep.subr.mxu0 0.0
    %4655 = vmatpush1.msra.mxu0 0.0
    %4656 = vmatprep.subr.mxu0 0.0
    %4657 = vmatpush1.msra.mxu0 0.0
    %4658 = vmatprep.subr.mxu0 0.0
    %4659 = vmatpush1.msra.mxu0 0.0
    %4660 = vmatprep.subr.mxu0 0.0
    %4661 = vmatpush1.msra.mxu0 0.0
    %4662 = vmatprep.subr.mxu0 0.0
    %4663 = vmatpush1.msra.mxu0 0.0
    %4664 = vmatprep.subr.mxu0 0.0
    %4665 = vmatpush1.msra.mxu0 0.0
    %4666 = vmatprep.subr.mxu0 0.0
    %4667 = vmatpush1.msra.mxu0 0.0
    %4668 = vmatprep.subr.mxu0 0.0
    %4669 = vmatpush1.msra.mxu0 0.0
    %4670 = vmatprep.subr.mxu0 0.0
    %4671 = vmatpush1.msra.mxu0 0.0
    %4672 = vmatprep.subr.mxu0 0.0
    %4673 = vmatpush1.msra.mxu0 0.0
    %4674 = vmatprep.subr.mxu0 0.0
    %4675 = vmatpush1.msra.mxu0 0.0
    %4676 = vmatprep.subr.mxu0 0.0
    %4677 = vmatpush1.msra.mxu0 0.0
    %4678 = vmatprep.subr.mxu0 0.0
    %4679 = vmatpush1.msra.mxu0 0.0
    %4680 = vmatprep.subr.mxu0 0.0
    %4681 = vmatpush1.msra.mxu0 0.0
    %4682 = vmatprep.subr.mxu0 0.0
    %4683 = vmatpush1.msra.mxu0 0.0
    %4684 = vmatprep.subr.mxu0 0.0
    %4685 = vmatpush1.msra.mxu0 0.0
    %4686 = vmatprep.subr.mxu0 0.0
    %4687 = vmatpush1.msra.mxu0 0.0
    %4688 = vmatprep.subr.mxu0 0.0
    %4689 = vmatpush1.msra.mxu0 0.0
    %4690 = vmatprep.subr.mxu0 0.0
    %4691 = vmatpush1.msra.mxu0 0.0
    %4692 = vmatprep.subr.mxu0 0.0
    %4693 = vmatpush1.msra.mxu0 0.0
    %4694 = vmatprep.subr.mxu0 0.0
    %4695 = vmatpush1.msra.mxu0 0.0
    %4696 = vmatprep.subr.mxu0 0.0
    %4697 = vmatpush1.msra.mxu0 0.0
    %4698 = vmatprep.subr.mxu0 0.0
    %4699 = vmatpush1.msra.mxu0 0.0
    %4700 = vmatprep.subr.mxu0 0.0
    %4701 = vmatpush1.msra.mxu0 0.0
    %4702 = vmatprep.subr.mxu0 0.0
    %4703 = vmatpush1.msra.mxu0 0.0
    %4704 = vmatprep.mubr.f32.mxu0 0.0
    %4705 = vmatmul.mubr.f32.gmra.mrb[0].mxu0 %v4638
    %v4706 = vpop.f32.mrb[0].mxu0
    %v4707 = vadd.f32 0.0, %v4706
    %v4708 = vpop.f32.mrb[0].mxu0
    %4709 = vdwg.mxu0
    %v4710 = vadd.f32 %v4556, %v4707
    %s4711 = scalar_lea.vmem %s6, 64
    %v4712 = vld [vmem:[%s4711] sm:$0xff]
    %v4714 = vsel %vm3481, %v4712, 0
    %4716 = vmatprep.subr.mxu0 0.0
    %4717 = vmatpush1.msra.mxu0 %v3468
    %4718 = vmatprep.subr.mxu0 0.0
    %4719 = vmatpush1.msra.mxu0 %v3469
    %4720 = vmatprep.subr.mxu0 0.0
    %4721 = vmatpush1.msra.mxu0 %v3470
    %4722 = vmatprep.subr.mxu0 0.0
    %4723 = vmatpush1.msra.mxu0 %v3471
    %4724 = vmatprep.subr.mxu0 0.0
    %4725 = vmatpush1.msra.mxu0 0.0
    %4726 = vmatprep.subr.mxu0 0.0
    %4727 = vmatpush1.msra.mxu0 0.0
    %4728 = vmatprep.subr.mxu0 0.0
    %4729 = vmatpush1.msra.mxu0 0.0
    %4730 = vmatprep.subr.mxu0 0.0
    %4731 = vmatpush1.msra.mxu0 0.0
    %4732 = vmatprep.subr.mxu0 0.0
    %4733 = vmatpush1.msra.mxu0 0.0
    %4734 = vmatprep.subr.mxu0 0.0
    %4735 = vmatpush1.msra.mxu0 0.0
    %4736 = vmatprep.subr.mxu0 0.0
    %4737 = vmatpush1.msra.mxu0 0.0
    %4738 = vmatprep.subr.mxu0 0.0
    %4739 = vmatpush1.msra.mxu0 0.0
    %4740 = vmatprep.subr.mxu0 0.0
    %4741 = vmatpush1.msra.mxu0 0.0
    %4742 = vmatprep.subr.mxu0 0.0
    %4743 = vmatpush1.msra.mxu0 0.0
    %4744 = vmatprep.subr.mxu0 0.0
    %4745 = vmatpush1.msra.mxu0 0.0
    %4746 = vmatprep.subr.mxu0 0.0
    %4747 = vmatpush1.msra.mxu0 0.0
    %4748 = vmatprep.subr.mxu0 0.0
    %4749 = vmatpush1.msra.mxu0 0.0
    %4750 = vmatprep.subr.mxu0 0.0
    %4751 = vmatpush1.msra.mxu0 0.0
    %4752 = vmatprep.subr.mxu0 0.0
    %4753 = vmatpush1.msra.mxu0 0.0
    %4754 = vmatprep.subr.mxu0 0.0
    %4755 = vmatpush1.msra.mxu0 0.0
    %4756 = vmatprep.subr.mxu0 0.0
    %4757 = vmatpush1.msra.mxu0 0.0
    %4758 = vmatprep.subr.mxu0 0.0
    %4759 = vmatpush1.msra.mxu0 0.0
    %4760 = vmatprep.subr.mxu0 0.0
    %4761 = vmatpush1.msra.mxu0 0.0
    %4762 = vmatprep.subr.mxu0 0.0
    %4763 = vmatpush1.msra.mxu0 0.0
    %4764 = vmatprep.subr.mxu0 0.0
    %4765 = vmatpush1.msra.mxu0 0.0
    %4766 = vmatprep.subr.mxu0 0.0
    %4767 = vmatpush1.msra.mxu0 0.0
    %4768 = vmatprep.subr.mxu0 0.0
    %4769 = vmatpush1.msra.mxu0 0.0
    %4770 = vmatprep.subr.mxu0 0.0
    %4771 = vmatpush1.msra.mxu0 0.0
    %4772 = vmatprep.subr.mxu0 0.0
    %4773 = vmatpush1.msra.mxu0 0.0
    %4774 = vmatprep.subr.mxu0 0.0
    %4775 = vmatpush1.msra.mxu0 0.0
    %4776 = vmatprep.subr.mxu0 0.0
    %4777 = vmatpush1.msra.mxu0 0.0
    %4778 = vmatprep.subr.mxu0 0.0
    %4779 = vmatpush1.msra.mxu0 0.0
    %4780 = vmatprep.mubr.f32.mxu0 0.0
    %4781 = vmatmul.mubr.f32.gmra.mrb[0].mxu0 %v4714
    %v4782 = vpop.f32.mrb[0].mxu0
    %v4783 = vadd.f32 0.0, %v4782
    %v4784 = vpop.f32.mrb[0].mxu0
    %4785 = vdwg.mxu0
    %s4786 = scalar_lea.vmem [#allocation5], 256
    %v4787 = vld [vmem:[%s4786] sm:$0xff]
    %v4788 = vld [vmem:[%s4786 + $0x8] sm:$0xff]
    %v4789 = vld [vmem:[%s4786 + $0x10] sm:$0xff]
    %v4790 = vld [vmem:[%s4786 + $0x18] sm:$0xff]
    %v4792 = vsel %vm3481, %v4783, 0
    %4794 = vmatprep.subr.mxu0 0.0
    %4795 = vmatpush1.msra.mxu0 %v4787
    %4796 = vmatprep.subr.mxu0 0.0
    %4797 = vmatpush1.msra.mxu0 %v4788
    %4798 = vmatprep.subr.mxu0 0.0
    %4799 = vmatpush1.msra.mxu0 %v4789
    %4800 = vmatprep.subr.mxu0 0.0
    %4801 = vmatpush1.msra.mxu0 %v4790
    %4802 = vmatprep.subr.mxu0 0.0
    %4803 = vmatpush1.msra.mxu0 0.0
    %4804 = vmatprep.subr.mxu0 0.0
    %4805 = vmatpush1.msra.mxu0 0.0
    %4806 = vmatprep.subr.mxu0 0.0
    %4807 = vmatpush1.msra.mxu0 0.0
    %4808 = vmatprep.subr.mxu0 0.0
    %4809 = vmatpush1.msra.mxu0 0.0
    %4810 = vmatprep.subr.mxu0 0.0
    %4811 = vmatpush1.msra.mxu0 0.0
    %4812 = vmatprep.subr.mxu0 0.0
    %4813 = vmatpush1.msra.mxu0 0.0
    %4814 = vmatprep.subr.mxu0 0.0
    %4815 = vmatpush1.msra.mxu0 0.0
    %4816 = vmatprep.subr.mxu0 0.0
    %4817 = vmatpush1.msra.mxu0 0.0
    %4818 = vmatprep.subr.mxu0 0.0
    %4819 = vmatpush1.msra.mxu0 0.0
    %4820 = vmatprep.subr.mxu0 0.0
    %4821 = vmatpush1.msra.mxu0 0.0
    %4822 = vmatprep.subr.mxu0 0.0
    %4823 = vmatpush1.msra.mxu0 0.0
    %4824 = vmatprep.subr.mxu0 0.0
    %4825 = vmatpush1.msra.mxu0 0.0
    %4826 = vmatprep.subr.mxu0 0.0
    %4827 = vmatpush1.msra.mxu0 0.0
    %4828 = vmatprep.subr.mxu0 0.0
    %4829 = vmatpush1.msra.mxu0 0.0
    %4830 = vmatprep.subr.mxu0 0.0
    %4831 = vmatpush1.msra.mxu0 0.0
    %4832 = vmatprep.subr.mxu0 0.0
    %4833 = vmatpush1.msra.mxu0 0.0
    %4834 = vmatprep.subr.mxu0 0.0
    %4835 = vmatpush1.msra.mxu0 0.0
    %4836 = vmatprep.subr.mxu0 0.0
    %4837 = vmatpush1.msra.mxu0 0.0
    %4838 = vmatprep.subr.mxu0 0.0
    %4839 = vmatpush1.msra.mxu0 0.0
    %4840 = vmatprep.subr.mxu0 0.0
    %4841 = vmatpush1.msra.mxu0 0.0
    %4842 = vmatprep.subr.mxu0 0.0
    %4843 = vmatpush1.msra.mxu0 0.0
    %4844 = vmatprep.subr.mxu0 0.0
    %4845 = vmatpush1.msra.mxu0 0.0
    %4846 = vmatprep.subr.mxu0 0.0
    %4847 = vmatpush1.msra.mxu0 0.0
    %4848 = vmatprep.subr.mxu0 0.0
    %4849 = vmatpush1.msra.mxu0 0.0
    %4850 = vmatprep.subr.mxu0 0.0
    %4851 = vmatpush1.msra.mxu0 0.0
    %4852 = vmatprep.subr.mxu0 0.0
    %4853 = vmatpush1.msra.mxu0 0.0
    %4854 = vmatprep.subr.mxu0 0.0
    %4855 = vmatpush1.msra.mxu0 0.0
    %4856 = vmatprep.subr.mxu0 0.0
    %4857 = vmatpush1.msra.mxu0 0.0
    %4858 = vmatprep.mubr.f32.mxu0 0.0
    %4859 = vmatmul.mubr.f32.gmra.mrb[0].mxu0 %v4792
    %v4860 = vpop.f32.mrb[0].mxu0
    %v4861 = vadd.f32 0.0, %v4860
    %v4862 = vpop.f32.mrb[0].mxu0
    %4863 = vdwg.mxu0
    %v4864 = vadd.f32 %v4710, %v4861
    %s4865 = scalar_lea.vmem %s6, 72
    %v4866 = vld [vmem:[%s4865] sm:$0xff]
    %v4868 = vsel %vm3481, %v4866, 0
    %4870 = vmatprep.subr.mxu0 0.0
    %4871 = vmatpush1.msra.mxu0 %v3468
    %4872 = vmatprep.subr.mxu0 0.0
    %4873 = vmatpush1.msra.mxu0 %v3469
    %4874 = vmatprep.subr.mxu0 0.0
    %4875 = vmatpush1.msra.mxu0 %v3470
    %4876 = vmatprep.subr.mxu0 0.0
    %4877 = vmatpush1.msra.mxu0 %v3471
    %4878 = vmatprep.subr.mxu0 0.0
    %4879 = vmatpush1.msra.mxu0 0.0
    %4880 = vmatprep.subr.mxu0 0.0
    %4881 = vmatpush1.msra.mxu0 0.0
    %4882 = vmatprep.subr.mxu0 0.0
    %4883 = vmatpush1.msra.mxu0 0.0
    %4884 = vmatprep.subr.mxu0 0.0
    %4885 = vmatpush1.msra.mxu0 0.0
    %4886 = vmatprep.subr.mxu0 0.0
    %4887 = vmatpush1.msra.mxu0 0.0
    %4888 = vmatprep.subr.mxu0 0.0
    %4889 = vmatpush1.msra.mxu0 0.0
    %4890 = vmatprep.subr.mxu0 0.0
    %4891 = vmatpush1.msra.mxu0 0.0
    %4892 = vmatprep.subr.mxu0 0.0
    %4893 = vmatpush1.msra.mxu0 0.0
    %4894 = vmatprep.subr.mxu0 0.0
    %4895 = vmatpush1.msra.mxu0 0.0
    %4896 = vmatprep.subr.mxu0 0.0
    %4897 = vmatpush1.msra.mxu0 0.0
    %4898 = vmatprep.subr.mxu0 0.0
    %4899 = vmatpush1.msra.mxu0 0.0
    %4900 = vmatprep.subr.mxu0 0.0
    %4901 = vmatpush1.msra.mxu0 0.0
    %4902 = vmatprep.subr.mxu0 0.0
    %4903 = vmatpush1.msra.mxu0 0.0
    %4904 = vmatprep.subr.mxu0 0.0
    %4905 = vmatpush1.msra.mxu0 0.0
    %4906 = vmatprep.subr.mxu0 0.0
    %4907 = vmatpush1.msra.mxu0 0.0
    %4908 = vmatprep.subr.mxu0 0.0
    %4909 = vmatpush1.msra.mxu0 0.0
    %4910 = vmatprep.subr.mxu0 0.0
    %4911 = vmatpush1.msra.mxu0 0.0
    %4912 = vmatprep.subr.mxu0 0.0
    %4913 = vmatpush1.msra.mxu0 0.0
    %4914 = vmatprep.subr.mxu0 0.0
    %4915 = vmatpush1.msra.mxu0 0.0
    %4916 = vmatprep.subr.mxu0 0.0
    %4917 = vmatpush1.msra.mxu0 0.0
    %4918 = vmatprep.subr.mxu0 0.0
    %4919 = vmatpush1.msra.mxu0 0.0
    %4920 = vmatprep.subr.mxu0 0.0
    %4921 = vmatpush1.msra.mxu0 0.0
    %4922 = vmatprep.subr.mxu0 0.0
    %4923 = vmatpush1.msra.mxu0 0.0
    %4924 = vmatprep.subr.mxu0 0.0
    %4925 = vmatpush1.msra.mxu0 0.0
    %4926 = vmatprep.subr.mxu0 0.0
    %4927 = vmatpush1.msra.mxu0 0.0
    %4928 = vmatprep.subr.mxu0 0.0
    %4929 = vmatpush1.msra.mxu0 0.0
    %4930 = vmatprep.subr.mxu0 0.0
    %4931 = vmatpush1.msra.mxu0 0.0
    %4932 = vmatprep.subr.mxu0 0.0
    %4933 = vmatpush1.msra.mxu0 0.0
    %4934 = vmatprep.mubr.f32.mxu0 0.0
    %4935 = vmatmul.mubr.f32.gmra.mrb[0].mxu0 %v4868
    %v4936 = vpop.f32.mrb[0].mxu0
    %v4937 = vadd.f32 0.0, %v4936
    %v4938 = vpop.f32.mrb[0].mxu0
    %4939 = vdwg.mxu0
    %s4940 = scalar_lea.vmem [#allocation5], 288
    %v4941 = vld [vmem:[%s4940] sm:$0xff]
    %v4942 = vld [vmem:[%s4940 + $0x8] sm:$0xff]
    %v4943 = vld [vmem:[%s4940 + $0x10] sm:$0xff]
    %v4944 = vld [vmem:[%s4940 + $0x18] sm:$0xff]
    %v4946 = vsel %vm3481, %v4937, 0
    %4948 = vmatprep.subr.mxu0 0.0
    %4949 = vmatpush1.msra.mxu0 %v4941
    %4950 = vmatprep.subr.mxu0 0.0
    %4951 = vmatpush1.msra.mxu0 %v4942
    %4952 = vmatprep.subr.mxu0 0.0
    %4953 = vmatpush1.msra.mxu0 %v4943
    %4954 = vmatprep.subr.mxu0 0.0
    %4955 = vmatpush1.msra.mxu0 %v4944
    %4956 = vmatprep.subr.mxu0 0.0
    %4957 = vmatpush1.msra.mxu0 0.0
    %4958 = vmatprep.subr.mxu0 0.0
    %4959 = vmatpush1.msra.mxu0 0.0
    %4960 = vmatprep.subr.mxu0 0.0
    %4961 = vmatpush1.msra.mxu0 0.0
    %4962 = vmatprep.subr.mxu0 0.0
    %4963 = vmatpush1.msra.mxu0 0.0
    %4964 = vmatprep.subr.mxu0 0.0
    %4965 = vmatpush1.msra.mxu0 0.0
    %4966 = vmatprep.subr.mxu0 0.0
    %4967 = vmatpush1.msra.mxu0 0.0
    %4968 = vmatprep.subr.mxu0 0.0
    %4969 = vmatpush1.msra.mxu0 0.0
    %4970 = vmatprep.subr.mxu0 0.0
    %4971 = vmatpush1.msra.mxu0 0.0
    %4972 = vmatprep.subr.mxu0 0.0
    %4973 = vmatpush1.msra.mxu0 0.0
    %4974 = vmatprep.subr.mxu0 0.0
    %4975 = vmatpush1.msra.mxu0 0.0
    %4976 = vmatprep.subr.mxu0 0.0
    %4977 = vmatpush1.msra.mxu0 0.0
    %4978 = vmatprep.subr.mxu0 0.0
    %4979 = vmatpush1.msra.mxu0 0.0
    %4980 = vmatprep.subr.mxu0 0.0
    %4981 = vmatpush1.msra.mxu0 0.0
    %4982 = vmatprep.subr.mxu0 0.0
    %4983 = vmatpush1.msra.mxu0 0.0
    %4984 = vmatprep.subr.mxu0 0.0
    %4985 = vmatpush1.msra.mxu0 0.0
    %4986 = vmatprep.subr.mxu0 0.0
    %4987 = vmatpush1.msra.mxu0 0.0
    %4988 = vmatprep.subr.mxu0 0.0
    %4989 = vmatpush1.msra.mxu0 0.0
    %4990 = vmatprep.subr.mxu0 0.0
    %4991 = vmatpush1.msra.mxu0 0.0
    %4992 = vmatprep.subr.mxu0 0.0
    %4993 = vmatpush1.msra.mxu0 0.0
    %4994 = vmatprep.subr.mxu0 0.0
    %4995 = vmatpush1.msra.mxu0 0.0
    %4996 = vmatprep.subr.mxu0 0.0
    %4997 = vmatpush1.msra.mxu0 0.0
    %4998 = vmatprep.subr.mxu0 0.0
    %4999 = vmatpush1.msra.mxu0 0.0
    %5000 = vmatprep.subr.mxu0 0.0
    %5001 = vmatpush1.msra.mxu0 0.0
    %5002 = vmatprep.subr.mxu0 0.0
    %5003 = vmatpush1.msra.mxu0 0.0
    %5004 = vmatprep.subr.mxu0 0.0
    %5005 = vmatpush1.msra.mxu0 0.0
    %5006 = vmatprep.subr.mxu0 0.0
    %5007 = vmatpush1.msra.mxu0 0.0
    %5008 = vmatprep.subr.mxu0 0.0
    %5009 = vmatpush1.msra.mxu0 0.0
    %5010 = vmatprep.subr.mxu0 0.0
    %5011 = vmatpush1.msra.mxu0 0.0
    %5012 = vmatprep.mubr.f32.mxu0 0.0
    %5013 = vmatmul.mubr.f32.gmra.mrb[0].mxu0 %v4946
    %v5014 = vpop.f32.mrb[0].mxu0
    %v5015 = vadd.f32 0.0, %v5014
    %v5016 = vpop.f32.mrb[0].mxu0
    %5017 = vdwg.mxu0
    %v5018 = vadd.f32 %v4864, %v5015
    %s5019 = scalar_lea.vmem %s6, 80
    %v5020 = vld [vmem:[%s5019] sm:$0xff]
    %v5022 = vsel %vm3481, %v5020, 0
    %5024 = vmatprep.subr.mxu0 0.0
    %5025 = vmatpush1.msra.mxu0 %v3468
    %5026 = vmatprep.subr.mxu0 0.0
    %5027 = vmatpush1.msra.mxu0 %v3469
    %5028 = vmatprep.subr.mxu0 0.0
    %5029 = vmatpush1.msra.mxu0 %v3470
    %5030 = vmatprep.subr.mxu0 0.0
    %5031 = vmatpush1.msra.mxu0 %v3471
    %5032 = vmatprep.subr.mxu0 0.0
    %5033 = vmatpush1.msra.mxu0 0.0
    %5034 = vmatprep.subr.mxu0 0.0
    %5035 = vmatpush1.msra.mxu0 0.0
    %5036 = vmatprep.subr.mxu0 0.0
    %5037 = vmatpush1.msra.mxu0 0.0
    %5038 = vmatprep.subr.mxu0 0.0
    %5039 = vmatpush1.msra.mxu0 0.0
    %5040 = vmatprep.subr.mxu0 0.0
    %5041 = vmatpush1.msra.mxu0 0.0
    %5042 = vmatprep.subr.mxu0 0.0
    %5043 = vmatpush1.msra.mxu0 0.0
    %5044 = vmatprep.subr.mxu0 0.0
    %5045 = vmatpush1.msra.mxu0 0.0
    %5046 = vmatprep.subr.mxu0 0.0
    %5047 = vmatpush1.msra.mxu0 0.0
    %5048 = vmatprep.subr.mxu0 0.0
    %5049 = vmatpush1.msra.mxu0 0.0
    %5050 = vmatprep.subr.mxu0 0.0
    %5051 = vmatpush1.msra.mxu0 0.0
    %5052 = vmatprep.subr.mxu0 0.0
    %5053 = vmatpush1.msra.mxu0 0.0
    %5054 = vmatprep.subr.mxu0 0.0
    %5055 = vmatpush1.msra.mxu0 0.0
    %5056 = vmatprep.subr.mxu0 0.0
    %5057 = vmatpush1.msra.mxu0 0.0
    %5058 = vmatprep.subr.mxu0 0.0
    %5059 = vmatpush1.msra.mxu0 0.0
    %5060 = vmatprep.subr.mxu0 0.0
    %5061 = vmatpush1.msra.mxu0 0.0
    %5062 = vmatprep.subr.mxu0 0.0
    %5063 = vmatpush1.msra.mxu0 0.0
    %5064 = vmatprep.subr.mxu0 0.0
    %5065 = vmatpush1.msra.mxu0 0.0
    %5066 = vmatprep.subr.mxu0 0.0
    %5067 = vmatpush1.msra.mxu0 0.0
    %5068 = vmatprep.subr.mxu0 0.0
    %5069 = vmatpush1.msra.mxu0 0.0
    %5070 = vmatprep.subr.mxu0 0.0
    %5071 = vmatpush1.msra.mxu0 0.0
    %5072 = vmatprep.subr.mxu0 0.0
    %5073 = vmatpush1.msra.mxu0 0.0
    %5074 = vmatprep.subr.mxu0 0.0
    %5075 = vmatpush1.msra.mxu0 0.0
    %5076 = vmatprep.subr.mxu0 0.0
    %5077 = vmatpush1.msra.mxu0 0.0
    %5078 = vmatprep.subr.mxu0 0.0
    %5079 = vmatpush1.msra.mxu0 0.0
    %5080 = vmatprep.subr.mxu0 0.0
    %5081 = vmatpush1.msra.mxu0 0.0
    %5082 = vmatprep.subr.mxu0 0.0
    %5083 = vmatpush1.msra.mxu0 0.0
    %5084 = vmatprep.subr.mxu0 0.0
    %5085 = vmatpush1.msra.mxu0 0.0
    %5086 = vmatprep.subr.mxu0 0.0
    %5087 = vmatpush1.msra.mxu0 0.0
    %5088 = vmatprep.mubr.f32.mxu0 0.0
    %5089 = vmatmul.mubr.f32.gmra.mrb[0].mxu0 %v5022
    %v5090 = vpop.f32.mrb[0].mxu0
    %v5091 = vadd.f32 0.0, %v5090
    %v5092 = vpop.f32.mrb[0].mxu0
    %5093 = vdwg.mxu0
    %s5094 = scalar_lea.vmem [#allocation5], 320
    %v5095 = vld [vmem:[%s5094] sm:$0xff]
    %v5096 = vld [vmem:[%s5094 + $0x8] sm:$0xff]
    %v5097 = vld [vmem:[%s5094 + $0x10] sm:$0xff]
    %v5098 = vld [vmem:[%s5094 + $0x18] sm:$0xff]
    %v5100 = vsel %vm3481, %v5091, 0
    %5102 = vmatprep.subr.mxu0 0.0
    %5103 = vmatpush1.msra.mxu0 %v5095
    %5104 = vmatprep.subr.mxu0 0.0
    %5105 = vmatpush1.msra.mxu0 %v5096
    %5106 = vmatprep.subr.mxu0 0.0
    %5107 = vmatpush1.msra.mxu0 %v5097
    %5108 = vmatprep.subr.mxu0 0.0
    %5109 = vmatpush1.msra.mxu0 %v5098
    %5110 = vmatprep.subr.mxu0 0.0
    %5111 = vmatpush1.msra.mxu0 0.0
    %5112 = vmatprep.subr.mxu0 0.0
    %5113 = vmatpush1.msra.mxu0 0.0
    %5114 = vmatprep.subr.mxu0 0.0
    %5115 = vmatpush1.msra.mxu0 0.0
    %5116 = vmatprep.subr.mxu0 0.0
    %5117 = vmatpush1.msra.mxu0 0.0
    %5118 = vmatprep.subr.mxu0 0.0
    %5119 = vmatpush1.msra.mxu0 0.0
    %5120 = vmatprep.subr.mxu0 0.0
    %5121 = vmatpush1.msra.mxu0 0.0
    %5122 = vmatprep.subr.mxu0 0.0
    %5123 = vmatpush1.msra.mxu0 0.0
    %5124 = vmatprep.subr.mxu0 0.0
    %5125 = vmatpush1.msra.mxu0 0.0
    %5126 = vmatprep.subr.mxu0 0.0
    %5127 = vmatpush1.msra.mxu0 0.0
    %5128 = vmatprep.subr.mxu0 0.0
    %5129 = vmatpush1.msra.mxu0 0.0
    %5130 = vmatprep.subr.mxu0 0.0
    %5131 = vmatpush1.msra.mxu0 0.0
    %5132 = vmatprep.subr.mxu0 0.0
    %5133 = vmatpush1.msra.mxu0 0.0
    %5134 = vmatprep.subr.mxu0 0.0
    %5135 = vmatpush1.msra.mxu0 0.0
    %5136 = vmatprep.subr.mxu0 0.0
    %5137 = vmatpush1.msra.mxu0 0.0
    %5138 = vmatprep.subr.mxu0 0.0
    %5139 = vmatpush1.msra.mxu0 0.0
    %5140 = vmatprep.subr.mxu0 0.0
    %5141 = vmatpush1.msra.mxu0 0.0
    %5142 = vmatprep.subr.mxu0 0.0
    %5143 = vmatpush1.msra.mxu0 0.0
    %5144 = vmatprep.subr.mxu0 0.0
    %5145 = vmatpush1.msra.mxu0 0.0
    %5146 = vmatprep.subr.mxu0 0.0
    %5147 = vmatpush1.msra.mxu0 0.0
    %5148 = vmatprep.subr.mxu0 0.0
    %5149 = vmatpush1.msra.mxu0 0.0
    %5150 = vmatprep.subr.mxu0 0.0
    %5151 = vmatpush1.msra.mxu0 0.0
    %5152 = vmatprep.subr.mxu0 0.0
    %5153 = vmatpush1.msra.mxu0 0.0
    %5154 = vmatprep.subr.mxu0 0.0
    %5155 = vmatpush1.msra.mxu0 0.0
    %5156 = vmatprep.subr.mxu0 0.0
    %5157 = vmatpush1.msra.mxu0 0.0
    %5158 = vmatprep.subr.mxu0 0.0
    %5159 = vmatpush1.msra.mxu0 0.0
    %5160 = vmatprep.subr.mxu0 0.0
    %5161 = vmatpush1.msra.mxu0 0.0
    %5162 = vmatprep.subr.mxu0 0.0
    %5163 = vmatpush1.msra.mxu0 0.0
    %5164 = vmatprep.subr.mxu0 0.0
    %5165 = vmatpush1.msra.mxu0 0.0
    %5166 = vmatprep.mubr.f32.mxu0 0.0
    %5167 = vmatmul.mubr.f32.gmra.mrb[0].mxu0 %v5100
    %v5168 = vpop.f32.mrb[0].mxu0
    %v5169 = vadd.f32 0.0, %v5168
    %v5170 = vpop.f32.mrb[0].mxu0
    %5171 = vdwg.mxu0
    %v5172 = vadd.f32 %v5018, %v5169
    %s5173 = scalar_lea.vmem %s6, 88
    %v5174 = vld [vmem:[%s5173] sm:$0xff]
    %v5176 = vsel %vm3481, %v5174, 0
    %5178 = vmatprep.subr.mxu0 0.0
    %5179 = vmatpush1.msra.mxu0 %v3468
    %5180 = vmatprep.subr.mxu0 0.0
    %5181 = vmatpush1.msra.mxu0 %v3469
    %5182 = vmatprep.subr.mxu0 0.0
    %5183 = vmatpush1.msra.mxu0 %v3470
    %5184 = vmatprep.subr.mxu0 0.0
    %5185 = vmatpush1.msra.mxu0 %v3471
    %5186 = vmatprep.subr.mxu0 0.0
    %5187 = vmatpush1.msra.mxu0 0.0
    %5188 = vmatprep.subr.mxu0 0.0
    %5189 = vmatpush1.msra.mxu0 0.0
    %5190 = vmatprep.subr.mxu0 0.0
    %5191 = vmatpush1.msra.mxu0 0.0
    %5192 = vmatprep.subr.mxu0 0.0
    %5193 = vmatpush1.msra.mxu0 0.0
    %5194 = vmatprep.subr.mxu0 0.0
    %5195 = vmatpush1.msra.mxu0 0.0
    %5196 = vmatprep.subr.mxu0 0.0
    %5197 = vmatpush1.msra.mxu0 0.0
    %5198 = vmatprep.subr.mxu0 0.0
    %5199 = vmatpush1.msra.mxu0 0.0
    %5200 = vmatprep.subr.mxu0 0.0
    %5201 = vmatpush1.msra.mxu0 0.0
    %5202 = vmatprep.subr.mxu0 0.0
    %5203 = vmatpush1.msra.mxu0 0.0
    %5204 = vmatprep.subr.mxu0 0.0
    %5205 = vmatpush1.msra.mxu0 0.0
    %5206 = vmatprep.subr.mxu0 0.0
    %5207 = vmatpush1.msra.mxu0 0.0
    %5208 = vmatprep.subr.mxu0 0.0
    %5209 = vmatpush1.msra.mxu0 0.0
    %5210 = vmatprep.subr.mxu0 0.0
    %5211 = vmatpush1.msra.mxu0 0.0
    %5212 = vmatprep.subr.mxu0 0.0
    %5213 = vmatpush1.msra.mxu0 0.0
    %5214 = vmatprep.subr.mxu0 0.0
    %5215 = vmatpush1.msra.mxu0 0.0
    %5216 = vmatprep.subr.mxu0 0.0
    %5217 = vmatpush1.msra.mxu0 0.0
    %5218 = vmatprep.subr.mxu0 0.0
    %5219 = vmatpush1.msra.mxu0 0.0
    %5220 = vmatprep.subr.mxu0 0.0
    %5221 = vmatpush1.msra.mxu0 0.0
    %5222 = vmatprep.subr.mxu0 0.0
    %5223 = vmatpush1.msra.mxu0 0.0
    %5224 = vmatprep.subr.mxu0 0.0
    %5225 = vmatpush1.msra.mxu0 0.0
    %5226 = vmatprep.subr.mxu0 0.0
    %5227 = vmatpush1.msra.mxu0 0.0
    %5228 = vmatprep.subr.mxu0 0.0
    %5229 = vmatpush1.msra.mxu0 0.0
    %5230 = vmatprep.subr.mxu0 0.0
    %5231 = vmatpush1.msra.mxu0 0.0
    %5232 = vmatprep.subr.mxu0 0.0
    %5233 = vmatpush1.msra.mxu0 0.0
    %5234 = vmatprep.subr.mxu0 0.0
    %5235 = vmatpush1.msra.mxu0 0.0
    %5236 = vmatprep.subr.mxu0 0.0
    %5237 = vmatpush1.msra.mxu0 0.0
    %5238 = vmatprep.subr.mxu0 0.0
    %5239 = vmatpush1.msra.mxu0 0.0
    %5240 = vmatprep.subr.mxu0 0.0
    %5241 = vmatpush1.msra.mxu0 0.0
    %5242 = vmatprep.mubr.f32.mxu0 0.0
    %5243 = vmatmul.mubr.f32.gmra.mrb[0].mxu0 %v5176
    %v5244 = vpop.f32.mrb[0].mxu0
    %v5245 = vadd.f32 0.0, %v5244
    %v5246 = vpop.f32.mrb[0].mxu0
    %5247 = vdwg.mxu0
    %s5248 = scalar_lea.vmem [#allocation5], 352
    %v5249 = vld [vmem:[%s5248] sm:$0xff]
    %v5250 = vld [vmem:[%s5248 + $0x8] sm:$0xff]
    %v5251 = vld [vmem:[%s5248 + $0x10] sm:$0xff]
    %v5252 = vld [vmem:[%s5248 + $0x18] sm:$0xff]
    %v5254 = vsel %vm3481, %v5245, 0
    %5256 = vmatprep.subr.mxu0 0.0
    %5257 = vmatpush1.msra.mxu0 %v5249
    %5258 = vmatprep.subr.mxu0 0.0
    %5259 = vmatpush1.msra.mxu0 %v5250
    %5260 = vmatprep.subr.mxu0 0.0
    %5261 = vmatpush1.msra.mxu0 %v5251
    %5262 = vmatprep.subr.mxu0 0.0
    %5263 = vmatpush1.msra.mxu0 %v5252
    %5264 = vmatprep.subr.mxu0 0.0
    %5265 = vmatpush1.msra.mxu0 0.0
    %5266 = vmatprep.subr.mxu0 0.0
    %5267 = vmatpush1.msra.mxu0 0.0
    %5268 = vmatprep.subr.mxu0 0.0
    %5269 = vmatpush1.msra.mxu0 0.0
    %5270 = vmatprep.subr.mxu0 0.0
    %5271 = vmatpush1.msra.mxu0 0.0
    %5272 = vmatprep.subr.mxu0 0.0
    %5273 = vmatpush1.msra.mxu0 0.0
    %5274 = vmatprep.subr.mxu0 0.0
    %5275 = vmatpush1.msra.mxu0 0.0
    %5276 = vmatprep.subr.mxu0 0.0
    %5277 = vmatpush1.msra.mxu0 0.0
    %5278 = vmatprep.subr.mxu0 0.0
    %5279 = vmatpush1.msra.mxu0 0.0
    %5280 = vmatprep.subr.mxu0 0.0
    %5281 = vmatpush1.msra.mxu0 0.0
    %5282 = vmatprep.subr.mxu0 0.0
    %5283 = vmatpush1.msra.mxu0 0.0
    %5284 = vmatprep.subr.mxu0 0.0
    %5285 = vmatpush1.msra.mxu0 0.0
    %5286 = vmatprep.subr.mxu0 0.0
    %5287 = vmatpush1.msra.mxu0 0.0
    %5288 = vmatprep.subr.mxu0 0.0
    %5289 = vmatpush1.msra.mxu0 0.0
    %5290 = vmatprep.subr.mxu0 0.0
    %5291 = vmatpush1.msra.mxu0 0.0
    %5292 = vmatprep.subr.mxu0 0.0
    %5293 = vmatpush1.msra.mxu0 0.0
    %5294 = vmatprep.subr.mxu0 0.0
    %5295 = vmatpush1.msra.mxu0 0.0
    %5296 = vmatprep.subr.mxu0 0.0
    %5297 = vmatpush1.msra.mxu0 0.0
    %5298 = vmatprep.subr.mxu0 0.0
    %5299 = vmatpush1.msra.mxu0 0.0
    %5300 = vmatprep.subr.mxu0 0.0
    %5301 = vmatpush1.msra.mxu0 0.0
    %5302 = vmatprep.subr.mxu0 0.0
    %5303 = vmatpush1.msra.mxu0 0.0
    %5304 = vmatprep.subr.mxu0 0.0
    %5305 = vmatpush1.msra.mxu0 0.0
    %5306 = vmatprep.subr.mxu0 0.0
    %5307 = vmatpush1.msra.mxu0 0.0
    %5308 = vmatprep.subr.mxu0 0.0
    %5309 = vmatpush1.msra.mxu0 0.0
    %5310 = vmatprep.subr.mxu0 0.0
    %5311 = vmatpush1.msra.mxu0 0.0
    %5312 = vmatprep.subr.mxu0 0.0
    %5313 = vmatpush1.msra.mxu0 0.0
    %5314 = vmatprep.subr.mxu0 0.0
    %5315 = vmatpush1.msra.mxu0 0.0
    %5316 = vmatprep.subr.mxu0 0.0
    %5317 = vmatpush1.msra.mxu0 0.0
    %5318 = vmatprep.subr.mxu0 0.0
    %5319 = vmatpush1.msra.mxu0 0.0
    %5320 = vmatprep.mubr.f32.mxu0 0.0
    %5321 = vmatmul.mubr.f32.gmra.mrb[0].mxu0 %v5254
    %v5322 = vpop.f32.mrb[0].mxu0
    %v5323 = vadd.f32 0.0, %v5322
    %v5324 = vpop.f32.mrb[0].mxu0
    %5325 = vdwg.mxu0
    %v5326 = vadd.f32 %v5172, %v5323
    %s5327 = scalar_lea.vmem %s6, 96
    %v5328 = vld [vmem:[%s5327] sm:$0xff]
    %v5330 = vsel %vm3481, %v5328, 0
    %5332 = vmatprep.subr.mxu0 0.0
    %5333 = vmatpush1.msra.mxu0 %v3468
    %5334 = vmatprep.subr.mxu0 0.0
    %5335 = vmatpush1.msra.mxu0 %v3469
    %5336 = vmatprep.subr.mxu0 0.0
    %5337 = vmatpush1.msra.mxu0 %v3470
    %5338 = vmatprep.subr.mxu0 0.0
    %5339 = vmatpush1.msra.mxu0 %v3471
    %5340 = vmatprep.subr.mxu0 0.0
    %5341 = vmatpush1.msra.mxu0 0.0
    %5342 = vmatprep.subr.mxu0 0.0
    %5343 = vmatpush1.msra.mxu0 0.0
    %5344 = vmatprep.subr.mxu0 0.0
    %5345 = vmatpush1.msra.mxu0 0.0
    %5346 = vmatprep.subr.mxu0 0.0
    %5347 = vmatpush1.msra.mxu0 0.0
    %5348 = vmatprep.subr.mxu0 0.0
    %5349 = vmatpush1.msra.mxu0 0.0
    %5350 = vmatprep.subr.mxu0 0.0
    %5351 = vmatpush1.msra.mxu0 0.0
    %5352 = vmatprep.subr.mxu0 0.0
    %5353 = vmatpush1.msra.mxu0 0.0
    %5354 = vmatprep.subr.mxu0 0.0
    %5355 = vmatpush1.msra.mxu0 0.0
    %5356 = vmatprep.subr.mxu0 0.0
    %5357 = vmatpush1.msra.mxu0 0.0
    %5358 = vmatprep.subr.mxu0 0.0
    %5359 = vmatpush1.msra.mxu0 0.0
    %5360 = vmatprep.subr.mxu0 0.0
    %5361 = vmatpush1.msra.mxu0 0.0
    %5362 = vmatprep.subr.mxu0 0.0
    %5363 = vmatpush1.msra.mxu0 0.0
    %5364 = vmatprep.subr.mxu0 0.0
    %5365 = vmatpush1.msra.mxu0 0.0
    %5366 = vmatprep.subr.mxu0 0.0
    %5367 = vmatpush1.msra.mxu0 0.0
    %5368 = vmatprep.subr.mxu0 0.0
    %5369 = vmatpush1.msra.mxu0 0.0
    %5370 = vmatprep.subr.mxu0 0.0
    %5371 = vmatpush1.msra.mxu0 0.0
    %5372 = vmatprep.subr.mxu0 0.0
    %5373 = vmatpush1.msra.mxu0 0.0
    %5374 = vmatprep.subr.mxu0 0.0
    %5375 = vmatpush1.msra.mxu0 0.0
    %5376 = vmatprep.subr.mxu0 0.0
    %5377 = vmatpush1.msra.mxu0 0.0
    %5378 = vmatprep.subr.mxu0 0.0
    %5379 = vmatpush1.msra.mxu0 0.0
    %5380 = vmatprep.subr.mxu0 0.0
    %5381 = vmatpush1.msra.mxu0 0.0
    %5382 = vmatprep.subr.mxu0 0.0
    %5383 = vmatpush1.msra.mxu0 0.0
    %5384 = vmatprep.subr.mxu0 0.0
    %5385 = vmatpush1.msra.mxu0 0.0
    %5386 = vmatprep.subr.mxu0 0.0
    %5387 = vmatpush1.msra.mxu0 0.0
    %5388 = vmatprep.subr.mxu0 0.0
    %5389 = vmatpush1.msra.mxu0 0.0
    %5390 = vmatprep.subr.mxu0 0.0
    %5391 = vmatpush1.msra.mxu0 0.0
    %5392 = vmatprep.subr.mxu0 0.0
    %5393 = vmatpush1.msra.mxu0 0.0
    %5394 = vmatprep.subr.mxu0 0.0
    %5395 = vmatpush1.msra.mxu0 0.0
    %5396 = vmatprep.mubr.f32.mxu0 0.0
    %5397 = vmatmul.mubr.f32.gmra.mrb[0].mxu0 %v5330
    %v5398 = vpop.f32.mrb[0].mxu0
    %v5399 = vadd.f32 0.0, %v5398
    %v5400 = vpop.f32.mrb[0].mxu0
    %5401 = vdwg.mxu0
    %s5402 = scalar_lea.vmem [#allocation5], 384
    %v5403 = vld [vmem:[%s5402] sm:$0xff]
    %v5404 = vld [vmem:[%s5402 + $0x8] sm:$0xff]
    %v5405 = vld [vmem:[%s5402 + $0x10] sm:$0xff]
    %v5406 = vld [vmem:[%s5402 + $0x18] sm:$0xff]
    %v5408 = vsel %vm3481, %v5399, 0
    %5410 = vmatprep.subr.mxu0 0.0
    %5411 = vmatpush1.msra.mxu0 %v5403
    %5412 = vmatprep.subr.mxu0 0.0
    %5413 = vmatpush1.msra.mxu0 %v5404
    %5414 = vmatprep.subr.mxu0 0.0
    %5415 = vmatpush1.msra.mxu0 %v5405
    %5416 = vmatprep.subr.mxu0 0.0
    %5417 = vmatpush1.msra.mxu0 %v5406
    %5418 = vmatprep.subr.mxu0 0.0
    %5419 = vmatpush1.msra.mxu0 0.0
    %5420 = vmatprep.subr.mxu0 0.0
    %5421 = vmatpush1.msra.mxu0 0.0
    %5422 = vmatprep.subr.mxu0 0.0
    %5423 = vmatpush1.msra.mxu0 0.0
    %5424 = vmatprep.subr.mxu0 0.0
    %5425 = vmatpush1.msra.mxu0 0.0
    %5426 = vmatprep.subr.mxu0 0.0
    %5427 = vmatpush1.msra.mxu0 0.0
    %5428 = vmatprep.subr.mxu0 0.0
    %5429 = vmatpush1.msra.mxu0 0.0
    %5430 = vmatprep.subr.mxu0 0.0
    %5431 = vmatpush1.msra.mxu0 0.0
    %5432 = vmatprep.subr.mxu0 0.0
    %5433 = vmatpush1.msra.mxu0 0.0
    %5434 = vmatprep.subr.mxu0 0.0
    %5435 = vmatpush1.msra.mxu0 0.0
    %5436 = vmatprep.subr.mxu0 0.0
    %5437 = vmatpush1.msra.mxu0 0.0
    %5438 = vmatprep.subr.mxu0 0.0
    %5439 = vmatpush1.msra.mxu0 0.0
    %5440 = vmatprep.subr.mxu0 0.0
    %5441 = vmatpush1.msra.mxu0 0.0
    %5442 = vmatprep.subr.mxu0 0.0
    %5443 = vmatpush1.msra.mxu0 0.0
    %5444 = vmatprep.subr.mxu0 0.0
    %5445 = vmatpush1.msra.mxu0 0.0
    %5446 = vmatprep.subr.mxu0 0.0
    %5447 = vmatpush1.msra.mxu0 0.0
    %5448 = vmatprep.subr.mxu0 0.0
    %5449 = vmatpush1.msra.mxu0 0.0
    %5450 = vmatprep.subr.mxu0 0.0
    %5451 = vmatpush1.msra.mxu0 0.0
    %5452 = vmatprep.subr.mxu0 0.0
    %5453 = vmatpush1.msra.mxu0 0.0
    %5454 = vmatprep.subr.mxu0 0.0
    %5455 = vmatpush1.msra.mxu0 0.0
    %5456 = vmatprep.subr.mxu0 0.0
    %5457 = vmatpush1.msra.mxu0 0.0
    %5458 = vmatprep.subr.mxu0 0.0
    %5459 = vmatpush1.msra.mxu0 0.0
    %5460 = vmatprep.subr.mxu0 0.0
    %5461 = vmatpush1.msra.mxu0 0.0
    %5462 = vmatprep.subr.mxu0 0.0
    %5463 = vmatpush1.msra.mxu0 0.0
    %5464 = vmatprep.subr.mxu0 0.0
    %5465 = vmatpush1.msra.mxu0 0.0
    %5466 = vmatprep.subr.mxu0 0.0
    %5467 = vmatpush1.msra.mxu0 0.0
    %5468 = vmatprep.subr.mxu0 0.0
    %5469 = vmatpush1.msra.mxu0 0.0
    %5470 = vmatprep.subr.mxu0 0.0
    %5471 = vmatpush1.msra.mxu0 0.0
    %5472 = vmatprep.subr.mxu0 0.0
    %5473 = vmatpush1.msra.mxu0 0.0
    %5474 = vmatprep.mubr.f32.mxu0 0.0
    %5475 = vmatmul.mubr.f32.gmra.mrb[0].mxu0 %v5408
    %v5476 = vpop.f32.mrb[0].mxu0
    %v5477 = vadd.f32 0.0, %v5476
    %v5478 = vpop.f32.mrb[0].mxu0
    %5479 = vdwg.mxu0
    %v5480 = vadd.f32 %v5326, %v5477
    %s5481 = scalar_lea.vmem %s6, 104
    %v5482 = vld [vmem:[%s5481] sm:$0xff]
    %v5484 = vsel %vm3481, %v5482, 0
    %5486 = vmatprep.subr.mxu0 0.0
    %5487 = vmatpush1.msra.mxu0 %v3468
    %5488 = vmatprep.subr.mxu0 0.0
    %5489 = vmatpush1.msra.mxu0 %v3469
    %5490 = vmatprep.subr.mxu0 0.0
    %5491 = vmatpush1.msra.mxu0 %v3470
    %5492 = vmatprep.subr.mxu0 0.0
    %5493 = vmatpush1.msra.mxu0 %v3471
    %5494 = vmatprep.subr.mxu0 0.0
    %5495 = vmatpush1.msra.mxu0 0.0
    %5496 = vmatprep.subr.mxu0 0.0
    %5497 = vmatpush1.msra.mxu0 0.0
    %5498 = vmatprep.subr.mxu0 0.0
    %5499 = vmatpush1.msra.mxu0 0.0
    %5500 = vmatprep.subr.mxu0 0.0
    %5501 = vmatpush1.msra.mxu0 0.0
    %5502 = vmatprep.subr.mxu0 0.0
    %5503 = vmatpush1.msra.mxu0 0.0
    %5504 = vmatprep.subr.mxu0 0.0
    %5505 = vmatpush1.msra.mxu0 0.0
    %5506 = vmatprep.subr.mxu0 0.0
    %5507 = vmatpush1.msra.mxu0 0.0
    %5508 = vmatprep.subr.mxu0 0.0
    %5509 = vmatpush1.msra.mxu0 0.0
    %5510 = vmatprep.subr.mxu0 0.0
    %5511 = vmatpush1.msra.mxu0 0.0
    %5512 = vmatprep.subr.mxu0 0.0
    %5513 = vmatpush1.msra.mxu0 0.0
    %5514 = vmatprep.subr.mxu0 0.0
    %5515 = vmatpush1.msra.mxu0 0.0
    %5516 = vmatprep.subr.mxu0 0.0
    %5517 = vmatpush1.msra.mxu0 0.0
    %5518 = vmatprep.subr.mxu0 0.0
    %5519 = vmatpush1.msra.mxu0 0.0
    %5520 = vmatprep.subr.mxu0 0.0
    %5521 = vmatpush1.msra.mxu0 0.0
    %5522 = vmatprep.subr.mxu0 0.0
    %5523 = vmatpush1.msra.mxu0 0.0
    %5524 = vmatprep.subr.mxu0 0.0
    %5525 = vmatpush1.msra.mxu0 0.0
    %5526 = vmatprep.subr.mxu0 0.0
    %5527 = vmatpush1.msra.mxu0 0.0
    %5528 = vmatprep.subr.mxu0 0.0
    %5529 = vmatpush1.msra.mxu0 0.0
    %5530 = vmatprep.subr.mxu0 0.0
    %5531 = vmatpush1.msra.mxu0 0.0
    %5532 = vmatprep.subr.mxu0 0.0
    %5533 = vmatpush1.msra.mxu0 0.0
    %5534 = vmatprep.subr.mxu0 0.0
    %5535 = vmatpush1.msra.mxu0 0.0
    %5536 = vmatprep.subr.mxu0 0.0
    %5537 = vmatpush1.msra.mxu0 0.0
    %5538 = vmatprep.subr.mxu0 0.0
    %5539 = vmatpush1.msra.mxu0 0.0
    %5540 = vmatprep.subr.mxu0 0.0
    %5541 = vmatpush1.msra.mxu0 0.0
    %5542 = vmatprep.subr.mxu0 0.0
    %5543 = vmatpush1.msra.mxu0 0.0
    %5544 = vmatprep.subr.mxu0 0.0
    %5545 = vmatpush1.msra.mxu0 0.0
    %5546 = vmatprep.subr.mxu0 0.0
    %5547 = vmatpush1.msra.mxu0 0.0
    %5548 = vmatprep.subr.mxu0 0.0
    %5549 = vmatpush1.msra.mxu0 0.0
    %5550 = vmatprep.mubr.f32.mxu0 0.0
    %5551 = vmatmul.mubr.f32.gmra.mrb[0].mxu0 %v5484
    %v5552 = vpop.f32.mrb[0].mxu0
    %v5553 = vadd.f32 0.0, %v5552
    %v5554 = vpop.f32.mrb[0].mxu0
    %5555 = vdwg.mxu0
    %s5556 = scalar_lea.vmem [#allocation5], 416
    %v5557 = vld [vmem:[%s5556] sm:$0xff]
    %v5558 = vld [vmem:[%s5556 + $0x8] sm:$0xff]
    %v5559 = vld [vmem:[%s5556 + $0x10] sm:$0xff]
    %v5560 = vld [vmem:[%s5556 + $0x18] sm:$0xff]
    %v5562 = vsel %vm3481, %v5553, 0
    %5564 = vmatprep.subr.mxu0 0.0
    %5565 = vmatpush1.msra.mxu0 %v5557
    %5566 = vmatprep.subr.mxu0 0.0
    %5567 = vmatpush1.msra.mxu0 %v5558
    %5568 = vmatprep.subr.mxu0 0.0
    %5569 = vmatpush1.msra.mxu0 %v5559
    %5570 = vmatprep.subr.mxu0 0.0
    %5571 = vmatpush1.msra.mxu0 %v5560
    %5572 = vmatprep.subr.mxu0 0.0
    %5573 = vmatpush1.msra.mxu0 0.0
    %5574 = vmatprep.subr.mxu0 0.0
    %5575 = vmatpush1.msra.mxu0 0.0
    %5576 = vmatprep.subr.mxu0 0.0
    %5577 = vmatpush1.msra.mxu0 0.0
    %5578 = vmatprep.subr.mxu0 0.0
    %5579 = vmatpush1.msra.mxu0 0.0
    %5580 = vmatprep.subr.mxu0 0.0
    %5581 = vmatpush1.msra.mxu0 0.0
    %5582 = vmatprep.subr.mxu0 0.0
    %5583 = vmatpush1.msra.mxu0 0.0
    %5584 = vmatprep.subr.mxu0 0.0
    %5585 = vmatpush1.msra.mxu0 0.0
    %5586 = vmatprep.subr.mxu0 0.0
    %5587 = vmatpush1.msra.mxu0 0.0
    %5588 = vmatprep.subr.mxu0 0.0
    %5589 = vmatpush1.msra.mxu0 0.0
    %5590 = vmatprep.subr.mxu0 0.0
    %5591 = vmatpush1.msra.mxu0 0.0
    %5592 = vmatprep.subr.mxu0 0.0
    %5593 = vmatpush1.msra.mxu0 0.0
    %5594 = vmatprep.subr.mxu0 0.0
    %5595 = vmatpush1.msra.mxu0 0.0
    %5596 = vmatprep.subr.mxu0 0.0
    %5597 = vmatpush1.msra.mxu0 0.0
    %5598 = vmatprep.subr.mxu0 0.0
    %5599 = vmatpush1.msra.mxu0 0.0
    %5600 = vmatprep.subr.mxu0 0.0
    %5601 = vmatpush1.msra.mxu0 0.0
    %5602 = vmatprep.subr.mxu0 0.0
    %5603 = vmatpush1.msra.mxu0 0.0
    %5604 = vmatprep.subr.mxu0 0.0
    %5605 = vmatpush1.msra.mxu0 0.0
    %5606 = vmatprep.subr.mxu0 0.0
    %5607 = vmatpush1.msra.mxu0 0.0
    %5608 = vmatprep.subr.mxu0 0.0
    %5609 = vmatpush1.msra.mxu0 0.0
    %5610 = vmatprep.subr.mxu0 0.0
    %5611 = vmatpush1.msra.mxu0 0.0
    %5612 = vmatprep.subr.mxu0 0.0
    %5613 = vmatpush1.msra.mxu0 0.0
    %5614 = vmatprep.subr.mxu0 0.0
    %5615 = vmatpush1.msra.mxu0 0.0
    %5616 = vmatprep.subr.mxu0 0.0
    %5617 = vmatpush1.msra.mxu0 0.0
    %5618 = vmatprep.subr.mxu0 0.0
    %5619 = vmatpush1.msra.mxu0 0.0
    %5620 = vmatprep.subr.mxu0 0.0
    %5621 = vmatpush1.msra.mxu0 0.0
    %5622 = vmatprep.subr.mxu0 0.0
    %5623 = vmatpush1.msra.mxu0 0.0
    %5624 = vmatprep.subr.mxu0 0.0
    %5625 = vmatpush1.msra.mxu0 0.0
    %5626 = vmatprep.subr.mxu0 0.0
    %5627 = vmatpush1.msra.mxu0 0.0
    %5628 = vmatprep.mubr.f32.mxu0 0.0
    %5629 = vmatmul.mubr.f32.gmra.mrb[0].mxu0 %v5562
    %v5630 = vpop.f32.mrb[0].mxu0
    %v5631 = vadd.f32 0.0, %v5630
    %v5632 = vpop.f32.mrb[0].mxu0
    %5633 = vdwg.mxu0
    %v5634 = vadd.f32 %v5480, %v5631
    %s5635 = scalar_lea.vmem %s6, 112
    %v5636 = vld [vmem:[%s5635] sm:$0xff]
    %v5638 = vsel %vm3481, %v5636, 0
    %5640 = vmatprep.subr.mxu0 0.0
    %5641 = vmatpush1.msra.mxu0 %v3468
    %5642 = vmatprep.subr.mxu0 0.0
    %5643 = vmatpush1.msra.mxu0 %v3469
    %5644 = vmatprep.subr.mxu0 0.0
    %5645 = vmatpush1.msra.mxu0 %v3470
    %5646 = vmatprep.subr.mxu0 0.0
    %5647 = vmatpush1.msra.mxu0 %v3471
    %5648 = vmatprep.subr.mxu0 0.0
    %5649 = vmatpush1.msra.mxu0 0.0
    %5650 = vmatprep.subr.mxu0 0.0
    %5651 = vmatpush1.msra.mxu0 0.0
    %5652 = vmatprep.subr.mxu0 0.0
    %5653 = vmatpush1.msra.mxu0 0.0
    %5654 = vmatprep.subr.mxu0 0.0
    %5655 = vmatpush1.msra.mxu0 0.0
    %5656 = vmatprep.subr.mxu0 0.0
    %5657 = vmatpush1.msra.mxu0 0.0
    %5658 = vmatprep.subr.mxu0 0.0
    %5659 = vmatpush1.msra.mxu0 0.0
    %5660 = vmatprep.subr.mxu0 0.0
    %5661 = vmatpush1.msra.mxu0 0.0
    %5662 = vmatprep.subr.mxu0 0.0
    %5663 = vmatpush1.msra.mxu0 0.0
    %5664 = vmatprep.subr.mxu0 0.0
    %5665 = vmatpush1.msra.mxu0 0.0
    %5666 = vmatprep.subr.mxu0 0.0
    %5667 = vmatpush1.msra.mxu0 0.0
    %5668 = vmatprep.subr.mxu0 0.0
    %5669 = vmatpush1.msra.mxu0 0.0
    %5670 = vmatprep.subr.mxu0 0.0
    %5671 = vmatpush1.msra.mxu0 0.0
    %5672 = vmatprep.subr.mxu0 0.0
    %5673 = vmatpush1.msra.mxu0 0.0
    %5674 = vmatprep.subr.mxu0 0.0
    %5675 = vmatpush1.msra.mxu0 0.0
    %5676 = vmatprep.subr.mxu0 0.0
    %5677 = vmatpush1.msra.mxu0 0.0
    %5678 = vmatprep.subr.mxu0 0.0
    %5679 = vmatpush1.msra.mxu0 0.0
    %5680 = vmatprep.subr.mxu0 0.0
    %5681 = vmatpush1.msra.mxu0 0.0
    %5682 = vmatprep.subr.mxu0 0.0
    %5683 = vmatpush1.msra.mxu0 0.0
    %5684 = vmatprep.subr.mxu0 0.0
    %5685 = vmatpush1.msra.mxu0 0.0
    %5686 = vmatprep.subr.mxu0 0.0
    %5687 = vmatpush1.msra.mxu0 0.0
    %5688 = vmatprep.subr.mxu0 0.0
    %5689 = vmatpush1.msra.mxu0 0.0
    %5690 = vmatprep.subr.mxu0 0.0
    %5691 = vmatpush1.msra.mxu0 0.0
    %5692 = vmatprep.subr.mxu0 0.0
    %5693 = vmatpush1.msra.mxu0 0.0
    %5694 = vmatprep.subr.mxu0 0.0
    %5695 = vmatpush1.msra.mxu0 0.0
    %5696 = vmatprep.subr.mxu0 0.0
    %5697 = vmatpush1.msra.mxu0 0.0
    %5698 = vmatprep.subr.mxu0 0.0
    %5699 = vmatpush1.msra.mxu0 0.0
    %5700 = vmatprep.subr.mxu0 0.0
    %5701 = vmatpush1.msra.mxu0 0.0
    %5702 = vmatprep.subr.mxu0 0.0
    %5703 = vmatpush1.msra.mxu0 0.0
    %5704 = vmatprep.mubr.f32.mxu0 0.0
    %5705 = vmatmul.mubr.f32.gmra.mrb[0].mxu0 %v5638
    %v5706 = vpop.f32.mrb[0].mxu0
    %v5707 = vadd.f32 0.0, %v5706
    %v5708 = vpop.f32.mrb[0].mxu0
    %5709 = vdwg.mxu0
    %s5710 = scalar_lea.vmem [#allocation5], 448
    %v5711 = vld [vmem:[%s5710] sm:$0xff]
    %v5712 = vld [vmem:[%s5710 + $0x8] sm:$0xff]
    %v5713 = vld [vmem:[%s5710 + $0x10] sm:$0xff]
    %v5714 = vld [vmem:[%s5710 + $0x18] sm:$0xff]
    %v5716 = vsel %vm3481, %v5707, 0
    %5718 = vmatprep.subr.mxu0 0.0
    %5719 = vmatpush1.msra.mxu0 %v5711
    %5720 = vmatprep.subr.mxu0 0.0
    %5721 = vmatpush1.msra.mxu0 %v5712
    %5722 = vmatprep.subr.mxu0 0.0
    %5723 = vmatpush1.msra.mxu0 %v5713
    %5724 = vmatprep.subr.mxu0 0.0
    %5725 = vmatpush1.msra.mxu0 %v5714
    %5726 = vmatprep.subr.mxu0 0.0
    %5727 = vmatpush1.msra.mxu0 0.0
    %5728 = vmatprep.subr.mxu0 0.0
    %5729 = vmatpush1.msra.mxu0 0.0
    %5730 = vmatprep.subr.mxu0 0.0
    %5731 = vmatpush1.msra.mxu0 0.0
    %5732 = vmatprep.subr.mxu0 0.0
    %5733 = vmatpush1.msra.mxu0 0.0
    %5734 = vmatprep.subr.mxu0 0.0
    %5735 = vmatpush1.msra.mxu0 0.0
    %5736 = vmatprep.subr.mxu0 0.0
    %5737 = vmatpush1.msra.mxu0 0.0
    %5738 = vmatprep.subr.mxu0 0.0
    %5739 = vmatpush1.msra.mxu0 0.0
    %5740 = vmatprep.subr.mxu0 0.0
    %5741 = vmatpush1.msra.mxu0 0.0
    %5742 = vmatprep.subr.mxu0 0.0
    %5743 = vmatpush1.msra.mxu0 0.0
    %5744 = vmatprep.subr.mxu0 0.0
    %5745 = vmatpush1.msra.mxu0 0.0
    %5746 = vmatprep.subr.mxu0 0.0
    %5747 = vmatpush1.msra.mxu0 0.0
    %5748 = vmatprep.subr.mxu0 0.0
    %5749 = vmatpush1.msra.mxu0 0.0
    %5750 = vmatprep.subr.mxu0 0.0
    %5751 = vmatpush1.msra.mxu0 0.0
    %5752 = vmatprep.subr.mxu0 0.0
    %5753 = vmatpush1.msra.mxu0 0.0
    %5754 = vmatprep.subr.mxu0 0.0
    %5755 = vmatpush1.msra.mxu0 0.0
    %5756 = vmatprep.subr.mxu0 0.0
    %5757 = vmatpush1.msra.mxu0 0.0
    %5758 = vmatprep.subr.mxu0 0.0
    %5759 = vmatpush1.msra.mxu0 0.0
    %5760 = vmatprep.subr.mxu0 0.0
    %5761 = vmatpush1.msra.mxu0 0.0
    %5762 = vmatprep.subr.mxu0 0.0
    %5763 = vmatpush1.msra.mxu0 0.0
    %5764 = vmatprep.subr.mxu0 0.0
    %5765 = vmatpush1.msra.mxu0 0.0
    %5766 = vmatprep.subr.mxu0 0.0
    %5767 = vmatpush1.msra.mxu0 0.0
    %5768 = vmatprep.subr.mxu0 0.0
    %5769 = vmatpush1.msra.mxu0 0.0
    %5770 = vmatprep.subr.mxu0 0.0
    %5771 = vmatpush1.msra.mxu0 0.0
    %5772 = vmatprep.subr.mxu0 0.0
    %5773 = vmatpush1.msra.mxu0 0.0
    %5774 = vmatprep.subr.mxu0 0.0
    %5775 = vmatpush1.msra.mxu0 0.0
    %5776 = vmatprep.subr.mxu0 0.0
    %5777 = vmatpush1.msra.mxu0 0.0
    %5778 = vmatprep.subr.mxu0 0.0
    %5779 = vmatpush1.msra.mxu0 0.0
    %5780 = vmatprep.subr.mxu0 0.0
    %5781 = vmatpush1.msra.mxu0 0.0
    %5782 = vmatprep.mubr.f32.mxu0 0.0
    %5783 = vmatmul.mubr.f32.gmra.mrb[0].mxu0 %v5716
    %v5784 = vpop.f32.mrb[0].mxu0
    %v5785 = vadd.f32 0.0, %v5784
    %v5786 = vpop.f32.mrb[0].mxu0
    %5787 = vdwg.mxu0
    %v5788 = vadd.f32 %v5634, %v5785
    %s5789 = scalar_lea.vmem %s6, 120
    %v5790 = vld [vmem:[%s5789] sm:$0xff]
    %v5792 = vsel %vm3481, %v5790, 0
    %5794 = vmatprep.subr.mxu0 0.0
    %5795 = vmatpush1.msra.mxu0 %v3468
    %5796 = vmatprep.subr.mxu0 0.0
    %5797 = vmatpush1.msra.mxu0 %v3469
    %5798 = vmatprep.subr.mxu0 0.0
    %5799 = vmatpush1.msra.mxu0 %v3470
    %5800 = vmatprep.subr.mxu0 0.0
    %5801 = vmatpush1.msra.mxu0 %v3471
    %5802 = vmatprep.subr.mxu0 0.0
    %5803 = vmatpush1.msra.mxu0 0.0
    %5804 = vmatprep.subr.mxu0 0.0
    %5805 = vmatpush1.msra.mxu0 0.0
    %5806 = vmatprep.subr.mxu0 0.0
    %5807 = vmatpush1.msra.mxu0 0.0
    %5808 = vmatprep.subr.mxu0 0.0
    %5809 = vmatpush1.msra.mxu0 0.0
    %5810 = vmatprep.subr.mxu0 0.0
    %5811 = vmatpush1.msra.mxu0 0.0
    %5812 = vmatprep.subr.mxu0 0.0
    %5813 = vmatpush1.msra.mxu0 0.0
    %5814 = vmatprep.subr.mxu0 0.0
    %5815 = vmatpush1.msra.mxu0 0.0
    %5816 = vmatprep.subr.mxu0 0.0
    %5817 = vmatpush1.msra.mxu0 0.0
    %5818 = vmatprep.subr.mxu0 0.0
    %5819 = vmatpush1.msra.mxu0 0.0
    %5820 = vmatprep.subr.mxu0 0.0
    %5821 = vmatpush1.msra.mxu0 0.0
    %5822 = vmatprep.subr.mxu0 0.0
    %5823 = vmatpush1.msra.mxu0 0.0
    %5824 = vmatprep.subr.mxu0 0.0
    %5825 = vmatpush1.msra.mxu0 0.0
    %5826 = vmatprep.subr.mxu0 0.0
    %5827 = vmatpush1.msra.mxu0 0.0
    %5828 = vmatprep.subr.mxu0 0.0
    %5829 = vmatpush1.msra.mxu0 0.0
    %5830 = vmatprep.subr.mxu0 0.0
    %5831 = vmatpush1.msra.mxu0 0.0
    %5832 = vmatprep.subr.mxu0 0.0
    %5833 = vmatpush1.msra.mxu0 0.0
    %5834 = vmatprep.subr.mxu0 0.0
    %5835 = vmatpush1.msra.mxu0 0.0
    %5836 = vmatprep.subr.mxu0 0.0
    %5837 = vmatpush1.msra.mxu0 0.0
    %5838 = vmatprep.subr.mxu0 0.0
    %5839 = vmatpush1.msra.mxu0 0.0
    %5840 = vmatprep.subr.mxu0 0.0
    %5841 = vmatpush1.msra.mxu0 0.0
    %5842 = vmatprep.subr.mxu0 0.0
    %5843 = vmatpush1.msra.mxu0 0.0
    %5844 = vmatprep.subr.mxu0 0.0
    %5845 = vmatpush1.msra.mxu0 0.0
    %5846 = vmatprep.subr.mxu0 0.0
    %5847 = vmatpush1.msra.mxu0 0.0
    %5848 = vmatprep.subr.mxu0 0.0
    %5849 = vmatpush1.msra.mxu0 0.0
    %5850 = vmatprep.subr.mxu0 0.0
    %5851 = vmatpush1.msra.mxu0 0.0
    %5852 = vmatprep.subr.mxu0 0.0
    %5853 = vmatpush1.msra.mxu0 0.0
    %5854 = vmatprep.subr.mxu0 0.0
    %5855 = vmatpush1.msra.mxu0 0.0
    %5856 = vmatprep.subr.mxu0 0.0
    %5857 = vmatpush1.msra.mxu0 0.0
    %5858 = vmatprep.mubr.f32.mxu0 0.0
    %5859 = vmatmul.mubr.f32.gmra.mrb[0].mxu0 %v5792
    %v5860 = vpop.f32.mrb[0].mxu0
    %v5861 = vadd.f32 0.0, %v5860
    %v5862 = vpop.f32.mrb[0].mxu0
    %5863 = vdwg.mxu0
    %s5864 = scalar_lea.vmem [#allocation5], 480
    %v5865 = vld [vmem:[%s5864] sm:$0xff]
    %v5866 = vld [vmem:[%s5864 + $0x8] sm:$0xff]
    %v5867 = vld [vmem:[%s5864 + $0x10] sm:$0xff]
    %v5868 = vld [vmem:[%s5864 + $0x18] sm:$0xff]
    %v5870 = vsel %vm3481, %v5861, 0
    %5872 = vmatprep.subr.mxu0 0.0
    %5873 = vmatpush1.msra.mxu0 %v5865
    %5874 = vmatprep.subr.mxu0 0.0
    %5875 = vmatpush1.msra.mxu0 %v5866
    %5876 = vmatprep.subr.mxu0 0.0
    %5877 = vmatpush1.msra.mxu0 %v5867
    %5878 = vmatprep.subr.mxu0 0.0
    %5879 = vmatpush1.msra.mxu0 %v5868
    %5880 = vmatprep.subr.mxu0 0.0
    %5881 = vmatpush1.msra.mxu0 0.0
    %5882 = vmatprep.subr.mxu0 0.0
    %5883 = vmatpush1.msra.mxu0 0.0
    %5884 = vmatprep.subr.mxu0 0.0
    %5885 = vmatpush1.msra.mxu0 0.0
    %5886 = vmatprep.subr.mxu0 0.0
    %5887 = vmatpush1.msra.mxu0 0.0
    %5888 = vmatprep.subr.mxu0 0.0
    %5889 = vmatpush1.msra.mxu0 0.0
    %5890 = vmatprep.subr.mxu0 0.0
    %5891 = vmatpush1.msra.mxu0 0.0
    %5892 = vmatprep.subr.mxu0 0.0
    %5893 = vmatpush1.msra.mxu0 0.0
    %5894 = vmatprep.subr.mxu0 0.0
    %5895 = vmatpush1.msra.mxu0 0.0
    %5896 = vmatprep.subr.mxu0 0.0
    %5897 = vmatpush1.msra.mxu0 0.0
    %5898 = vmatprep.subr.mxu0 0.0
    %5899 = vmatpush1.msra.mxu0 0.0
    %5900 = vmatprep.subr.mxu0 0.0
    %5901 = vmatpush1.msra.mxu0 0.0
    %5902 = vmatprep.subr.mxu0 0.0
    %5903 = vmatpush1.msra.mxu0 0.0
    %5904 = vmatprep.subr.mxu0 0.0
    %5905 = vmatpush1.msra.mxu0 0.0
    %5906 = vmatprep.subr.mxu0 0.0
    %5907 = vmatpush1.msra.mxu0 0.0
    %5908 = vmatprep.subr.mxu0 0.0
    %5909 = vmatpush1.msra.mxu0 0.0
    %5910 = vmatprep.subr.mxu0 0.0
    %5911 = vmatpush1.msra.mxu0 0.0
    %5912 = vmatprep.subr.mxu0 0.0
    %5913 = vmatpush1.msra.mxu0 0.0
    %5914 = vmatprep.subr.mxu0 0.0
    %5915 = vmatpush1.msra.mxu0 0.0
    %5916 = vmatprep.subr.mxu0 0.0
    %5917 = vmatpush1.msra.mxu0 0.0
    %5918 = vmatprep.subr.mxu0 0.0
    %5919 = vmatpush1.msra.mxu0 0.0
    %5920 = vmatprep.subr.mxu0 0.0
    %5921 = vmatpush1.msra.mxu0 0.0
    %5922 = vmatprep.subr.mxu0 0.0
    %5923 = vmatpush1.msra.mxu0 0.0
    %5924 = vmatprep.subr.mxu0 0.0
    %5925 = vmatpush1.msra.mxu0 0.0
    %5926 = vmatprep.subr.mxu0 0.0
    %5927 = vmatpush1.msra.mxu0 0.0
    %5928 = vmatprep.subr.mxu0 0.0
    %5929 = vmatpush1.msra.mxu0 0.0
    %5930 = vmatprep.subr.mxu0 0.0
    %5931 = vmatpush1.msra.mxu0 0.0
    %5932 = vmatprep.subr.mxu0 0.0
    %5933 = vmatpush1.msra.mxu0 0.0
    %5934 = vmatprep.subr.mxu0 0.0
    %5935 = vmatpush1.msra.mxu0 0.0
    %5936 = vmatprep.mubr.f32.mxu0 0.0
    %5937 = vmatmul.mubr.f32.gmra.mrb[0].mxu0 %v5870
    %v5938 = vpop.f32.mrb[0].mxu0
    %v5939 = vadd.f32 0.0, %v5938
    %v5940 = vpop.f32.mrb[0].mxu0
    %5941 = vdwg.mxu0
    %v5942 = vadd.f32 %v5788, %v5939
    %vm5943 = vcmp.ge.f32.partialorder %v5942, 0.0
    %v5944 = vmul.f32 %v5942, 0.01
    %v5945 = vsel %vm5943, %v5942, %v5944
    %v5946 = vld [vmem:[%s11] sm:$0x1]
    %v5948 = vlaneseq
    %v5949 = vshrl.u32 %v5948, 7
    %v5950 = vsub.s32 0, %v5949
    %v5951 = vrot.slane %v5946, %v5950
    %v5953 = vadd.f32 %v5951, 0.0
    %v5954 = vld [vmem:[%s9] sm:$0x3]
    %vm5955 = vcmask 64512
    %v5957 = vsel %vm5955, %v5954, 0
    %5959 = vmatprep.subr.mxu0 0.0
    %5960 = vmatpush1.msra.mxu0 %v5945
    %5961 = vmatprep.subr.mxu0 0.0
    %5962 = vmatpush1.msra.mxu0 0.0
    %5963 = vmatprep.subr.mxu0 0.0
    %5964 = vmatpush1.msra.mxu0 0.0
    %5965 = vmatprep.subr.mxu0 0.0
    %5966 = vmatpush1.msra.mxu0 0.0
    %5967 = vmatprep.subr.mxu0 0.0
    %5968 = vmatpush1.msra.mxu0 0.0
    %5969 = vmatprep.subr.mxu0 0.0
    %5970 = vmatpush1.msra.mxu0 0.0
    %5971 = vmatprep.subr.mxu0 0.0
    %5972 = vmatpush1.msra.mxu0 0.0
    %5973 = vmatprep.subr.mxu0 0.0
    %5974 = vmatpush1.msra.mxu0 0.0
    %5975 = vmatprep.subr.mxu0 0.0
    %5976 = vmatpush1.msra.mxu0 0.0
    %5977 = vmatprep.subr.mxu0 0.0
    %5978 = vmatpush1.msra.mxu0 0.0
    %5979 = vmatprep.subr.mxu0 0.0
    %5980 = vmatpush1.msra.mxu0 0.0
    %5981 = vmatprep.subr.mxu0 0.0
    %5982 = vmatpush1.msra.mxu0 0.0
    %5983 = vmatprep.subr.mxu0 0.0
    %5984 = vmatpush1.msra.mxu0 0.0
    %5985 = vmatprep.subr.mxu0 0.0
    %5986 = vmatpush1.msra.mxu0 0.0
    %5987 = vmatprep.subr.mxu0 0.0
    %5988 = vmatpush1.msra.mxu0 0.0
    %5989 = vmatprep.subr.mxu0 0.0
    %5990 = vmatpush1.msra.mxu0 0.0
    %5991 = vmatprep.subr.mxu0 0.0
    %5992 = vmatpush1.msra.mxu0 0.0
    %5993 = vmatprep.subr.mxu0 0.0
    %5994 = vmatpush1.msra.mxu0 0.0
    %5995 = vmatprep.subr.mxu0 0.0
    %5996 = vmatpush1.msra.mxu0 0.0
    %5997 = vmatprep.subr.mxu0 0.0
    %5998 = vmatpush1.msra.mxu0 0.0
    %5999 = vmatprep.subr.mxu0 0.0
    %6000 = vmatpush1.msra.mxu0 0.0
    %6001 = vmatprep.subr.mxu0 0.0
    %6002 = vmatpush1.msra.mxu0 0.0
    %6003 = vmatprep.subr.mxu0 0.0
    %6004 = vmatpush1.msra.mxu0 0.0
    %6005 = vmatprep.subr.mxu0 0.0
    %6006 = vmatpush1.msra.mxu0 0.0
    %6007 = vmatprep.subr.mxu0 0.0
    %6008 = vmatpush1.msra.mxu0 0.0
    %6009 = vmatprep.subr.mxu0 0.0
    %6010 = vmatpush1.msra.mxu0 0.0
    %6011 = vmatprep.subr.mxu0 0.0
    %6012 = vmatpush1.msra.mxu0 0.0
    %6013 = vmatprep.subr.mxu0 0.0
    %6014 = vmatpush1.msra.mxu0 0.0
    %6015 = vmatprep.subr.mxu0 0.0
    %6016 = vmatpush1.msra.mxu0 0.0
    %6017 = vmatprep.subr.mxu0 0.0
    %6018 = vmatpush1.msra.mxu0 0.0
    %6019 = vmatprep.subr.mxu0 0.0
    %6020 = vmatpush1.msra.mxu0 0.0
    %6021 = vmatprep.subr.mxu0 0.0
    %6022 = vmatpush1.msra.mxu0 0.0
    %6023 = vmatprep.mubr.f32.mxu0 0.0
    %6024 = vmatmul.mubr.f32.gmra.mrb[0].mxu0 %v5957
    %v6025 = vpop.f32.mrb[0].mxu0
    %v6026 = vadd.f32 0.0, %v6025
    %v6027 = vpop.f32.mrb[0].mxu0
    %6028 = vdwg.mxu0
    %v6029 = vld [vmem:[%s10] sm:$0xff]
    %v6030 = vld [vmem:[%s10 + $0x8] sm:$0xff]
    %v6031 = vld [vmem:[%s10 + $0x10] sm:$0xff]
    %v6032 = vld [vmem:[%s10 + $0x18] sm:$0xff]
    %v6033 = vld [vmem:[%s10 + $0x20] sm:$0xff]
    %v6034 = vld [vmem:[%s10 + $0x28] sm:$0xff]
    %v6035 = vld [vmem:[%s10 + $0x30] sm:$0xff]
    %v6036 = vld [vmem:[%s10 + $0x38] sm:$0xff]
    %vm6037 = vcmask 523264
    %v6039 = vsel %vm6037, %v6026, 0
    %6041 = vmatprep.subr.mxu0 0.0
    %6042 = vmatpush1.msra.mxu0 %v6029
    %6043 = vmatprep.subr.mxu0 0.0
    %6044 = vmatpush1.msra.mxu0 %v6030
    %6045 = vmatprep.subr.mxu0 0.0
    %6046 = vmatpush1.msra.mxu0 %v6031
    %6047 = vmatprep.subr.mxu0 0.0
    %6048 = vmatpush1.msra.mxu0 %v6032
    %6049 = vmatprep.subr.mxu0 0.0
    %6050 = vmatpush1.msra.mxu0 %v6033
    %6051 = vmatprep.subr.mxu0 0.0
    %6052 = vmatpush1.msra.mxu0 %v6034
    %6053 = vmatprep.subr.mxu0 0.0
    %6054 = vmatpush1.msra.mxu0 %v6035
    %6055 = vmatprep.subr.mxu0 0.0
    %6056 = vmatpush1.msra.mxu0 %v6036
    %6057 = vmatprep.subr.mxu0 0.0
    %6058 = vmatpush1.msra.mxu0 0.0
    %6059 = vmatprep.subr.mxu0 0.0
    %6060 = vmatpush1.msra.mxu0 0.0
    %6061 = vmatprep.subr.mxu0 0.0
    %6062 = vmatpush1.msra.mxu0 0.0
    %6063 = vmatprep.subr.mxu0 0.0
    %6064 = vmatpush1.msra.mxu0 0.0
    %6065 = vmatprep.subr.mxu0 0.0
    %6066 = vmatpush1.msra.mxu0 0.0
    %6067 = vmatprep.subr.mxu0 0.0
    %6068 = vmatpush1.msra.mxu0 0.0
    %6069 = vmatprep.subr.mxu0 0.0
    %6070 = vmatpush1.msra.mxu0 0.0
    %6071 = vmatprep.subr.mxu0 0.0
    %6072 = vmatpush1.msra.mxu0 0.0
    %6073 = vmatprep.subr.mxu0 0.0
    %6074 = vmatpush1.msra.mxu0 0.0
    %6075 = vmatprep.subr.mxu0 0.0
    %6076 = vmatpush1.msra.mxu0 0.0
    %6077 = vmatprep.subr.mxu0 0.0
    %6078 = vmatpush1.msra.mxu0 0.0
    %6079 = vmatprep.subr.mxu0 0.0
    %6080 = vmatpush1.msra.mxu0 0.0
    %6081 = vmatprep.subr.mxu0 0.0
    %6082 = vmatpush1.msra.mxu0 0.0
    %6083 = vmatprep.subr.mxu0 0.0
    %6084 = vmatpush1.msra.mxu0 0.0
    %6085 = vmatprep.subr.mxu0 0.0
    %6086 = vmatpush1.msra.mxu0 0.0
    %6087 = vmatprep.subr.mxu0 0.0
    %6088 = vmatpush1.msra.mxu0 0.0
    %6089 = vmatprep.subr.mxu0 0.0
    %6090 = vmatpush1.msra.mxu0 0.0
    %6091 = vmatprep.subr.mxu0 0.0
    %6092 = vmatpush1.msra.mxu0 0.0
    %6093 = vmatprep.subr.mxu0 0.0
    %6094 = vmatpush1.msra.mxu0 0.0
    %6095 = vmatprep.subr.mxu0 0.0
    %6096 = vmatpush1.msra.mxu0 0.0
    %6097 = vmatprep.subr.mxu0 0.0
    %6098 = vmatpush1.msra.mxu0 0.0
    %6099 = vmatprep.subr.mxu0 0.0
    %6100 = vmatpush1.msra.mxu0 0.0
    %6101 = vmatprep.subr.mxu0 0.0
    %6102 = vmatpush1.msra.mxu0 0.0
    %6103 = vmatprep.subr.mxu0 0.0
    %6104 = vmatpush1.msra.mxu0 0.0
    %6105 = vmatprep.mubr.f32.mxu0 0.0
    %6106 = vmatmul.mubr.f32.gmra.mrb[0].mxu0 %v6039
    %v6107 = vpop.f32.mrb[0].mxu0
    %v6108 = vadd.f32 0.0, %v6107
    %v6109 = vpop.f32.mrb[0].mxu0
    %6110 = vdwg.mxu0
    %v6111 = vadd.f32 %v5953, %v6108
    %s6112 = scalar_lea.vmem %s9, 2
    %v6113 = vld [vmem:[%s6112] sm:$0x3]
    %v6115 = vsel %vm5955, %v6113, 0
    %6117 = vmatprep.subr.mxu0 0.0
    %6118 = vmatpush1.msra.mxu0 %v5945
    %6119 = vmatprep.subr.mxu0 0.0
    %6120 = vmatpush1.msra.mxu0 0.0
    %6121 = vmatprep.subr.mxu0 0.0
    %6122 = vmatpush1.msra.mxu0 0.0
    %6123 = vmatprep.subr.mxu0 0.0
    %6124 = vmatpush1.msra.mxu0 0.0
    %6125 = vmatprep.subr.mxu0 0.0
    %6126 = vmatpush1.msra.mxu0 0.0
    %6127 = vmatprep.subr.mxu0 0.0
    %6128 = vmatpush1.msra.mxu0 0.0
    %6129 = vmatprep.subr.mxu0 0.0
    %6130 = vmatpush1.msra.mxu0 0.0
    %6131 = vmatprep.subr.mxu0 0.0
    %6132 = vmatpush1.msra.mxu0 0.0
    %6133 = vmatprep.subr.mxu0 0.0
    %6134 = vmatpush1.msra.mxu0 0.0
    %6135 = vmatprep.subr.mxu0 0.0
    %6136 = vmatpush1.msra.mxu0 0.0
    %6137 = vmatprep.subr.mxu0 0.0
    %6138 = vmatpush1.msra.mxu0 0.0
    %6139 = vmatprep.subr.mxu0 0.0
    %6140 = vmatpush1.msra.mxu0 0.0
    %6141 = vmatprep.subr.mxu0 0.0
    %6142 = vmatpush1.msra.mxu0 0.0
    %6143 = vmatprep.subr.mxu0 0.0
    %6144 = vmatpush1.msra.mxu0 0.0
    %6145 = vmatprep.subr.mxu0 0.0
    %6146 = vmatpush1.msra.mxu0 0.0
    %6147 = vmatprep.subr.mxu0 0.0
    %6148 = vmatpush1.msra.mxu0 0.0
    %6149 = vmatprep.subr.mxu0 0.0
    %6150 = vmatpush1.msra.mxu0 0.0
    %6151 = vmatprep.subr.mxu0 0.0
    %6152 = vmatpush1.msra.mxu0 0.0
    %6153 = vmatprep.subr.mxu0 0.0
    %6154 = vmatpush1.msra.mxu0 0.0
    %6155 = vmatprep.subr.mxu0 0.0
    %6156 = vmatpush1.msra.mxu0 0.0
    %6157 = vmatprep.subr.mxu0 0.0
    %6158 = vmatpush1.msra.mxu0 0.0
    %6159 = vmatprep.subr.mxu0 0.0
    %6160 = vmatpush1.msra.mxu0 0.0
    %6161 = vmatprep.subr.mxu0 0.0
    %6162 = vmatpush1.msra.mxu0 0.0
    %6163 = vmatprep.subr.mxu0 0.0
    %6164 = vmatpush1.msra.mxu0 0.0
    %6165 = vmatprep.subr.mxu0 0.0
    %6166 = vmatpush1.msra.mxu0 0.0
    %6167 = vmatprep.subr.mxu0 0.0
    %6168 = vmatpush1.msra.mxu0 0.0
    %6169 = vmatprep.subr.mxu0 0.0
    %6170 = vmatpush1.msra.mxu0 0.0
    %6171 = vmatprep.subr.mxu0 0.0
    %6172 = vmatpush1.msra.mxu0 0.0
    %6173 = vmatprep.subr.mxu0 0.0
    %6174 = vmatpush1.msra.mxu0 0.0
    %6175 = vmatprep.subr.mxu0 0.0
    %6176 = vmatpush1.msra.mxu0 0.0
    %6177 = vmatprep.subr.mxu0 0.0
    %6178 = vmatpush1.msra.mxu0 0.0
    %6179 = vmatprep.subr.mxu0 0.0
    %6180 = vmatpush1.msra.mxu0 0.0
    %6181 = vmatprep.mubr.f32.mxu0 0.0
    %6182 = vmatmul.mubr.f32.gmra.mrb[0].mxu0 %v6115
    %v6183 = vpop.f32.mrb[0].mxu0
    %v6184 = vadd.f32 0.0, %v6183
    %v6185 = vpop.f32.mrb[0].mxu0
    %6186 = vdwg.mxu0
    %s6187 = scalar_lea.vmem %s10, 64
    %v6188 = vld [vmem:[%s6187] sm:$0xff]
    %v6189 = vld [vmem:[%s6187 + $0x8] sm:$0xff]
    %v6190 = vld [vmem:[%s6187 + $0x10] sm:$0xff]
    %v6191 = vld [vmem:[%s6187 + $0x18] sm:$0xff]
    %v6192 = vld [vmem:[%s6187 + $0x20] sm:$0xff]
    %v6193 = vld [vmem:[%s6187 + $0x28] sm:$0xff]
    %v6194 = vld [vmem:[%s6187 + $0x30] sm:$0xff]
    %v6195 = vld [vmem:[%s6187 + $0x38] sm:$0xff]
    %v6197 = vsel %vm6037, %v6184, 0
    %6199 = vmatprep.subr.mxu0 0.0
    %6200 = vmatpush1.msra.mxu0 %v6188
    %6201 = vmatprep.subr.mxu0 0.0
    %6202 = vmatpush1.msra.mxu0 %v6189
    %6203 = vmatprep.subr.mxu0 0.0
    %6204 = vmatpush1.msra.mxu0 %v6190
    %6205 = vmatprep.subr.mxu0 0.0
    %6206 = vmatpush1.msra.mxu0 %v6191
    %6207 = vmatprep.subr.mxu0 0.0
    %6208 = vmatpush1.msra.mxu0 %v6192
    %6209 = vmatprep.subr.mxu0 0.0
    %6210 = vmatpush1.msra.mxu0 %v6193
    %6211 = vmatprep.subr.mxu0 0.0
    %6212 = vmatpush1.msra.mxu0 %v6194
    %6213 = vmatprep.subr.mxu0 0.0
    %6214 = vmatpush1.msra.mxu0 %v6195
    %6215 = vmatprep.subr.mxu0 0.0
    %6216 = vmatpush1.msra.mxu0 0.0
    %6217 = vmatprep.subr.mxu0 0.0
    %6218 = vmatpush1.msra.mxu0 0.0
    %6219 = vmatprep.subr.mxu0 0.0
    %6220 = vmatpush1.msra.mxu0 0.0
    %6221 = vmatprep.subr.mxu0 0.0
    %6222 = vmatpush1.msra.mxu0 0.0
    %6223 = vmatprep.subr.mxu0 0.0
    %6224 = vmatpush1.msra.mxu0 0.0
    %6225 = vmatprep.subr.mxu0 0.0
    %6226 = vmatpush1.msra.mxu0 0.0
    %6227 = vmatprep.subr.mxu0 0.0
    %6228 = vmatpush1.msra.mxu0 0.0
    %6229 = vmatprep.subr.mxu0 0.0
    %6230 = vmatpush1.msra.mxu0 0.0
    %6231 = vmatprep.subr.mxu0 0.0
    %6232 = vmatpush1.msra.mxu0 0.0
    %6233 = vmatprep.subr.mxu0 0.0
    %6234 = vmatpush1.msra.mxu0 0.0
    %6235 = vmatprep.subr.mxu0 0.0
    %6236 = vmatpush1.msra.mxu0 0.0
    %6237 = vmatprep.subr.mxu0 0.0
    %6238 = vmatpush1.msra.mxu0 0.0
    %6239 = vmatprep.subr.mxu0 0.0
    %6240 = vmatpush1.msra.mxu0 0.0
    %6241 = vmatprep.subr.mxu0 0.0
    %6242 = vmatpush1.msra.mxu0 0.0
    %6243 = vmatprep.subr.mxu0 0.0
    %6244 = vmatpush1.msra.mxu0 0.0
    %6245 = vmatprep.subr.mxu0 0.0
    %6246 = vmatpush1.msra.mxu0 0.0
    %6247 = vmatprep.subr.mxu0 0.0
    %6248 = vmatpush1.msra.mxu0 0.0
    %6249 = vmatprep.subr.mxu0 0.0
    %6250 = vmatpush1.msra.mxu0 0.0
    %6251 = vmatprep.subr.mxu0 0.0
    %6252 = vmatpush1.msra.mxu0 0.0
    %6253 = vmatprep.subr.mxu0 0.0
    %6254 = vmatpush1.msra.mxu0 0.0
    %6255 = vmatprep.subr.mxu0 0.0
    %6256 = vmatpush1.msra.mxu0 0.0
    %6257 = vmatprep.subr.mxu0 0.0
    %6258 = vmatpush1.msra.mxu0 0.0
    %6259 = vmatprep.subr.mxu0 0.0
    %6260 = vmatpush1.msra.mxu0 0.0
    %6261 = vmatprep.subr.mxu0 0.0
    %6262 = vmatpush1.msra.mxu0 0.0
    %6263 = vmatprep.mubr.f32.mxu0 0.0
    %6264 = vmatmul.mubr.f32.gmra.mrb[0].mxu0 %v6197
    %v6265 = vpop.f32.mrb[0].mxu0
    %v6266 = vadd.f32 0.0, %v6265
    %v6267 = vpop.f32.mrb[0].mxu0
    %6268 = vdwg.mxu0
    %v6269 = vadd.f32 %v6111, %v6266
    %s6270 = scalar_lea.vmem %s9, 4
    %v6271 = vld [vmem:[%s6270] sm:$0x3]
    %v6273 = vsel %vm5955, %v6271, 0
    %6275 = vmatprep.subr.mxu0 0.0
    %6276 = vmatpush1.msra.mxu0 %v5945
    %6277 = vmatprep.subr.mxu0 0.0
    %6278 = vmatpush1.msra.mxu0 0.0
    %6279 = vmatprep.subr.mxu0 0.0
    %6280 = vmatpush1.msra.mxu0 0.0
    %6281 = vmatprep.subr.mxu0 0.0
    %6282 = vmatpush1.msra.mxu0 0.0
    %6283 = vmatprep.subr.mxu0 0.0
    %6284 = vmatpush1.msra.mxu0 0.0
    %6285 = vmatprep.subr.mxu0 0.0
    %6286 = vmatpush1.msra.mxu0 0.0
    %6287 = vmatprep.subr.mxu0 0.0
    %6288 = vmatpush1.msra.mxu0 0.0
    %6289 = vmatprep.subr.mxu0 0.0
    %6290 = vmatpush1.msra.mxu0 0.0
    %6291 = vmatprep.subr.mxu0 0.0
    %6292 = vmatpush1.msra.mxu0 0.0
    %6293 = vmatprep.subr.mxu0 0.0
    %6294 = vmatpush1.msra.mxu0 0.0
    %6295 = vmatprep.subr.mxu0 0.0
    %6296 = vmatpush1.msra.mxu0 0.0
    %6297 = vmatprep.subr.mxu0 0.0
    %6298 = vmatpush1.msra.mxu0 0.0
    %6299 = vmatprep.subr.mxu0 0.0
    %6300 = vmatpush1.msra.mxu0 0.0
    %6301 = vmatprep.subr.mxu0 0.0
    %6302 = vmatpush1.msra.mxu0 0.0
    %6303 = vmatprep.subr.mxu0 0.0
    %6304 = vmatpush1.msra.mxu0 0.0
    %6305 = vmatprep.subr.mxu0 0.0
    %6306 = vmatpush1.msra.mxu0 0.0
    %6307 = vmatprep.subr.mxu0 0.0
    %6308 = vmatpush1.msra.mxu0 0.0
    %6309 = vmatprep.subr.mxu0 0.0
    %6310 = vmatpush1.msra.mxu0 0.0
    %6311 = vmatprep.subr.mxu0 0.0
    %6312 = vmatpush1.msra.mxu0 0.0
    %6313 = vmatprep.subr.mxu0 0.0
    %6314 = vmatpush1.msra.mxu0 0.0
    %6315 = vmatprep.subr.mxu0 0.0
    %6316 = vmatpush1.msra.mxu0 0.0
    %6317 = vmatprep.subr.mxu0 0.0
    %6318 = vmatpush1.msra.mxu0 0.0
    %6319 = vmatprep.subr.mxu0 0.0
    %6320 = vmatpush1.msra.mxu0 0.0
    %6321 = vmatprep.subr.mxu0 0.0
    %6322 = vmatpush1.msra.mxu0 0.0
    %6323 = vmatprep.subr.mxu0 0.0
    %6324 = vmatpush1.msra.mxu0 0.0
    %6325 = vmatprep.subr.mxu0 0.0
    %6326 = vmatpush1.msra.mxu0 0.0
    %6327 = vmatprep.subr.mxu0 0.0
    %6328 = vmatpush1.msra.mxu0 0.0
    %6329 = vmatprep.subr.mxu0 0.0
    %6330 = vmatpush1.msra.mxu0 0.0
    %6331 = vmatprep.subr.mxu0 0.0
    %6332 = vmatpush1.msra.mxu0 0.0
    %6333 = vmatprep.subr.mxu0 0.0
    %6334 = vmatpush1.msra.mxu0 0.0
    %6335 = vmatprep.subr.mxu0 0.0
    %6336 = vmatpush1.msra.mxu0 0.0
    %6337 = vmatprep.subr.mxu0 0.0
    %6338 = vmatpush1.msra.mxu0 0.0
    %6339 = vmatprep.mubr.f32.mxu0 0.0
    %6340 = vmatmul.mubr.f32.gmra.mrb[0].mxu0 %v6273
    %v6341 = vpop.f32.mrb[0].mxu0
    %v6342 = vadd.f32 0.0, %v6341
    %v6343 = vpop.f32.mrb[0].mxu0
    %6344 = vdwg.mxu0
    %s6345 = scalar_lea.vmem %s10, 128
    %v6346 = vld [vmem:[%s6345] sm:$0xff]
    %v6347 = vld [vmem:[%s6345 + $0x8] sm:$0xff]
    %v6348 = vld [vmem:[%s6345 + $0x10] sm:$0xff]
    %v6349 = vld [vmem:[%s6345 + $0x18] sm:$0xff]
    %v6350 = vld [vmem:[%s6345 + $0x20] sm:$0xff]
    %v6351 = vld [vmem:[%s6345 + $0x28] sm:$0xff]
    %v6352 = vld [vmem:[%s6345 + $0x30] sm:$0xff]
    %v6353 = vld [vmem:[%s6345 + $0x38] sm:$0xff]
    %v6355 = vsel %vm6037, %v6342, 0
    %6357 = vmatprep.subr.mxu0 0.0
    %6358 = vmatpush1.msra.mxu0 %v6346
    %6359 = vmatprep.subr.mxu0 0.0
    %6360 = vmatpush1.msra.mxu0 %v6347
    %6361 = vmatprep.subr.mxu0 0.0
    %6362 = vmatpush1.msra.mxu0 %v6348
    %6363 = vmatprep.subr.mxu0 0.0
    %6364 = vmatpush1.msra.mxu0 %v6349
    %6365 = vmatprep.subr.mxu0 0.0
    %6366 = vmatpush1.msra.mxu0 %v6350
    %6367 = vmatprep.subr.mxu0 0.0
    %6368 = vmatpush1.msra.mxu0 %v6351
    %6369 = vmatprep.subr.mxu0 0.0
    %6370 = vmatpush1.msra.mxu0 %v6352
    %6371 = vmatprep.subr.mxu0 0.0
    %6372 = vmatpush1.msra.mxu0 %v6353
    %6373 = vmatprep.subr.mxu0 0.0
    %6374 = vmatpush1.msra.mxu0 0.0
    %6375 = vmatprep.subr.mxu0 0.0
    %6376 = vmatpush1.msra.mxu0 0.0
    %6377 = vmatprep.subr.mxu0 0.0
    %6378 = vmatpush1.msra.mxu0 0.0
    %6379 = vmatprep.subr.mxu0 0.0
    %6380 = vmatpush1.msra.mxu0 0.0
    %6381 = vmatprep.subr.mxu0 0.0
    %6382 = vmatpush1.msra.mxu0 0.0
    %6383 = vmatprep.subr.mxu0 0.0
    %6384 = vmatpush1.msra.mxu0 0.0
    %6385 = vmatprep.subr.mxu0 0.0
    %6386 = vmatpush1.msra.mxu0 0.0
    %6387 = vmatprep.subr.mxu0 0.0
    %6388 = vmatpush1.msra.mxu0 0.0
    %6389 = vmatprep.subr.mxu0 0.0
    %6390 = vmatpush1.msra.mxu0 0.0
    %6391 = vmatprep.subr.mxu0 0.0
    %6392 = vmatpush1.msra.mxu0 0.0
    %6393 = vmatprep.subr.mxu0 0.0
    %6394 = vmatpush1.msra.mxu0 0.0
    %6395 = vmatprep.subr.mxu0 0.0
    %6396 = vmatpush1.msra.mxu0 0.0
    %6397 = vmatprep.subr.mxu0 0.0
    %6398 = vmatpush1.msra.mxu0 0.0
    %6399 = vmatprep.subr.mxu0 0.0
    %6400 = vmatpush1.msra.mxu0 0.0
    %6401 = vmatprep.subr.mxu0 0.0
    %6402 = vmatpush1.msra.mxu0 0.0
    %6403 = vmatprep.subr.mxu0 0.0
    %6404 = vmatpush1.msra.mxu0 0.0
    %6405 = vmatprep.subr.mxu0 0.0
    %6406 = vmatpush1.msra.mxu0 0.0
    %6407 = vmatprep.subr.mxu0 0.0
    %6408 = vmatpush1.msra.mxu0 0.0
    %6409 = vmatprep.subr.mxu0 0.0
    %6410 = vmatpush1.msra.mxu0 0.0
    %6411 = vmatprep.subr.mxu0 0.0
    %6412 = vmatpush1.msra.mxu0 0.0
    %6413 = vmatprep.subr.mxu0 0.0
    %6414 = vmatpush1.msra.mxu0 0.0
    %6415 = vmatprep.subr.mxu0 0.0
    %6416 = vmatpush1.msra.mxu0 0.0
    %6417 = vmatprep.subr.mxu0 0.0
    %6418 = vmatpush1.msra.mxu0 0.0
    %6419 = vmatprep.subr.mxu0 0.0
    %6420 = vmatpush1.msra.mxu0 0.0
    %6421 = vmatprep.mubr.f32.mxu0 0.0
    %6422 = vmatmul.mubr.f32.gmra.mrb[0].mxu0 %v6355
    %v6423 = vpop.f32.mrb[0].mxu0
    %v6424 = vadd.f32 0.0, %v6423
    %v6425 = vpop.f32.mrb[0].mxu0
    %6426 = vdwg.mxu0
    %v6427 = vadd.f32 %v6269, %v6424
    %s6428 = scalar_lea.vmem %s9, 6
    %v6429 = vld [vmem:[%s6428] sm:$0x3]
    %v6431 = vsel %vm5955, %v6429, 0
    %6433 = vmatprep.subr.mxu0 0.0
    %6434 = vmatpush1.msra.mxu0 %v5945
    %6435 = vmatprep.subr.mxu0 0.0
    %6436 = vmatpush1.msra.mxu0 0.0
    %6437 = vmatprep.subr.mxu0 0.0
    %6438 = vmatpush1.msra.mxu0 0.0
    %6439 = vmatprep.subr.mxu0 0.0
    %6440 = vmatpush1.msra.mxu0 0.0
    %6441 = vmatprep.subr.mxu0 0.0
    %6442 = vmatpush1.msra.mxu0 0.0
    %6443 = vmatprep.subr.mxu0 0.0
    %6444 = vmatpush1.msra.mxu0 0.0
    %6445 = vmatprep.subr.mxu0 0.0
    %6446 = vmatpush1.msra.mxu0 0.0
    %6447 = vmatprep.subr.mxu0 0.0
    %6448 = vmatpush1.msra.mxu0 0.0
    %6449 = vmatprep.subr.mxu0 0.0
    %6450 = vmatpush1.msra.mxu0 0.0
    %6451 = vmatprep.subr.mxu0 0.0
    %6452 = vmatpush1.msra.mxu0 0.0
    %6453 = vmatprep.subr.mxu0 0.0
    %6454 = vmatpush1.msra.mxu0 0.0
    %6455 = vmatprep.subr.mxu0 0.0
    %6456 = vmatpush1.msra.mxu0 0.0
    %6457 = vmatprep.subr.mxu0 0.0
    %6458 = vmatpush1.msra.mxu0 0.0
    %6459 = vmatprep.subr.mxu0 0.0
    %6460 = vmatpush1.msra.mxu0 0.0
    %6461 = vmatprep.subr.mxu0 0.0
    %6462 = vmatpush1.msra.mxu0 0.0
    %6463 = vmatprep.subr.mxu0 0.0
    %6464 = vmatpush1.msra.mxu0 0.0
    %6465 = vmatprep.subr.mxu0 0.0
    %6466 = vmatpush1.msra.mxu0 0.0
    %6467 = vmatprep.subr.mxu0 0.0
    %6468 = vmatpush1.msra.mxu0 0.0
    %6469 = vmatprep.subr.mxu0 0.0
    %6470 = vmatpush1.msra.mxu0 0.0
    %6471 = vmatprep.subr.mxu0 0.0
    %6472 = vmatpush1.msra.mxu0 0.0
    %6473 = vmatprep.subr.mxu0 0.0
    %6474 = vmatpush1.msra.mxu0 0.0
    %6475 = vmatprep.subr.mxu0 0.0
    %6476 = vmatpush1.msra.mxu0 0.0
    %6477 = vmatprep.subr.mxu0 0.0
    %6478 = vmatpush1.msra.mxu0 0.0
    %6479 = vmatprep.subr.mxu0 0.0
    %6480 = vmatpush1.msra.mxu0 0.0
    %6481 = vmatprep.subr.mxu0 0.0
    %6482 = vmatpush1.msra.mxu0 0.0
    %6483 = vmatprep.subr.mxu0 0.0
    %6484 = vmatpush1.msra.mxu0 0.0
    %6485 = vmatprep.subr.mxu0 0.0
    %6486 = vmatpush1.msra.mxu0 0.0
    %6487 = vmatprep.subr.mxu0 0.0
    %6488 = vmatpush1.msra.mxu0 0.0
    %6489 = vmatprep.subr.mxu0 0.0
    %6490 = vmatpush1.msra.mxu0 0.0
    %6491 = vmatprep.subr.mxu0 0.0
    %6492 = vmatpush1.msra.mxu0 0.0
    %6493 = vmatprep.subr.mxu0 0.0
    %6494 = vmatpush1.msra.mxu0 0.0
    %6495 = vmatprep.subr.mxu0 0.0
    %6496 = vmatpush1.msra.mxu0 0.0
    %6497 = vmatprep.mubr.f32.mxu0 0.0
    %6498 = vmatmul.mubr.f32.gmra.mrb[0].mxu0 %v6431
    %v6499 = vpop.f32.mrb[0].mxu0
    %v6500 = vadd.f32 0.0, %v6499
    %v6501 = vpop.f32.mrb[0].mxu0
    %6502 = vdwg.mxu0
    %s6503 = scalar_lea.vmem %s10, 192
    %v6504 = vld [vmem:[%s6503] sm:$0xff]
    %v6505 = vld [vmem:[%s6503 + $0x8] sm:$0xff]
    %v6506 = vld [vmem:[%s6503 + $0x10] sm:$0xff]
    %v6507 = vld [vmem:[%s6503 + $0x18] sm:$0xff]
    %v6508 = vld [vmem:[%s6503 + $0x20] sm:$0xff]
    %v6509 = vld [vmem:[%s6503 + $0x28] sm:$0xff]
    %v6510 = vld [vmem:[%s6503 + $0x30] sm:$0xff]
    %v6511 = vld [vmem:[%s6503 + $0x38] sm:$0xff]
    %v6513 = vsel %vm6037, %v6500, 0
    %6515 = vmatprep.subr.mxu0 0.0
    %6516 = vmatpush1.msra.mxu0 %v6504
    %6517 = vmatprep.subr.mxu0 0.0
    %6518 = vmatpush1.msra.mxu0 %v6505
    %6519 = vmatprep.subr.mxu0 0.0
    %6520 = vmatpush1.msra.mxu0 %v6506
    %6521 = vmatprep.subr.mxu0 0.0
    %6522 = vmatpush1.msra.mxu0 %v6507
    %6523 = vmatprep.subr.mxu0 0.0
    %6524 = vmatpush1.msra.mxu0 %v6508
    %6525 = vmatprep.subr.mxu0 0.0
    %6526 = vmatpush1.msra.mxu0 %v6509
    %6527 = vmatprep.subr.mxu0 0.0
    %6528 = vmatpush1.msra.mxu0 %v6510
    %6529 = vmatprep.subr.mxu0 0.0
    %6530 = vmatpush1.msra.mxu0 %v6511
    %6531 = vmatprep.subr.mxu0 0.0
    %6532 = vmatpush1.msra.mxu0 0.0
    %6533 = vmatprep.subr.mxu0 0.0
    %6534 = vmatpush1.msra.mxu0 0.0
    %6535 = vmatprep.subr.mxu0 0.0
    %6536 = vmatpush1.msra.mxu0 0.0
    %6537 = vmatprep.subr.mxu0 0.0
    %6538 = vmatpush1.msra.mxu0 0.0
    %6539 = vmatprep.subr.mxu0 0.0
    %6540 = vmatpush1.msra.mxu0 0.0
    %6541 = vmatprep.subr.mxu0 0.0
    %6542 = vmatpush1.msra.mxu0 0.0
    %6543 = vmatprep.subr.mxu0 0.0
    %6544 = vmatpush1.msra.mxu0 0.0
    %6545 = vmatprep.subr.mxu0 0.0
    %6546 = vmatpush1.msra.mxu0 0.0
    %6547 = vmatprep.subr.mxu0 0.0
    %6548 = vmatpush1.msra.mxu0 0.0
    %6549 = vmatprep.subr.mxu0 0.0
    %6550 = vmatpush1.msra.mxu0 0.0
    %6551 = vmatprep.subr.mxu0 0.0
    %6552 = vmatpush1.msra.mxu0 0.0
    %6553 = vmatprep.subr.mxu0 0.0
    %6554 = vmatpush1.msra.mxu0 0.0
    %6555 = vmatprep.subr.mxu0 0.0
    %6556 = vmatpush1.msra.mxu0 0.0
    %6557 = vmatprep.subr.mxu0 0.0
    %6558 = vmatpush1.msra.mxu0 0.0
    %6559 = vmatprep.subr.mxu0 0.0
    %6560 = vmatpush1.msra.mxu0 0.0
    %6561 = vmatprep.subr.mxu0 0.0
    %6562 = vmatpush1.msra.mxu0 0.0
    %6563 = vmatprep.subr.mxu0 0.0
    %6564 = vmatpush1.msra.mxu0 0.0
    %6565 = vmatprep.subr.mxu0 0.0
    %6566 = vmatpush1.msra.mxu0 0.0
    %6567 = vmatprep.subr.mxu0 0.0
    %6568 = vmatpush1.msra.mxu0 0.0
    %6569 = vmatprep.subr.mxu0 0.0
    %6570 = vmatpush1.msra.mxu0 0.0
    %6571 = vmatprep.subr.mxu0 0.0
    %6572 = vmatpush1.msra.mxu0 0.0
    %6573 = vmatprep.subr.mxu0 0.0
    %6574 = vmatpush1.msra.mxu0 0.0
    %6575 = vmatprep.subr.mxu0 0.0
    %6576 = vmatpush1.msra.mxu0 0.0
    %6577 = vmatprep.subr.mxu0 0.0
    %6578 = vmatpush1.msra.mxu0 0.0
    %6579 = vmatprep.mubr.f32.mxu0 0.0
    %6580 = vmatmul.mubr.f32.gmra.mrb[0].mxu0 %v6513
    %v6581 = vpop.f32.mrb[0].mxu0
    %v6582 = vadd.f32 0.0, %v6581
    %v6583 = vpop.f32.mrb[0].mxu0
    %6584 = vdwg.mxu0
    %v6585 = vadd.f32 %v6427, %v6582
    %s6586 = scalar_lea.vmem %s9, 8
    %v6587 = vld [vmem:[%s6586] sm:$0x3]
    %v6589 = vsel %vm5955, %v6587, 0
    %6591 = vmatprep.subr.mxu0 0.0
    %6592 = vmatpush1.msra.mxu0 %v5945
    %6593 = vmatprep.subr.mxu0 0.0
    %6594 = vmatpush1.msra.mxu0 0.0
    %6595 = vmatprep.subr.mxu0 0.0
    %6596 = vmatpush1.msra.mxu0 0.0
    %6597 = vmatprep.subr.mxu0 0.0
    %6598 = vmatpush1.msra.mxu0 0.0
    %6599 = vmatprep.subr.mxu0 0.0
    %6600 = vmatpush1.msra.mxu0 0.0
    %6601 = vmatprep.subr.mxu0 0.0
    %6602 = vmatpush1.msra.mxu0 0.0
    %6603 = vmatprep.subr.mxu0 0.0
    %6604 = vmatpush1.msra.mxu0 0.0
    %6605 = vmatprep.subr.mxu0 0.0
    %6606 = vmatpush1.msra.mxu0 0.0
    %6607 = vmatprep.subr.mxu0 0.0
    %6608 = vmatpush1.msra.mxu0 0.0
    %6609 = vmatprep.subr.mxu0 0.0
    %6610 = vmatpush1.msra.mxu0 0.0
    %6611 = vmatprep.subr.mxu0 0.0
    %6612 = vmatpush1.msra.mxu0 0.0
    %6613 = vmatprep.subr.mxu0 0.0
    %6614 = vmatpush1.msra.mxu0 0.0
    %6615 = vmatprep.subr.mxu0 0.0
    %6616 = vmatpush1.msra.mxu0 0.0
    %6617 = vmatprep.subr.mxu0 0.0
    %6618 = vmatpush1.msra.mxu0 0.0
    %6619 = vmatprep.subr.mxu0 0.0
    %6620 = vmatpush1.msra.mxu0 0.0
    %6621 = vmatprep.subr.mxu0 0.0
    %6622 = vmatpush1.msra.mxu0 0.0
    %6623 = vmatprep.subr.mxu0 0.0
    %6624 = vmatpush1.msra.mxu0 0.0
    %6625 = vmatprep.subr.mxu0 0.0
    %6626 = vmatpush1.msra.mxu0 0.0
    %6627 = vmatprep.subr.mxu0 0.0
    %6628 = vmatpush1.msra.mxu0 0.0
    %6629 = vmatprep.subr.mxu0 0.0
    %6630 = vmatpush1.msra.mxu0 0.0
    %6631 = vmatprep.subr.mxu0 0.0
    %6632 = vmatpush1.msra.mxu0 0.0
    %6633 = vmatprep.subr.mxu0 0.0
    %6634 = vmatpush1.msra.mxu0 0.0
    %6635 = vmatprep.subr.mxu0 0.0
    %6636 = vmatpush1.msra.mxu0 0.0
    %6637 = vmatprep.subr.mxu0 0.0
    %6638 = vmatpush1.msra.mxu0 0.0
    %6639 = vmatprep.subr.mxu0 0.0
    %6640 = vmatpush1.msra.mxu0 0.0
    %6641 = vmatprep.subr.mxu0 0.0
    %6642 = vmatpush1.msra.mxu0 0.0
    %6643 = vmatprep.subr.mxu0 0.0
    %6644 = vmatpush1.msra.mxu0 0.0
    %6645 = vmatprep.subr.mxu0 0.0
    %6646 = vmatpush1.msra.mxu0 0.0
    %6647 = vmatprep.subr.mxu0 0.0
    %6648 = vmatpush1.msra.mxu0 0.0
    %6649 = vmatprep.subr.mxu0 0.0
    %6650 = vmatpush1.msra.mxu0 0.0
    %6651 = vmatprep.subr.mxu0 0.0
    %6652 = vmatpush1.msra.mxu0 0.0
    %6653 = vmatprep.subr.mxu0 0.0
    %6654 = vmatpush1.msra.mxu0 0.0
    %6655 = vmatprep.mubr.f32.mxu0 0.0
    %6656 = vmatmul.mubr.f32.gmra.mrb[0].mxu0 %v6589
    %v6657 = vpop.f32.mrb[0].mxu0
    %v6658 = vadd.f32 0.0, %v6657
    %v6659 = vpop.f32.mrb[0].mxu0
    %6660 = vdwg.mxu0
    %s6661 = scalar_lea.vmem %s10, 256
    %v6662 = vld [vmem:[%s6661] sm:$0xff]
    %v6663 = vld [vmem:[%s6661 + $0x8] sm:$0xff]
    %v6664 = vld [vmem:[%s6661 + $0x10] sm:$0xff]
    %v6665 = vld [vmem:[%s6661 + $0x18] sm:$0xff]
    %v6666 = vld [vmem:[%s6661 + $0x20] sm:$0xff]
    %v6667 = vld [vmem:[%s6661 + $0x28] sm:$0xff]
    %v6668 = vld [vmem:[%s6661 + $0x30] sm:$0xff]
    %v6669 = vld [vmem:[%s6661 + $0x38] sm:$0xff]
    %v6671 = vsel %vm6037, %v6658, 0
    %6673 = vmatprep.subr.mxu0 0.0
    %6674 = vmatpush1.msra.mxu0 %v6662
    %6675 = vmatprep.subr.mxu0 0.0
    %6676 = vmatpush1.msra.mxu0 %v6663
    %6677 = vmatprep.subr.mxu0 0.0
    %6678 = vmatpush1.msra.mxu0 %v6664
    %6679 = vmatprep.subr.mxu0 0.0
    %6680 = vmatpush1.msra.mxu0 %v6665
    %6681 = vmatprep.subr.mxu0 0.0
    %6682 = vmatpush1.msra.mxu0 %v6666
    %6683 = vmatprep.subr.mxu0 0.0
    %6684 = vmatpush1.msra.mxu0 %v6667
    %6685 = vmatprep.subr.mxu0 0.0
    %6686 = vmatpush1.msra.mxu0 %v6668
    %6687 = vmatprep.subr.mxu0 0.0
    %6688 = vmatpush1.msra.mxu0 %v6669
    %6689 = vmatprep.subr.mxu0 0.0
    %6690 = vmatpush1.msra.mxu0 0.0
    %6691 = vmatprep.subr.mxu0 0.0
    %6692 = vmatpush1.msra.mxu0 0.0
    %6693 = vmatprep.subr.mxu0 0.0
    %6694 = vmatpush1.msra.mxu0 0.0
    %6695 = vmatprep.subr.mxu0 0.0
    %6696 = vmatpush1.msra.mxu0 0.0
    %6697 = vmatprep.subr.mxu0 0.0
    %6698 = vmatpush1.msra.mxu0 0.0
    %6699 = vmatprep.subr.mxu0 0.0
    %6700 = vmatpush1.msra.mxu0 0.0
    %6701 = vmatprep.subr.mxu0 0.0
    %6702 = vmatpush1.msra.mxu0 0.0
    %6703 = vmatprep.subr.mxu0 0.0
    %6704 = vmatpush1.msra.mxu0 0.0
    %6705 = vmatprep.subr.mxu0 0.0
    %6706 = vmatpush1.msra.mxu0 0.0
    %6707 = vmatprep.subr.mxu0 0.0
    %6708 = vmatpush1.msra.mxu0 0.0
    %6709 = vmatprep.subr.mxu0 0.0
    %6710 = vmatpush1.msra.mxu0 0.0
    %6711 = vmatprep.subr.mxu0 0.0
    %6712 = vmatpush1.msra.mxu0 0.0
    %6713 = vmatprep.subr.mxu0 0.0
    %6714 = vmatpush1.msra.mxu0 0.0
    %6715 = vmatprep.subr.mxu0 0.0
    %6716 = vmatpush1.msra.mxu0 0.0
    %6717 = vmatprep.subr.mxu0 0.0
    %6718 = vmatpush1.msra.mxu0 0.0
    %6719 = vmatprep.subr.mxu0 0.0
    %6720 = vmatpush1.msra.mxu0 0.0
    %6721 = vmatprep.subr.mxu0 0.0
    %6722 = vmatpush1.msra.mxu0 0.0
    %6723 = vmatprep.subr.mxu0 0.0
    %6724 = vmatpush1.msra.mxu0 0.0
    %6725 = vmatprep.subr.mxu0 0.0
    %6726 = vmatpush1.msra.mxu0 0.0
    %6727 = vmatprep.subr.mxu0 0.0
    %6728 = vmatpush1.msra.mxu0 0.0
    %6729 = vmatprep.subr.mxu0 0.0
    %6730 = vmatpush1.msra.mxu0 0.0
    %6731 = vmatprep.subr.mxu0 0.0
    %6732 = vmatpush1.msra.mxu0 0.0
    %6733 = vmatprep.subr.mxu0 0.0
    %6734 = vmatpush1.msra.mxu0 0.0
    %6735 = vmatprep.subr.mxu0 0.0
    %6736 = vmatpush1.msra.mxu0 0.0
    %6737 = vmatprep.mubr.f32.mxu0 0.0
    %6738 = vmatmul.mubr.f32.gmra.mrb[0].mxu0 %v6671
    %v6739 = vpop.f32.mrb[0].mxu0
    %v6740 = vadd.f32 0.0, %v6739
    %v6741 = vpop.f32.mrb[0].mxu0
    %6742 = vdwg.mxu0
    %v6743 = vadd.f32 %v6585, %v6740
    %s6744 = scalar_lea.vmem %s9, 10
    %v6745 = vld [vmem:[%s6744] sm:$0x3]
    %v6747 = vsel %vm5955, %v6745, 0
    %6749 = vmatprep.subr.mxu0 0.0
    %6750 = vmatpush1.msra.mxu0 %v5945
    %6751 = vmatprep.subr.mxu0 0.0
    %6752 = vmatpush1.msra.mxu0 0.0
    %6753 = vmatprep.subr.mxu0 0.0
    %6754 = vmatpush1.msra.mxu0 0.0
    %6755 = vmatprep.subr.mxu0 0.0
    %6756 = vmatpush1.msra.mxu0 0.0
    %6757 = vmatprep.subr.mxu0 0.0
    %6758 = vmatpush1.msra.mxu0 0.0
    %6759 = vmatprep.subr.mxu0 0.0
    %6760 = vmatpush1.msra.mxu0 0.0
    %6761 = vmatprep.subr.mxu0 0.0
    %6762 = vmatpush1.msra.mxu0 0.0
    %6763 = vmatprep.subr.mxu0 0.0
    %6764 = vmatpush1.msra.mxu0 0.0
    %6765 = vmatprep.subr.mxu0 0.0
    %6766 = vmatpush1.msra.mxu0 0.0
    %6767 = vmatprep.subr.mxu0 0.0
    %6768 = vmatpush1.msra.mxu0 0.0
    %6769 = vmatprep.subr.mxu0 0.0
    %6770 = vmatpush1.msra.mxu0 0.0
    %6771 = vmatprep.subr.mxu0 0.0
    %6772 = vmatpush1.msra.mxu0 0.0
    %6773 = vmatprep.subr.mxu0 0.0
    %6774 = vmatpush1.msra.mxu0 0.0
    %6775 = vmatprep.subr.mxu0 0.0
    %6776 = vmatpush1.msra.mxu0 0.0
    %6777 = vmatprep.subr.mxu0 0.0
    %6778 = vmatpush1.msra.mxu0 0.0
    %6779 = vmatprep.subr.mxu0 0.0
    %6780 = vmatpush1.msra.mxu0 0.0
    %6781 = vmatprep.subr.mxu0 0.0
    %6782 = vmatpush1.msra.mxu0 0.0
    %6783 = vmatprep.subr.mxu0 0.0
    %6784 = vmatpush1.msra.mxu0 0.0
    %6785 = vmatprep.subr.mxu0 0.0
    %6786 = vmatpush1.msra.mxu0 0.0
    %6787 = vmatprep.subr.mxu0 0.0
    %6788 = vmatpush1.msra.mxu0 0.0
    %6789 = vmatprep.subr.mxu0 0.0
    %6790 = vmatpush1.msra.mxu0 0.0
    %6791 = vmatprep.subr.mxu0 0.0
    %6792 = vmatpush1.msra.mxu0 0.0
    %6793 = vmatprep.subr.mxu0 0.0
    %6794 = vmatpush1.msra.mxu0 0.0
    %6795 = vmatprep.subr.mxu0 0.0
    %6796 = vmatpush1.msra.mxu0 0.0
    %6797 = vmatprep.subr.mxu0 0.0
    %6798 = vmatpush1.msra.mxu0 0.0
    %6799 = vmatprep.subr.mxu0 0.0
    %6800 = vmatpush1.msra.mxu0 0.0
    %6801 = vmatprep.subr.mxu0 0.0
    %6802 = vmatpush1.msra.mxu0 0.0
    %6803 = vmatprep.subr.mxu0 0.0
    %6804 = vmatpush1.msra.mxu0 0.0
    %6805 = vmatprep.subr.mxu0 0.0
    %6806 = vmatpush1.msra.mxu0 0.0
    %6807 = vmatprep.subr.mxu0 0.0
    %6808 = vmatpush1.msra.mxu0 0.0
    %6809 = vmatprep.subr.mxu0 0.0
    %6810 = vmatpush1.msra.mxu0 0.0
    %6811 = vmatprep.subr.mxu0 0.0
    %6812 = vmatpush1.msra.mxu0 0.0
    %6813 = vmatprep.mubr.f32.mxu0 0.0
    %6814 = vmatmul.mubr.f32.gmra.mrb[0].mxu0 %v6747
    %v6815 = vpop.f32.mrb[0].mxu0
    %v6816 = vadd.f32 0.0, %v6815
    %v6817 = vpop.f32.mrb[0].mxu0
    %6818 = vdwg.mxu0
    %s6819 = scalar_lea.vmem %s10, 320
    %v6820 = vld [vmem:[%s6819] sm:$0xff]
    %v6821 = vld [vmem:[%s6819 + $0x8] sm:$0xff]
    %v6822 = vld [vmem:[%s6819 + $0x10] sm:$0xff]
    %v6823 = vld [vmem:[%s6819 + $0x18] sm:$0xff]
    %v6824 = vld [vmem:[%s6819 + $0x20] sm:$0xff]
    %v6825 = vld [vmem:[%s6819 + $0x28] sm:$0xff]
    %v6826 = vld [vmem:[%s6819 + $0x30] sm:$0xff]
    %v6827 = vld [vmem:[%s6819 + $0x38] sm:$0xff]
    %v6829 = vsel %vm6037, %v6816, 0
    %6831 = vmatprep.subr.mxu0 0.0
    %6832 = vmatpush1.msra.mxu0 %v6820
    %6833 = vmatprep.subr.mxu0 0.0
    %6834 = vmatpush1.msra.mxu0 %v6821
    %6835 = vmatprep.subr.mxu0 0.0
    %6836 = vmatpush1.msra.mxu0 %v6822
    %6837 = vmatprep.subr.mxu0 0.0
    %6838 = vmatpush1.msra.mxu0 %v6823
    %6839 = vmatprep.subr.mxu0 0.0
    %6840 = vmatpush1.msra.mxu0 %v6824
    %6841 = vmatprep.subr.mxu0 0.0
    %6842 = vmatpush1.msra.mxu0 %v6825
    %6843 = vmatprep.subr.mxu0 0.0
    %6844 = vmatpush1.msra.mxu0 %v6826
    %6845 = vmatprep.subr.mxu0 0.0
    %6846 = vmatpush1.msra.mxu0 %v6827
    %6847 = vmatprep.subr.mxu0 0.0
    %6848 = vmatpush1.msra.mxu0 0.0
    %6849 = vmatprep.subr.mxu0 0.0
    %6850 = vmatpush1.msra.mxu0 0.0
    %6851 = vmatprep.subr.mxu0 0.0
    %6852 = vmatpush1.msra.mxu0 0.0
    %6853 = vmatprep.subr.mxu0 0.0
    %6854 = vmatpush1.msra.mxu0 0.0
    %6855 = vmatprep.subr.mxu0 0.0
    %6856 = vmatpush1.msra.mxu0 0.0
    %6857 = vmatprep.subr.mxu0 0.0
    %6858 = vmatpush1.msra.mxu0 0.0
    %6859 = vmatprep.subr.mxu0 0.0
    %6860 = vmatpush1.msra.mxu0 0.0
    %6861 = vmatprep.subr.mxu0 0.0
    %6862 = vmatpush1.msra.mxu0 0.0
    %6863 = vmatprep.subr.mxu0 0.0
    %6864 = vmatpush1.msra.mxu0 0.0
    %6865 = vmatprep.subr.mxu0 0.0
    %6866 = vmatpush1.msra.mxu0 0.0
    %6867 = vmatprep.subr.mxu0 0.0
    %6868 = vmatpush1.msra.mxu0 0.0
    %6869 = vmatprep.subr.mxu0 0.0
    %6870 = vmatpush1.msra.mxu0 0.0
    %6871 = vmatprep.subr.mxu0 0.0
    %6872 = vmatpush1.msra.mxu0 0.0
    %6873 = vmatprep.subr.mxu0 0.0
    %6874 = vmatpush1.msra.mxu0 0.0
    %6875 = vmatprep.subr.mxu0 0.0
    %6876 = vmatpush1.msra.mxu0 0.0
    %6877 = vmatprep.subr.mxu0 0.0
    %6878 = vmatpush1.msra.mxu0 0.0
    %6879 = vmatprep.subr.mxu0 0.0
    %6880 = vmatpush1.msra.mxu0 0.0
    %6881 = vmatprep.subr.mxu0 0.0
    %6882 = vmatpush1.msra.mxu0 0.0
    %6883 = vmatprep.subr.mxu0 0.0
    %6884 = vmatpush1.msra.mxu0 0.0
    %6885 = vmatprep.subr.mxu0 0.0
    %6886 = vmatpush1.msra.mxu0 0.0
    %6887 = vmatprep.subr.mxu0 0.0
    %6888 = vmatpush1.msra.mxu0 0.0
    %6889 = vmatprep.subr.mxu0 0.0
    %6890 = vmatpush1.msra.mxu0 0.0
    %6891 = vmatprep.subr.mxu0 0.0
    %6892 = vmatpush1.msra.mxu0 0.0
    %6893 = vmatprep.subr.mxu0 0.0
    %6894 = vmatpush1.msra.mxu0 0.0
    %6895 = vmatprep.mubr.f32.mxu0 0.0
    %6896 = vmatmul.mubr.f32.gmra.mrb[0].mxu0 %v6829
    %v6897 = vpop.f32.mrb[0].mxu0
    %v6898 = vadd.f32 0.0, %v6897
    %v6899 = vpop.f32.mrb[0].mxu0
    %6900 = vdwg.mxu0
    %v6901 = vadd.f32 %v6743, %v6898
    %s6902 = scalar_lea.vmem %s9, 12
    %v6903 = vld [vmem:[%s6902] sm:$0x3]
    %v6905 = vsel %vm5955, %v6903, 0
    %6907 = vmatprep.subr.mxu0 0.0
    %6908 = vmatpush1.msra.mxu0 %v5945
    %6909 = vmatprep.subr.mxu0 0.0
    %6910 = vmatpush1.msra.mxu0 0.0
    %6911 = vmatprep.subr.mxu0 0.0
    %6912 = vmatpush1.msra.mxu0 0.0
    %6913 = vmatprep.subr.mxu0 0.0
    %6914 = vmatpush1.msra.mxu0 0.0
    %6915 = vmatprep.subr.mxu0 0.0
    %6916 = vmatpush1.msra.mxu0 0.0
    %6917 = vmatprep.subr.mxu0 0.0
    %6918 = vmatpush1.msra.mxu0 0.0
    %6919 = vmatprep.subr.mxu0 0.0
    %6920 = vmatpush1.msra.mxu0 0.0
    %6921 = vmatprep.subr.mxu0 0.0
    %6922 = vmatpush1.msra.mxu0 0.0
    %6923 = vmatprep.subr.mxu0 0.0
    %6924 = vmatpush1.msra.mxu0 0.0
    %6925 = vmatprep.subr.mxu0 0.0
    %6926 = vmatpush1.msra.mxu0 0.0
    %6927 = vmatprep.subr.mxu0 0.0
    %6928 = vmatpush1.msra.mxu0 0.0
    %6929 = vmatprep.subr.mxu0 0.0
    %6930 = vmatpush1.msra.mxu0 0.0
    %6931 = vmatprep.subr.mxu0 0.0
    %6932 = vmatpush1.msra.mxu0 0.0
    %6933 = vmatprep.subr.mxu0 0.0
    %6934 = vmatpush1.msra.mxu0 0.0
    %6935 = vmatprep.subr.mxu0 0.0
    %6936 = vmatpush1.msra.mxu0 0.0
    %6937 = vmatprep.subr.mxu0 0.0
    %6938 = vmatpush1.msra.mxu0 0.0
    %6939 = vmatprep.subr.mxu0 0.0
    %6940 = vmatpush1.msra.mxu0 0.0
    %6941 = vmatprep.subr.mxu0 0.0
    %6942 = vmatpush1.msra.mxu0 0.0
    %6943 = vmatprep.subr.mxu0 0.0
    %6944 = vmatpush1.msra.mxu0 0.0
    %6945 = vmatprep.subr.mxu0 0.0
    %6946 = vmatpush1.msra.mxu0 0.0
    %6947 = vmatprep.subr.mxu0 0.0
    %6948 = vmatpush1.msra.mxu0 0.0
    %6949 = vmatprep.subr.mxu0 0.0
    %6950 = vmatpush1.msra.mxu0 0.0
    %6951 = vmatprep.subr.mxu0 0.0
    %6952 = vmatpush1.msra.mxu0 0.0
    %6953 = vmatprep.subr.mxu0 0.0
    %6954 = vmatpush1.msra.mxu0 0.0
    %6955 = vmatprep.subr.mxu0 0.0
    %6956 = vmatpush1.msra.mxu0 0.0
    %6957 = vmatprep.subr.mxu0 0.0
    %6958 = vmatpush1.msra.mxu0 0.0
    %6959 = vmatprep.subr.mxu0 0.0
    %6960 = vmatpush1.msra.mxu0 0.0
    %6961 = vmatprep.subr.mxu0 0.0
    %6962 = vmatpush1.msra.mxu0 0.0
    %6963 = vmatprep.subr.mxu0 0.0
    %6964 = vmatpush1.msra.mxu0 0.0
    %6965 = vmatprep.subr.mxu0 0.0
    %6966 = vmatpush1.msra.mxu0 0.0
    %6967 = vmatprep.subr.mxu0 0.0
    %6968 = vmatpush1.msra.mxu0 0.0
    %6969 = vmatprep.subr.mxu0 0.0
    %6970 = vmatpush1.msra.mxu0 0.0
    %6971 = vmatprep.mubr.f32.mxu0 0.0
    %6972 = vmatmul.mubr.f32.gmra.mrb[0].mxu0 %v6905
    %v6973 = vpop.f32.mrb[0].mxu0
    %v6974 = vadd.f32 0.0, %v6973
    %v6975 = vpop.f32.mrb[0].mxu0
    %6976 = vdwg.mxu0
    %s6977 = scalar_lea.vmem %s10, 384
    %v6978 = vld [vmem:[%s6977] sm:$0xff]
    %v6979 = vld [vmem:[%s6977 + $0x8] sm:$0xff]
    %v6980 = vld [vmem:[%s6977 + $0x10] sm:$0xff]
    %v6981 = vld [vmem:[%s6977 + $0x18] sm:$0xff]
    %v6982 = vld [vmem:[%s6977 + $0x20] sm:$0xff]
    %v6983 = vld [vmem:[%s6977 + $0x28] sm:$0xff]
    %v6984 = vld [vmem:[%s6977 + $0x30] sm:$0xff]
    %v6985 = vld [vmem:[%s6977 + $0x38] sm:$0xff]
    %v6987 = vsel %vm6037, %v6974, 0
    %6989 = vmatprep.subr.mxu0 0.0
    %6990 = vmatpush1.msra.mxu0 %v6978
    %6991 = vmatprep.subr.mxu0 0.0
    %6992 = vmatpush1.msra.mxu0 %v6979
    %6993 = vmatprep.subr.mxu0 0.0
    %6994 = vmatpush1.msra.mxu0 %v6980
    %6995 = vmatprep.subr.mxu0 0.0
    %6996 = vmatpush1.msra.mxu0 %v6981
    %6997 = vmatprep.subr.mxu0 0.0
    %6998 = vmatpush1.msra.mxu0 %v6982
    %6999 = vmatprep.subr.mxu0 0.0
    %7000 = vmatpush1.msra.mxu0 %v6983
    %7001 = vmatprep.subr.mxu0 0.0
    %7002 = vmatpush1.msra.mxu0 %v6984
    %7003 = vmatprep.subr.mxu0 0.0
    %7004 = vmatpush1.msra.mxu0 %v6985
    %7005 = vmatprep.subr.mxu0 0.0
    %7006 = vmatpush1.msra.mxu0 0.0
    %7007 = vmatprep.subr.mxu0 0.0
    %7008 = vmatpush1.msra.mxu0 0.0
    %7009 = vmatprep.subr.mxu0 0.0
    %7010 = vmatpush1.msra.mxu0 0.0
    %7011 = vmatprep.subr.mxu0 0.0
    %7012 = vmatpush1.msra.mxu0 0.0
    %7013 = vmatprep.subr.mxu0 0.0
    %7014 = vmatpush1.msra.mxu0 0.0
    %7015 = vmatprep.subr.mxu0 0.0
    %7016 = vmatpush1.msra.mxu0 0.0
    %7017 = vmatprep.subr.mxu0 0.0
    %7018 = vmatpush1.msra.mxu0 0.0
    %7019 = vmatprep.subr.mxu0 0.0
    %7020 = vmatpush1.msra.mxu0 0.0
    %7021 = vmatprep.subr.mxu0 0.0
    %7022 = vmatpush1.msra.mxu0 0.0
    %7023 = vmatprep.subr.mxu0 0.0
    %7024 = vmatpush1.msra.mxu0 0.0
    %7025 = vmatprep.subr.mxu0 0.0
    %7026 = vmatpush1.msra.mxu0 0.0
    %7027 = vmatprep.subr.mxu0 0.0
    %7028 = vmatpush1.msra.mxu0 0.0
    %7029 = vmatprep.subr.mxu0 0.0
    %7030 = vmatpush1.msra.mxu0 0.0
    %7031 = vmatprep.subr.mxu0 0.0
    %7032 = vmatpush1.msra.mxu0 0.0
    %7033 = vmatprep.subr.mxu0 0.0
    %7034 = vmatpush1.msra.mxu0 0.0
    %7035 = vmatprep.subr.mxu0 0.0
    %7036 = vmatpush1.msra.mxu0 0.0
    %7037 = vmatprep.subr.mxu0 0.0
    %7038 = vmatpush1.msra.mxu0 0.0
    %7039 = vmatprep.subr.mxu0 0.0
    %7040 = vmatpush1.msra.mxu0 0.0
    %7041 = vmatprep.subr.mxu0 0.0
    %7042 = vmatpush1.msra.mxu0 0.0
    %7043 = vmatprep.subr.mxu0 0.0
    %7044 = vmatpush1.msra.mxu0 0.0
    %7045 = vmatprep.subr.mxu0 0.0
    %7046 = vmatpush1.msra.mxu0 0.0
    %7047 = vmatprep.subr.mxu0 0.0
    %7048 = vmatpush1.msra.mxu0 0.0
    %7049 = vmatprep.subr.mxu0 0.0
    %7050 = vmatpush1.msra.mxu0 0.0
    %7051 = vmatprep.subr.mxu0 0.0
    %7052 = vmatpush1.msra.mxu0 0.0
    %7053 = vmatprep.mubr.f32.mxu0 0.0
    %7054 = vmatmul.mubr.f32.gmra.mrb[0].mxu0 %v6987
    %v7055 = vpop.f32.mrb[0].mxu0
    %v7056 = vadd.f32 0.0, %v7055
    %v7057 = vpop.f32.mrb[0].mxu0
    %7058 = vdwg.mxu0
    %v7059 = vadd.f32 %v6901, %v7056
    %s7060 = scalar_lea.vmem %s9, 14
    %v7061 = vld [vmem:[%s7060] sm:$0x3]
    %v7063 = vsel %vm5955, %v7061, 0
    %7065 = vmatprep.subr.mxu0 0.0
    %7066 = vmatpush1.msra.mxu0 %v5945
    %7067 = vmatprep.subr.mxu0 0.0
    %7068 = vmatpush1.msra.mxu0 0.0
    %7069 = vmatprep.subr.mxu0 0.0
    %7070 = vmatpush1.msra.mxu0 0.0
    %7071 = vmatprep.subr.mxu0 0.0
    %7072 = vmatpush1.msra.mxu0 0.0
    %7073 = vmatprep.subr.mxu0 0.0
    %7074 = vmatpush1.msra.mxu0 0.0
    %7075 = vmatprep.subr.mxu0 0.0
    %7076 = vmatpush1.msra.mxu0 0.0
    %7077 = vmatprep.subr.mxu0 0.0
    %7078 = vmatpush1.msra.mxu0 0.0
    %7079 = vmatprep.subr.mxu0 0.0
    %7080 = vmatpush1.msra.mxu0 0.0
    %7081 = vmatprep.subr.mxu0 0.0
    %7082 = vmatpush1.msra.mxu0 0.0
    %7083 = vmatprep.subr.mxu0 0.0
    %7084 = vmatpush1.msra.mxu0 0.0
    %7085 = vmatprep.subr.mxu0 0.0
    %7086 = vmatpush1.msra.mxu0 0.0
    %7087 = vmatprep.subr.mxu0 0.0
    %7088 = vmatpush1.msra.mxu0 0.0
    %7089 = vmatprep.subr.mxu0 0.0
    %7090 = vmatpush1.msra.mxu0 0.0
    %7091 = vmatprep.subr.mxu0 0.0
    %7092 = vmatpush1.msra.mxu0 0.0
    %7093 = vmatprep.subr.mxu0 0.0
    %7094 = vmatpush1.msra.mxu0 0.0
    %7095 = vmatprep.subr.mxu0 0.0
    %7096 = vmatpush1.msra.mxu0 0.0
    %7097 = vmatprep.subr.mxu0 0.0
    %7098 = vmatpush1.msra.mxu0 0.0
    %7099 = vmatprep.subr.mxu0 0.0
    %7100 = vmatpush1.msra.mxu0 0.0
    %7101 = vmatprep.subr.mxu0 0.0
    %7102 = vmatpush1.msra.mxu0 0.0
    %7103 = vmatprep.subr.mxu0 0.0
    %7104 = vmatpush1.msra.mxu0 0.0
    %7105 = vmatprep.subr.mxu0 0.0
    %7106 = vmatpush1.msra.mxu0 0.0
    %7107 = vmatprep.subr.mxu0 0.0
    %7108 = vmatpush1.msra.mxu0 0.0
    %7109 = vmatprep.subr.mxu0 0.0
    %7110 = vmatpush1.msra.mxu0 0.0
    %7111 = vmatprep.subr.mxu0 0.0
    %7112 = vmatpush1.msra.mxu0 0.0
    %7113 = vmatprep.subr.mxu0 0.0
    %7114 = vmatpush1.msra.mxu0 0.0
    %7115 = vmatprep.subr.mxu0 0.0
    %7116 = vmatpush1.msra.mxu0 0.0
    %7117 = vmatprep.subr.mxu0 0.0
    %7118 = vmatpush1.msra.mxu0 0.0
    %7119 = vmatprep.subr.mxu0 0.0
    %7120 = vmatpush1.msra.mxu0 0.0
    %7121 = vmatprep.subr.mxu0 0.0
    %7122 = vmatpush1.msra.mxu0 0.0
    %7123 = vmatprep.subr.mxu0 0.0
    %7124 = vmatpush1.msra.mxu0 0.0
    %7125 = vmatprep.subr.mxu0 0.0
    %7126 = vmatpush1.msra.mxu0 0.0
    %7127 = vmatprep.subr.mxu0 0.0
    %7128 = vmatpush1.msra.mxu0 0.0
    %7129 = vmatprep.mubr.f32.mxu0 0.0
    %7130 = vmatmul.mubr.f32.gmra.mrb[0].mxu0 %v7063
    %v7131 = vpop.f32.mrb[0].mxu0
    %v7132 = vadd.f32 0.0, %v7131
    %v7133 = vpop.f32.mrb[0].mxu0
    %7134 = vdwg.mxu0
    %s7135 = scalar_lea.vmem %s10, 448
    %v7136 = vld [vmem:[%s7135] sm:$0xff]
    %v7137 = vld [vmem:[%s7135 + $0x8] sm:$0xff]
    %v7138 = vld [vmem:[%s7135 + $0x10] sm:$0xff]
    %v7139 = vld [vmem:[%s7135 + $0x18] sm:$0xff]
    %v7140 = vld [vmem:[%s7135 + $0x20] sm:$0xff]
    %v7141 = vld [vmem:[%s7135 + $0x28] sm:$0xff]
    %v7142 = vld [vmem:[%s7135 + $0x30] sm:$0xff]
    %v7143 = vld [vmem:[%s7135 + $0x38] sm:$0xff]
    %v7145 = vsel %vm6037, %v7132, 0
    %7147 = vmatprep.subr.mxu0 0.0
    %7148 = vmatpush1.msra.mxu0 %v7136
    %7149 = vmatprep.subr.mxu0 0.0
    %7150 = vmatpush1.msra.mxu0 %v7137
    %7151 = vmatprep.subr.mxu0 0.0
    %7152 = vmatpush1.msra.mxu0 %v7138
    %7153 = vmatprep.subr.mxu0 0.0
    %7154 = vmatpush1.msra.mxu0 %v7139
    %7155 = vmatprep.subr.mxu0 0.0
    %7156 = vmatpush1.msra.mxu0 %v7140
    %7157 = vmatprep.subr.mxu0 0.0
    %7158 = vmatpush1.msra.mxu0 %v7141
    %7159 = vmatprep.subr.mxu0 0.0
    %7160 = vmatpush1.msra.mxu0 %v7142
    %7161 = vmatprep.subr.mxu0 0.0
    %7162 = vmatpush1.msra.mxu0 %v7143
    %7163 = vmatprep.subr.mxu0 0.0
    %7164 = vmatpush1.msra.mxu0 0.0
    %7165 = vmatprep.subr.mxu0 0.0
    %7166 = vmatpush1.msra.mxu0 0.0
    %7167 = vmatprep.subr.mxu0 0.0
    %7168 = vmatpush1.msra.mxu0 0.0
    %7169 = vmatprep.subr.mxu0 0.0
    %7170 = vmatpush1.msra.mxu0 0.0
    %7171 = vmatprep.subr.mxu0 0.0
    %7172 = vmatpush1.msra.mxu0 0.0
    %7173 = vmatprep.subr.mxu0 0.0
    %7174 = vmatpush1.msra.mxu0 0.0
    %7175 = vmatprep.subr.mxu0 0.0
    %7176 = vmatpush1.msra.mxu0 0.0
    %7177 = vmatprep.subr.mxu0 0.0
    %7178 = vmatpush1.msra.mxu0 0.0
    %7179 = vmatprep.subr.mxu0 0.0
    %7180 = vmatpush1.msra.mxu0 0.0
    %7181 = vmatprep.subr.mxu0 0.0
    %7182 = vmatpush1.msra.mxu0 0.0
    %7183 = vmatprep.subr.mxu0 0.0
    %7184 = vmatpush1.msra.mxu0 0.0
    %7185 = vmatprep.subr.mxu0 0.0
    %7186 = vmatpush1.msra.mxu0 0.0
    %7187 = vmatprep.subr.mxu0 0.0
    %7188 = vmatpush1.msra.mxu0 0.0
    %7189 = vmatprep.subr.mxu0 0.0
    %7190 = vmatpush1.msra.mxu0 0.0
    %7191 = vmatprep.subr.mxu0 0.0
    %7192 = vmatpush1.msra.mxu0 0.0
    %7193 = vmatprep.subr.mxu0 0.0
    %7194 = vmatpush1.msra.mxu0 0.0
    %7195 = vmatprep.subr.mxu0 0.0
    %7196 = vmatpush1.msra.mxu0 0.0
    %7197 = vmatprep.subr.mxu0 0.0
    %7198 = vmatpush1.msra.mxu0 0.0
    %7199 = vmatprep.subr.mxu0 0.0
    %7200 = vmatpush1.msra.mxu0 0.0
    %7201 = vmatprep.subr.mxu0 0.0
    %7202 = vmatpush1.msra.mxu0 0.0
    %7203 = vmatprep.subr.mxu0 0.0
    %7204 = vmatpush1.msra.mxu0 0.0
    %7205 = vmatprep.subr.mxu0 0.0
    %7206 = vmatpush1.msra.mxu0 0.0
    %7207 = vmatprep.subr.mxu0 0.0
    %7208 = vmatpush1.msra.mxu0 0.0
    %7209 = vmatprep.subr.mxu0 0.0
    %7210 = vmatpush1.msra.mxu0 0.0
    %7211 = vmatprep.mubr.f32.mxu0 0.0
    %7212 = vmatmul.mubr.f32.gmra.mrb[0].mxu0 %v7145
    %v7213 = vpop.f32.mrb[0].mxu0
    %v7214 = vadd.f32 0.0, %v7213
    %v7215 = vpop.f32.mrb[0].mxu0
    %7216 = vdwg.mxu0
    %v7217 = vadd.f32 %v7059, %v7214
    %s7218 = scalar_lea.vmem %s9, 16
    %v7219 = vld [vmem:[%s7218] sm:$0x3]
    %v7221 = vsel %vm5955, %v7219, 0
    %7223 = vmatprep.subr.mxu0 0.0
    %7224 = vmatpush1.msra.mxu0 %v5945
    %7225 = vmatprep.subr.mxu0 0.0
    %7226 = vmatpush1.msra.mxu0 0.0
    %7227 = vmatprep.subr.mxu0 0.0
    %7228 = vmatpush1.msra.mxu0 0.0
    %7229 = vmatprep.subr.mxu0 0.0
    %7230 = vmatpush1.msra.mxu0 0.0
    %7231 = vmatprep.subr.mxu0 0.0
    %7232 = vmatpush1.msra.mxu0 0.0
    %7233 = vmatprep.subr.mxu0 0.0
    %7234 = vmatpush1.msra.mxu0 0.0
    %7235 = vmatprep.subr.mxu0 0.0
    %7236 = vmatpush1.msra.mxu0 0.0
    %7237 = vmatprep.subr.mxu0 0.0
    %7238 = vmatpush1.msra.mxu0 0.0
    %7239 = vmatprep.subr.mxu0 0.0
    %7240 = vmatpush1.msra.mxu0 0.0
    %7241 = vmatprep.subr.mxu0 0.0
    %7242 = vmatpush1.msra.mxu0 0.0
    %7243 = vmatprep.subr.mxu0 0.0
    %7244 = vmatpush1.msra.mxu0 0.0
    %7245 = vmatprep.subr.mxu0 0.0
    %7246 = vmatpush1.msra.mxu0 0.0
    %7247 = vmatprep.subr.mxu0 0.0
    %7248 = vmatpush1.msra.mxu0 0.0
    %7249 = vmatprep.subr.mxu0 0.0
    %7250 = vmatpush1.msra.mxu0 0.0
    %7251 = vmatprep.subr.mxu0 0.0
    %7252 = vmatpush1.msra.mxu0 0.0
    %7253 = vmatprep.subr.mxu0 0.0
    %7254 = vmatpush1.msra.mxu0 0.0
    %7255 = vmatprep.subr.mxu0 0.0
    %7256 = vmatpush1.msra.mxu0 0.0
    %7257 = vmatprep.subr.mxu0 0.0
    %7258 = vmatpush1.msra.mxu0 0.0
    %7259 = vmatprep.subr.mxu0 0.0
    %7260 = vmatpush1.msra.mxu0 0.0
    %7261 = vmatprep.subr.mxu0 0.0
    %7262 = vmatpush1.msra.mxu0 0.0
    %7263 = vmatprep.subr.mxu0 0.0
    %7264 = vmatpush1.msra.mxu0 0.0
    %7265 = vmatprep.subr.mxu0 0.0
    %7266 = vmatpush1.msra.mxu0 0.0
    %7267 = vmatprep.subr.mxu0 0.0
    %7268 = vmatpush1.msra.mxu0 0.0
    %7269 = vmatprep.subr.mxu0 0.0
    %7270 = vmatpush1.msra.mxu0 0.0
    %7271 = vmatprep.subr.mxu0 0.0
    %7272 = vmatpush1.msra.mxu0 0.0
    %7273 = vmatprep.subr.mxu0 0.0
    %7274 = vmatpush1.msra.mxu0 0.0
    %7275 = vmatprep.subr.mxu0 0.0
    %7276 = vmatpush1.msra.mxu0 0.0
    %7277 = vmatprep.subr.mxu0 0.0
    %7278 = vmatpush1.msra.mxu0 0.0
    %7279 = vmatprep.subr.mxu0 0.0
    %7280 = vmatpush1.msra.mxu0 0.0
    %7281 = vmatprep.subr.mxu0 0.0
    %7282 = vmatpush1.msra.mxu0 0.0
    %7283 = vmatprep.subr.mxu0 0.0
    %7284 = vmatpush1.msra.mxu0 0.0
    %7285 = vmatprep.subr.mxu0 0.0
    %7286 = vmatpush1.msra.mxu0 0.0
    %7287 = vmatprep.mubr.f32.mxu0 0.0
    %7288 = vmatmul.mubr.f32.gmra.mrb[0].mxu0 %v7221
    %v7289 = vpop.f32.mrb[0].mxu0
    %v7290 = vadd.f32 0.0, %v7289
    %v7291 = vpop.f32.mrb[0].mxu0
    %7292 = vdwg.mxu0
    %s7293 = scalar_lea.vmem %s10, 512
    %v7294 = vld [vmem:[%s7293] sm:$0xff]
    %v7295 = vld [vmem:[%s7293 + $0x8] sm:$0xff]
    %v7296 = vld [vmem:[%s7293 + $0x10] sm:$0xff]
    %v7297 = vld [vmem:[%s7293 + $0x18] sm:$0xff]
    %v7298 = vld [vmem:[%s7293 + $0x20] sm:$0xff]
    %v7299 = vld [vmem:[%s7293 + $0x28] sm:$0xff]
    %v7300 = vld [vmem:[%s7293 + $0x30] sm:$0xff]
    %v7301 = vld [vmem:[%s7293 + $0x38] sm:$0xff]
    %v7303 = vsel %vm6037, %v7290, 0
    %7305 = vmatprep.subr.mxu0 0.0
    %7306 = vmatpush1.msra.mxu0 %v7294
    %7307 = vmatprep.subr.mxu0 0.0
    %7308 = vmatpush1.msra.mxu0 %v7295
    %7309 = vmatprep.subr.mxu0 0.0
    %7310 = vmatpush1.msra.mxu0 %v7296
    %7311 = vmatprep.subr.mxu0 0.0
    %7312 = vmatpush1.msra.mxu0 %v7297
    %7313 = vmatprep.subr.mxu0 0.0
    %7314 = vmatpush1.msra.mxu0 %v7298
    %7315 = vmatprep.subr.mxu0 0.0
    %7316 = vmatpush1.msra.mxu0 %v7299
    %7317 = vmatprep.subr.mxu0 0.0
    %7318 = vmatpush1.msra.mxu0 %v7300
    %7319 = vmatprep.subr.mxu0 0.0
    %7320 = vmatpush1.msra.mxu0 %v7301
    %7321 = vmatprep.subr.mxu0 0.0
    %7322 = vmatpush1.msra.mxu0 0.0
    %7323 = vmatprep.subr.mxu0 0.0
    %7324 = vmatpush1.msra.mxu0 0.0
    %7325 = vmatprep.subr.mxu0 0.0
    %7326 = vmatpush1.msra.mxu0 0.0
    %7327 = vmatprep.subr.mxu0 0.0
    %7328 = vmatpush1.msra.mxu0 0.0
    %7329 = vmatprep.subr.mxu0 0.0
    %7330 = vmatpush1.msra.mxu0 0.0
    %7331 = vmatprep.subr.mxu0 0.0
    %7332 = vmatpush1.msra.mxu0 0.0
    %7333 = vmatprep.subr.mxu0 0.0
    %7334 = vmatpush1.msra.mxu0 0.0
    %7335 = vmatprep.subr.mxu0 0.0
    %7336 = vmatpush1.msra.mxu0 0.0
    %7337 = vmatprep.subr.mxu0 0.0
    %7338 = vmatpush1.msra.mxu0 0.0
    %7339 = vmatprep.subr.mxu0 0.0
    %7340 = vmatpush1.msra.mxu0 0.0
    %7341 = vmatprep.subr.mxu0 0.0
    %7342 = vmatpush1.msra.mxu0 0.0
    %7343 = vmatprep.subr.mxu0 0.0
    %7344 = vmatpush1.msra.mxu0 0.0
    %7345 = vmatprep.subr.mxu0 0.0
    %7346 = vmatpush1.msra.mxu0 0.0
    %7347 = vmatprep.subr.mxu0 0.0
    %7348 = vmatpush1.msra.mxu0 0.0
    %7349 = vmatprep.subr.mxu0 0.0
    %7350 = vmatpush1.msra.mxu0 0.0
    %7351 = vmatprep.subr.mxu0 0.0
    %7352 = vmatpush1.msra.mxu0 0.0
    %7353 = vmatprep.subr.mxu0 0.0
    %7354 = vmatpush1.msra.mxu0 0.0
    %7355 = vmatprep.subr.mxu0 0.0
    %7356 = vmatpush1.msra.mxu0 0.0
    %7357 = vmatprep.subr.mxu0 0.0
    %7358 = vmatpush1.msra.mxu0 0.0
    %7359 = vmatprep.subr.mxu0 0.0
    %7360 = vmatpush1.msra.mxu0 0.0
    %7361 = vmatprep.subr.mxu0 0.0
    %7362 = vmatpush1.msra.mxu0 0.0
    %7363 = vmatprep.subr.mxu0 0.0
    %7364 = vmatpush1.msra.mxu0 0.0
    %7365 = vmatprep.subr.mxu0 0.0
    %7366 = vmatpush1.msra.mxu0 0.0
    %7367 = vmatprep.subr.mxu0 0.0
    %7368 = vmatpush1.msra.mxu0 0.0
    %7369 = vmatprep.mubr.f32.mxu0 0.0
    %7370 = vmatmul.mubr.f32.gmra.mrb[0].mxu0 %v7303
    %v7371 = vpop.f32.mrb[0].mxu0
    %v7372 = vadd.f32 0.0, %v7371
    %v7373 = vpop.f32.mrb[0].mxu0
    %7374 = vdwg.mxu0
    %v7375 = vadd.f32 %v7217, %v7372
    %s7376 = scalar_lea.vmem %s9, 18
    %v7377 = vld [vmem:[%s7376] sm:$0x3]
    %v7379 = vsel %vm5955, %v7377, 0
    %7381 = vmatprep.subr.mxu0 0.0
    %7382 = vmatpush1.msra.mxu0 %v5945
    %7383 = vmatprep.subr.mxu0 0.0
    %7384 = vmatpush1.msra.mxu0 0.0
    %7385 = vmatprep.subr.mxu0 0.0
    %7386 = vmatpush1.msra.mxu0 0.0
    %7387 = vmatprep.subr.mxu0 0.0
    %7388 = vmatpush1.msra.mxu0 0.0
    %7389 = vmatprep.subr.mxu0 0.0
    %7390 = vmatpush1.msra.mxu0 0.0
    %7391 = vmatprep.subr.mxu0 0.0
    %7392 = vmatpush1.msra.mxu0 0.0
    %7393 = vmatprep.subr.mxu0 0.0
    %7394 = vmatpush1.msra.mxu0 0.0
    %7395 = vmatprep.subr.mxu0 0.0
    %7396 = vmatpush1.msra.mxu0 0.0
    %7397 = vmatprep.subr.mxu0 0.0
    %7398 = vmatpush1.msra.mxu0 0.0
    %7399 = vmatprep.subr.mxu0 0.0
    %7400 = vmatpush1.msra.mxu0 0.0
    %7401 = vmatprep.subr.mxu0 0.0
    %7402 = vmatpush1.msra.mxu0 0.0
    %7403 = vmatprep.subr.mxu0 0.0
    %7404 = vmatpush1.msra.mxu0 0.0
    %7405 = vmatprep.subr.mxu0 0.0
    %7406 = vmatpush1.msra.mxu0 0.0
    %7407 = vmatprep.subr.mxu0 0.0
    %7408 = vmatpush1.msra.mxu0 0.0
    %7409 = vmatprep.subr.mxu0 0.0
    %7410 = vmatpush1.msra.mxu0 0.0
    %7411 = vmatprep.subr.mxu0 0.0
    %7412 = vmatpush1.msra.mxu0 0.0
    %7413 = vmatprep.subr.mxu0 0.0
    %7414 = vmatpush1.msra.mxu0 0.0
    %7415 = vmatprep.subr.mxu0 0.0
    %7416 = vmatpush1.msra.mxu0 0.0
    %7417 = vmatprep.subr.mxu0 0.0
    %7418 = vmatpush1.msra.mxu0 0.0
    %7419 = vmatprep.subr.mxu0 0.0
    %7420 = vmatpush1.msra.mxu0 0.0
    %7421 = vmatprep.subr.mxu0 0.0
    %7422 = vmatpush1.msra.mxu0 0.0
    %7423 = vmatprep.subr.mxu0 0.0
    %7424 = vmatpush1.msra.mxu0 0.0
    %7425 = vmatprep.subr.mxu0 0.0
    %7426 = vmatpush1.msra.mxu0 0.0
    %7427 = vmatprep.subr.mxu0 0.0
    %7428 = vmatpush1.msra.mxu0 0.0
    %7429 = vmatprep.subr.mxu0 0.0
    %7430 = vmatpush1.msra.mxu0 0.0
    %7431 = vmatprep.subr.mxu0 0.0
    %7432 = vmatpush1.msra.mxu0 0.0
    %7433 = vmatprep.subr.mxu0 0.0
    %7434 = vmatpush1.msra.mxu0 0.0
    %7435 = vmatprep.subr.mxu0 0.0
    %7436 = vmatpush1.msra.mxu0 0.0
    %7437 = vmatprep.subr.mxu0 0.0
    %7438 = vmatpush1.msra.mxu0 0.0
    %7439 = vmatprep.subr.mxu0 0.0
    %7440 = vmatpush1.msra.mxu0 0.0
    %7441 = vmatprep.subr.mxu0 0.0
    %7442 = vmatpush1.msra.mxu0 0.0
    %7443 = vmatprep.subr.mxu0 0.0
    %7444 = vmatpush1.msra.mxu0 0.0
    %7445 = vmatprep.mubr.f32.mxu0 0.0
    %7446 = vmatmul.mubr.f32.gmra.mrb[0].mxu0 %v7379
    %v7447 = vpop.f32.mrb[0].mxu0
    %v7448 = vadd.f32 0.0, %v7447
    %v7449 = vpop.f32.mrb[0].mxu0
    %7450 = vdwg.mxu0
    %s7451 = scalar_lea.vmem %s10, 576
    %v7452 = vld [vmem:[%s7451] sm:$0xff]
    %v7453 = vld [vmem:[%s7451 + $0x8] sm:$0xff]
    %v7454 = vld [vmem:[%s7451 + $0x10] sm:$0xff]
    %v7455 = vld [vmem:[%s7451 + $0x18] sm:$0xff]
    %v7456 = vld [vmem:[%s7451 + $0x20] sm:$0xff]
    %v7457 = vld [vmem:[%s7451 + $0x28] sm:$0xff]
    %v7458 = vld [vmem:[%s7451 + $0x30] sm:$0xff]
    %v7459 = vld [vmem:[%s7451 + $0x38] sm:$0xff]
    %v7461 = vsel %vm6037, %v7448, 0
    %7463 = vmatprep.subr.mxu0 0.0
    %7464 = vmatpush1.msra.mxu0 %v7452
    %7465 = vmatprep.subr.mxu0 0.0
    %7466 = vmatpush1.msra.mxu0 %v7453
    %7467 = vmatprep.subr.mxu0 0.0
    %7468 = vmatpush1.msra.mxu0 %v7454
    %7469 = vmatprep.subr.mxu0 0.0
    %7470 = vmatpush1.msra.mxu0 %v7455
    %7471 = vmatprep.subr.mxu0 0.0
    %7472 = vmatpush1.msra.mxu0 %v7456
    %7473 = vmatprep.subr.mxu0 0.0
    %7474 = vmatpush1.msra.mxu0 %v7457
    %7475 = vmatprep.subr.mxu0 0.0
    %7476 = vmatpush1.msra.mxu0 %v7458
    %7477 = vmatprep.subr.mxu0 0.0
    %7478 = vmatpush1.msra.mxu0 %v7459
    %7479 = vmatprep.subr.mxu0 0.0
    %7480 = vmatpush1.msra.mxu0 0.0
    %7481 = vmatprep.subr.mxu0 0.0
    %7482 = vmatpush1.msra.mxu0 0.0
    %7483 = vmatprep.subr.mxu0 0.0
    %7484 = vmatpush1.msra.mxu0 0.0
    %7485 = vmatprep.subr.mxu0 0.0
    %7486 = vmatpush1.msra.mxu0 0.0
    %7487 = vmatprep.subr.mxu0 0.0
    %7488 = vmatpush1.msra.mxu0 0.0
    %7489 = vmatprep.subr.mxu0 0.0
    %7490 = vmatpush1.msra.mxu0 0.0
    %7491 = vmatprep.subr.mxu0 0.0
    %7492 = vmatpush1.msra.mxu0 0.0
    %7493 = vmatprep.subr.mxu0 0.0
    %7494 = vmatpush1.msra.mxu0 0.0
    %7495 = vmatprep.subr.mxu0 0.0
    %7496 = vmatpush1.msra.mxu0 0.0
    %7497 = vmatprep.subr.mxu0 0.0
    %7498 = vmatpush1.msra.mxu0 0.0
    %7499 = vmatprep.subr.mxu0 0.0
    %7500 = vmatpush1.msra.mxu0 0.0
    %7501 = vmatprep.subr.mxu0 0.0
    %7502 = vmatpush1.msra.mxu0 0.0
    %7503 = vmatprep.subr.mxu0 0.0
    %7504 = vmatpush1.msra.mxu0 0.0
    %7505 = vmatprep.subr.mxu0 0.0
    %7506 = vmatpush1.msra.mxu0 0.0
    %7507 = vmatprep.subr.mxu0 0.0
    %7508 = vmatpush1.msra.mxu0 0.0
    %7509 = vmatprep.subr.mxu0 0.0
    %7510 = vmatpush1.msra.mxu0 0.0
    %7511 = vmatprep.subr.mxu0 0.0
    %7512 = vmatpush1.msra.mxu0 0.0
    %7513 = vmatprep.subr.mxu0 0.0
    %7514 = vmatpush1.msra.mxu0 0.0
    %7515 = vmatprep.subr.mxu0 0.0
    %7516 = vmatpush1.msra.mxu0 0.0
    %7517 = vmatprep.subr.mxu0 0.0
    %7518 = vmatpush1.msra.mxu0 0.0
    %7519 = vmatprep.subr.mxu0 0.0
    %7520 = vmatpush1.msra.mxu0 0.0
    %7521 = vmatprep.subr.mxu0 0.0
    %7522 = vmatpush1.msra.mxu0 0.0
    %7523 = vmatprep.subr.mxu0 0.0
    %7524 = vmatpush1.msra.mxu0 0.0
    %7525 = vmatprep.subr.mxu0 0.0
    %7526 = vmatpush1.msra.mxu0 0.0
    %7527 = vmatprep.mubr.f32.mxu0 0.0
    %7528 = vmatmul.mubr.f32.gmra.mrb[0].mxu0 %v7461
    %v7529 = vpop.f32.mrb[0].mxu0
    %v7530 = vadd.f32 0.0, %v7529
    %v7531 = vpop.f32.mrb[0].mxu0
    %7532 = vdwg.mxu0
    %v7533 = vadd.f32 %v7375, %v7530
    %s7534 = scalar_lea.vmem %s9, 20
    %v7535 = vld [vmem:[%s7534] sm:$0x3]
    %v7537 = vsel %vm5955, %v7535, 0
    %7539 = vmatprep.subr.mxu0 0.0
    %7540 = vmatpush1.msra.mxu0 %v5945
    %7541 = vmatprep.subr.mxu0 0.0
    %7542 = vmatpush1.msra.mxu0 0.0
    %7543 = vmatprep.subr.mxu0 0.0
    %7544 = vmatpush1.msra.mxu0 0.0
    %7545 = vmatprep.subr.mxu0 0.0
    %7546 = vmatpush1.msra.mxu0 0.0
    %7547 = vmatprep.subr.mxu0 0.0
    %7548 = vmatpush1.msra.mxu0 0.0
    %7549 = vmatprep.subr.mxu0 0.0
    %7550 = vmatpush1.msra.mxu0 0.0
    %7551 = vmatprep.subr.mxu0 0.0
    %7552 = vmatpush1.msra.mxu0 0.0
    %7553 = vmatprep.subr.mxu0 0.0
    %7554 = vmatpush1.msra.mxu0 0.0
    %7555 = vmatprep.subr.mxu0 0.0
    %7556 = vmatpush1.msra.mxu0 0.0
    %7557 = vmatprep.subr.mxu0 0.0
    %7558 = vmatpush1.msra.mxu0 0.0
    %7559 = vmatprep.subr.mxu0 0.0
    %7560 = vmatpush1.msra.mxu0 0.0
    %7561 = vmatprep.subr.mxu0 0.0
    %7562 = vmatpush1.msra.mxu0 0.0
    %7563 = vmatprep.subr.mxu0 0.0
    %7564 = vmatpush1.msra.mxu0 0.0
    %7565 = vmatprep.subr.mxu0 0.0
    %7566 = vmatpush1.msra.mxu0 0.0
    %7567 = vmatprep.subr.mxu0 0.0
    %7568 = vmatpush1.msra.mxu0 0.0
    %7569 = vmatprep.subr.mxu0 0.0
    %7570 = vmatpush1.msra.mxu0 0.0
    %7571 = vmatprep.subr.mxu0 0.0
    %7572 = vmatpush1.msra.mxu0 0.0
    %7573 = vmatprep.subr.mxu0 0.0
    %7574 = vmatpush1.msra.mxu0 0.0
    %7575 = vmatprep.subr.mxu0 0.0
    %7576 = vmatpush1.msra.mxu0 0.0
    %7577 = vmatprep.subr.mxu0 0.0
    %7578 = vmatpush1.msra.mxu0 0.0
    %7579 = vmatprep.subr.mxu0 0.0
    %7580 = vmatpush1.msra.mxu0 0.0
    %7581 = vmatprep.subr.mxu0 0.0
    %7582 = vmatpush1.msra.mxu0 0.0
    %7583 = vmatprep.subr.mxu0 0.0
    %7584 = vmatpush1.msra.mxu0 0.0
    %7585 = vmatprep.subr.mxu0 0.0
    %7586 = vmatpush1.msra.mxu0 0.0
    %7587 = vmatprep.subr.mxu0 0.0
    %7588 = vmatpush1.msra.mxu0 0.0
    %7589 = vmatprep.subr.mxu0 0.0
    %7590 = vmatpush1.msra.mxu0 0.0
    %7591 = vmatprep.subr.mxu0 0.0
    %7592 = vmatpush1.msra.mxu0 0.0
    %7593 = vmatprep.subr.mxu0 0.0
    %7594 = vmatpush1.msra.mxu0 0.0
    %7595 = vmatprep.subr.mxu0 0.0
    %7596 = vmatpush1.msra.mxu0 0.0
    %7597 = vmatprep.subr.mxu0 0.0
    %7598 = vmatpush1.msra.mxu0 0.0
    %7599 = vmatprep.subr.mxu0 0.0
    %7600 = vmatpush1.msra.mxu0 0.0
    %7601 = vmatprep.subr.mxu0 0.0
    %7602 = vmatpush1.msra.mxu0 0.0
    %7603 = vmatprep.mubr.f32.mxu0 0.0
    %7604 = vmatmul.mubr.f32.gmra.mrb[0].mxu0 %v7537
    %v7605 = vpop.f32.mrb[0].mxu0
    %v7606 = vadd.f32 0.0, %v7605
    %v7607 = vpop.f32.mrb[0].mxu0
    %7608 = vdwg.mxu0
    %s7609 = scalar_lea.vmem %s10, 640
    %v7610 = vld [vmem:[%s7609] sm:$0xff]
    %v7611 = vld [vmem:[%s7609 + $0x8] sm:$0xff]
    %v7612 = vld [vmem:[%s7609 + $0x10] sm:$0xff]
    %v7613 = vld [vmem:[%s7609 + $0x18] sm:$0xff]
    %v7614 = vld [vmem:[%s7609 + $0x20] sm:$0xff]
    %v7615 = vld [vmem:[%s7609 + $0x28] sm:$0xff]
    %v7616 = vld [vmem:[%s7609 + $0x30] sm:$0xff]
    %v7617 = vld [vmem:[%s7609 + $0x38] sm:$0xff]
    %v7619 = vsel %vm6037, %v7606, 0
    %7621 = vmatprep.subr.mxu0 0.0
    %7622 = vmatpush1.msra.mxu0 %v7610
    %7623 = vmatprep.subr.mxu0 0.0
    %7624 = vmatpush1.msra.mxu0 %v7611
    %7625 = vmatprep.subr.mxu0 0.0
    %7626 = vmatpush1.msra.mxu0 %v7612
    %7627 = vmatprep.subr.mxu0 0.0
    %7628 = vmatpush1.msra.mxu0 %v7613
    %7629 = vmatprep.subr.mxu0 0.0
    %7630 = vmatpush1.msra.mxu0 %v7614
    %7631 = vmatprep.subr.mxu0 0.0
    %7632 = vmatpush1.msra.mxu0 %v7615
    %7633 = vmatprep.subr.mxu0 0.0
    %7634 = vmatpush1.msra.mxu0 %v7616
    %7635 = vmatprep.subr.mxu0 0.0
    %7636 = vmatpush1.msra.mxu0 %v7617
    %7637 = vmatprep.subr.mxu0 0.0
    %7638 = vmatpush1.msra.mxu0 0.0
    %7639 = vmatprep.subr.mxu0 0.0
    %7640 = vmatpush1.msra.mxu0 0.0
    %7641 = vmatprep.subr.mxu0 0.0
    %7642 = vmatpush1.msra.mxu0 0.0
    %7643 = vmatprep.subr.mxu0 0.0
    %7644 = vmatpush1.msra.mxu0 0.0
    %7645 = vmatprep.subr.mxu0 0.0
    %7646 = vmatpush1.msra.mxu0 0.0
    %7647 = vmatprep.subr.mxu0 0.0
    %7648 = vmatpush1.msra.mxu0 0.0
    %7649 = vmatprep.subr.mxu0 0.0
    %7650 = vmatpush1.msra.mxu0 0.0
    %7651 = vmatprep.subr.mxu0 0.0
    %7652 = vmatpush1.msra.mxu0 0.0
    %7653 = vmatprep.subr.mxu0 0.0
    %7654 = vmatpush1.msra.mxu0 0.0
    %7655 = vmatprep.subr.mxu0 0.0
    %7656 = vmatpush1.msra.mxu0 0.0
    %7657 = vmatprep.subr.mxu0 0.0
    %7658 = vmatpush1.msra.mxu0 0.0
    %7659 = vmatprep.subr.mxu0 0.0
    %7660 = vmatpush1.msra.mxu0 0.0
    %7661 = vmatprep.subr.mxu0 0.0
    %7662 = vmatpush1.msra.mxu0 0.0
    %7663 = vmatprep.subr.mxu0 0.0
    %7664 = vmatpush1.msra.mxu0 0.0
    %7665 = vmatprep.subr.mxu0 0.0
    %7666 = vmatpush1.msra.mxu0 0.0
    %7667 = vmatprep.subr.mxu0 0.0
    %7668 = vmatpush1.msra.mxu0 0.0
    %7669 = vmatprep.subr.mxu0 0.0
    %7670 = vmatpush1.msra.mxu0 0.0
    %7671 = vmatprep.subr.mxu0 0.0
    %7672 = vmatpush1.msra.mxu0 0.0
    %7673 = vmatprep.subr.mxu0 0.0
    %7674 = vmatpush1.msra.mxu0 0.0
    %7675 = vmatprep.subr.mxu0 0.0
    %7676 = vmatpush1.msra.mxu0 0.0
    %7677 = vmatprep.subr.mxu0 0.0
    %7678 = vmatpush1.msra.mxu0 0.0
    %7679 = vmatprep.subr.mxu0 0.0
    %7680 = vmatpush1.msra.mxu0 0.0
    %7681 = vmatprep.subr.mxu0 0.0
    %7682 = vmatpush1.msra.mxu0 0.0
    %7683 = vmatprep.subr.mxu0 0.0
    %7684 = vmatpush1.msra.mxu0 0.0
    %7685 = vmatprep.mubr.f32.mxu0 0.0
    %7686 = vmatmul.mubr.f32.gmra.mrb[0].mxu0 %v7619
    %v7687 = vpop.f32.mrb[0].mxu0
    %v7688 = vadd.f32 0.0, %v7687
    %v7689 = vpop.f32.mrb[0].mxu0
    %7690 = vdwg.mxu0
    %v7691 = vadd.f32 %v7533, %v7688
    %s7692 = scalar_lea.vmem %s9, 22
    %v7693 = vld [vmem:[%s7692] sm:$0x3]
    %v7695 = vsel %vm5955, %v7693, 0
    %7697 = vmatprep.subr.mxu0 0.0
    %7698 = vmatpush1.msra.mxu0 %v5945
    %7699 = vmatprep.subr.mxu0 0.0
    %7700 = vmatpush1.msra.mxu0 0.0
    %7701 = vmatprep.subr.mxu0 0.0
    %7702 = vmatpush1.msra.mxu0 0.0
    %7703 = vmatprep.subr.mxu0 0.0
    %7704 = vmatpush1.msra.mxu0 0.0
    %7705 = vmatprep.subr.mxu0 0.0
    %7706 = vmatpush1.msra.mxu0 0.0
    %7707 = vmatprep.subr.mxu0 0.0
    %7708 = vmatpush1.msra.mxu0 0.0
    %7709 = vmatprep.subr.mxu0 0.0
    %7710 = vmatpush1.msra.mxu0 0.0
    %7711 = vmatprep.subr.mxu0 0.0
    %7712 = vmatpush1.msra.mxu0 0.0
    %7713 = vmatprep.subr.mxu0 0.0
    %7714 = vmatpush1.msra.mxu0 0.0
    %7715 = vmatprep.subr.mxu0 0.0
    %7716 = vmatpush1.msra.mxu0 0.0
    %7717 = vmatprep.subr.mxu0 0.0
    %7718 = vmatpush1.msra.mxu0 0.0
    %7719 = vmatprep.subr.mxu0 0.0
    %7720 = vmatpush1.msra.mxu0 0.0
    %7721 = vmatprep.subr.mxu0 0.0
    %7722 = vmatpush1.msra.mxu0 0.0
    %7723 = vmatprep.subr.mxu0 0.0
    %7724 = vmatpush1.msra.mxu0 0.0
    %7725 = vmatprep.subr.mxu0 0.0
    %7726 = vmatpush1.msra.mxu0 0.0
    %7727 = vmatprep.subr.mxu0 0.0
    %7728 = vmatpush1.msra.mxu0 0.0
    %7729 = vmatprep.subr.mxu0 0.0
    %7730 = vmatpush1.msra.mxu0 0.0
    %7731 = vmatprep.subr.mxu0 0.0
    %7732 = vmatpush1.msra.mxu0 0.0
    %7733 = vmatprep.subr.mxu0 0.0
    %7734 = vmatpush1.msra.mxu0 0.0
    %7735 = vmatprep.subr.mxu0 0.0
    %7736 = vmatpush1.msra.mxu0 0.0
    %7737 = vmatprep.subr.mxu0 0.0
    %7738 = vmatpush1.msra.mxu0 0.0
    %7739 = vmatprep.subr.mxu0 0.0
    %7740 = vmatpush1.msra.mxu0 0.0
    %7741 = vmatprep.subr.mxu0 0.0
    %7742 = vmatpush1.msra.mxu0 0.0
    %7743 = vmatprep.subr.mxu0 0.0
    %7744 = vmatpush1.msra.mxu0 0.0
    %7745 = vmatprep.subr.mxu0 0.0
    %7746 = vmatpush1.msra.mxu0 0.0
    %7747 = vmatprep.subr.mxu0 0.0
    %7748 = vmatpush1.msra.mxu0 0.0
    %7749 = vmatprep.subr.mxu0 0.0
    %7750 = vmatpush1.msra.mxu0 0.0
    %7751 = vmatprep.subr.mxu0 0.0
    %7752 = vmatpush1.msra.mxu0 0.0
    %7753 = vmatprep.subr.mxu0 0.0
    %7754 = vmatpush1.msra.mxu0 0.0
    %7755 = vmatprep.subr.mxu0 0.0
    %7756 = vmatpush1.msra.mxu0 0.0
    %7757 = vmatprep.subr.mxu0 0.0
    %7758 = vmatpush1.msra.mxu0 0.0
    %7759 = vmatprep.subr.mxu0 0.0
    %7760 = vmatpush1.msra.mxu0 0.0
    %7761 = vmatprep.mubr.f32.mxu0 0.0
    %7762 = vmatmul.mubr.f32.gmra.mrb[0].mxu0 %v7695
    %v7763 = vpop.f32.mrb[0].mxu0
    %v7764 = vadd.f32 0.0, %v7763
    %v7765 = vpop.f32.mrb[0].mxu0
    %7766 = vdwg.mxu0
    %s7767 = scalar_lea.vmem %s10, 704
    %v7768 = vld [vmem:[%s7767] sm:$0xff]
    %v7769 = vld [vmem:[%s7767 + $0x8] sm:$0xff]
    %v7770 = vld [vmem:[%s7767 + $0x10] sm:$0xff]
    %v7771 = vld [vmem:[%s7767 + $0x18] sm:$0xff]
    %v7772 = vld [vmem:[%s7767 + $0x20] sm:$0xff]
    %v7773 = vld [vmem:[%s7767 + $0x28] sm:$0xff]
    %v7774 = vld [vmem:[%s7767 + $0x30] sm:$0xff]
    %v7775 = vld [vmem:[%s7767 + $0x38] sm:$0xff]
    %v7777 = vsel %vm6037, %v7764, 0
    %7779 = vmatprep.subr.mxu0 0.0
    %7780 = vmatpush1.msra.mxu0 %v7768
    %7781 = vmatprep.subr.mxu0 0.0
    %7782 = vmatpush1.msra.mxu0 %v7769
    %7783 = vmatprep.subr.mxu0 0.0
    %7784 = vmatpush1.msra.mxu0 %v7770
    %7785 = vmatprep.subr.mxu0 0.0
    %7786 = vmatpush1.msra.mxu0 %v7771
    %7787 = vmatprep.subr.mxu0 0.0
    %7788 = vmatpush1.msra.mxu0 %v7772
    %7789 = vmatprep.subr.mxu0 0.0
    %7790 = vmatpush1.msra.mxu0 %v7773
    %7791 = vmatprep.subr.mxu0 0.0
    %7792 = vmatpush1.msra.mxu0 %v7774
    %7793 = vmatprep.subr.mxu0 0.0
    %7794 = vmatpush1.msra.mxu0 %v7775
    %7795 = vmatprep.subr.mxu0 0.0
    %7796 = vmatpush1.msra.mxu0 0.0
    %7797 = vmatprep.subr.mxu0 0.0
    %7798 = vmatpush1.msra.mxu0 0.0
    %7799 = vmatprep.subr.mxu0 0.0
    %7800 = vmatpush1.msra.mxu0 0.0
    %7801 = vmatprep.subr.mxu0 0.0
    %7802 = vmatpush1.msra.mxu0 0.0
    %7803 = vmatprep.subr.mxu0 0.0
    %7804 = vmatpush1.msra.mxu0 0.0
    %7805 = vmatprep.subr.mxu0 0.0
    %7806 = vmatpush1.msra.mxu0 0.0
    %7807 = vmatprep.subr.mxu0 0.0
    %7808 = vmatpush1.msra.mxu0 0.0
    %7809 = vmatprep.subr.mxu0 0.0
    %7810 = vmatpush1.msra.mxu0 0.0
    %7811 = vmatprep.subr.mxu0 0.0
    %7812 = vmatpush1.msra.mxu0 0.0
    %7813 = vmatprep.subr.mxu0 0.0
    %7814 = vmatpush1.msra.mxu0 0.0
    %7815 = vmatprep.subr.mxu0 0.0
    %7816 = vmatpush1.msra.mxu0 0.0
    %7817 = vmatprep.subr.mxu0 0.0
    %7818 = vmatpush1.msra.mxu0 0.0
    %7819 = vmatprep.subr.mxu0 0.0
    %7820 = vmatpush1.msra.mxu0 0.0
    %7821 = vmatprep.subr.mxu0 0.0
    %7822 = vmatpush1.msra.mxu0 0.0
    %7823 = vmatprep.subr.mxu0 0.0
    %7824 = vmatpush1.msra.mxu0 0.0
    %7825 = vmatprep.subr.mxu0 0.0
    %7826 = vmatpush1.msra.mxu0 0.0
    %7827 = vmatprep.subr.mxu0 0.0
    %7828 = vmatpush1.msra.mxu0 0.0
    %7829 = vmatprep.subr.mxu0 0.0
    %7830 = vmatpush1.msra.mxu0 0.0
    %7831 = vmatprep.subr.mxu0 0.0
    %7832 = vmatpush1.msra.mxu0 0.0
    %7833 = vmatprep.subr.mxu0 0.0
    %7834 = vmatpush1.msra.mxu0 0.0
    %7835 = vmatprep.subr.mxu0 0.0
    %7836 = vmatpush1.msra.mxu0 0.0
    %7837 = vmatprep.subr.mxu0 0.0
    %7838 = vmatpush1.msra.mxu0 0.0
    %7839 = vmatprep.subr.mxu0 0.0
    %7840 = vmatpush1.msra.mxu0 0.0
    %7841 = vmatprep.subr.mxu0 0.0
    %7842 = vmatpush1.msra.mxu0 0.0
    %7843 = vmatprep.mubr.f32.mxu0 0.0
    %7844 = vmatmul.mubr.f32.gmra.mrb[0].mxu0 %v7777
    %v7845 = vpop.f32.mrb[0].mxu0
    %v7846 = vadd.f32 0.0, %v7845
    %v7847 = vpop.f32.mrb[0].mxu0
    %7848 = vdwg.mxu0
    %v7849 = vadd.f32 %v7691, %v7846
    %s7850 = scalar_lea.vmem %s9, 24
    %v7851 = vld [vmem:[%s7850] sm:$0x3]
    %v7853 = vsel %vm5955, %v7851, 0
    %7855 = vmatprep.subr.mxu0 0.0
    %7856 = vmatpush1.msra.mxu0 %v5945
    %7857 = vmatprep.subr.mxu0 0.0
    %7858 = vmatpush1.msra.mxu0 0.0
    %7859 = vmatprep.subr.mxu0 0.0
    %7860 = vmatpush1.msra.mxu0 0.0
    %7861 = vmatprep.subr.mxu0 0.0
    %7862 = vmatpush1.msra.mxu0 0.0
    %7863 = vmatprep.subr.mxu0 0.0
    %7864 = vmatpush1.msra.mxu0 0.0
    %7865 = vmatprep.subr.mxu0 0.0
    %7866 = vmatpush1.msra.mxu0 0.0
    %7867 = vmatprep.subr.mxu0 0.0
    %7868 = vmatpush1.msra.mxu0 0.0
    %7869 = vmatprep.subr.mxu0 0.0
    %7870 = vmatpush1.msra.mxu0 0.0
    %7871 = vmatprep.subr.mxu0 0.0
    %7872 = vmatpush1.msra.mxu0 0.0
    %7873 = vmatprep.subr.mxu0 0.0
    %7874 = vmatpush1.msra.mxu0 0.0
    %7875 = vmatprep.subr.mxu0 0.0
    %7876 = vmatpush1.msra.mxu0 0.0
    %7877 = vmatprep.subr.mxu0 0.0
    %7878 = vmatpush1.msra.mxu0 0.0
    %7879 = vmatprep.subr.mxu0 0.0
    %7880 = vmatpush1.msra.mxu0 0.0
    %7881 = vmatprep.subr.mxu0 0.0
    %7882 = vmatpush1.msra.mxu0 0.0
    %7883 = vmatprep.subr.mxu0 0.0
    %7884 = vmatpush1.msra.mxu0 0.0
    %7885 = vmatprep.subr.mxu0 0.0
    %7886 = vmatpush1.msra.mxu0 0.0
    %7887 = vmatprep.subr.mxu0 0.0
    %7888 = vmatpush1.msra.mxu0 0.0
    %7889 = vmatprep.subr.mxu0 0.0
    %7890 = vmatpush1.msra.mxu0 0.0
    %7891 = vmatprep.subr.mxu0 0.0
    %7892 = vmatpush1.msra.mxu0 0.0
    %7893 = vmatprep.subr.mxu0 0.0
    %7894 = vmatpush1.msra.mxu0 0.0
    %7895 = vmatprep.subr.mxu0 0.0
    %7896 = vmatpush1.msra.mxu0 0.0
    %7897 = vmatprep.subr.mxu0 0.0
    %7898 = vmatpush1.msra.mxu0 0.0
    %7899 = vmatprep.subr.mxu0 0.0
    %7900 = vmatpush1.msra.mxu0 0.0
    %7901 = vmatprep.subr.mxu0 0.0
    %7902 = vmatpush1.msra.mxu0 0.0
    %7903 = vmatprep.subr.mxu0 0.0
    %7904 = vmatpush1.msra.mxu0 0.0
    %7905 = vmatprep.subr.mxu0 0.0
    %7906 = vmatpush1.msra.mxu0 0.0
    %7907 = vmatprep.subr.mxu0 0.0
    %7908 = vmatpush1.msra.mxu0 0.0
    %7909 = vmatprep.subr.mxu0 0.0
    %7910 = vmatpush1.msra.mxu0 0.0
    %7911 = vmatprep.subr.mxu0 0.0
    %7912 = vmatpush1.msra.mxu0 0.0
    %7913 = vmatprep.subr.mxu0 0.0
    %7914 = vmatpush1.msra.mxu0 0.0
    %7915 = vmatprep.subr.mxu0 0.0
    %7916 = vmatpush1.msra.mxu0 0.0
    %7917 = vmatprep.subr.mxu0 0.0
    %7918 = vmatpush1.msra.mxu0 0.0
    %7919 = vmatprep.mubr.f32.mxu0 0.0
    %7920 = vmatmul.mubr.f32.gmra.mrb[0].mxu0 %v7853
    %v7921 = vpop.f32.mrb[0].mxu0
    %v7922 = vadd.f32 0.0, %v7921
    %v7923 = vpop.f32.mrb[0].mxu0
    %7924 = vdwg.mxu0
    %s7925 = scalar_lea.vmem %s10, 768
    %v7926 = vld [vmem:[%s7925] sm:$0xff]
    %v7927 = vld [vmem:[%s7925 + $0x8] sm:$0xff]
    %v7928 = vld [vmem:[%s7925 + $0x10] sm:$0xff]
    %v7929 = vld [vmem:[%s7925 + $0x18] sm:$0xff]
    %v7930 = vld [vmem:[%s7925 + $0x20] sm:$0xff]
    %v7931 = vld [vmem:[%s7925 + $0x28] sm:$0xff]
    %v7932 = vld [vmem:[%s7925 + $0x30] sm:$0xff]
    %v7933 = vld [vmem:[%s7925 + $0x38] sm:$0xff]
    %v7935 = vsel %vm6037, %v7922, 0
    %7937 = vmatprep.subr.mxu0 0.0
    %7938 = vmatpush1.msra.mxu0 %v7926
    %7939 = vmatprep.subr.mxu0 0.0
    %7940 = vmatpush1.msra.mxu0 %v7927
    %7941 = vmatprep.subr.mxu0 0.0
    %7942 = vmatpush1.msra.mxu0 %v7928
    %7943 = vmatprep.subr.mxu0 0.0
    %7944 = vmatpush1.msra.mxu0 %v7929
    %7945 = vmatprep.subr.mxu0 0.0
    %7946 = vmatpush1.msra.mxu0 %v7930
    %7947 = vmatprep.subr.mxu0 0.0
    %7948 = vmatpush1.msra.mxu0 %v7931
    %7949 = vmatprep.subr.mxu0 0.0
    %7950 = vmatpush1.msra.mxu0 %v7932
    %7951 = vmatprep.subr.mxu0 0.0
    %7952 = vmatpush1.msra.mxu0 %v7933
    %7953 = vmatprep.subr.mxu0 0.0
    %7954 = vmatpush1.msra.mxu0 0.0
    %7955 = vmatprep.subr.mxu0 0.0
    %7956 = vmatpush1.msra.mxu0 0.0
    %7957 = vmatprep.subr.mxu0 0.0
    %7958 = vmatpush1.msra.mxu0 0.0
    %7959 = vmatprep.subr.mxu0 0.0
    %7960 = vmatpush1.msra.mxu0 0.0
    %7961 = vmatprep.subr.mxu0 0.0
    %7962 = vmatpush1.msra.mxu0 0.0
    %7963 = vmatprep.subr.mxu0 0.0
    %7964 = vmatpush1.msra.mxu0 0.0
    %7965 = vmatprep.subr.mxu0 0.0
    %7966 = vmatpush1.msra.mxu0 0.0
    %7967 = vmatprep.subr.mxu0 0.0
    %7968 = vmatpush1.msra.mxu0 0.0
    %7969 = vmatprep.subr.mxu0 0.0
    %7970 = vmatpush1.msra.mxu0 0.0
    %7971 = vmatprep.subr.mxu0 0.0
    %7972 = vmatpush1.msra.mxu0 0.0
    %7973 = vmatprep.subr.mxu0 0.0
    %7974 = vmatpush1.msra.mxu0 0.0
    %7975 = vmatprep.subr.mxu0 0.0
    %7976 = vmatpush1.msra.mxu0 0.0
    %7977 = vmatprep.subr.mxu0 0.0
    %7978 = vmatpush1.msra.mxu0 0.0
    %7979 = vmatprep.subr.mxu0 0.0
    %7980 = vmatpush1.msra.mxu0 0.0
    %7981 = vmatprep.subr.mxu0 0.0
    %7982 = vmatpush1.msra.mxu0 0.0
    %7983 = vmatprep.subr.mxu0 0.0
    %7984 = vmatpush1.msra.mxu0 0.0
    %7985 = vmatprep.subr.mxu0 0.0
    %7986 = vmatpush1.msra.mxu0 0.0
    %7987 = vmatprep.subr.mxu0 0.0
    %7988 = vmatpush1.msra.mxu0 0.0
    %7989 = vmatprep.subr.mxu0 0.0
    %7990 = vmatpush1.msra.mxu0 0.0
    %7991 = vmatprep.subr.mxu0 0.0
    %7992 = vmatpush1.msra.mxu0 0.0
    %7993 = vmatprep.subr.mxu0 0.0
    %7994 = vmatpush1.msra.mxu0 0.0
    %7995 = vmatprep.subr.mxu0 0.0
    %7996 = vmatpush1.msra.mxu0 0.0
    %7997 = vmatprep.subr.mxu0 0.0
    %7998 = vmatpush1.msra.mxu0 0.0
    %7999 = vmatprep.subr.mxu0 0.0
    %8000 = vmatpush1.msra.mxu0 0.0
    %8001 = vmatprep.mubr.f32.mxu0 0.0
    %8002 = vmatmul.mubr.f32.gmra.mrb[0].mxu0 %v7935
    %v8003 = vpop.f32.mrb[0].mxu0
    %v8004 = vadd.f32 0.0, %v8003
    %v8005 = vpop.f32.mrb[0].mxu0
    %8006 = vdwg.mxu0
    %v8007 = vadd.f32 %v7849, %v8004
    %s8008 = scalar_lea.vmem %s9, 26
    %v8009 = vld [vmem:[%s8008] sm:$0x3]
    %v8011 = vsel %vm5955, %v8009, 0
    %8013 = vmatprep.subr.mxu0 0.0
    %8014 = vmatpush1.msra.mxu0 %v5945
    %8015 = vmatprep.subr.mxu0 0.0
    %8016 = vmatpush1.msra.mxu0 0.0
    %8017 = vmatprep.subr.mxu0 0.0
    %8018 = vmatpush1.msra.mxu0 0.0
    %8019 = vmatprep.subr.mxu0 0.0
    %8020 = vmatpush1.msra.mxu0 0.0
    %8021 = vmatprep.subr.mxu0 0.0
    %8022 = vmatpush1.msra.mxu0 0.0
    %8023 = vmatprep.subr.mxu0 0.0
    %8024 = vmatpush1.msra.mxu0 0.0
    %8025 = vmatprep.subr.mxu0 0.0
    %8026 = vmatpush1.msra.mxu0 0.0
    %8027 = vmatprep.subr.mxu0 0.0
    %8028 = vmatpush1.msra.mxu0 0.0
    %8029 = vmatprep.subr.mxu0 0.0
    %8030 = vmatpush1.msra.mxu0 0.0
    %8031 = vmatprep.subr.mxu0 0.0
    %8032 = vmatpush1.msra.mxu0 0.0
    %8033 = vmatprep.subr.mxu0 0.0
    %8034 = vmatpush1.msra.mxu0 0.0
    %8035 = vmatprep.subr.mxu0 0.0
    %8036 = vmatpush1.msra.mxu0 0.0
    %8037 = vmatprep.subr.mxu0 0.0
    %8038 = vmatpush1.msra.mxu0 0.0
    %8039 = vmatprep.subr.mxu0 0.0
    %8040 = vmatpush1.msra.mxu0 0.0
    %8041 = vmatprep.subr.mxu0 0.0
    %8042 = vmatpush1.msra.mxu0 0.0
    %8043 = vmatprep.subr.mxu0 0.0
    %8044 = vmatpush1.msra.mxu0 0.0
    %8045 = vmatprep.subr.mxu0 0.0
    %8046 = vmatpush1.msra.mxu0 0.0
    %8047 = vmatprep.subr.mxu0 0.0
    %8048 = vmatpush1.msra.mxu0 0.0
    %8049 = vmatprep.subr.mxu0 0.0
    %8050 = vmatpush1.msra.mxu0 0.0
    %8051 = vmatprep.subr.mxu0 0.0
    %8052 = vmatpush1.msra.mxu0 0.0
    %8053 = vmatprep.subr.mxu0 0.0
    %8054 = vmatpush1.msra.mxu0 0.0
    %8055 = vmatprep.subr.mxu0 0.0
    %8056 = vmatpush1.msra.mxu0 0.0
    %8057 = vmatprep.subr.mxu0 0.0
    %8058 = vmatpush1.msra.mxu0 0.0
    %8059 = vmatprep.subr.mxu0 0.0
    %8060 = vmatpush1.msra.mxu0 0.0
    %8061 = vmatprep.subr.mxu0 0.0
    %8062 = vmatpush1.msra.mxu0 0.0
    %8063 = vmatprep.subr.mxu0 0.0
    %8064 = vmatpush1.msra.mxu0 0.0
    %8065 = vmatprep.subr.mxu0 0.0
    %8066 = vmatpush1.msra.mxu0 0.0
    %8067 = vmatprep.subr.mxu0 0.0
    %8068 = vmatpush1.msra.mxu0 0.0
    %8069 = vmatprep.subr.mxu0 0.0
    %8070 = vmatpush1.msra.mxu0 0.0
    %8071 = vmatprep.subr.mxu0 0.0
    %8072 = vmatpush1.msra.mxu0 0.0
    %8073 = vmatprep.subr.mxu0 0.0
    %8074 = vmatpush1.msra.mxu0 0.0
    %8075 = vmatprep.subr.mxu0 0.0
    %8076 = vmatpush1.msra.mxu0 0.0
    %8077 = vmatprep.mubr.f32.mxu0 0.0
    %8078 = vmatmul.mubr.f32.gmra.mrb[0].mxu0 %v8011
    %v8079 = vpop.f32.mrb[0].mxu0
    %v8080 = vadd.f32 0.0, %v8079
    %v8081 = vpop.f32.mrb[0].mxu0
    %8082 = vdwg.mxu0
    %s8083 = scalar_lea.vmem %s10, 832
    %v8084 = vld [vmem:[%s8083] sm:$0xff]
    %v8085 = vld [vmem:[%s8083 + $0x8] sm:$0xff]
    %v8086 = vld [vmem:[%s8083 + $0x10] sm:$0xff]
    %v8087 = vld [vmem:[%s8083 + $0x18] sm:$0xff]
    %v8088 = vld [vmem:[%s8083 + $0x20] sm:$0xff]
    %v8089 = vld [vmem:[%s8083 + $0x28] sm:$0xff]
    %v8090 = vld [vmem:[%s8083 + $0x30] sm:$0xff]
    %v8091 = vld [vmem:[%s8083 + $0x38] sm:$0xff]
    %v8093 = vsel %vm6037, %v8080, 0
    %8095 = vmatprep.subr.mxu0 0.0
    %8096 = vmatpush1.msra.mxu0 %v8084
    %8097 = vmatprep.subr.mxu0 0.0
    %8098 = vmatpush1.msra.mxu0 %v8085
    %8099 = vmatprep.subr.mxu0 0.0
    %8100 = vmatpush1.msra.mxu0 %v8086
    %8101 = vmatprep.subr.mxu0 0.0
    %8102 = vmatpush1.msra.mxu0 %v8087
    %8103 = vmatprep.subr.mxu0 0.0
    %8104 = vmatpush1.msra.mxu0 %v8088
    %8105 = vmatprep.subr.mxu0 0.0
    %8106 = vmatpush1.msra.mxu0 %v8089
    %8107 = vmatprep.subr.mxu0 0.0
    %8108 = vmatpush1.msra.mxu0 %v8090
    %8109 = vmatprep.subr.mxu0 0.0
    %8110 = vmatpush1.msra.mxu0 %v8091
    %8111 = vmatprep.subr.mxu0 0.0
    %8112 = vmatpush1.msra.mxu0 0.0
    %8113 = vmatprep.subr.mxu0 0.0
    %8114 = vmatpush1.msra.mxu0 0.0
    %8115 = vmatprep.subr.mxu0 0.0
    %8116 = vmatpush1.msra.mxu0 0.0
    %8117 = vmatprep.subr.mxu0 0.0
    %8118 = vmatpush1.msra.mxu0 0.0
    %8119 = vmatprep.subr.mxu0 0.0
    %8120 = vmatpush1.msra.mxu0 0.0
    %8121 = vmatprep.subr.mxu0 0.0
    %8122 = vmatpush1.msra.mxu0 0.0
    %8123 = vmatprep.subr.mxu0 0.0
    %8124 = vmatpush1.msra.mxu0 0.0
    %8125 = vmatprep.subr.mxu0 0.0
    %8126 = vmatpush1.msra.mxu0 0.0
    %8127 = vmatprep.subr.mxu0 0.0
    %8128 = vmatpush1.msra.mxu0 0.0
    %8129 = vmatprep.subr.mxu0 0.0
    %8130 = vmatpush1.msra.mxu0 0.0
    %8131 = vmatprep.subr.mxu0 0.0
    %8132 = vmatpush1.msra.mxu0 0.0
    %8133 = vmatprep.subr.mxu0 0.0
    %8134 = vmatpush1.msra.mxu0 0.0
    %8135 = vmatprep.subr.mxu0 0.0
    %8136 = vmatpush1.msra.mxu0 0.0
    %8137 = vmatprep.subr.mxu0 0.0
    %8138 = vmatpush1.msra.mxu0 0.0
    %8139 = vmatprep.subr.mxu0 0.0
    %8140 = vmatpush1.msra.mxu0 0.0
    %8141 = vmatprep.subr.mxu0 0.0
    %8142 = vmatpush1.msra.mxu0 0.0
    %8143 = vmatprep.subr.mxu0 0.0
    %8144 = vmatpush1.msra.mxu0 0.0
    %8145 = vmatprep.subr.mxu0 0.0
    %8146 = vmatpush1.msra.mxu0 0.0
    %8147 = vmatprep.subr.mxu0 0.0
    %8148 = vmatpush1.msra.mxu0 0.0
    %8149 = vmatprep.subr.mxu0 0.0
    %8150 = vmatpush1.msra.mxu0 0.0
    %8151 = vmatprep.subr.mxu0 0.0
    %8152 = vmatpush1.msra.mxu0 0.0
    %8153 = vmatprep.subr.mxu0 0.0
    %8154 = vmatpush1.msra.mxu0 0.0
    %8155 = vmatprep.subr.mxu0 0.0
    %8156 = vmatpush1.msra.mxu0 0.0
    %8157 = vmatprep.subr.mxu0 0.0
    %8158 = vmatpush1.msra.mxu0 0.0
    %8159 = vmatprep.mubr.f32.mxu0 0.0
    %8160 = vmatmul.mubr.f32.gmra.mrb[0].mxu0 %v8093
    %v8161 = vpop.f32.mrb[0].mxu0
    %v8162 = vadd.f32 0.0, %v8161
    %v8163 = vpop.f32.mrb[0].mxu0
    %8164 = vdwg.mxu0
    %v8165 = vadd.f32 %v8007, %v8162
    %s8166 = scalar_lea.vmem %s9, 28
    %v8167 = vld [vmem:[%s8166] sm:$0x3]
    %v8169 = vsel %vm5955, %v8167, 0
    %8171 = vmatprep.subr.mxu0 0.0
    %8172 = vmatpush1.msra.mxu0 %v5945
    %8173 = vmatprep.subr.mxu0 0.0
    %8174 = vmatpush1.msra.mxu0 0.0
    %8175 = vmatprep.subr.mxu0 0.0
    %8176 = vmatpush1.msra.mxu0 0.0
    %8177 = vmatprep.subr.mxu0 0.0
    %8178 = vmatpush1.msra.mxu0 0.0
    %8179 = vmatprep.subr.mxu0 0.0
    %8180 = vmatpush1.msra.mxu0 0.0
    %8181 = vmatprep.subr.mxu0 0.0
    %8182 = vmatpush1.msra.mxu0 0.0
    %8183 = vmatprep.subr.mxu0 0.0
    %8184 = vmatpush1.msra.mxu0 0.0
    %8185 = vmatprep.subr.mxu0 0.0
    %8186 = vmatpush1.msra.mxu0 0.0
    %8187 = vmatprep.subr.mxu0 0.0
    %8188 = vmatpush1.msra.mxu0 0.0
    %8189 = vmatprep.subr.mxu0 0.0
    %8190 = vmatpush1.msra.mxu0 0.0
    %8191 = vmatprep.subr.mxu0 0.0
    %8192 = vmatpush1.msra.mxu0 0.0
    %8193 = vmatprep.subr.mxu0 0.0
    %8194 = vmatpush1.msra.mxu0 0.0
    %8195 = vmatprep.subr.mxu0 0.0
    %8196 = vmatpush1.msra.mxu0 0.0
    %8197 = vmatprep.subr.mxu0 0.0
    %8198 = vmatpush1.msra.mxu0 0.0
    %8199 = vmatprep.subr.mxu0 0.0
    %8200 = vmatpush1.msra.mxu0 0.0
    %8201 = vmatprep.subr.mxu0 0.0
    %8202 = vmatpush1.msra.mxu0 0.0
    %8203 = vmatprep.subr.mxu0 0.0
    %8204 = vmatpush1.msra.mxu0 0.0
    %8205 = vmatprep.subr.mxu0 0.0
    %8206 = vmatpush1.msra.mxu0 0.0
    %8207 = vmatprep.subr.mxu0 0.0
    %8208 = vmatpush1.msra.mxu0 0.0
    %8209 = vmatprep.subr.mxu0 0.0
    %8210 = vmatpush1.msra.mxu0 0.0
    %8211 = vmatprep.subr.mxu0 0.0
    %8212 = vmatpush1.msra.mxu0 0.0
    %8213 = vmatprep.subr.mxu0 0.0
    %8214 = vmatpush1.msra.mxu0 0.0
    %8215 = vmatprep.subr.mxu0 0.0
    %8216 = vmatpush1.msra.mxu0 0.0
    %8217 = vmatprep.subr.mxu0 0.0
    %8218 = vmatpush1.msra.mxu0 0.0
    %8219 = vmatprep.subr.mxu0 0.0
    %8220 = vmatpush1.msra.mxu0 0.0
    %8221 = vmatprep.subr.mxu0 0.0
    %8222 = vmatpush1.msra.mxu0 0.0
    %8223 = vmatprep.subr.mxu0 0.0
    %8224 = vmatpush1.msra.mxu0 0.0
    %8225 = vmatprep.subr.mxu0 0.0
    %8226 = vmatpush1.msra.mxu0 0.0
    %8227 = vmatprep.subr.mxu0 0.0
    %8228 = vmatpush1.msra.mxu0 0.0
    %8229 = vmatprep.subr.mxu0 0.0
    %8230 = vmatpush1.msra.mxu0 0.0
    %8231 = vmatprep.subr.mxu0 0.0
    %8232 = vmatpush1.msra.mxu0 0.0
    %8233 = vmatprep.subr.mxu0 0.0
    %8234 = vmatpush1.msra.mxu0 0.0
    %8235 = vmatprep.mubr.f32.mxu0 0.0
    %8236 = vmatmul.mubr.f32.gmra.mrb[0].mxu0 %v8169
    %v8237 = vpop.f32.mrb[0].mxu0
    %v8238 = vadd.f32 0.0, %v8237
    %v8239 = vpop.f32.mrb[0].mxu0
    %8240 = vdwg.mxu0
    %s8241 = scalar_lea.vmem %s10, 896
    %v8242 = vld [vmem:[%s8241] sm:$0xff]
    %v8243 = vld [vmem:[%s8241 + $0x8] sm:$0xff]
    %v8244 = vld [vmem:[%s8241 + $0x10] sm:$0xff]
    %v8245 = vld [vmem:[%s8241 + $0x18] sm:$0xff]
    %v8246 = vld [vmem:[%s8241 + $0x20] sm:$0xff]
    %v8247 = vld [vmem:[%s8241 + $0x28] sm:$0xff]
    %v8248 = vld [vmem:[%s8241 + $0x30] sm:$0xff]
    %v8249 = vld [vmem:[%s8241 + $0x38] sm:$0xff]
    %v8251 = vsel %vm6037, %v8238, 0
    %8253 = vmatprep.subr.mxu0 0.0
    %8254 = vmatpush1.msra.mxu0 %v8242
    %8255 = vmatprep.subr.mxu0 0.0
    %8256 = vmatpush1.msra.mxu0 %v8243
    %8257 = vmatprep.subr.mxu0 0.0
    %8258 = vmatpush1.msra.mxu0 %v8244
    %8259 = vmatprep.subr.mxu0 0.0
    %8260 = vmatpush1.msra.mxu0 %v8245
    %8261 = vmatprep.subr.mxu0 0.0
    %8262 = vmatpush1.msra.mxu0 %v8246
    %8263 = vmatprep.subr.mxu0 0.0
    %8264 = vmatpush1.msra.mxu0 %v8247
    %8265 = vmatprep.subr.mxu0 0.0
    %8266 = vmatpush1.msra.mxu0 %v8248
    %8267 = vmatprep.subr.mxu0 0.0
    %8268 = vmatpush1.msra.mxu0 %v8249
    %8269 = vmatprep.subr.mxu0 0.0
    %8270 = vmatpush1.msra.mxu0 0.0
    %8271 = vmatprep.subr.mxu0 0.0
    %8272 = vmatpush1.msra.mxu0 0.0
    %8273 = vmatprep.subr.mxu0 0.0
    %8274 = vmatpush1.msra.mxu0 0.0
    %8275 = vmatprep.subr.mxu0 0.0
    %8276 = vmatpush1.msra.mxu0 0.0
    %8277 = vmatprep.subr.mxu0 0.0
    %8278 = vmatpush1.msra.mxu0 0.0
    %8279 = vmatprep.subr.mxu0 0.0
    %8280 = vmatpush1.msra.mxu0 0.0
    %8281 = vmatprep.subr.mxu0 0.0
    %8282 = vmatpush1.msra.mxu0 0.0
    %8283 = vmatprep.subr.mxu0 0.0
    %8284 = vmatpush1.msra.mxu0 0.0
    %8285 = vmatprep.subr.mxu0 0.0
    %8286 = vmatpush1.msra.mxu0 0.0
    %8287 = vmatprep.subr.mxu0 0.0
    %8288 = vmatpush1.msra.mxu0 0.0
    %8289 = vmatprep.subr.mxu0 0.0
    %8290 = vmatpush1.msra.mxu0 0.0
    %8291 = vmatprep.subr.mxu0 0.0
    %8292 = vmatpush1.msra.mxu0 0.0
    %8293 = vmatprep.subr.mxu0 0.0
    %8294 = vmatpush1.msra.mxu0 0.0
    %8295 = vmatprep.subr.mxu0 0.0
    %8296 = vmatpush1.msra.mxu0 0.0
    %8297 = vmatprep.subr.mxu0 0.0
    %8298 = vmatpush1.msra.mxu0 0.0
    %8299 = vmatprep.subr.mxu0 0.0
    %8300 = vmatpush1.msra.mxu0 0.0
    %8301 = vmatprep.subr.mxu0 0.0
    %8302 = vmatpush1.msra.mxu0 0.0
    %8303 = vmatprep.subr.mxu0 0.0
    %8304 = vmatpush1.msra.mxu0 0.0
    %8305 = vmatprep.subr.mxu0 0.0
    %8306 = vmatpush1.msra.mxu0 0.0
    %8307 = vmatprep.subr.mxu0 0.0
    %8308 = vmatpush1.msra.mxu0 0.0
    %8309 = vmatprep.subr.mxu0 0.0
    %8310 = vmatpush1.msra.mxu0 0.0
    %8311 = vmatprep.subr.mxu0 0.0
    %8312 = vmatpush1.msra.mxu0 0.0
    %8313 = vmatprep.subr.mxu0 0.0
    %8314 = vmatpush1.msra.mxu0 0.0
    %8315 = vmatprep.subr.mxu0 0.0
    %8316 = vmatpush1.msra.mxu0 0.0
    %8317 = vmatprep.mubr.f32.mxu0 0.0
    %8318 = vmatmul.mubr.f32.gmra.mrb[0].mxu0 %v8251
    %v8319 = vpop.f32.mrb[0].mxu0
    %v8320 = vadd.f32 0.0, %v8319
    %v8321 = vpop.f32.mrb[0].mxu0
    %8322 = vdwg.mxu0
    %v8323 = vadd.f32 %v8165, %v8320
    %s8324 = scalar_lea.vmem %s9, 30
    %v8325 = vld [vmem:[%s8324] sm:$0x3]
    %v8327 = vsel %vm5955, %v8325, 0
    %8329 = vmatprep.subr.mxu0 0.0
    %8330 = vmatpush1.msra.mxu0 %v5945
    %8331 = vmatprep.subr.mxu0 0.0
    %8332 = vmatpush1.msra.mxu0 0.0
    %8333 = vmatprep.subr.mxu0 0.0
    %8334 = vmatpush1.msra.mxu0 0.0
    %8335 = vmatprep.subr.mxu0 0.0
    %8336 = vmatpush1.msra.mxu0 0.0
    %8337 = vmatprep.subr.mxu0 0.0
    %8338 = vmatpush1.msra.mxu0 0.0
    %8339 = vmatprep.subr.mxu0 0.0
    %8340 = vmatpush1.msra.mxu0 0.0
    %8341 = vmatprep.subr.mxu0 0.0
    %8342 = vmatpush1.msra.mxu0 0.0
    %8343 = vmatprep.subr.mxu0 0.0
    %8344 = vmatpush1.msra.mxu0 0.0
    %8345 = vmatprep.subr.mxu0 0.0
    %8346 = vmatpush1.msra.mxu0 0.0
    %8347 = vmatprep.subr.mxu0 0.0
    %8348 = vmatpush1.msra.mxu0 0.0
    %8349 = vmatprep.subr.mxu0 0.0
    %8350 = vmatpush1.msra.mxu0 0.0
    %8351 = vmatprep.subr.mxu0 0.0
    %8352 = vmatpush1.msra.mxu0 0.0
    %8353 = vmatprep.subr.mxu0 0.0
    %8354 = vmatpush1.msra.mxu0 0.0
    %8355 = vmatprep.subr.mxu0 0.0
    %8356 = vmatpush1.msra.mxu0 0.0
    %8357 = vmatprep.subr.mxu0 0.0
    %8358 = vmatpush1.msra.mxu0 0.0
    %8359 = vmatprep.subr.mxu0 0.0
    %8360 = vmatpush1.msra.mxu0 0.0
    %8361 = vmatprep.subr.mxu0 0.0
    %8362 = vmatpush1.msra.mxu0 0.0
    %8363 = vmatprep.subr.mxu0 0.0
    %8364 = vmatpush1.msra.mxu0 0.0
    %8365 = vmatprep.subr.mxu0 0.0
    %8366 = vmatpush1.msra.mxu0 0.0
    %8367 = vmatprep.subr.mxu0 0.0
    %8368 = vmatpush1.msra.mxu0 0.0
    %8369 = vmatprep.subr.mxu0 0.0
    %8370 = vmatpush1.msra.mxu0 0.0
    %8371 = vmatprep.subr.mxu0 0.0
    %8372 = vmatpush1.msra.mxu0 0.0
    %8373 = vmatprep.subr.mxu0 0.0
    %8374 = vmatpush1.msra.mxu0 0.0
    %8375 = vmatprep.subr.mxu0 0.0
    %8376 = vmatpush1.msra.mxu0 0.0
    %8377 = vmatprep.subr.mxu0 0.0
    %8378 = vmatpush1.msra.mxu0 0.0
    %8379 = vmatprep.subr.mxu0 0.0
    %8380 = vmatpush1.msra.mxu0 0.0
    %8381 = vmatprep.subr.mxu0 0.0
    %8382 = vmatpush1.msra.mxu0 0.0
    %8383 = vmatprep.subr.mxu0 0.0
    %8384 = vmatpush1.msra.mxu0 0.0
    %8385 = vmatprep.subr.mxu0 0.0
    %8386 = vmatpush1.msra.mxu0 0.0
    %8387 = vmatprep.subr.mxu0 0.0
    %8388 = vmatpush1.msra.mxu0 0.0
    %8389 = vmatprep.subr.mxu0 0.0
    %8390 = vmatpush1.msra.mxu0 0.0
    %8391 = vmatprep.subr.mxu0 0.0
    %8392 = vmatpush1.msra.mxu0 0.0
    %8393 = vmatprep.mubr.f32.mxu0 0.0
    %8394 = vmatmul.mubr.f32.gmra.mrb[0].mxu0 %v8327
    %v8395 = vpop.f32.mrb[0].mxu0
    %v8396 = vadd.f32 0.0, %v8395
    %v8397 = vpop.f32.mrb[0].mxu0
    %8398 = vdwg.mxu0
    %s8399 = scalar_lea.vmem %s10, 960
    %v8400 = vld [vmem:[%s8399] sm:$0xff]
    %v8401 = vld [vmem:[%s8399 + $0x8] sm:$0xff]
    %v8402 = vld [vmem:[%s8399 + $0x10] sm:$0xff]
    %v8403 = vld [vmem:[%s8399 + $0x18] sm:$0xff]
    %v8404 = vld [vmem:[%s8399 + $0x20] sm:$0xff]
    %v8405 = vld [vmem:[%s8399 + $0x28] sm:$0xff]
    %v8406 = vld [vmem:[%s8399 + $0x30] sm:$0xff]
    %v8407 = vld [vmem:[%s8399 + $0x38] sm:$0xff]
    %v8409 = vsel %vm6037, %v8396, 0
    %8411 = vmatprep.subr.mxu0 0.0
    %8412 = vmatpush1.msra.mxu0 %v8400
    %8413 = vmatprep.subr.mxu0 0.0
    %8414 = vmatpush1.msra.mxu0 %v8401
    %8415 = vmatprep.subr.mxu0 0.0
    %8416 = vmatpush1.msra.mxu0 %v8402
    %8417 = vmatprep.subr.mxu0 0.0
    %8418 = vmatpush1.msra.mxu0 %v8403
    %8419 = vmatprep.subr.mxu0 0.0
    %8420 = vmatpush1.msra.mxu0 %v8404
    %8421 = vmatprep.subr.mxu0 0.0
    %8422 = vmatpush1.msra.mxu0 %v8405
    %8423 = vmatprep.subr.mxu0 0.0
    %8424 = vmatpush1.msra.mxu0 %v8406
    %8425 = vmatprep.subr.mxu0 0.0
    %8426 = vmatpush1.msra.mxu0 %v8407
    %8427 = vmatprep.subr.mxu0 0.0
    %8428 = vmatpush1.msra.mxu0 0.0
    %8429 = vmatprep.subr.mxu0 0.0
    %8430 = vmatpush1.msra.mxu0 0.0
    %8431 = vmatprep.subr.mxu0 0.0
    %8432 = vmatpush1.msra.mxu0 0.0
    %8433 = vmatprep.subr.mxu0 0.0
    %8434 = vmatpush1.msra.mxu0 0.0
    %8435 = vmatprep.subr.mxu0 0.0
    %8436 = vmatpush1.msra.mxu0 0.0
    %8437 = vmatprep.subr.mxu0 0.0
    %8438 = vmatpush1.msra.mxu0 0.0
    %8439 = vmatprep.subr.mxu0 0.0
    %8440 = vmatpush1.msra.mxu0 0.0
    %8441 = vmatprep.subr.mxu0 0.0
    %8442 = vmatpush1.msra.mxu0 0.0
    %8443 = vmatprep.subr.mxu0 0.0
    %8444 = vmatpush1.msra.mxu0 0.0
    %8445 = vmatprep.subr.mxu0 0.0
    %8446 = vmatpush1.msra.mxu0 0.0
    %8447 = vmatprep.subr.mxu0 0.0
    %8448 = vmatpush1.msra.mxu0 0.0
    %8449 = vmatprep.subr.mxu0 0.0
    %8450 = vmatpush1.msra.mxu0 0.0
    %8451 = vmatprep.subr.mxu0 0.0
    %8452 = vmatpush1.msra.mxu0 0.0
    %8453 = vmatprep.subr.mxu0 0.0
    %8454 = vmatpush1.msra.mxu0 0.0
    %8455 = vmatprep.subr.mxu0 0.0
    %8456 = vmatpush1.msra.mxu0 0.0
    %8457 = vmatprep.subr.mxu0 0.0
    %8458 = vmatpush1.msra.mxu0 0.0
    %8459 = vmatprep.subr.mxu0 0.0
    %8460 = vmatpush1.msra.mxu0 0.0
    %8461 = vmatprep.subr.mxu0 0.0
    %8462 = vmatpush1.msra.mxu0 0.0
    %8463 = vmatprep.subr.mxu0 0.0
    %8464 = vmatpush1.msra.mxu0 0.0
    %8465 = vmatprep.subr.mxu0 0.0
    %8466 = vmatpush1.msra.mxu0 0.0
    %8467 = vmatprep.subr.mxu0 0.0
    %8468 = vmatpush1.msra.mxu0 0.0
    %8469 = vmatprep.subr.mxu0 0.0
    %8470 = vmatpush1.msra.mxu0 0.0
    %8471 = vmatprep.subr.mxu0 0.0
    %8472 = vmatpush1.msra.mxu0 0.0
    %8473 = vmatprep.subr.mxu0 0.0
    %8474 = vmatpush1.msra.mxu0 0.0
    %8475 = vmatprep.mubr.f32.mxu0 0.0
    %8476 = vmatmul.mubr.f32.gmra.mrb[0].mxu0 %v8409
    %v8477 = vpop.f32.mrb[0].mxu0
    %v8478 = vadd.f32 0.0, %v8477
    %v8479 = vpop.f32.mrb[0].mxu0
    %8480 = vdwg.mxu0
    %v8481 = vadd.f32 %v8323, %v8478
    %vm8482 = vcmp.ge.f32.partialorder %v8481, 0.0
    %v8483 = vmul.f32 %v8481, 0.01
    %v8484 = vsel %vm8482, %v8481, %v8483
    %v8485 = vld [vmem:[%s12] sm:$0xff]
    %v8486 = vld [vmem:[%s12 + $0x8] sm:$0xff]
    %v8487 = vld [vmem:[%s12 + $0x10] sm:$0xff]
    %v8488 = vld [vmem:[%s12 + $0x18] sm:$0xff]
    %v8489 = vld [vmem:[%s12 + $0x20] sm:$0xff]
    %v8490 = vld [vmem:[%s12 + $0x28] sm:$0xff]
    %v8491 = vld [vmem:[%s12 + $0x30] sm:$0xff]
    %v8492 = vld [vmem:[%s12 + $0x38] sm:$0xff]
    %v8493 = vld [vmem:[%s12 + $0x40] sm:$0xff]
    %v8494 = vld [vmem:[%s12 + $0x48] sm:$0xff]
    %v8495 = vld [vmem:[%s12 + $0x50] sm:$0xff]
    %v8496 = vld [vmem:[%s12 + $0x58] sm:$0xff]
    %v8497 = vld [vmem:[%s12 + $0x60] sm:$0xff]
    %v8498 = vld [vmem:[%s12 + $0x68] sm:$0xff]
    %v8499 = vld [vmem:[%s12 + $0x70] sm:$0xff]
    %v8500 = vld [vmem:[%s12 + $0x78] sm:$0xff]
    %v8501 = vld [vmem:[%s13] sm:$0x1]
    %v8503 = vlaneseq
    %v8504 = vshrl.u32 %v8503, 7
    %v8505 = vsub.s32 0, %v8504
    %v8506 = vrot.slane %v8501, %v8505
    %8508 = vmatprep.subr.mxu0 0.0
    %8509 = vmatpush1.msra.mxu0 %v8485
    %8510 = vmatprep.subr.mxu0 0.0
    %8511 = vmatpush1.msra.mxu0 %v8486
    %8512 = vmatprep.subr.mxu0 0.0
    %8513 = vmatpush1.msra.mxu0 %v8487
    %8514 = vmatprep.subr.mxu0 0.0
    %8515 = vmatpush1.msra.mxu0 %v8488
    %8516 = vmatprep.subr.mxu0 0.0
    %8517 = vmatpush1.msra.mxu0 %v8489
    %8518 = vmatprep.subr.mxu0 0.0
    %8519 = vmatpush1.msra.mxu0 %v8490
    %8520 = vmatprep.subr.mxu0 0.0
    %8521 = vmatpush1.msra.mxu0 %v8491
    %8522 = vmatprep.subr.mxu0 0.0
    %8523 = vmatpush1.msra.mxu0 %v8492
    %8524 = vmatprep.subr.mxu0 0.0
    %8525 = vmatpush1.msra.mxu0 %v8493
    %8526 = vmatprep.subr.mxu0 0.0
    %8527 = vmatpush1.msra.mxu0 %v8494
    %8528 = vmatprep.subr.mxu0 0.0
    %8529 = vmatpush1.msra.mxu0 %v8495
    %8530 = vmatprep.subr.mxu0 0.0
    %8531 = vmatpush1.msra.mxu0 %v8496
    %8532 = vmatprep.subr.mxu0 0.0
    %8533 = vmatpush1.msra.mxu0 %v8497
    %8534 = vmatprep.subr.mxu0 0.0
    %8535 = vmatpush1.msra.mxu0 %v8498
    %8536 = vmatprep.subr.mxu0 0.0
    %8537 = vmatpush1.msra.mxu0 %v8499
    %8538 = vmatprep.subr.mxu0 0.0
    %8539 = vmatpush1.msra.mxu0 %v8500
    %8540 = vmatprep.subr.mxu0 0.0
    %8541 = vmatpush1.msra.mxu0 0.0
    %8542 = vmatprep.subr.mxu0 0.0
    %8543 = vmatpush1.msra.mxu0 0.0
    %8544 = vmatprep.subr.mxu0 0.0
    %8545 = vmatpush1.msra.mxu0 0.0
    %8546 = vmatprep.subr.mxu0 0.0
    %8547 = vmatpush1.msra.mxu0 0.0
    %8548 = vmatprep.subr.mxu0 0.0
    %8549 = vmatpush1.msra.mxu0 0.0
    %8550 = vmatprep.subr.mxu0 0.0
    %8551 = vmatpush1.msra.mxu0 0.0
    %8552 = vmatprep.subr.mxu0 0.0
    %8553 = vmatpush1.msra.mxu0 0.0
    %8554 = vmatprep.subr.mxu0 0.0
    %8555 = vmatpush1.msra.mxu0 0.0
    %8556 = vmatprep.subr.mxu0 0.0
    %8557 = vmatpush1.msra.mxu0 0.0
    %8558 = vmatprep.subr.mxu0 0.0
    %8559 = vmatpush1.msra.mxu0 0.0
    %8560 = vmatprep.subr.mxu0 0.0
    %8561 = vmatpush1.msra.mxu0 0.0
    %8562 = vmatprep.subr.mxu0 0.0
    %8563 = vmatpush1.msra.mxu0 0.0
    %8564 = vmatprep.subr.mxu0 0.0
    %8565 = vmatpush1.msra.mxu0 0.0
    %8566 = vmatprep.subr.mxu0 0.0
    %8567 = vmatpush1.msra.mxu0 0.0
    %8568 = vmatprep.subr.mxu0 0.0
    %8569 = vmatpush1.msra.mxu0 0.0
    %8570 = vmatprep.subr.mxu0 0.0
    %8571 = vmatpush1.msra.mxu0 0.0
    %8572 = vmatprep.mubr.f32.mxu0 0.0
    %8573 = vmatmul.mubr.f32.gmra.mrb[0].mxu0 %v8484
    %v8574 = vpop.f32.mrb[0].mxu0
    %v8575 = vadd.f32 %v8506, %v8574
    %v8576 = vpop.f32.mrb[0].mxu0
    %8577 = vdwg.mxu0
    %v8578 = vld [vmem:[%s14] sm:$0x3]
    %v8579 = vmul.f32 %v8575, 0.5
    %v8580 = vmul.f32 %v8579, 1.442695
    %v8581 = vpow.pop %v8580
    %8583 = vrot.lane.b32.xlu0 %v8581, 126
    %v8584 = vpop.permute.xlu0 %8583
    %v8586 = vmul.f32 %v8578, %v8584
    %v8587 = vadd.f32 %v8575, %v8586
    %vm8588 = vcmask 9216
    %8589 = vst.msk [vmem:[#allocation7] sm:$0x3] %vm8588, %v8575
    %8591 = vrot.lane.b32.xlu0 %v8575, 126
    %v8592 = vpop.permute.xlu0 %8591
    %8594 = vst.msk [vmem:[#allocation8] sm:$0x3] %vm8588, %v8592
    %8595 = vst.msk [vmem:[#allocation10] sm:$0x3] %vm8588, %v8587
    // Predicated region
    $region70: #{encoder_forward.1} parent=1 // pred_check
      _
    $region71: #{encoder_forward.1} parent=1 // pred_check_branch
      %8597 = sbr.rel (0) target = $region73
    $region72: #{encoder_forward.1} parent=1 // pred_region
      %s8599 = ssub.s32 32, 32
      %8600 = vsyncadd [#allocation4], %s8599
      %s8602 = sshll.u32 [#allocation7], 4
      %s8603 = int_to_ptr.vmem [resolvable:$true] %s8602
      %8605 = dma.vmem_to_hbm [thread:$0]  %s8603, 32, %s15, [#allocation4]
    $region73: #{encoder_forward.1} parent=1 // pred_fallthru
      _
    // Predicated region
    $region74: #{encoder_forward.1} parent=1 // pred_check
      _
    $region75: #{encoder_forward.1} parent=1 // pred_check_branch
      %8607 = sbr.rel (0) target = $region77
    $region76: #{encoder_forward.1} parent=1 // pred_region
      %s8609 = ssub.s32 32, 32
      %8610 = vsyncadd [#allocation9], %s8609
      %s8612 = sshll.u32 [#allocation8], 4
      %s8613 = int_to_ptr.vmem [resolvable:$true] %s8612
      %8615 = dma.vmem_to_hbm [thread:$0]  %s8613, 32, %s16, [#allocation9]
    $region77: #{encoder_forward.1} parent=1 // pred_fallthru
      _
    // Predicated region
    $region78: #{encoder_forward.1} parent=1 // pred_check
      _
    $region79: #{encoder_forward.1} parent=1 // pred_check_branch
      %8617 = sbr.rel (0) target = $region81
    $region80: #{encoder_forward.1} parent=1 // pred_region
      %s8619 = ssub.s32 32, 32
      %8620 = vsyncadd [#allocation9], %s8619
      %s8622 = sshll.u32 [#allocation10], 4
      %s8623 = int_to_ptr.vmem [resolvable:$true] %s8622
      %8625 = dma.vmem_to_hbm [thread:$0]  %s8623, 32, %s17, [#allocation9]
    $region81: #{encoder_forward.1} parent=1 // pred_fallthru
      _
    // Predicated region
    $region82: #{encoder_forward.1} parent=1 // pred_check
      _
    $region83: #{encoder_forward.1} parent=1 // pred_check_branch
      %8627 = sbr.rel (0) target = $region85
    $region84: #{encoder_forward.1} parent=1 // pred_region
      %8628 = dma.done [#allocation4], 32
    $region85: #{encoder_forward.1} parent=1 // pred_fallthru
      _
    // Predicated region
    $region86: #{encoder_forward.1} parent=1 // pred_check
      _
    $region87: #{encoder_forward.1} parent=1 // pred_check_branch
      %8630 = sbr.rel (0) target = $region89
    $region88: #{encoder_forward.1} parent=1 // pred_region
      %8631 = dma.done [#allocation9], 32
    $region89: #{encoder_forward.1} parent=1 // pred_fallthru
      _
    // Predicated region
    $region90: #{encoder_forward.1} parent=1 // pred_check
      _
    $region91: #{encoder_forward.1} parent=1 // pred_check_branch
      %8633 = sbr.rel (0) target = $region93
    $region92: #{encoder_forward.1} parent=1 // pred_region
      %8634 = dma.done [#allocation9], 32
    $region93: #{encoder_forward.1} parent=1 // pred_fallthru
      _
    %8635 = vsyncpa [#allocation3], 1
    %8636 = vsyncpa [#allocation6], 1
    %8637 = vsyncpa [#allocation4], 1
    %8638 = vsyncpa [#allocation9], 1

</llo_original>
